<compile_context>
chip_gen: v7x
topology: tpu7x:2x2x1
jax: 0.10.0
libtpu: 0.0.40
codegen_flags: <defaults>
</compile_context>

<pallas_src>
import functools

import jax
import jax.numpy as jnp
from jax.experimental import pallas as pl
from jax.experimental.pallas import tpu as pltpu


# ----------------------------- fused Pallas kernel ----------------------------------

def _fga_kernel(x_ref, w9fem_ref, bfem_ref, wca1_ref, wca2_ref, wsa_ref,
                w9sp1_ref, bsp1_ref, w9sp2_ref, bsp2_ref,
                opf_ref, opi_ref, wcf_ref, bcf_ref, wfin_ref, bfin_ref,
                m3_ref, m3f_ref, m7_ref,
                o_ref, *, B, C, H, W):
    f32 = jnp.float32
    HW = H * W
    op_dtype = opf_ref.dtype
    # taps enumerated row-major: t = (dy + r) * k + (dx + r)
    SH3 = [dy * W + dx for dy in (-1, 0, 1) for dx in (-1, 0, 1)]
    SH7 = [dy * W + dx for dy in range(-3, 4) for dx in range(-3, 4)]

    def mdot(a, b):
        return jnp.dot(a, b, preferred_element_type=f32)

    def shift(a, s):
        # a: (rows, HW) with the flattened spatial axis in the lane dim.
        # Returns a'[r, p] = a[r, (p + s) mod HW]; wrapped/out-of-image positions are
        # zeroed by the precomputed tap masks.
        if s == 0:
            return a
        return pltpu.roll(a, shift=(-s) % HW, axis=1)

    def conv3x3(parts, w9_ref, b_ref, mask_ref):
        # 3x3 'same' conv in the (channels, H*W) layout: 9 lane-rolled + masked copies of
        # the input are stacked along the channel (sublane) axis -> lane-dense, aligned
        # stores -> ONE (Cout, 9*Cin) x (9*Cin, HW) MXU matmul.
        taps = []
        for ti, s in enumerate(SH3):
            m = mask_ref[ti:ti + 1, :]                       # (1, HW)
            for a in parts:
                taps.append(shift(a, s) * m)
        col = jnp.concatenate(taps, axis=0)                  # (9*Cin, HW)
        return mdot(w9_ref[...], col) + b_ref[...]           # (Cout, HW)

    # ---- FeatureExtractionModule: conv+BN+ReLU -> channel attention -----------------
    t_list, avg_rows, max_rows = [], [], []
    for b in range(B):
        xb = x_ref[b]                                                     # (C, HW)
        t = jnp.maximum(conv3x3([xb], w9fem_ref, bfem_ref, m3_ref), 0.0)
        y = jnp.mean(t, axis=1, keepdims=True)                            # (C, 1)
        h = jnp.maximum(mdot(wca1_ref[...], y), 0.0)                      # (hid, 1)
        amp = jax.nn.sigmoid(mdot(wca2_ref[...], h))                      # (C, 1)
        t = t * amp
        t_list.append(t)
        avg_rows.append(jnp.mean(t, axis=0, keepdims=True))               # (1, HW)
        max_rows.append(jnp.max(t, axis=0, keepdims=True))                # (1, HW)

    # ---- Spatial attention: direct 7x7 conv on [avg, max], batch-fused over B --------
    am = jnp.concatenate(avg_rows + max_rows, axis=0)                     # (2B, HW)
    pad_rows = (-2 * B) % 8
    if pad_rows:
        am = jnp.concatenate([am, jnp.zeros((pad_rows, HW), f32)], axis=0)
    attn = jnp.zeros((B, HW), f32)
    for ti, s in enumerate(SH7):
        r = shift(am, s)
        attn = attn + m7_ref[ti:ti + 1, :] * (wsa_ref[0, ti] * r[0:B, :] +
                                              wsa_ref[1, ti] * r[B:2 * B, :])
    attn = jax.nn.sigmoid(attn)                                           # (B, HW)

    # dropout == identity (eval); FEM residual
    fem_list = [t_list[b] * attn[b:b + 1, :] + x_ref[b] for b in range(B)]

    # ---- SpectralModule ---------------------------------------------------------------
    v_all = jnp.concatenate(
        [jnp.maximum(conv3x3([fem_list[b]], w9sp1_ref, bsp1_ref, m3_ref), 0.0)
         for b in range(B)], axis=0)                                      # (B*C, HW)

    # rfft2: ONE dense matmul against the stacked [Re | Im] operator (batch+channel fused
    # along the MXU M dim; frequency grid padded Wf -> W so lanes stay 128-aligned).
    fr = mdot(v_all.astype(op_dtype), opf_ref[...])                       # (B*C, 2*HW)
    re_all = fr[:, 0:HW]
    im_all = fr[:, HW:2 * HW]

    # conv2 on the channel-concatenated [Re, Im] frequency maps ('same' conv on the
    # (H, Wf) grid emulated by the m3f masks on the padded (H, W) grid).
    v2_all = jnp.concatenate(
        [jnp.maximum(conv3x3([re_all[b * C:(b + 1) * C, :],
                              im_all[b * C:(b + 1) * C, :]],
                             w9sp2_ref, bsp2_ref, m3f_ref), 0.0)
         for b in range(B)], axis=0)                                      # (B*C, HW)

    # irfft2: ONE dense matmul (Hermitian fold + backward 1/(H*W) norm folded into the
    # operator; rows for padded frequency columns are zero, so garbage there is ignored).
    z_all = mdot(v2_all.astype(op_dtype), opi_ref[...])                   # (B*C, HW)

    # conv_final (1x1) + spectral residual, then FGA final_conv (1x1).
    for b in range(B):
        z = z_all[b * C:(b + 1) * C, :]
        sp = mdot(wcf_ref[...], z) + bcf_ref[...] + fem_list[b]
        out = mdot(wfin_ref[...], sp) + bfin_ref[...]
        o_ref[b] = out.astype(o_ref.dtype)


# ----------------------------- operator / mask preparation ---------------------------

def _dft_operators(H, W):
    """Dense rfft2 / irfft2 operators acting on the flattened spatial axis.

    The frequency grid is zero-padded from Wf=W//2+1 to W columns so that the flattened
    frequency axis has the same length (H*W) as the spatial one (lane-dim multiple of 128).
    Returns:
      op_fwd: (HW, 2*HW)  act @ op_fwd -> [Re | Im]
      op_inv: (HW, HW)    act @ op_inv -> irfft2 (padded freq columns have zero rows)
    """
    f32 = jnp.float32
    Wf = W // 2 + 1
    HW = H * W
    idx = jnp.arange(HW)
    yy = (idx // W).astype(f32)                       # spatial row / frequency row (ky)
    xx = (idx % W).astype(f32)                        # spatial col / frequency col (kx)
    # theta[p, q] = 2*pi*(ky_q*y_p/H + kx_q*x_p/W); symmetric as a matrix.
    theta = 2.0 * jnp.pi * (jnp.outer(yy, yy) / H + jnp.outer(xx, xx) / W)
    validf = (idx % W < Wf).astype(f32)
    op_re = jnp.cos(theta) * validf[None, :]
    op_im = -jnp.sin(theta) * validf[None, :]
    op_fwd = jnp.concatenate([op_re, op_im], axis=1)  # (HW, 2*HW)
    kx = idx % W
    d = jnp.where((kx == 0) | (kx == W // 2), 1.0, 2.0).astype(f32) * validf / float(H * W)
    op_inv = d[:, None] * jnp.cos(theta)              # (HW_freq, HW_spatial)
    return op_fwd, op_inv


def _tap_masks(H, W, ksize, w_valid):
    """(k*k, H*W) 0/1 masks: tap (dy,dx) at flattened p=(y,x) is valid iff
    0<=y+dy<H and 0<=x+dx<w_valid (w_valid<W emulates the narrower rfft frequency grid)."""
    r = ksize // 2
    y = jnp.arange(H)[:, None]
    x = jnp.arange(W)[None, :]
    rows = []
    for dy in range(-r, r + 1):
        for dx in range(-r, r + 1):
            ok = (y + dy >= 0) & (y + dy < H) & (x + dx >= 0) & (x + dx < w_valid)
            rows.append(ok.reshape(-1))
    return jnp.stack(rows).astype(jnp.float32)


# ----------------------------- full FGA forward --------------------------------------

def fga_forward_pallas(x_nchw, p, op_dtype=jnp.bfloat16):
    B, C, H, W = x_nchw.shape
    assert W % 2 == 0, "irfft width reconstruction assumes even W"
    HW = H * W
    f32 = jnp.float32
    bn = (1.0 + 1e-5) ** -0.5          # eval-mode BatchNorm fold (running stats at init)

    def conv_w9(w_hwio, cin):
        # (3,3,cin,C) HWIO -> (C, 9*cin) matching the kernel's tap-major im2col row order.
        return jnp.transpose(w_hwio.reshape(9, cin, C), (2, 0, 1)).reshape(C, 9 * cin)

    w9_fem = conv_w9(p['w_fem'], C) * bn
    b_fem = (p['b_fem'] * bn).reshape(C, 1)
    w9_sp1 = conv_w9(p['w_sp1'], C) * bn
    b_sp1 = (p['b_sp1'] * bn).reshape(C, 1)
    w9_sp2 = conv_w9(p['w_sp2'], 2 * C) * bn
    b_sp2 = (p['b_sp2'] * bn).reshape(C, 1)
    wca1_t = p['w_ca1'].T                              # (hid, C)
    wca2_t = p['w_ca2'].T                              # (C, hid)
    w_sa = p['w_sa'].reshape(2, 49).astype(f32)        # SMEM scalars for the 7x7 SA conv
    w_cf_t = p['w_cf'].T
    b_cf = p['b_cf'].reshape(C, 1)
    w_fin_t = p['w_fin'].T
    b_fin = p['b_fin'].reshape(C, 1)

    op_fwd, op_inv = _dft_operators(H, W)
    op_fwd = op_fwd.astype(op_dtype)
    op_inv = op_inv.astype(op_dtype)

    mask3 = _tap_masks(H, W, 3, W)
    mask3f = _tap_masks(H, W, 3, W // 2 + 1)
    mask7 = _tap_masks(H, W, 7, W)

    # NCHW is already (B, C, H*W): pure reshape, no layout transpose.
    x_flat = x_nchw.reshape(B, C, HW).astype(f32)

    operands = (x_flat, w9_fem, b_fem, wca1_t, wca2_t, w_sa, w9_sp1, b_sp1,
                w9_sp2, b_sp2, op_fwd, op_inv, w_cf_t, b_cf, w_fin_t, b_fin,
                mask3, mask3f, mask7)

    vmem = pl.BlockSpec(memory_space=pltpu.MemorySpace.VMEM)
    smem = pl.BlockSpec(memory_space=pltpu.MemorySpace.SMEM)
    in_specs = [vmem] * 5 + [smem] + [vmem] * 13

    # Derive the scoped-VMEM limit from actual operand footprints + a generous estimate
    # for compiler-managed temporaries (im2col stacks, DFT outputs), instead of hardcoding.
    operand_bytes = sum(int(a.size) * a.dtype.itemsize for a in operands)
    temp_bytes = (2 * 9 * 2 * C * HW + 6 * B * C * HW) * 4
    vmem_limit = int(min(max(4 * (operand_bytes + temp_bytes), 32 << 20), 64 << 20))

    out = pl.pallas_call(
        functools.partial(_fga_kernel, B=B, C=C, H=H, W=W),
        out_shape=jax.ShapeDtypeStruct((B, C, HW), f32),
        in_specs=in_specs,
        out_specs=vmem,
        compiler_params=pltpu.CompilerParams(vmem_limit_bytes=vmem_limit),
    )(*operands)

    return out.reshape(B, C, H, W)


# ----------------------------- pure-JAX reference (for verification) -----------------

def fga_forward_ref(x, p):
    bn = (1.0 + 1e-5) ** -0.5
    hp = jax.lax.Precision.HIGHEST

    def conv3(xn, w_hwio, b):
        w = jnp.transpose(w_hwio, (3, 2, 0, 1))
        y = jax.lax.conv_general_dilated(xn, w, (1, 1), [(1, 1), (1, 1)],
                                         dimension_numbers=('NCHW', 'OIHW', 'NCHW'),
                                         precision=hp)
        return y + b.reshape(1, -1, 1, 1)

    res = x
    t = jax.nn.relu(conv3(x, p['w_fem'], p['b_fem']) * bn)
    y = jnp.mean(t, axis=(2, 3))
    y = jax.nn.relu(jnp.dot(y, p['w_ca1'], precision=hp))
    y = jax.nn.sigmoid(jnp.dot(y, p['w_ca2'], precision=hp))
    t = t * y[:, :, None, None]
    sm = jnp.concatenate([jnp.mean(t, axis=1, keepdims=True),
                          jnp.max(t, axis=1, keepdims=True)], axis=1)
    a = jax.lax.conv_general_dilated(sm, p['w_sa'][None], (1, 1), [(3, 3), (3, 3)],
                                     dimension_numbers=('NCHW', 'OIHW', 'NCHW'),
                                     precision=hp)
    fem = t * jax.nn.sigmoid(a) + res

    v = jax.nn.relu(conv3(fem, p['w_sp1'], p['b_sp1']) * bn)
    F = jnp.fft.rfft2(v, axes=(-2, -1))
    comb = jnp.concatenate([jnp.real(F), jnp.imag(F)], axis=1).astype(jnp.float32)
    v2 = jax.nn.relu(conv3(comb, p['w_sp2'], p['b_sp2']) * bn)
    ir = jnp.fft.irfft2(v2, axes=(-2, -1))
    cf = jnp.einsum('bchw,cd->bdhw', ir, p['w_cf'], precision=hp) + p['b_cf'].reshape(1, -1, 1, 1)
    sp = cf + fem
    return jnp.einsum('bchw,cd->bdhw', sp, p['w_fin'], precision=hp) + p['b_fin'].reshape(1, -1, 1, 1)


# ----------------------------- main ---------------------------------------------------

if __name__ == "__main__":
    B, C, H, W = 2, 32, 16, 16          # in_channels must be >= 16 (reduction=16 in ChannelAttention)
    hid = C // 16
    key = jax.random.PRNGKey(0)
    ks = jax.random.split(key, 13)
    p = {
        'w_fem': jax.random.normal(ks[0], (3, 3, C, C), jnp.float32) * (2.0 / (9 * C)) ** 0.5,
        'b_fem': jnp.zeros((C,), jnp.float32),
        'w_ca1': jax.random.normal(ks[1], (C, hid), jnp.float32) / float(C) ** 0.5,
        'w_ca2': jax.random.normal(ks[2], (hid, C), jnp.float32) / float(hid) ** 0.5,
        'w_sa':  jax.random.normal(ks[3], (2, 7, 7), jnp.float32) / 98.0 ** 0.5,
        'w_sp1': jax.random.normal(ks[4], (3, 3, C, C), jnp.float32) * (2.0 / (9 * C)) ** 0.5,
        'b_sp1': jax.random.normal(ks[5], (C,), jnp.float32) * 0.05,
        'w_sp2': jax.random.normal(ks[6], (3, 3, 2 * C, C), jnp.float32) * (2.0 / (9 * 2 * C)) ** 0.5,
        'b_sp2': jax.random.normal(ks[7], (C,), jnp.float32) * 0.05,
        'w_cf':  jax.random.normal(ks[8], (C, C), jnp.float32) * (2.0 / C) ** 0.5,
        'b_cf':  jax.random.normal(ks[9], (C,), jnp.float32) * 0.05,
        'w_fin': jax.random.normal(ks[10], (C, C), jnp.float32) / float(C) ** 0.5,
        'b_fin': jax.random.normal(ks[11], (C,), jnp.float32) * 0.05,
    }
    x = jax.random.normal(ks[12], (B, C, H, W), jnp.float32)

    ref = fga_forward_ref(x, p)

    # f32-operator variant: validates the kernel math against the FFT reference.
    out_f32 = jax.block_until_ready(
        jax.jit(functools.partial(fga_forward_pallas, op_dtype=jnp.float32))(x, p))
    err_f32 = float(jnp.max(jnp.abs(out_f32 - ref)))
    if err_f32 > 1e-1:
        raise AssertionError(f"f32-operator Pallas output mismatch vs reference: max abs err = {err_f32}")

    # Default bf16-operator variant (MXU-native rate, f32 accumulation).  Tolerance covers
    # the expected bf16 quantization noise of the dense DFT chain (outputs are O(10)).
    out = jax.block_until_ready(
        jax.jit(functools.partial(fga_forward_pallas, op_dtype=jnp.bfloat16))(x, p))
    assert out.shape == (B, C, H, W) and out.dtype == jnp.float32
    err_bf16 = float(jnp.max(jnp.abs(out - ref)))
    if err_bf16 > 2.5e-1:
        raise AssertionError(f"bf16-operator Pallas output mismatch vs reference: max abs err = {err_bf16}")

    print("KERNEL_OK")
</pallas_src>

<mosaic_0001>
module attributes {stable_mosaic.version = 11 : i64} {
  func.func @_fga_kernel(%arg0: memref<2x32x256xf32, #tpu.memory_space<vmem>>, %arg1: memref<32x288xf32, #tpu.memory_space<vmem>>, %arg2: memref<32x1xf32, #tpu.memory_space<vmem>>, %arg3: memref<2x32xf32, #tpu.memory_space<vmem>>, %arg4: memref<32x2xf32, #tpu.memory_space<vmem>>, %arg5: memref<2x49xf32, #tpu.memory_space<smem>>, %arg6: memref<32x288xf32, #tpu.memory_space<vmem>>, %arg7: memref<32x1xf32, #tpu.memory_space<vmem>>, %arg8: memref<32x576xf32, #tpu.memory_space<vmem>>, %arg9: memref<32x1xf32, #tpu.memory_space<vmem>>, %arg10: memref<256x512xf32, #tpu.memory_space<vmem>>, %arg11: memref<256x256xf32, #tpu.memory_space<vmem>>, %arg12: memref<32x32xf32, #tpu.memory_space<vmem>>, %arg13: memref<32x1xf32, #tpu.memory_space<vmem>>, %arg14: memref<32x32xf32, #tpu.memory_space<vmem>>, %arg15: memref<32x1xf32, #tpu.memory_space<vmem>>, %arg16: memref<9x256xf32, #tpu.memory_space<vmem>>, %arg17: memref<9x256xf32, #tpu.memory_space<vmem>>, %arg18: memref<49x256xf32, #tpu.memory_space<vmem>>, %arg19: memref<2x32x256xf32, #tpu.memory_space<vmem>>) attributes {dimension_semantics = [], scalar_prefetch = 0 : i64, scratch_operands = 0 : i64, tpu.core_type = #tpu.core_type<tc>} {
    %c0 = arith.constant 0 : index
    %c0_0 = arith.constant 0 : index
    %c0_1 = arith.constant 0 : index
    %0 = vector.load %arg0[%c0, %c0_0, %c0_1] : memref<2x32x256xf32, #tpu.memory_space<vmem>>, vector<1x32x256xf32>
    %1 = vector.shape_cast %0 : vector<1x32x256xf32> to vector<32x256xf32>
    %c0_2 = arith.constant 0 : index
    %c0_3 = arith.constant 0 : index
    %2 = vector.load %arg16[%c0_2, %c0_3] : memref<9x256xf32, #tpu.memory_space<vmem>>, vector<1x256xf32>
    %c17_i32 = arith.constant 17 : i32
    %3 = tpu.dynamic_rotate %1 by %c17_i32 dim 1 : vector<32x256xf32>, i32 -> vector<32x256xf32>
    %4 = vector.broadcast %2 : vector<1x256xf32> to vector<32x256xf32>
    %5 = arith.mulf %3, %4 : vector<32x256xf32>
    %c1 = arith.constant 1 : index
    %c0_4 = arith.constant 0 : index
    %6 = vector.load %arg16[%c1, %c0_4] : memref<9x256xf32, #tpu.memory_space<vmem>>, vector<1x256xf32>
    %c16_i32 = arith.constant 16 : i32
    %7 = tpu.dynamic_rotate %1 by %c16_i32 dim 1 : vector<32x256xf32>, i32 -> vector<32x256xf32>
    %8 = vector.broadcast %6 : vector<1x256xf32> to vector<32x256xf32>
    %9 = arith.mulf %7, %8 : vector<32x256xf32>
    %c2 = arith.constant 2 : index
    %c0_5 = arith.constant 0 : index
    %10 = vector.load %arg16[%c2, %c0_5] : memref<9x256xf32, #tpu.memory_space<vmem>>, vector<1x256xf32>
    %c15_i32 = arith.constant 15 : i32
    %11 = tpu.dynamic_rotate %1 by %c15_i32 dim 1 : vector<32x256xf32>, i32 -> vector<32x256xf32>
    %12 = vector.broadcast %10 : vector<1x256xf32> to vector<32x256xf32>
    %13 = arith.mulf %11, %12 : vector<32x256xf32>
    %c3 = arith.constant 3 : index
    %c0_6 = arith.constant 0 : index
    %14 = vector.load %arg16[%c3, %c0_6] : memref<9x256xf32, #tpu.memory_space<vmem>>, vector<1x256xf32>
    %c1_i32 = arith.constant 1 : i32
    %15 = tpu.dynamic_rotate %1 by %c1_i32 dim 1 : vector<32x256xf32>, i32 -> vector<32x256xf32>
    %16 = vector.broadcast %14 : vector<1x256xf32> to vector<32x256xf32>
    %17 = arith.mulf %15, %16 : vector<32x256xf32>
    %c4 = arith.constant 4 : index
    %c0_7 = arith.constant 0 : index
    %18 = vector.load %arg16[%c4, %c0_7] : memref<9x256xf32, #tpu.memory_space<vmem>>, vector<1x256xf32>
    %19 = vector.broadcast %18 : vector<1x256xf32> to vector<32x256xf32>
    %20 = arith.mulf %1, %19 : vector<32x256xf32>
    %c5 = arith.constant 5 : index
    %c0_8 = arith.constant 0 : index
    %21 = vector.load %arg16[%c5, %c0_8] : memref<9x256xf32, #tpu.memory_space<vmem>>, vector<1x256xf32>
    %c255_i32 = arith.constant 255 : i32
    %22 = tpu.dynamic_rotate %1 by %c255_i32 dim 1 : vector<32x256xf32>, i32 -> vector<32x256xf32>
    %23 = vector.broadcast %21 : vector<1x256xf32> to vector<32x256xf32>
    %24 = arith.mulf %22, %23 : vector<32x256xf32>
    %c6 = arith.constant 6 : index
    %c0_9 = arith.constant 0 : index
    %25 = vector.load %arg16[%c6, %c0_9] : memref<9x256xf32, #tpu.memory_space<vmem>>, vector<1x256xf32>
    %c241_i32 = arith.constant 241 : i32
    %26 = tpu.dynamic_rotate %1 by %c241_i32 dim 1 : vector<32x256xf32>, i32 -> vector<32x256xf32>
    %27 = vector.broadcast %25 : vector<1x256xf32> to vector<32x256xf32>
    %28 = arith.mulf %26, %27 : vector<32x256xf32>
    %c7 = arith.constant 7 : index
    %c0_10 = arith.constant 0 : index
    %29 = vector.load %arg16[%c7, %c0_10] : memref<9x256xf32, #tpu.memory_space<vmem>>, vector<1x256xf32>
    %c240_i32 = arith.constant 240 : i32
    %30 = tpu.dynamic_rotate %1 by %c240_i32 dim 1 : vector<32x256xf32>, i32 -> vector<32x256xf32>
    %31 = vector.broadcast %29 : vector<1x256xf32> to vector<32x256xf32>
    %32 = arith.mulf %30, %31 : vector<32x256xf32>
    %c8 = arith.constant 8 : index
    %c0_11 = arith.constant 0 : index
    %33 = vector.load %arg16[%c8, %c0_11] : memref<9x256xf32, #tpu.memory_space<vmem>>, vector<1x256xf32>
    %c239_i32 = arith.constant 239 : i32
    %34 = tpu.dynamic_rotate %1 by %c239_i32 dim 1 : vector<32x256xf32>, i32 -> vector<32x256xf32>
    %35 = vector.broadcast %33 : vector<1x256xf32> to vector<32x256xf32>
    %36 = arith.mulf %34, %35 : vector<32x256xf32>
    %37 = tpu.concatenate %5, %9, %13, %17, %20, %24, %28, %32, %36 in 0 : vector<32x256xf32>, vector<32x256xf32>, vector<32x256xf32>, vector<32x256xf32>, vector<32x256xf32>, vector<32x256xf32>, vector<32x256xf32>, vector<32x256xf32>, vector<32x256xf32> -> vector<288x256xf32>
    %c0_12 = arith.constant 0 : index
    %c0_13 = arith.constant 0 : index
    %38 = vector.load %arg1[%c0_12, %c0_13] : memref<32x288xf32, #tpu.memory_space<vmem>>, vector<32x288xf32>
    %cst = arith.constant dense<0.000000e+00> : vector<32x256xf32>
    %39 = tpu.matmul %38, %37, %cst {dimension_numbers = #tpu.dot_dimension_numbers<[1], [0], [0], [1], [0, 0, 1, 1], [], []>} : vector<32x288xf32>, vector<288x256xf32>, vector<32x256xf32> -> vector<32x256xf32>
    %c0_14 = arith.constant 0 : index
    %c0_15 = arith.constant 0 : index
    %40 = vector.load %arg2[%c0_14, %c0_15] : memref<32x1xf32, #tpu.memory_space<vmem>>, vector<32x1xf32>
    %41 = vector.broadcast %40 : vector<32x1xf32> to vector<32x256xf32>
    %42 = arith.addf %39, %41 : vector<32x256xf32>
    %cst_16 = arith.constant 0.000000e+00 : f32
    %43 = vector.broadcast %cst_16 : f32 to vector<32x256xf32>
    %44 = arith.maximumf %42, %43 : vector<32x256xf32>
    %cst_17 = arith.constant dense<0.000000e+00> : vector<32xf32>
    %45 = vector.multi_reduction <add>, %44, %cst_17 [1] : vector<32x256xf32> to vector<32xf32>
    %46 = vector.shape_cast %45 : vector<32xf32> to vector<32x1xf32>
    %cst_18 = arith.constant 2.560000e+02 : f32
    %47 = vector.broadcast %cst_18 : f32 to vector<32x1xf32>
    %48 = arith.divf %46, %47 : vector<32x1xf32>
    %c0_19 = arith.constant 0 : index
    %c0_20 = arith.constant 0 : index
    %49 = vector.load %arg3[%c0_19, %c0_20] : memref<2x32xf32, #tpu.memory_space<vmem>>, vector<2x32xf32>
    %cst_21 = arith.constant dense<0.000000e+00> : vector<2x1xf32>
    %50 = tpu.matmul %49, %48, %cst_21 {dimension_numbers = #tpu.dot_dimension_numbers<[1], [0], [0], [1], [0, 0, 1, 1], [], []>} : vector<2x32xf32>, vector<32x1xf32>, vector<2x1xf32> -> vector<2x1xf32>
    %cst_22 = arith.constant 0.000000e+00 : f32
    %51 = vector.broadcast %cst_22 : f32 to vector<2x1xf32>
    %52 = arith.maximumf %50, %51 : vector<2x1xf32>
    %c0_23 = arith.constant 0 : index
    %c0_24 = arith.constant 0 : index
    %53 = vector.load %arg4[%c0_23, %c0_24] : memref<32x2xf32, #tpu.memory_space<vmem>>, vector<32x2xf32>
    %cst_25 = arith.constant dense<0.000000e+00> : vector<32x1xf32>
    %54 = tpu.matmul %53, %52, %cst_25 {dimension_numbers = #tpu.dot_dimension_numbers<[1], [0], [0], [1], [0, 0, 1, 1], [], []>} : vector<32x2xf32>, vector<2x1xf32>, vector<32x1xf32> -> vector<32x1xf32>
    %55 = arith.negf %54 : vector<32x1xf32>
    %56 = math.exp %55 : vector<32x1xf32>
    %cst_26 = arith.constant 1.000000e+00 : f32
    %57 = vector.broadcast %cst_26 : f32 to vector<32x1xf32>
    %58 = arith.addf %57, %56 : vector<32x1xf32>
    %59 = arith.divf %57, %58 : vector<32x1xf32>
    %60 = vector.broadcast %59 : vector<32x1xf32> to vector<32x256xf32>
    %61 = arith.mulf %44, %60 : vector<32x256xf32>
    %cst_27 = arith.constant dense<0.000000e+00> : vector<256xf32>
    %62 = vector.multi_reduction <add>, %61, %cst_27 [0] : vector<32x256xf32> to vector<256xf32>
    %63 = vector.shape_cast %62 : vector<256xf32> to vector<1x256xf32>
    %cst_28 = arith.constant 3.200000e+01 : f32
    %64 = vector.broadcast %cst_28 : f32 to vector<1x256xf32>
    %65 = arith.divf %63, %64 : vector<1x256xf32>
    %cst_29 = arith.constant dense<0xFF800000> : vector<256xf32>
    %66 = vector.multi_reduction <maximumf>, %61, %cst_29 [0] : vector<32x256xf32> to vector<256xf32>
    %67 = vector.shape_cast %66 : vector<256xf32> to vector<1x256xf32>
    %c1_30 = arith.constant 1 : index
    %c0_31 = arith.constant 0 : index
    %c0_32 = arith.constant 0 : index
    %68 = vector.load %arg0[%c1_30, %c0_31, %c0_32] : memref<2x32x256xf32, #tpu.memory_space<vmem>>, vector<1x32x256xf32>
    %69 = vector.shape_cast %68 : vector<1x32x256xf32> to vector<32x256xf32>
    %c0_33 = arith.constant 0 : index
    %c0_34 = arith.constant 0 : index
    %70 = vector.load %arg16[%c0_33, %c0_34] : memref<9x256xf32, #tpu.memory_space<vmem>>, vector<1x256xf32>
    %c17_i32_35 = arith.constant 17 : i32
    %71 = tpu.dynamic_rotate %69 by %c17_i32_35 dim 1 : vector<32x256xf32>, i32 -> vector<32x256xf32>
    %72 = vector.broadcast %70 : vector<1x256xf32> to vector<32x256xf32>
    %73 = arith.mulf %71, %72 : vector<32x256xf32>
    %c1_36 = arith.constant 1 : index
    %c0_37 = arith.constant 0 : index
    %74 = vector.load %arg16[%c1_36, %c0_37] : memref<9x256xf32, #tpu.memory_space<vmem>>, vector<1x256xf32>
    %c16_i32_38 = arith.constant 16 : i32
    %75 = tpu.dynamic_rotate %69 by %c16_i32_38 dim 1 : vector<32x256xf32>, i32 -> vector<32x256xf32>
    %76 = vector.broadcast %74 : vector<1x256xf32> to vector<32x256xf32>
    %77 = arith.mulf %75, %76 : vector<32x256xf32>
    %c2_39 = arith.constant 2 : index
    %c0_40 = arith.constant 0 : index
    %78 = vector.load %arg16[%c2_39, %c0_40] : memref<9x256xf32, #tpu.memory_space<vmem>>, vector<1x256xf32>
    %c15_i32_41 = arith.constant 15 : i32
    %79 = tpu.dynamic_rotate %69 by %c15_i32_41 dim 1 : vector<32x256xf32>, i32 -> vector<32x256xf32>
    %80 = vector.broadcast %78 : vector<1x256xf32> to vector<32x256xf32>
    %81 = arith.mulf %79, %80 : vector<32x256xf32>
    %c3_42 = arith.constant 3 : index
    %c0_43 = arith.constant 0 : index
    %82 = vector.load %arg16[%c3_42, %c0_43] : memref<9x256xf32, #tpu.memory_space<vmem>>, vector<1x256xf32>
    %c1_i32_44 = arith.constant 1 : i32
    %83 = tpu.dynamic_rotate %69 by %c1_i32_44 dim 1 : vector<32x256xf32>, i32 -> vector<32x256xf32>
    %84 = vector.broadcast %82 : vector<1x256xf32> to vector<32x256xf32>
    %85 = arith.mulf %83, %84 : vector<32x256xf32>
    %c4_45 = arith.constant 4 : index
    %c0_46 = arith.constant 0 : index
    %86 = vector.load %arg16[%c4_45, %c0_46] : memref<9x256xf32, #tpu.memory_space<vmem>>, vector<1x256xf32>
    %87 = vector.broadcast %86 : vector<1x256xf32> to vector<32x256xf32>
    %88 = arith.mulf %69, %87 : vector<32x256xf32>
    %c5_47 = arith.constant 5 : index
    %c0_48 = arith.constant 0 : index
    %89 = vector.load %arg16[%c5_47, %c0_48] : memref<9x256xf32, #tpu.memory_space<vmem>>, vector<1x256xf32>
    %c255_i32_49 = arith.constant 255 : i32
    %90 = tpu.dynamic_rotate %69 by %c255_i32_49 dim 1 : vector<32x256xf32>, i32 -> vector<32x256xf32>
    %91 = vector.broadcast %89 : vector<1x256xf32> to vector<32x256xf32>
    %92 = arith.mulf %90, %91 : vector<32x256xf32>
    %c6_50 = arith.constant 6 : index
    %c0_51 = arith.constant 0 : index
    %93 = vector.load %arg16[%c6_50, %c0_51] : memref<9x256xf32, #tpu.memory_space<vmem>>, vector<1x256xf32>
    %c241_i32_52 = arith.constant 241 : i32
    %94 = tpu.dynamic_rotate %69 by %c241_i32_52 dim 1 : vector<32x256xf32>, i32 -> vector<32x256xf32>
    %95 = vector.broadcast %93 : vector<1x256xf32> to vector<32x256xf32>
    %96 = arith.mulf %94, %95 : vector<32x256xf32>
    %c7_53 = arith.constant 7 : index
    %c0_54 = arith.constant 0 : index
    %97 = vector.load %arg16[%c7_53, %c0_54] : memref<9x256xf32, #tpu.memory_space<vmem>>, vector<1x256xf32>
    %c240_i32_55 = arith.constant 240 : i32
    %98 = tpu.dynamic_rotate %69 by %c240_i32_55 dim 1 : vector<32x256xf32>, i32 -> vector<32x256xf32>
    %99 = vector.broadcast %97 : vector<1x256xf32> to vector<32x256xf32>
    %100 = arith.mulf %98, %99 : vector<32x256xf32>
    %c8_56 = arith.constant 8 : index
    %c0_57 = arith.constant 0 : index
    %101 = vector.load %arg16[%c8_56, %c0_57] : memref<9x256xf32, #tpu.memory_space<vmem>>, vector<1x256xf32>
    %c239_i32_58 = arith.constant 239 : i32
    %102 = tpu.dynamic_rotate %69 by %c239_i32_58 dim 1 : vector<32x256xf32>, i32 -> vector<32x256xf32>
    %103 = vector.broadcast %101 : vector<1x256xf32> to vector<32x256xf32>
    %104 = arith.mulf %102, %103 : vector<32x256xf32>
    %105 = tpu.concatenate %73, %77, %81, %85, %88, %92, %96, %100, %104 in 0 : vector<32x256xf32>, vector<32x256xf32>, vector<32x256xf32>, vector<32x256xf32>, vector<32x256xf32>, vector<32x256xf32>, vector<32x256xf32>, vector<32x256xf32>, vector<32x256xf32> -> vector<288x256xf32>
    %c0_59 = arith.constant 0 : index
    %c0_60 = arith.constant 0 : index
    %106 = vector.load %arg1[%c0_59, %c0_60] : memref<32x288xf32, #tpu.memory_space<vmem>>, vector<32x288xf32>
    %cst_61 = arith.constant dense<0.000000e+00> : vector<32x256xf32>
    %107 = tpu.matmul %106, %105, %cst_61 {dimension_numbers = #tpu.dot_dimension_numbers<[1], [0], [0], [1], [0, 0, 1, 1], [], []>} : vector<32x288xf32>, vector<288x256xf32>, vector<32x256xf32> -> vector<32x256xf32>
    %c0_62 = arith.constant 0 : index
    %c0_63 = arith.constant 0 : index
    %108 = vector.load %arg2[%c0_62, %c0_63] : memref<32x1xf32, #tpu.memory_space<vmem>>, vector<32x1xf32>
    %109 = vector.broadcast %108 : vector<32x1xf32> to vector<32x256xf32>
    %110 = arith.addf %107, %109 : vector<32x256xf32>
    %cst_64 = arith.constant 0.000000e+00 : f32
    %111 = vector.broadcast %cst_64 : f32 to vector<32x256xf32>
    %112 = arith.maximumf %110, %111 : vector<32x256xf32>
    %cst_65 = arith.constant dense<0.000000e+00> : vector<32xf32>
    %113 = vector.multi_reduction <add>, %112, %cst_65 [1] : vector<32x256xf32> to vector<32xf32>
    %114 = vector.shape_cast %113 : vector<32xf32> to vector<32x1xf32>
    %cst_66 = arith.constant 2.560000e+02 : f32
    %115 = vector.broadcast %cst_66 : f32 to vector<32x1xf32>
    %116 = arith.divf %114, %115 : vector<32x1xf32>
    %c0_67 = arith.constant 0 : index
    %c0_68 = arith.constant 0 : index
    %117 = vector.load %arg3[%c0_67, %c0_68] : memref<2x32xf32, #tpu.memory_space<vmem>>, vector<2x32xf32>
    %cst_69 = arith.constant dense<0.000000e+00> : vector<2x1xf32>
    %118 = tpu.matmul %117, %116, %cst_69 {dimension_numbers = #tpu.dot_dimension_numbers<[1], [0], [0], [1], [0, 0, 1, 1], [], []>} : vector<2x32xf32>, vector<32x1xf32>, vector<2x1xf32> -> vector<2x1xf32>
    %cst_70 = arith.constant 0.000000e+00 : f32
    %119 = vector.broadcast %cst_70 : f32 to vector<2x1xf32>
    %120 = arith.maximumf %118, %119 : vector<2x1xf32>
    %c0_71 = arith.constant 0 : index
    %c0_72 = arith.constant 0 : index
    %121 = vector.load %arg4[%c0_71, %c0_72] : memref<32x2xf32, #tpu.memory_space<vmem>>, vector<32x2xf32>
    %cst_73 = arith.constant dense<0.000000e+00> : vector<32x1xf32>
    %122 = tpu.matmul %121, %120, %cst_73 {dimension_numbers = #tpu.dot_dimension_numbers<[1], [0], [0], [1], [0, 0, 1, 1], [], []>} : vector<32x2xf32>, vector<2x1xf32>, vector<32x1xf32> -> vector<32x1xf32>
    %123 = arith.negf %122 : vector<32x1xf32>
    %124 = math.exp %123 : vector<32x1xf32>
    %cst_74 = arith.constant 1.000000e+00 : f32
    %125 = vector.broadcast %cst_74 : f32 to vector<32x1xf32>
    %126 = arith.addf %125, %124 : vector<32x1xf32>
    %127 = arith.divf %125, %126 : vector<32x1xf32>
    %128 = vector.broadcast %127 : vector<32x1xf32> to vector<32x256xf32>
    %129 = arith.mulf %112, %128 : vector<32x256xf32>
    %cst_75 = arith.constant dense<0.000000e+00> : vector<256xf32>
    %130 = vector.multi_reduction <add>, %129, %cst_75 [0] : vector<32x256xf32> to vector<256xf32>
    %131 = vector.shape_cast %130 : vector<256xf32> to vector<1x256xf32>
    %cst_76 = arith.constant 3.200000e+01 : f32
    %132 = vector.broadcast %cst_76 : f32 to vector<1x256xf32>
    %133 = arith.divf %131, %132 : vector<1x256xf32>
    %cst_77 = arith.constant dense<0xFF800000> : vector<256xf32>
    %134 = vector.multi_reduction <maximumf>, %129, %cst_77 [0] : vector<32x256xf32> to vector<256xf32>
    %135 = vector.shape_cast %134 : vector<256xf32> to vector<1x256xf32>
    %136 = tpu.concatenate %65, %133, %67, %135 in 0 : vector<1x256xf32>, vector<1x256xf32>, vector<1x256xf32>, vector<1x256xf32> -> vector<4x256xf32>
    %cst_78 = arith.constant 0.000000e+00 : f32
    %137 = vector.broadcast %cst_78 : f32 to vector<4x256xf32>
    %138 = tpu.concatenate %136, %137 in 0 : vector<4x256xf32>, vector<4x256xf32> -> vector<8x256xf32>
    %cst_79 = arith.constant 0.000000e+00 : f32
    %139 = vector.broadcast %cst_79 : f32 to vector<2x256xf32>
    %c51_i32 = arith.constant 51 : i32
    %140 = tpu.dynamic_rotate %138 by %c51_i32 dim 1 : vector<8x256xf32>, i32 -> vector<8x256xf32>
    %c0_80 = arith.constant 0 : index
    %c0_81 = arith.constant 0 : index
    %141 = vector.load %arg18[%c0_80, %c0_81] : memref<49x256xf32, #tpu.memory_space<vmem>>, vector<1x256xf32>
    %c0_82 = arith.constant 0 : index
    %c0_83 = arith.constant 0 : index
    %142 = memref.load %arg5[%c0_82, %c0_83] : memref<2x49xf32, #tpu.memory_space<smem>>
    %143 = vector.extract_strided_slice %140 {offsets = [0, 0], sizes = [2, 256], strides = [1, 1]} : vector<8x256xf32> to vector<2x256xf32>
    %144 = vector.broadcast %142 : f32 to vector<2x256xf32>
    %145 = arith.mulf %144, %143 : vector<2x256xf32>
    %c1_84 = arith.constant 1 : index
    %c0_85 = arith.constant 0 : index
    %146 = memref.load %arg5[%c1_84, %c0_85] : memref<2x49xf32, #tpu.memory_space<smem>>
    %147 = vector.extract_strided_slice %140 {offsets = [2, 0], sizes = [2, 256], strides = [1, 1]} : vector<8x256xf32> to vector<2x256xf32>
    %148 = vector.broadcast %146 : f32 to vector<2x256xf32>
    %149 = arith.mulf %148, %147 : vector<2x256xf32>
    %150 = arith.addf %145, %149 : vector<2x256xf32>
    %151 = vector.broadcast %141 : vector<1x256xf32> to vector<2x256xf32>
    %152 = arith.mulf %151, %150 : vector<2x256xf32>
    %153 = arith.addf %139, %152 : vector<2x256xf32>
    %c50_i32 = arith.constant 50 : i32
    %154 = tpu.dynamic_rotate %138 by %c50_i32 dim 1 : vector<8x256xf32>, i32 -> vector<8x256xf32>
    %c1_86 = arith.constant 1 : index
    %c0_87 = arith.constant 0 : index
    %155 = vector.load %arg18[%c1_86, %c0_87] : memref<49x256xf32, #tpu.memory_space<vmem>>, vector<1x256xf32>
    %c0_88 = arith.constant 0 : index
    %c1_89 = arith.constant 1 : index
    %156 = memref.load %arg5[%c0_88, %c1_89] : memref<2x49xf32, #tpu.memory_space<smem>>
    %157 = vector.extract_strided_slice %154 {offsets = [0, 0], sizes = [2, 256], strides = [1, 1]} : vector<8x256xf32> to vector<2x256xf32>
    %158 = vector.broadcast %156 : f32 to vector<2x256xf32>
    %159 = arith.mulf %158, %157 : vector<2x256xf32>
    %c1_90 = arith.constant 1 : index
    %c1_91 = arith.constant 1 : index
    %160 = memref.load %arg5[%c1_90, %c1_91] : memref<2x49xf32, #tpu.memory_space<smem>>
    %161 = vector.extract_strided_slice %154 {offsets = [2, 0], sizes = [2, 256], strides = [1, 1]} : vector<8x256xf32> to vector<2x256xf32>
    %162 = vector.broadcast %160 : f32 to vector<2x256xf32>
    %163 = arith.mulf %162, %161 : vector<2x256xf32>
    %164 = arith.addf %159, %163 : vector<2x256xf32>
    %165 = vector.broadcast %155 : vector<1x256xf32> to vector<2x256xf32>
    %166 = arith.mulf %165, %164 : vector<2x256xf32>
    %167 = arith.addf %153, %166 : vector<2x256xf32>
    %c49_i32 = arith.constant 49 : i32
    %168 = tpu.dynamic_rotate %138 by %c49_i32 dim 1 : vector<8x256xf32>, i32 -> vector<8x256xf32>
    %c2_92 = arith.constant 2 : index
    %c0_93 = arith.constant 0 : index
    %169 = vector.load %arg18[%c2_92, %c0_93] : memref<49x256xf32, #tpu.memory_space<vmem>>, vector<1x256xf32>
    %c0_94 = arith.constant 0 : index
    %c2_95 = arith.constant 2 : index
    %170 = memref.load %arg5[%c0_94, %c2_95] : memref<2x49xf32, #tpu.memory_space<smem>>
    %171 = vector.extract_strided_slice %168 {offsets = [0, 0], sizes = [2, 256], strides = [1, 1]} : vector<8x256xf32> to vector<2x256xf32>
    %172 = vector.broadcast %170 : f32 to vector<2x256xf32>
    %173 = arith.mulf %172, %171 : vector<2x256xf32>
    %c1_96 = arith.constant 1 : index
    %c2_97 = arith.constant 2 : index
    %174 = memref.load %arg5[%c1_96, %c2_97] : memref<2x49xf32, #tpu.memory_space<smem>>
    %175 = vector.extract_strided_slice %168 {offsets = [2, 0], sizes = [2, 256], strides = [1, 1]} : vector<8x256xf32> to vector<2x256xf32>
    %176 = vector.broadcast %174 : f32 to vector<2x256xf32>
    %177 = arith.mulf %176, %175 : vector<2x256xf32>
    %178 = arith.addf %173, %177 : vector<2x256xf32>
    %179 = vector.broadcast %169 : vector<1x256xf32> to vector<2x256xf32>
    %180 = arith.mulf %179, %178 : vector<2x256xf32>
    %181 = arith.addf %167, %180 : vector<2x256xf32>
    %c48_i32 = arith.constant 48 : i32
    %182 = tpu.dynamic_rotate %138 by %c48_i32 dim 1 : vector<8x256xf32>, i32 -> vector<8x256xf32>
    %c3_98 = arith.constant 3 : index
    %c0_99 = arith.constant 0 : index
    %183 = vector.load %arg18[%c3_98, %c0_99] : memref<49x256xf32, #tpu.memory_space<vmem>>, vector<1x256xf32>
    %c0_100 = arith.constant 0 : index
    %c3_101 = arith.constant 3 : index
    %184 = memref.load %arg5[%c0_100, %c3_101] : memref<2x49xf32, #tpu.memory_space<smem>>
    %185 = vector.extract_strided_slice %182 {offsets = [0, 0], sizes = [2, 256], strides = [1, 1]} : vector<8x256xf32> to vector<2x256xf32>
    %186 = vector.broadcast %184 : f32 to vector<2x256xf32>
    %187 = arith.mulf %186, %185 : vector<2x256xf32>
    %c1_102 = arith.constant 1 : index
    %c3_103 = arith.constant 3 : index
    %188 = memref.load %arg5[%c1_102, %c3_103] : memref<2x49xf32, #tpu.memory_space<smem>>
    %189 = vector.extract_strided_slice %182 {offsets = [2, 0], sizes = [2, 256], strides = [1, 1]} : vector<8x256xf32> to vector<2x256xf32>
    %190 = vector.broadcast %188 : f32 to vector<2x256xf32>
    %191 = arith.mulf %190, %189 : vector<2x256xf32>
    %192 = arith.addf %187, %191 : vector<2x256xf32>
    %193 = vector.broadcast %183 : vector<1x256xf32> to vector<2x256xf32>
    %194 = arith.mulf %193, %192 : vector<2x256xf32>
    %195 = arith.addf %181, %194 : vector<2x256xf32>
    %c47_i32 = arith.constant 47 : i32
    %196 = tpu.dynamic_rotate %138 by %c47_i32 dim 1 : vector<8x256xf32>, i32 -> vector<8x256xf32>
    %c4_104 = arith.constant 4 : index
    %c0_105 = arith.constant 0 : index
    %197 = vector.load %arg18[%c4_104, %c0_105] : memref<49x256xf32, #tpu.memory_space<vmem>>, vector<1x256xf32>
    %c0_106 = arith.constant 0 : index
    %c4_107 = arith.constant 4 : index
    %198 = memref.load %arg5[%c0_106, %c4_107] : memref<2x49xf32, #tpu.memory_space<smem>>
    %199 = vector.extract_strided_slice %196 {offsets = [0, 0], sizes = [2, 256], strides = [1, 1]} : vector<8x256xf32> to vector<2x256xf32>
    %200 = vector.broadcast %198 : f32 to vector<2x256xf32>
    %201 = arith.mulf %200, %199 : vector<2x256xf32>
    %c1_108 = arith.constant 1 : index
    %c4_109 = arith.constant 4 : index
    %202 = memref.load %arg5[%c1_108, %c4_109] : memref<2x49xf32, #tpu.memory_space<smem>>
    %203 = vector.extract_strided_slice %196 {offsets = [2, 0], sizes = [2, 256], strides = [1, 1]} : vector<8x256xf32> to vector<2x256xf32>
    %204 = vector.broadcast %202 : f32 to vector<2x256xf32>
    %205 = arith.mulf %204, %203 : vector<2x256xf32>
    %206 = arith.addf %201, %205 : vector<2x256xf32>
    %207 = vector.broadcast %197 : vector<1x256xf32> to vector<2x256xf32>
    %208 = arith.mulf %207, %206 : vector<2x256xf32>
    %209 = arith.addf %195, %208 : vector<2x256xf32>
    %c46_i32 = arith.constant 46 : i32
    %210 = tpu.dynamic_rotate %138 by %c46_i32 dim 1 : vector<8x256xf32>, i32 -> vector<8x256xf32>
    %c5_110 = arith.constant 5 : index
    %c0_111 = arith.constant 0 : index
    %211 = vector.load %arg18[%c5_110, %c0_111] : memref<49x256xf32, #tpu.memory_space<vmem>>, vector<1x256xf32>
    %c0_112 = arith.constant 0 : index
    %c5_113 = arith.constant 5 : index
    %212 = memref.load %arg5[%c0_112, %c5_113] : memref<2x49xf32, #tpu.memory_space<smem>>
    %213 = vector.extract_strided_slice %210 {offsets = [0, 0], sizes = [2, 256], strides = [1, 1]} : vector<8x256xf32> to vector<2x256xf32>
    %214 = vector.broadcast %212 : f32 to vector<2x256xf32>
    %215 = arith.mulf %214, %213 : vector<2x256xf32>
    %c1_114 = arith.constant 1 : index
    %c5_115 = arith.constant 5 : index
    %216 = memref.load %arg5[%c1_114, %c5_115] : memref<2x49xf32, #tpu.memory_space<smem>>
    %217 = vector.extract_strided_slice %210 {offsets = [2, 0], sizes = [2, 256], strides = [1, 1]} : vector<8x256xf32> to vector<2x256xf32>
    %218 = vector.broadcast %216 : f32 to vector<2x256xf32>
    %219 = arith.mulf %218, %217 : vector<2x256xf32>
    %220 = arith.addf %215, %219 : vector<2x256xf32>
    %221 = vector.broadcast %211 : vector<1x256xf32> to vector<2x256xf32>
    %222 = arith.mulf %221, %220 : vector<2x256xf32>
    %223 = arith.addf %209, %222 : vector<2x256xf32>
    %c45_i32 = arith.constant 45 : i32
    %224 = tpu.dynamic_rotate %138 by %c45_i32 dim 1 : vector<8x256xf32>, i32 -> vector<8x256xf32>
    %c6_116 = arith.constant 6 : index
    %c0_117 = arith.constant 0 : index
    %225 = vector.load %arg18[%c6_116, %c0_117] : memref<49x256xf32, #tpu.memory_space<vmem>>, vector<1x256xf32>
    %c0_118 = arith.constant 0 : index
    %c6_119 = arith.constant 6 : index
    %226 = memref.load %arg5[%c0_118, %c6_119] : memref<2x49xf32, #tpu.memory_space<smem>>
    %227 = vector.extract_strided_slice %224 {offsets = [0, 0], sizes = [2, 256], strides = [1, 1]} : vector<8x256xf32> to vector<2x256xf32>
    %228 = vector.broadcast %226 : f32 to vector<2x256xf32>
    %229 = arith.mulf %228, %227 : vector<2x256xf32>
    %c1_120 = arith.constant 1 : index
    %c6_121 = arith.constant 6 : index
    %230 = memref.load %arg5[%c1_120, %c6_121] : memref<2x49xf32, #tpu.memory_space<smem>>
    %231 = vector.extract_strided_slice %224 {offsets = [2, 0], sizes = [2, 256], strides = [1, 1]} : vector<8x256xf32> to vector<2x256xf32>
    %232 = vector.broadcast %230 : f32 to vector<2x256xf32>
    %233 = arith.mulf %232, %231 : vector<2x256xf32>
    %234 = arith.addf %229, %233 : vector<2x256xf32>
    %235 = vector.broadcast %225 : vector<1x256xf32> to vector<2x256xf32>
    %236 = arith.mulf %235, %234 : vector<2x256xf32>
    %237 = arith.addf %223, %236 : vector<2x256xf32>
    %c35_i32 = arith.constant 35 : i32
    %238 = tpu.dynamic_rotate %138 by %c35_i32 dim 1 : vector<8x256xf32>, i32 -> vector<8x256xf32>
    %c7_122 = arith.constant 7 : index
    %c0_123 = arith.constant 0 : index
    %239 = vector.load %arg18[%c7_122, %c0_123] : memref<49x256xf32, #tpu.memory_space<vmem>>, vector<1x256xf32>
    %c0_124 = arith.constant 0 : index
    %c7_125 = arith.constant 7 : index
    %240 = memref.load %arg5[%c0_124, %c7_125] : memref<2x49xf32, #tpu.memory_space<smem>>
    %241 = vector.extract_strided_slice %238 {offsets = [0, 0], sizes = [2, 256], strides = [1, 1]} : vector<8x256xf32> to vector<2x256xf32>
    %242 = vector.broadcast %240 : f32 to vector<2x256xf32>
    %243 = arith.mulf %242, %241 : vector<2x256xf32>
    %c1_126 = arith.constant 1 : index
    %c7_127 = arith.constant 7 : index
    %244 = memref.load %arg5[%c1_126, %c7_127] : memref<2x49xf32, #tpu.memory_space<smem>>
    %245 = vector.extract_strided_slice %238 {offsets = [2, 0], sizes = [2, 256], strides = [1, 1]} : vector<8x256xf32> to vector<2x256xf32>
    %246 = vector.broadcast %244 : f32 to vector<2x256xf32>
    %247 = arith.mulf %246, %245 : vector<2x256xf32>
    %248 = arith.addf %243, %247 : vector<2x256xf32>
    %249 = vector.broadcast %239 : vector<1x256xf32> to vector<2x256xf32>
    %250 = arith.mulf %249, %248 : vector<2x256xf32>
    %251 = arith.addf %237, %250 : vector<2x256xf32>
    %c34_i32 = arith.constant 34 : i32
    %252 = tpu.dynamic_rotate %138 by %c34_i32 dim 1 : vector<8x256xf32>, i32 -> vector<8x256xf32>
    %c8_128 = arith.constant 8 : index
    %c0_129 = arith.constant 0 : index
    %253 = vector.load %arg18[%c8_128, %c0_129] : memref<49x256xf32, #tpu.memory_space<vmem>>, vector<1x256xf32>
    %c0_130 = arith.constant 0 : index
    %c8_131 = arith.constant 8 : index
    %254 = memref.load %arg5[%c0_130, %c8_131] : memref<2x49xf32, #tpu.memory_space<smem>>
    %255 = vector.extract_strided_slice %252 {offsets = [0, 0], sizes = [2, 256], strides = [1, 1]} : vector<8x256xf32> to vector<2x256xf32>
    %256 = vector.broadcast %254 : f32 to vector<2x256xf32>
    %257 = arith.mulf %256, %255 : vector<2x256xf32>
    %c1_132 = arith.constant 1 : index
    %c8_133 = arith.constant 8 : index
    %258 = memref.load %arg5[%c1_132, %c8_133] : memref<2x49xf32, #tpu.memory_space<smem>>
    %259 = vector.extract_strided_slice %252 {offsets = [2, 0], sizes = [2, 256], strides = [1, 1]} : vector<8x256xf32> to vector<2x256xf32>
    %260 = vector.broadcast %258 : f32 to vector<2x256xf32>
    %261 = arith.mulf %260, %259 : vector<2x256xf32>
    %262 = arith.addf %257, %261 : vector<2x256xf32>
    %263 = vector.broadcast %253 : vector<1x256xf32> to vector<2x256xf32>
    %264 = arith.mulf %263, %262 : vector<2x256xf32>
    %265 = arith.addf %251, %264 : vector<2x256xf32>
    %c33_i32 = arith.constant 33 : i32
    %266 = tpu.dynamic_rotate %138 by %c33_i32 dim 1 : vector<8x256xf32>, i32 -> vector<8x256xf32>
    %c9 = arith.constant 9 : index
    %c0_134 = arith.constant 0 : index
    %267 = vector.load %arg18[%c9, %c0_134] : memref<49x256xf32, #tpu.memory_space<vmem>>, vector<1x256xf32>
    %c0_135 = arith.constant 0 : index
    %c9_136 = arith.constant 9 : index
    %268 = memref.load %arg5[%c0_135, %c9_136] : memref<2x49xf32, #tpu.memory_space<smem>>
    %269 = vector.extract_strided_slice %266 {offsets = [0, 0], sizes = [2, 256], strides = [1, 1]} : vector<8x256xf32> to vector<2x256xf32>
    %270 = vector.broadcast %268 : f32 to vector<2x256xf32>
    %271 = arith.mulf %270, %269 : vector<2x256xf32>
    %c1_137 = arith.constant 1 : index
    %c9_138 = arith.constant 9 : index
    %272 = memref.load %arg5[%c1_137, %c9_138] : memref<2x49xf32, #tpu.memory_space<smem>>
    %273 = vector.extract_strided_slice %266 {offsets = [2, 0], sizes = [2, 256], strides = [1, 1]} : vector<8x256xf32> to vector<2x256xf32>
    %274 = vector.broadcast %272 : f32 to vector<2x256xf32>
    %275 = arith.mulf %274, %273 : vector<2x256xf32>
    %276 = arith.addf %271, %275 : vector<2x256xf32>
    %277 = vector.broadcast %267 : vector<1x256xf32> to vector<2x256xf32>
    %278 = arith.mulf %277, %276 : vector<2x256xf32>
    %279 = arith.addf %265, %278 : vector<2x256xf32>
    %c32_i32 = arith.constant 32 : i32
    %280 = tpu.dynamic_rotate %138 by %c32_i32 dim 1 : vector<8x256xf32>, i32 -> vector<8x256xf32>
    %c10 = arith.constant 10 : index
    %c0_139 = arith.constant 0 : index
    %281 = vector.load %arg18[%c10, %c0_139] : memref<49x256xf32, #tpu.memory_space<vmem>>, vector<1x256xf32>
    %c0_140 = arith.constant 0 : index
    %c10_141 = arith.constant 10 : index
    %282 = memref.load %arg5[%c0_140, %c10_141] : memref<2x49xf32, #tpu.memory_space<smem>>
    %283 = vector.extract_strided_slice %280 {offsets = [0, 0], sizes = [2, 256], strides = [1, 1]} : vector<8x256xf32> to vector<2x256xf32>
    %284 = vector.broadcast %282 : f32 to vector<2x256xf32>
    %285 = arith.mulf %284, %283 : vector<2x256xf32>
    %c1_142 = arith.constant 1 : index
    %c10_143 = arith.constant 10 : index
    %286 = memref.load %arg5[%c1_142, %c10_143] : memref<2x49xf32, #tpu.memory_space<smem>>
    %287 = vector.extract_strided_slice %280 {offsets = [2, 0], sizes = [2, 256], strides = [1, 1]} : vector<8x256xf32> to vector<2x256xf32>
    %288 = vector.broadcast %286 : f32 to vector<2x256xf32>
    %289 = arith.mulf %288, %287 : vector<2x256xf32>
    %290 = arith.addf %285, %289 : vector<2x256xf32>
    %291 = vector.broadcast %281 : vector<1x256xf32> to vector<2x256xf32>
    %292 = arith.mulf %291, %290 : vector<2x256xf32>
    %293 = arith.addf %279, %292 : vector<2x256xf32>
    %c31_i32 = arith.constant 31 : i32
    %294 = tpu.dynamic_rotate %138 by %c31_i32 dim 1 : vector<8x256xf32>, i32 -> vector<8x256xf32>
    %c11 = arith.constant 11 : index
    %c0_144 = arith.constant 0 : index
    %295 = vector.load %arg18[%c11, %c0_144] : memref<49x256xf32, #tpu.memory_space<vmem>>, vector<1x256xf32>
    %c0_145 = arith.constant 0 : index
    %c11_146 = arith.constant 11 : index
    %296 = memref.load %arg5[%c0_145, %c11_146] : memref<2x49xf32, #tpu.memory_space<smem>>
    %297 = vector.extract_strided_slice %294 {offsets = [0, 0], sizes = [2, 256], strides = [1, 1]} : vector<8x256xf32> to vector<2x256xf32>
    %298 = vector.broadcast %296 : f32 to vector<2x256xf32>
    %299 = arith.mulf %298, %297 : vector<2x256xf32>
    %c1_147 = arith.constant 1 : index
    %c11_148 = arith.constant 11 : index
    %300 = memref.load %arg5[%c1_147, %c11_148] : memref<2x49xf32, #tpu.memory_space<smem>>
    %301 = vector.extract_strided_slice %294 {offsets = [2, 0], sizes = [2, 256], strides = [1, 1]} : vector<8x256xf32> to vector<2x256xf32>
    %302 = vector.broadcast %300 : f32 to vector<2x256xf32>
    %303 = arith.mulf %302, %301 : vector<2x256xf32>
    %304 = arith.addf %299, %303 : vector<2x256xf32>
    %305 = vector.broadcast %295 : vector<1x256xf32> to vector<2x256xf32>
    %306 = arith.mulf %305, %304 : vector<2x256xf32>
    %307 = arith.addf %293, %306 : vector<2x256xf32>
    %c30_i32 = arith.constant 30 : i32
    %308 = tpu.dynamic_rotate %138 by %c30_i32 dim 1 : vector<8x256xf32>, i32 -> vector<8x256xf32>
    %c12 = arith.constant 12 : index
    %c0_149 = arith.constant 0 : index
    %309 = vector.load %arg18[%c12, %c0_149] : memref<49x256xf32, #tpu.memory_space<vmem>>, vector<1x256xf32>
    %c0_150 = arith.constant 0 : index
    %c12_151 = arith.constant 12 : index
    %310 = memref.load %arg5[%c0_150, %c12_151] : memref<2x49xf32, #tpu.memory_space<smem>>
    %311 = vector.extract_strided_slice %308 {offsets = [0, 0], sizes = [2, 256], strides = [1, 1]} : vector<8x256xf32> to vector<2x256xf32>
    %312 = vector.broadcast %310 : f32 to vector<2x256xf32>
    %313 = arith.mulf %312, %311 : vector<2x256xf32>
    %c1_152 = arith.constant 1 : index
    %c12_153 = arith.constant 12 : index
    %314 = memref.load %arg5[%c1_152, %c12_153] : memref<2x49xf32, #tpu.memory_space<smem>>
    %315 = vector.extract_strided_slice %308 {offsets = [2, 0], sizes = [2, 256], strides = [1, 1]} : vector<8x256xf32> to vector<2x256xf32>
    %316 = vector.broadcast %314 : f32 to vector<2x256xf32>
    %317 = arith.mulf %316, %315 : vector<2x256xf32>
    %318 = arith.addf %313, %317 : vector<2x256xf32>
    %319 = vector.broadcast %309 : vector<1x256xf32> to vector<2x256xf32>
    %320 = arith.mulf %319, %318 : vector<2x256xf32>
    %321 = arith.addf %307, %320 : vector<2x256xf32>
    %c29_i32 = arith.constant 29 : i32
    %322 = tpu.dynamic_rotate %138 by %c29_i32 dim 1 : vector<8x256xf32>, i32 -> vector<8x256xf32>
    %c13 = arith.constant 13 : index
    %c0_154 = arith.constant 0 : index
    %323 = vector.load %arg18[%c13, %c0_154] : memref<49x256xf32, #tpu.memory_space<vmem>>, vector<1x256xf32>
    %c0_155 = arith.constant 0 : index
    %c13_156 = arith.constant 13 : index
    %324 = memref.load %arg5[%c0_155, %c13_156] : memref<2x49xf32, #tpu.memory_space<smem>>
    %325 = vector.extract_strided_slice %322 {offsets = [0, 0], sizes = [2, 256], strides = [1, 1]} : vector<8x256xf32> to vector<2x256xf32>
    %326 = vector.broadcast %324 : f32 to vector<2x256xf32>
    %327 = arith.mulf %326, %325 : vector<2x256xf32>
    %c1_157 = arith.constant 1 : index
    %c13_158 = arith.constant 13 : index
    %328 = memref.load %arg5[%c1_157, %c13_158] : memref<2x49xf32, #tpu.memory_space<smem>>
    %329 = vector.extract_strided_slice %322 {offsets = [2, 0], sizes = [2, 256], strides = [1, 1]} : vector<8x256xf32> to vector<2x256xf32>
    %330 = vector.broadcast %328 : f32 to vector<2x256xf32>
    %331 = arith.mulf %330, %329 : vector<2x256xf32>
    %332 = arith.addf %327, %331 : vector<2x256xf32>
    %333 = vector.broadcast %323 : vector<1x256xf32> to vector<2x256xf32>
    %334 = arith.mulf %333, %332 : vector<2x256xf32>
    %335 = arith.addf %321, %334 : vector<2x256xf32>
    %c19_i32 = arith.constant 19 : i32
    %336 = tpu.dynamic_rotate %138 by %c19_i32 dim 1 : vector<8x256xf32>, i32 -> vector<8x256xf32>
    %c14 = arith.constant 14 : index
    %c0_159 = arith.constant 0 : index
    %337 = vector.load %arg18[%c14, %c0_159] : memref<49x256xf32, #tpu.memory_space<vmem>>, vector<1x256xf32>
    %c0_160 = arith.constant 0 : index
    %c14_161 = arith.constant 14 : index
    %338 = memref.load %arg5[%c0_160, %c14_161] : memref<2x49xf32, #tpu.memory_space<smem>>
    %339 = vector.extract_strided_slice %336 {offsets = [0, 0], sizes = [2, 256], strides = [1, 1]} : vector<8x256xf32> to vector<2x256xf32>
    %340 = vector.broadcast %338 : f32 to vector<2x256xf32>
    %341 = arith.mulf %340, %339 : vector<2x256xf32>
    %c1_162 = arith.constant 1 : index
    %c14_163 = arith.constant 14 : index
    %342 = memref.load %arg5[%c1_162, %c14_163] : memref<2x49xf32, #tpu.memory_space<smem>>
    %343 = vector.extract_strided_slice %336 {offsets = [2, 0], sizes = [2, 256], strides = [1, 1]} : vector<8x256xf32> to vector<2x256xf32>
    %344 = vector.broadcast %342 : f32 to vector<2x256xf32>
    %345 = arith.mulf %344, %343 : vector<2x256xf32>
    %346 = arith.addf %341, %345 : vector<2x256xf32>
    %347 = vector.broadcast %337 : vector<1x256xf32> to vector<2x256xf32>
    %348 = arith.mulf %347, %346 : vector<2x256xf32>
    %349 = arith.addf %335, %348 : vector<2x256xf32>
    %c18_i32 = arith.constant 18 : i32
    %350 = tpu.dynamic_rotate %138 by %c18_i32 dim 1 : vector<8x256xf32>, i32 -> vector<8x256xf32>
    %c15 = arith.constant 15 : index
    %c0_164 = arith.constant 0 : index
    %351 = vector.load %arg18[%c15, %c0_164] : memref<49x256xf32, #tpu.memory_space<vmem>>, vector<1x256xf32>
    %c0_165 = arith.constant 0 : index
    %c15_166 = arith.constant 15 : index
    %352 = memref.load %arg5[%c0_165, %c15_166] : memref<2x49xf32, #tpu.memory_space<smem>>
    %353 = vector.extract_strided_slice %350 {offsets = [0, 0], sizes = [2, 256], strides = [1, 1]} : vector<8x256xf32> to vector<2x256xf32>
    %354 = vector.broadcast %352 : f32 to vector<2x256xf32>
    %355 = arith.mulf %354, %353 : vector<2x256xf32>
    %c1_167 = arith.constant 1 : index
    %c15_168 = arith.constant 15 : index
    %356 = memref.load %arg5[%c1_167, %c15_168] : memref<2x49xf32, #tpu.memory_space<smem>>
    %357 = vector.extract_strided_slice %350 {offsets = [2, 0], sizes = [2, 256], strides = [1, 1]} : vector<8x256xf32> to vector<2x256xf32>
    %358 = vector.broadcast %356 : f32 to vector<2x256xf32>
    %359 = arith.mulf %358, %357 : vector<2x256xf32>
    %360 = arith.addf %355, %359 : vector<2x256xf32>
    %361 = vector.broadcast %351 : vector<1x256xf32> to vector<2x256xf32>
    %362 = arith.mulf %361, %360 : vector<2x256xf32>
    %363 = arith.addf %349, %362 : vector<2x256xf32>
    %c17_i32_169 = arith.constant 17 : i32
    %364 = tpu.dynamic_rotate %138 by %c17_i32_169 dim 1 : vector<8x256xf32>, i32 -> vector<8x256xf32>
    %c16 = arith.constant 16 : index
    %c0_170 = arith.constant 0 : index
    %365 = vector.load %arg18[%c16, %c0_170] : memref<49x256xf32, #tpu.memory_space<vmem>>, vector<1x256xf32>
    %c0_171 = arith.constant 0 : index
    %c16_172 = arith.constant 16 : index
    %366 = memref.load %arg5[%c0_171, %c16_172] : memref<2x49xf32, #tpu.memory_space<smem>>
    %367 = vector.extract_strided_slice %364 {offsets = [0, 0], sizes = [2, 256], strides = [1, 1]} : vector<8x256xf32> to vector<2x256xf32>
    %368 = vector.broadcast %366 : f32 to vector<2x256xf32>
    %369 = arith.mulf %368, %367 : vector<2x256xf32>
    %c1_173 = arith.constant 1 : index
    %c16_174 = arith.constant 16 : index
    %370 = memref.load %arg5[%c1_173, %c16_174] : memref<2x49xf32, #tpu.memory_space<smem>>
    %371 = vector.extract_strided_slice %364 {offsets = [2, 0], sizes = [2, 256], strides = [1, 1]} : vector<8x256xf32> to vector<2x256xf32>
    %372 = vector.broadcast %370 : f32 to vector<2x256xf32>
    %373 = arith.mulf %372, %371 : vector<2x256xf32>
    %374 = arith.addf %369, %373 : vector<2x256xf32>
    %375 = vector.broadcast %365 : vector<1x256xf32> to vector<2x256xf32>
    %376 = arith.mulf %375, %374 : vector<2x256xf32>
    %377 = arith.addf %363, %376 : vector<2x256xf32>
    %c16_i32_175 = arith.constant 16 : i32
    %378 = tpu.dynamic_rotate %138 by %c16_i32_175 dim 1 : vector<8x256xf32>, i32 -> vector<8x256xf32>
    %c17 = arith.constant 17 : index
    %c0_176 = arith.constant 0 : index
    %379 = vector.load %arg18[%c17, %c0_176] : memref<49x256xf32, #tpu.memory_space<vmem>>, vector<1x256xf32>
    %c0_177 = arith.constant 0 : index
    %c17_178 = arith.constant 17 : index
    %380 = memref.load %arg5[%c0_177, %c17_178] : memref<2x49xf32, #tpu.memory_space<smem>>
    %381 = vector.extract_strided_slice %378 {offsets = [0, 0], sizes = [2, 256], strides = [1, 1]} : vector<8x256xf32> to vector<2x256xf32>
    %382 = vector.broadcast %380 : f32 to vector<2x256xf32>
    %383 = arith.mulf %382, %381 : vector<2x256xf32>
    %c1_179 = arith.constant 1 : index
    %c17_180 = arith.constant 17 : index
    %384 = memref.load %arg5[%c1_179, %c17_180] : memref<2x49xf32, #tpu.memory_space<smem>>
    %385 = vector.extract_strided_slice %378 {offsets = [2, 0], sizes = [2, 256], strides = [1, 1]} : vector<8x256xf32> to vector<2x256xf32>
    %386 = vector.broadcast %384 : f32 to vector<2x256xf32>
    %387 = arith.mulf %386, %385 : vector<2x256xf32>
    %388 = arith.addf %383, %387 : vector<2x256xf32>
    %389 = vector.broadcast %379 : vector<1x256xf32> to vector<2x256xf32>
    %390 = arith.mulf %389, %388 : vector<2x256xf32>
    %391 = arith.addf %377, %390 : vector<2x256xf32>
    %c15_i32_181 = arith.constant 15 : i32
    %392 = tpu.dynamic_rotate %138 by %c15_i32_181 dim 1 : vector<8x256xf32>, i32 -> vector<8x256xf32>
    %c18 = arith.constant 18 : index
    %c0_182 = arith.constant 0 : index
    %393 = vector.load %arg18[%c18, %c0_182] : memref<49x256xf32, #tpu.memory_space<vmem>>, vector<1x256xf32>
    %c0_183 = arith.constant 0 : index
    %c18_184 = arith.constant 18 : index
    %394 = memref.load %arg5[%c0_183, %c18_184] : memref<2x49xf32, #tpu.memory_space<smem>>
    %395 = vector.extract_strided_slice %392 {offsets = [0, 0], sizes = [2, 256], strides = [1, 1]} : vector<8x256xf32> to vector<2x256xf32>
    %396 = vector.broadcast %394 : f32 to vector<2x256xf32>
    %397 = arith.mulf %396, %395 : vector<2x256xf32>
    %c1_185 = arith.constant 1 : index
    %c18_186 = arith.constant 18 : index
    %398 = memref.load %arg5[%c1_185, %c18_186] : memref<2x49xf32, #tpu.memory_space<smem>>
    %399 = vector.extract_strided_slice %392 {offsets = [2, 0], sizes = [2, 256], strides = [1, 1]} : vector<8x256xf32> to vector<2x256xf32>
    %400 = vector.broadcast %398 : f32 to vector<2x256xf32>
    %401 = arith.mulf %400, %399 : vector<2x256xf32>
    %402 = arith.addf %397, %401 : vector<2x256xf32>
    %403 = vector.broadcast %393 : vector<1x256xf32> to vector<2x256xf32>
    %404 = arith.mulf %403, %402 : vector<2x256xf32>
    %405 = arith.addf %391, %404 : vector<2x256xf32>
    %c14_i32 = arith.constant 14 : i32
    %406 = tpu.dynamic_rotate %138 by %c14_i32 dim 1 : vector<8x256xf32>, i32 -> vector<8x256xf32>
    %c19 = arith.constant 19 : index
    %c0_187 = arith.constant 0 : index
    %407 = vector.load %arg18[%c19, %c0_187] : memref<49x256xf32, #tpu.memory_space<vmem>>, vector<1x256xf32>
    %c0_188 = arith.constant 0 : index
    %c19_189 = arith.constant 19 : index
    %408 = memref.load %arg5[%c0_188, %c19_189] : memref<2x49xf32, #tpu.memory_space<smem>>
    %409 = vector.extract_strided_slice %406 {offsets = [0, 0], sizes = [2, 256], strides = [1, 1]} : vector<8x256xf32> to vector<2x256xf32>
    %410 = vector.broadcast %408 : f32 to vector<2x256xf32>
    %411 = arith.mulf %410, %409 : vector<2x256xf32>
    %c1_190 = arith.constant 1 : index
    %c19_191 = arith.constant 19 : index
    %412 = memref.load %arg5[%c1_190, %c19_191] : memref<2x49xf32, #tpu.memory_space<smem>>
    %413 = vector.extract_strided_slice %406 {offsets = [2, 0], sizes = [2, 256], strides = [1, 1]} : vector<8x256xf32> to vector<2x256xf32>
    %414 = vector.broadcast %412 : f32 to vector<2x256xf32>
    %415 = arith.mulf %414, %413 : vector<2x256xf32>
    %416 = arith.addf %411, %415 : vector<2x256xf32>
    %417 = vector.broadcast %407 : vector<1x256xf32> to vector<2x256xf32>
    %418 = arith.mulf %417, %416 : vector<2x256xf32>
    %419 = arith.addf %405, %418 : vector<2x256xf32>
    %c13_i32 = arith.constant 13 : i32
    %420 = tpu.dynamic_rotate %138 by %c13_i32 dim 1 : vector<8x256xf32>, i32 -> vector<8x256xf32>
    %c20 = arith.constant 20 : index
    %c0_192 = arith.constant 0 : index
    %421 = vector.load %arg18[%c20, %c0_192] : memref<49x256xf32, #tpu.memory_space<vmem>>, vector<1x256xf32>
    %c0_193 = arith.constant 0 : index
    %c20_194 = arith.constant 20 : index
    %422 = memref.load %arg5[%c0_193, %c20_194] : memref<2x49xf32, #tpu.memory_space<smem>>
    %423 = vector.extract_strided_slice %420 {offsets = [0, 0], sizes = [2, 256], strides = [1, 1]} : vector<8x256xf32> to vector<2x256xf32>
    %424 = vector.broadcast %422 : f32 to vector<2x256xf32>
    %425 = arith.mulf %424, %423 : vector<2x256xf32>
    %c1_195 = arith.constant 1 : index
    %c20_196 = arith.constant 20 : index
    %426 = memref.load %arg5[%c1_195, %c20_196] : memref<2x49xf32, #tpu.memory_space<smem>>
    %427 = vector.extract_strided_slice %420 {offsets = [2, 0], sizes = [2, 256], strides = [1, 1]} : vector<8x256xf32> to vector<2x256xf32>
    %428 = vector.broadcast %426 : f32 to vector<2x256xf32>
    %429 = arith.mulf %428, %427 : vector<2x256xf32>
    %430 = arith.addf %425, %429 : vector<2x256xf32>
    %431 = vector.broadcast %421 : vector<1x256xf32> to vector<2x256xf32>
    %432 = arith.mulf %431, %430 : vector<2x256xf32>
    %433 = arith.addf %419, %432 : vector<2x256xf32>
    %c3_i32 = arith.constant 3 : i32
    %434 = tpu.dynamic_rotate %138 by %c3_i32 dim 1 : vector<8x256xf32>, i32 -> vector<8x256xf32>
    %c21 = arith.constant 21 : index
    %c0_197 = arith.constant 0 : index
    %435 = vector.load %arg18[%c21, %c0_197] : memref<49x256xf32, #tpu.memory_space<vmem>>, vector<1x256xf32>
    %c0_198 = arith.constant 0 : index
    %c21_199 = arith.constant 21 : index
    %436 = memref.load %arg5[%c0_198, %c21_199] : memref<2x49xf32, #tpu.memory_space<smem>>
    %437 = vector.extract_strided_slice %434 {offsets = [0, 0], sizes = [2, 256], strides = [1, 1]} : vector<8x256xf32> to vector<2x256xf32>
    %438 = vector.broadcast %436 : f32 to vector<2x256xf32>
    %439 = arith.mulf %438, %437 : vector<2x256xf32>
    %c1_200 = arith.constant 1 : index
    %c21_201 = arith.constant 21 : index
    %440 = memref.load %arg5[%c1_200, %c21_201] : memref<2x49xf32, #tpu.memory_space<smem>>
    %441 = vector.extract_strided_slice %434 {offsets = [2, 0], sizes = [2, 256], strides = [1, 1]} : vector<8x256xf32> to vector<2x256xf32>
    %442 = vector.broadcast %440 : f32 to vector<2x256xf32>
    %443 = arith.mulf %442, %441 : vector<2x256xf32>
    %444 = arith.addf %439, %443 : vector<2x256xf32>
    %445 = vector.broadcast %435 : vector<1x256xf32> to vector<2x256xf32>
    %446 = arith.mulf %445, %444 : vector<2x256xf32>
    %447 = arith.addf %433, %446 : vector<2x256xf32>
    %c2_i32 = arith.constant 2 : i32
    %448 = tpu.dynamic_rotate %138 by %c2_i32 dim 1 : vector<8x256xf32>, i32 -> vector<8x256xf32>
    %c22 = arith.constant 22 : index
    %c0_202 = arith.constant 0 : index
    %449 = vector.load %arg18[%c22, %c0_202] : memref<49x256xf32, #tpu.memory_space<vmem>>, vector<1x256xf32>
    %c0_203 = arith.constant 0 : index
    %c22_204 = arith.constant 22 : index
    %450 = memref.load %arg5[%c0_203, %c22_204] : memref<2x49xf32, #tpu.memory_space<smem>>
    %451 = vector.extract_strided_slice %448 {offsets = [0, 0], sizes = [2, 256], strides = [1, 1]} : vector<8x256xf32> to vector<2x256xf32>
    %452 = vector.broadcast %450 : f32 to vector<2x256xf32>
    %453 = arith.mulf %452, %451 : vector<2x256xf32>
    %c1_205 = arith.constant 1 : index
    %c22_206 = arith.constant 22 : index
    %454 = memref.load %arg5[%c1_205, %c22_206] : memref<2x49xf32, #tpu.memory_space<smem>>
    %455 = vector.extract_strided_slice %448 {offsets = [2, 0], sizes = [2, 256], strides = [1, 1]} : vector<8x256xf32> to vector<2x256xf32>
    %456 = vector.broadcast %454 : f32 to vector<2x256xf32>
    %457 = arith.mulf %456, %455 : vector<2x256xf32>
    %458 = arith.addf %453, %457 : vector<2x256xf32>
    %459 = vector.broadcast %449 : vector<1x256xf32> to vector<2x256xf32>
    %460 = arith.mulf %459, %458 : vector<2x256xf32>
    %461 = arith.addf %447, %460 : vector<2x256xf32>
    %c1_i32_207 = arith.constant 1 : i32
    %462 = tpu.dynamic_rotate %138 by %c1_i32_207 dim 1 : vector<8x256xf32>, i32 -> vector<8x256xf32>
    %c23 = arith.constant 23 : index
    %c0_208 = arith.constant 0 : index
    %463 = vector.load %arg18[%c23, %c0_208] : memref<49x256xf32, #tpu.memory_space<vmem>>, vector<1x256xf32>
    %c0_209 = arith.constant 0 : index
    %c23_210 = arith.constant 23 : index
    %464 = memref.load %arg5[%c0_209, %c23_210] : memref<2x49xf32, #tpu.memory_space<smem>>
    %465 = vector.extract_strided_slice %462 {offsets = [0, 0], sizes = [2, 256], strides = [1, 1]} : vector<8x256xf32> to vector<2x256xf32>
    %466 = vector.broadcast %464 : f32 to vector<2x256xf32>
    %467 = arith.mulf %466, %465 : vector<2x256xf32>
    %c1_211 = arith.constant 1 : index
    %c23_212 = arith.constant 23 : index
    %468 = memref.load %arg5[%c1_211, %c23_212] : memref<2x49xf32, #tpu.memory_space<smem>>
    %469 = vector.extract_strided_slice %462 {offsets = [2, 0], sizes = [2, 256], strides = [1, 1]} : vector<8x256xf32> to vector<2x256xf32>
    %470 = vector.broadcast %468 : f32 to vector<2x256xf32>
    %471 = arith.mulf %470, %469 : vector<2x256xf32>
    %472 = arith.addf %467, %471 : vector<2x256xf32>
    %473 = vector.broadcast %463 : vector<1x256xf32> to vector<2x256xf32>
    %474 = arith.mulf %473, %472 : vector<2x256xf32>
    %475 = arith.addf %461, %474 : vector<2x256xf32>
    %c24 = arith.constant 24 : index
    %c0_213 = arith.constant 0 : index
    %476 = vector.load %arg18[%c24, %c0_213] : memref<49x256xf32, #tpu.memory_space<vmem>>, vector<1x256xf32>
    %c0_214 = arith.constant 0 : index
    %c24_215 = arith.constant 24 : index
    %477 = memref.load %arg5[%c0_214, %c24_215] : memref<2x49xf32, #tpu.memory_space<smem>>
    %478 = vector.extract_strided_slice %138 {offsets = [0, 0], sizes = [2, 256], strides = [1, 1]} : vector<8x256xf32> to vector<2x256xf32>
    %479 = vector.broadcast %477 : f32 to vector<2x256xf32>
    %480 = arith.mulf %479, %478 : vector<2x256xf32>
    %c1_216 = arith.constant 1 : index
    %c24_217 = arith.constant 24 : index
    %481 = memref.load %arg5[%c1_216, %c24_217] : memref<2x49xf32, #tpu.memory_space<smem>>
    %482 = vector.extract_strided_slice %138 {offsets = [2, 0], sizes = [2, 256], strides = [1, 1]} : vector<8x256xf32> to vector<2x256xf32>
    %483 = vector.broadcast %481 : f32 to vector<2x256xf32>
    %484 = arith.mulf %483, %482 : vector<2x256xf32>
    %485 = arith.addf %480, %484 : vector<2x256xf32>
    %486 = vector.broadcast %476 : vector<1x256xf32> to vector<2x256xf32>
    %487 = arith.mulf %486, %485 : vector<2x256xf32>
    %488 = arith.addf %475, %487 : vector<2x256xf32>
    %c255_i32_218 = arith.constant 255 : i32
    %489 = tpu.dynamic_rotate %138 by %c255_i32_218 dim 1 : vector<8x256xf32>, i32 -> vector<8x256xf32>
    %c25 = arith.constant 25 : index
    %c0_219 = arith.constant 0 : index
    %490 = vector.load %arg18[%c25, %c0_219] : memref<49x256xf32, #tpu.memory_space<vmem>>, vector<1x256xf32>
    %c0_220 = arith.constant 0 : index
    %c25_221 = arith.constant 25 : index
    %491 = memref.load %arg5[%c0_220, %c25_221] : memref<2x49xf32, #tpu.memory_space<smem>>
    %492 = vector.extract_strided_slice %489 {offsets = [0, 0], sizes = [2, 256], strides = [1, 1]} : vector<8x256xf32> to vector<2x256xf32>
    %493 = vector.broadcast %491 : f32 to vector<2x256xf32>
    %494 = arith.mulf %493, %492 : vector<2x256xf32>
    %c1_222 = arith.constant 1 : index
    %c25_223 = arith.constant 25 : index
    %495 = memref.load %arg5[%c1_222, %c25_223] : memref<2x49xf32, #tpu.memory_space<smem>>
    %496 = vector.extract_strided_slice %489 {offsets = [2, 0], sizes = [2, 256], strides = [1, 1]} : vector<8x256xf32> to vector<2x256xf32>
    %497 = vector.broadcast %495 : f32 to vector<2x256xf32>
    %498 = arith.mulf %497, %496 : vector<2x256xf32>
    %499 = arith.addf %494, %498 : vector<2x256xf32>
    %500 = vector.broadcast %490 : vector<1x256xf32> to vector<2x256xf32>
    %501 = arith.mulf %500, %499 : vector<2x256xf32>
    %502 = arith.addf %488, %501 : vector<2x256xf32>
    %c254_i32 = arith.constant 254 : i32
    %503 = tpu.dynamic_rotate %138 by %c254_i32 dim 1 : vector<8x256xf32>, i32 -> vector<8x256xf32>
    %c26 = arith.constant 26 : index
    %c0_224 = arith.constant 0 : index
    %504 = vector.load %arg18[%c26, %c0_224] : memref<49x256xf32, #tpu.memory_space<vmem>>, vector<1x256xf32>
    %c0_225 = arith.constant 0 : index
    %c26_226 = arith.constant 26 : index
    %505 = memref.load %arg5[%c0_225, %c26_226] : memref<2x49xf32, #tpu.memory_space<smem>>
    %506 = vector.extract_strided_slice %503 {offsets = [0, 0], sizes = [2, 256], strides = [1, 1]} : vector<8x256xf32> to vector<2x256xf32>
    %507 = vector.broadcast %505 : f32 to vector<2x256xf32>
    %508 = arith.mulf %507, %506 : vector<2x256xf32>
    %c1_227 = arith.constant 1 : index
    %c26_228 = arith.constant 26 : index
    %509 = memref.load %arg5[%c1_227, %c26_228] : memref<2x49xf32, #tpu.memory_space<smem>>
    %510 = vector.extract_strided_slice %503 {offsets = [2, 0], sizes = [2, 256], strides = [1, 1]} : vector<8x256xf32> to vector<2x256xf32>
    %511 = vector.broadcast %509 : f32 to vector<2x256xf32>
    %512 = arith.mulf %511, %510 : vector<2x256xf32>
    %513 = arith.addf %508, %512 : vector<2x256xf32>
    %514 = vector.broadcast %504 : vector<1x256xf32> to vector<2x256xf32>
    %515 = arith.mulf %514, %513 : vector<2x256xf32>
    %516 = arith.addf %502, %515 : vector<2x256xf32>
    %c253_i32 = arith.constant 253 : i32
    %517 = tpu.dynamic_rotate %138 by %c253_i32 dim 1 : vector<8x256xf32>, i32 -> vector<8x256xf32>
    %c27 = arith.constant 27 : index
    %c0_229 = arith.constant 0 : index
    %518 = vector.load %arg18[%c27, %c0_229] : memref<49x256xf32, #tpu.memory_space<vmem>>, vector<1x256xf32>
    %c0_230 = arith.constant 0 : index
    %c27_231 = arith.constant 27 : index
    %519 = memref.load %arg5[%c0_230, %c27_231] : memref<2x49xf32, #tpu.memory_space<smem>>
    %520 = vector.extract_strided_slice %517 {offsets = [0, 0], sizes = [2, 256], strides = [1, 1]} : vector<8x256xf32> to vector<2x256xf32>
    %521 = vector.broadcast %519 : f32 to vector<2x256xf32>
    %522 = arith.mulf %521, %520 : vector<2x256xf32>
    %c1_232 = arith.constant 1 : index
    %c27_233 = arith.constant 27 : index
    %523 = memref.load %arg5[%c1_232, %c27_233] : memref<2x49xf32, #tpu.memory_space<smem>>
    %524 = vector.extract_strided_slice %517 {offsets = [2, 0], sizes = [2, 256], strides = [1, 1]} : vector<8x256xf32> to vector<2x256xf32>
    %525 = vector.broadcast %523 : f32 to vector<2x256xf32>
    %526 = arith.mulf %525, %524 : vector<2x256xf32>
    %527 = arith.addf %522, %526 : vector<2x256xf32>
    %528 = vector.broadcast %518 : vector<1x256xf32> to vector<2x256xf32>
    %529 = arith.mulf %528, %527 : vector<2x256xf32>
    %530 = arith.addf %516, %529 : vector<2x256xf32>
    %c243_i32 = arith.constant 243 : i32
    %531 = tpu.dynamic_rotate %138 by %c243_i32 dim 1 : vector<8x256xf32>, i32 -> vector<8x256xf32>
    %c28 = arith.constant 28 : index
    %c0_234 = arith.constant 0 : index
    %532 = vector.load %arg18[%c28, %c0_234] : memref<49x256xf32, #tpu.memory_space<vmem>>, vector<1x256xf32>
    %c0_235 = arith.constant 0 : index
    %c28_236 = arith.constant 28 : index
    %533 = memref.load %arg5[%c0_235, %c28_236] : memref<2x49xf32, #tpu.memory_space<smem>>
    %534 = vector.extract_strided_slice %531 {offsets = [0, 0], sizes = [2, 256], strides = [1, 1]} : vector<8x256xf32> to vector<2x256xf32>
    %535 = vector.broadcast %533 : f32 to vector<2x256xf32>
    %536 = arith.mulf %535, %534 : vector<2x256xf32>
    %c1_237 = arith.constant 1 : index
    %c28_238 = arith.constant 28 : index
    %537 = memref.load %arg5[%c1_237, %c28_238] : memref<2x49xf32, #tpu.memory_space<smem>>
    %538 = vector.extract_strided_slice %531 {offsets = [2, 0], sizes = [2, 256], strides = [1, 1]} : vector<8x256xf32> to vector<2x256xf32>
    %539 = vector.broadcast %537 : f32 to vector<2x256xf32>
    %540 = arith.mulf %539, %538 : vector<2x256xf32>
    %541 = arith.addf %536, %540 : vector<2x256xf32>
    %542 = vector.broadcast %532 : vector<1x256xf32> to vector<2x256xf32>
    %543 = arith.mulf %542, %541 : vector<2x256xf32>
    %544 = arith.addf %530, %543 : vector<2x256xf32>
    %c242_i32 = arith.constant 242 : i32
    %545 = tpu.dynamic_rotate %138 by %c242_i32 dim 1 : vector<8x256xf32>, i32 -> vector<8x256xf32>
    %c29 = arith.constant 29 : index
    %c0_239 = arith.constant 0 : index
    %546 = vector.load %arg18[%c29, %c0_239] : memref<49x256xf32, #tpu.memory_space<vmem>>, vector<1x256xf32>
    %c0_240 = arith.constant 0 : index
    %c29_241 = arith.constant 29 : index
    %547 = memref.load %arg5[%c0_240, %c29_241] : memref<2x49xf32, #tpu.memory_space<smem>>
    %548 = vector.extract_strided_slice %545 {offsets = [0, 0], sizes = [2, 256], strides = [1, 1]} : vector<8x256xf32> to vector<2x256xf32>
    %549 = vector.broadcast %547 : f32 to vector<2x256xf32>
    %550 = arith.mulf %549, %548 : vector<2x256xf32>
    %c1_242 = arith.constant 1 : index
    %c29_243 = arith.constant 29 : index
    %551 = memref.load %arg5[%c1_242, %c29_243] : memref<2x49xf32, #tpu.memory_space<smem>>
    %552 = vector.extract_strided_slice %545 {offsets = [2, 0], sizes = [2, 256], strides = [1, 1]} : vector<8x256xf32> to vector<2x256xf32>
    %553 = vector.broadcast %551 : f32 to vector<2x256xf32>
    %554 = arith.mulf %553, %552 : vector<2x256xf32>
    %555 = arith.addf %550, %554 : vector<2x256xf32>
    %556 = vector.broadcast %546 : vector<1x256xf32> to vector<2x256xf32>
    %557 = arith.mulf %556, %555 : vector<2x256xf32>
    %558 = arith.addf %544, %557 : vector<2x256xf32>
    %c241_i32_244 = arith.constant 241 : i32
    %559 = tpu.dynamic_rotate %138 by %c241_i32_244 dim 1 : vector<8x256xf32>, i32 -> vector<8x256xf32>
    %c30 = arith.constant 30 : index
    %c0_245 = arith.constant 0 : index
    %560 = vector.load %arg18[%c30, %c0_245] : memref<49x256xf32, #tpu.memory_space<vmem>>, vector<1x256xf32>
    %c0_246 = arith.constant 0 : index
    %c30_247 = arith.constant 30 : index
    %561 = memref.load %arg5[%c0_246, %c30_247] : memref<2x49xf32, #tpu.memory_space<smem>>
    %562 = vector.extract_strided_slice %559 {offsets = [0, 0], sizes = [2, 256], strides = [1, 1]} : vector<8x256xf32> to vector<2x256xf32>
    %563 = vector.broadcast %561 : f32 to vector<2x256xf32>
    %564 = arith.mulf %563, %562 : vector<2x256xf32>
    %c1_248 = arith.constant 1 : index
    %c30_249 = arith.constant 30 : index
    %565 = memref.load %arg5[%c1_248, %c30_249] : memref<2x49xf32, #tpu.memory_space<smem>>
    %566 = vector.extract_strided_slice %559 {offsets = [2, 0], sizes = [2, 256], strides = [1, 1]} : vector<8x256xf32> to vector<2x256xf32>
    %567 = vector.broadcast %565 : f32 to vector<2x256xf32>
    %568 = arith.mulf %567, %566 : vector<2x256xf32>
    %569 = arith.addf %564, %568 : vector<2x256xf32>
    %570 = vector.broadcast %560 : vector<1x256xf32> to vector<2x256xf32>
    %571 = arith.mulf %570, %569 : vector<2x256xf32>
    %572 = arith.addf %558, %571 : vector<2x256xf32>
    %c240_i32_250 = arith.constant 240 : i32
    %573 = tpu.dynamic_rotate %138 by %c240_i32_250 dim 1 : vector<8x256xf32>, i32 -> vector<8x256xf32>
    %c31 = arith.constant 31 : index
    %c0_251 = arith.constant 0 : index
    %574 = vector.load %arg18[%c31, %c0_251] : memref<49x256xf32, #tpu.memory_space<vmem>>, vector<1x256xf32>
    %c0_252 = arith.constant 0 : index
    %c31_253 = arith.constant 31 : index
    %575 = memref.load %arg5[%c0_252, %c31_253] : memref<2x49xf32, #tpu.memory_space<smem>>
    %576 = vector.extract_strided_slice %573 {offsets = [0, 0], sizes = [2, 256], strides = [1, 1]} : vector<8x256xf32> to vector<2x256xf32>
    %577 = vector.broadcast %575 : f32 to vector<2x256xf32>
    %578 = arith.mulf %577, %576 : vector<2x256xf32>
    %c1_254 = arith.constant 1 : index
    %c31_255 = arith.constant 31 : index
    %579 = memref.load %arg5[%c1_254, %c31_255] : memref<2x49xf32, #tpu.memory_space<smem>>
    %580 = vector.extract_strided_slice %573 {offsets = [2, 0], sizes = [2, 256], strides = [1, 1]} : vector<8x256xf32> to vector<2x256xf32>
    %581 = vector.broadcast %579 : f32 to vector<2x256xf32>
    %582 = arith.mulf %581, %580 : vector<2x256xf32>
    %583 = arith.addf %578, %582 : vector<2x256xf32>
    %584 = vector.broadcast %574 : vector<1x256xf32> to vector<2x256xf32>
    %585 = arith.mulf %584, %583 : vector<2x256xf32>
    %586 = arith.addf %572, %585 : vector<2x256xf32>
    %c239_i32_256 = arith.constant 239 : i32
    %587 = tpu.dynamic_rotate %138 by %c239_i32_256 dim 1 : vector<8x256xf32>, i32 -> vector<8x256xf32>
    %c32 = arith.constant 32 : index
    %c0_257 = arith.constant 0 : index
    %588 = vector.load %arg18[%c32, %c0_257] : memref<49x256xf32, #tpu.memory_space<vmem>>, vector<1x256xf32>
    %c0_258 = arith.constant 0 : index
    %c32_259 = arith.constant 32 : index
    %589 = memref.load %arg5[%c0_258, %c32_259] : memref<2x49xf32, #tpu.memory_space<smem>>
    %590 = vector.extract_strided_slice %587 {offsets = [0, 0], sizes = [2, 256], strides = [1, 1]} : vector<8x256xf32> to vector<2x256xf32>
    %591 = vector.broadcast %589 : f32 to vector<2x256xf32>
    %592 = arith.mulf %591, %590 : vector<2x256xf32>
    %c1_260 = arith.constant 1 : index
    %c32_261 = arith.constant 32 : index
    %593 = memref.load %arg5[%c1_260, %c32_261] : memref<2x49xf32, #tpu.memory_space<smem>>
    %594 = vector.extract_strided_slice %587 {offsets = [2, 0], sizes = [2, 256], strides = [1, 1]} : vector<8x256xf32> to vector<2x256xf32>
    %595 = vector.broadcast %593 : f32 to vector<2x256xf32>
    %596 = arith.mulf %595, %594 : vector<2x256xf32>
    %597 = arith.addf %592, %596 : vector<2x256xf32>
    %598 = vector.broadcast %588 : vector<1x256xf32> to vector<2x256xf32>
    %599 = arith.mulf %598, %597 : vector<2x256xf32>
    %600 = arith.addf %586, %599 : vector<2x256xf32>
    %c238_i32 = arith.constant 238 : i32
    %601 = tpu.dynamic_rotate %138 by %c238_i32 dim 1 : vector<8x256xf32>, i32 -> vector<8x256xf32>
    %c33 = arith.constant 33 : index
    %c0_262 = arith.constant 0 : index
    %602 = vector.load %arg18[%c33, %c0_262] : memref<49x256xf32, #tpu.memory_space<vmem>>, vector<1x256xf32>
    %c0_263 = arith.constant 0 : index
    %c33_264 = arith.constant 33 : index
    %603 = memref.load %arg5[%c0_263, %c33_264] : memref<2x49xf32, #tpu.memory_space<smem>>
    %604 = vector.extract_strided_slice %601 {offsets = [0, 0], sizes = [2, 256], strides = [1, 1]} : vector<8x256xf32> to vector<2x256xf32>
    %605 = vector.broadcast %603 : f32 to vector<2x256xf32>
    %606 = arith.mulf %605, %604 : vector<2x256xf32>
    %c1_265 = arith.constant 1 : index
    %c33_266 = arith.constant 33 : index
    %607 = memref.load %arg5[%c1_265, %c33_266] : memref<2x49xf32, #tpu.memory_space<smem>>
    %608 = vector.extract_strided_slice %601 {offsets = [2, 0], sizes = [2, 256], strides = [1, 1]} : vector<8x256xf32> to vector<2x256xf32>
    %609 = vector.broadcast %607 : f32 to vector<2x256xf32>
    %610 = arith.mulf %609, %608 : vector<2x256xf32>
    %611 = arith.addf %606, %610 : vector<2x256xf32>
    %612 = vector.broadcast %602 : vector<1x256xf32> to vector<2x256xf32>
    %613 = arith.mulf %612, %611 : vector<2x256xf32>
    %614 = arith.addf %600, %613 : vector<2x256xf32>
    %c237_i32 = arith.constant 237 : i32
    %615 = tpu.dynamic_rotate %138 by %c237_i32 dim 1 : vector<8x256xf32>, i32 -> vector<8x256xf32>
    %c34 = arith.constant 34 : index
    %c0_267 = arith.constant 0 : index
    %616 = vector.load %arg18[%c34, %c0_267] : memref<49x256xf32, #tpu.memory_space<vmem>>, vector<1x256xf32>
    %c0_268 = arith.constant 0 : index
    %c34_269 = arith.constant 34 : index
    %617 = memref.load %arg5[%c0_268, %c34_269] : memref<2x49xf32, #tpu.memory_space<smem>>
    %618 = vector.extract_strided_slice %615 {offsets = [0, 0], sizes = [2, 256], strides = [1, 1]} : vector<8x256xf32> to vector<2x256xf32>
    %619 = vector.broadcast %617 : f32 to vector<2x256xf32>
    %620 = arith.mulf %619, %618 : vector<2x256xf32>
    %c1_270 = arith.constant 1 : index
    %c34_271 = arith.constant 34 : index
    %621 = memref.load %arg5[%c1_270, %c34_271] : memref<2x49xf32, #tpu.memory_space<smem>>
    %622 = vector.extract_strided_slice %615 {offsets = [2, 0], sizes = [2, 256], strides = [1, 1]} : vector<8x256xf32> to vector<2x256xf32>
    %623 = vector.broadcast %621 : f32 to vector<2x256xf32>
    %624 = arith.mulf %623, %622 : vector<2x256xf32>
    %625 = arith.addf %620, %624 : vector<2x256xf32>
    %626 = vector.broadcast %616 : vector<1x256xf32> to vector<2x256xf32>
    %627 = arith.mulf %626, %625 : vector<2x256xf32>
    %628 = arith.addf %614, %627 : vector<2x256xf32>
    %c227_i32 = arith.constant 227 : i32
    %629 = tpu.dynamic_rotate %138 by %c227_i32 dim 1 : vector<8x256xf32>, i32 -> vector<8x256xf32>
    %c35 = arith.constant 35 : index
    %c0_272 = arith.constant 0 : index
    %630 = vector.load %arg18[%c35, %c0_272] : memref<49x256xf32, #tpu.memory_space<vmem>>, vector<1x256xf32>
    %c0_273 = arith.constant 0 : index
    %c35_274 = arith.constant 35 : index
    %631 = memref.load %arg5[%c0_273, %c35_274] : memref<2x49xf32, #tpu.memory_space<smem>>
    %632 = vector.extract_strided_slice %629 {offsets = [0, 0], sizes = [2, 256], strides = [1, 1]} : vector<8x256xf32> to vector<2x256xf32>
    %633 = vector.broadcast %631 : f32 to vector<2x256xf32>
    %634 = arith.mulf %633, %632 : vector<2x256xf32>
    %c1_275 = arith.constant 1 : index
    %c35_276 = arith.constant 35 : index
    %635 = memref.load %arg5[%c1_275, %c35_276] : memref<2x49xf32, #tpu.memory_space<smem>>
    %636 = vector.extract_strided_slice %629 {offsets = [2, 0], sizes = [2, 256], strides = [1, 1]} : vector<8x256xf32> to vector<2x256xf32>
    %637 = vector.broadcast %635 : f32 to vector<2x256xf32>
    %638 = arith.mulf %637, %636 : vector<2x256xf32>
    %639 = arith.addf %634, %638 : vector<2x256xf32>
    %640 = vector.broadcast %630 : vector<1x256xf32> to vector<2x256xf32>
    %641 = arith.mulf %640, %639 : vector<2x256xf32>
    %642 = arith.addf %628, %641 : vector<2x256xf32>
    %c226_i32 = arith.constant 226 : i32
    %643 = tpu.dynamic_rotate %138 by %c226_i32 dim 1 : vector<8x256xf32>, i32 -> vector<8x256xf32>
    %c36 = arith.constant 36 : index
    %c0_277 = arith.constant 0 : index
    %644 = vector.load %arg18[%c36, %c0_277] : memref<49x256xf32, #tpu.memory_space<vmem>>, vector<1x256xf32>
    %c0_278 = arith.constant 0 : index
    %c36_279 = arith.constant 36 : index
    %645 = memref.load %arg5[%c0_278, %c36_279] : memref<2x49xf32, #tpu.memory_space<smem>>
    %646 = vector.extract_strided_slice %643 {offsets = [0, 0], sizes = [2, 256], strides = [1, 1]} : vector<8x256xf32> to vector<2x256xf32>
    %647 = vector.broadcast %645 : f32 to vector<2x256xf32>
    %648 = arith.mulf %647, %646 : vector<2x256xf32>
    %c1_280 = arith.constant 1 : index
    %c36_281 = arith.constant 36 : index
    %649 = memref.load %arg5[%c1_280, %c36_281] : memref<2x49xf32, #tpu.memory_space<smem>>
    %650 = vector.extract_strided_slice %643 {offsets = [2, 0], sizes = [2, 256], strides = [1, 1]} : vector<8x256xf32> to vector<2x256xf32>
    %651 = vector.broadcast %649 : f32 to vector<2x256xf32>
    %652 = arith.mulf %651, %650 : vector<2x256xf32>
    %653 = arith.addf %648, %652 : vector<2x256xf32>
    %654 = vector.broadcast %644 : vector<1x256xf32> to vector<2x256xf32>
    %655 = arith.mulf %654, %653 : vector<2x256xf32>
    %656 = arith.addf %642, %655 : vector<2x256xf32>
    %c225_i32 = arith.constant 225 : i32
    %657 = tpu.dynamic_rotate %138 by %c225_i32 dim 1 : vector<8x256xf32>, i32 -> vector<8x256xf32>
    %c37 = arith.constant 37 : index
    %c0_282 = arith.constant 0 : index
    %658 = vector.load %arg18[%c37, %c0_282] : memref<49x256xf32, #tpu.memory_space<vmem>>, vector<1x256xf32>
    %c0_283 = arith.constant 0 : index
    %c37_284 = arith.constant 37 : index
    %659 = memref.load %arg5[%c0_283, %c37_284] : memref<2x49xf32, #tpu.memory_space<smem>>
    %660 = vector.extract_strided_slice %657 {offsets = [0, 0], sizes = [2, 256], strides = [1, 1]} : vector<8x256xf32> to vector<2x256xf32>
    %661 = vector.broadcast %659 : f32 to vector<2x256xf32>
    %662 = arith.mulf %661, %660 : vector<2x256xf32>
    %c1_285 = arith.constant 1 : index
    %c37_286 = arith.constant 37 : index
    %663 = memref.load %arg5[%c1_285, %c37_286] : memref<2x49xf32, #tpu.memory_space<smem>>
    %664 = vector.extract_strided_slice %657 {offsets = [2, 0], sizes = [2, 256], strides = [1, 1]} : vector<8x256xf32> to vector<2x256xf32>
    %665 = vector.broadcast %663 : f32 to vector<2x256xf32>
    %666 = arith.mulf %665, %664 : vector<2x256xf32>
    %667 = arith.addf %662, %666 : vector<2x256xf32>
    %668 = vector.broadcast %658 : vector<1x256xf32> to vector<2x256xf32>
    %669 = arith.mulf %668, %667 : vector<2x256xf32>
    %670 = arith.addf %656, %669 : vector<2x256xf32>
    %c224_i32 = arith.constant 224 : i32
    %671 = tpu.dynamic_rotate %138 by %c224_i32 dim 1 : vector<8x256xf32>, i32 -> vector<8x256xf32>
    %c38 = arith.constant 38 : index
    %c0_287 = arith.constant 0 : index
    %672 = vector.load %arg18[%c38, %c0_287] : memref<49x256xf32, #tpu.memory_space<vmem>>, vector<1x256xf32>
    %c0_288 = arith.constant 0 : index
    %c38_289 = arith.constant 38 : index
    %673 = memref.load %arg5[%c0_288, %c38_289] : memref<2x49xf32, #tpu.memory_space<smem>>
    %674 = vector.extract_strided_slice %671 {offsets = [0, 0], sizes = [2, 256], strides = [1, 1]} : vector<8x256xf32> to vector<2x256xf32>
    %675 = vector.broadcast %673 : f32 to vector<2x256xf32>
    %676 = arith.mulf %675, %674 : vector<2x256xf32>
    %c1_290 = arith.constant 1 : index
    %c38_291 = arith.constant 38 : index
    %677 = memref.load %arg5[%c1_290, %c38_291] : memref<2x49xf32, #tpu.memory_space<smem>>
    %678 = vector.extract_strided_slice %671 {offsets = [2, 0], sizes = [2, 256], strides = [1, 1]} : vector<8x256xf32> to vector<2x256xf32>
    %679 = vector.broadcast %677 : f32 to vector<2x256xf32>
    %680 = arith.mulf %679, %678 : vector<2x256xf32>
    %681 = arith.addf %676, %680 : vector<2x256xf32>
    %682 = vector.broadcast %672 : vector<1x256xf32> to vector<2x256xf32>
    %683 = arith.mulf %682, %681 : vector<2x256xf32>
    %684 = arith.addf %670, %683 : vector<2x256xf32>
    %c223_i32 = arith.constant 223 : i32
    %685 = tpu.dynamic_rotate %138 by %c223_i32 dim 1 : vector<8x256xf32>, i32 -> vector<8x256xf32>
    %c39 = arith.constant 39 : index
    %c0_292 = arith.constant 0 : index
    %686 = vector.load %arg18[%c39, %c0_292] : memref<49x256xf32, #tpu.memory_space<vmem>>, vector<1x256xf32>
    %c0_293 = arith.constant 0 : index
    %c39_294 = arith.constant 39 : index
    %687 = memref.load %arg5[%c0_293, %c39_294] : memref<2x49xf32, #tpu.memory_space<smem>>
    %688 = vector.extract_strided_slice %685 {offsets = [0, 0], sizes = [2, 256], strides = [1, 1]} : vector<8x256xf32> to vector<2x256xf32>
    %689 = vector.broadcast %687 : f32 to vector<2x256xf32>
    %690 = arith.mulf %689, %688 : vector<2x256xf32>
    %c1_295 = arith.constant 1 : index
    %c39_296 = arith.constant 39 : index
    %691 = memref.load %arg5[%c1_295, %c39_296] : memref<2x49xf32, #tpu.memory_space<smem>>
    %692 = vector.extract_strided_slice %685 {offsets = [2, 0], sizes = [2, 256], strides = [1, 1]} : vector<8x256xf32> to vector<2x256xf32>
    %693 = vector.broadcast %691 : f32 to vector<2x256xf32>
    %694 = arith.mulf %693, %692 : vector<2x256xf32>
    %695 = arith.addf %690, %694 : vector<2x256xf32>
    %696 = vector.broadcast %686 : vector<1x256xf32> to vector<2x256xf32>
    %697 = arith.mulf %696, %695 : vector<2x256xf32>
    %698 = arith.addf %684, %697 : vector<2x256xf32>
    %c222_i32 = arith.constant 222 : i32
    %699 = tpu.dynamic_rotate %138 by %c222_i32 dim 1 : vector<8x256xf32>, i32 -> vector<8x256xf32>
    %c40 = arith.constant 40 : index
    %c0_297 = arith.constant 0 : index
    %700 = vector.load %arg18[%c40, %c0_297] : memref<49x256xf32, #tpu.memory_space<vmem>>, vector<1x256xf32>
    %c0_298 = arith.constant 0 : index
    %c40_299 = arith.constant 40 : index
    %701 = memref.load %arg5[%c0_298, %c40_299] : memref<2x49xf32, #tpu.memory_space<smem>>
    %702 = vector.extract_strided_slice %699 {offsets = [0, 0], sizes = [2, 256], strides = [1, 1]} : vector<8x256xf32> to vector<2x256xf32>
    %703 = vector.broadcast %701 : f32 to vector<2x256xf32>
    %704 = arith.mulf %703, %702 : vector<2x256xf32>
    %c1_300 = arith.constant 1 : index
    %c40_301 = arith.constant 40 : index
    %705 = memref.load %arg5[%c1_300, %c40_301] : memref<2x49xf32, #tpu.memory_space<smem>>
    %706 = vector.extract_strided_slice %699 {offsets = [2, 0], sizes = [2, 256], strides = [1, 1]} : vector<8x256xf32> to vector<2x256xf32>
    %707 = vector.broadcast %705 : f32 to vector<2x256xf32>
    %708 = arith.mulf %707, %706 : vector<2x256xf32>
    %709 = arith.addf %704, %708 : vector<2x256xf32>
    %710 = vector.broadcast %700 : vector<1x256xf32> to vector<2x256xf32>
    %711 = arith.mulf %710, %709 : vector<2x256xf32>
    %712 = arith.addf %698, %711 : vector<2x256xf32>
    %c221_i32 = arith.constant 221 : i32
    %713 = tpu.dynamic_rotate %138 by %c221_i32 dim 1 : vector<8x256xf32>, i32 -> vector<8x256xf32>
    %c41 = arith.constant 41 : index
    %c0_302 = arith.constant 0 : index
    %714 = vector.load %arg18[%c41, %c0_302] : memref<49x256xf32, #tpu.memory_space<vmem>>, vector<1x256xf32>
    %c0_303 = arith.constant 0 : index
    %c41_304 = arith.constant 41 : index
    %715 = memref.load %arg5[%c0_303, %c41_304] : memref<2x49xf32, #tpu.memory_space<smem>>
    %716 = vector.extract_strided_slice %713 {offsets = [0, 0], sizes = [2, 256], strides = [1, 1]} : vector<8x256xf32> to vector<2x256xf32>
    %717 = vector.broadcast %715 : f32 to vector<2x256xf32>
    %718 = arith.mulf %717, %716 : vector<2x256xf32>
    %c1_305 = arith.constant 1 : index
    %c41_306 = arith.constant 41 : index
    %719 = memref.load %arg5[%c1_305, %c41_306] : memref<2x49xf32, #tpu.memory_space<smem>>
    %720 = vector.extract_strided_slice %713 {offsets = [2, 0], sizes = [2, 256], strides = [1, 1]} : vector<8x256xf32> to vector<2x256xf32>
    %721 = vector.broadcast %719 : f32 to vector<2x256xf32>
    %722 = arith.mulf %721, %720 : vector<2x256xf32>
    %723 = arith.addf %718, %722 : vector<2x256xf32>
    %724 = vector.broadcast %714 : vector<1x256xf32> to vector<2x256xf32>
    %725 = arith.mulf %724, %723 : vector<2x256xf32>
    %726 = arith.addf %712, %725 : vector<2x256xf32>
    %c211_i32 = arith.constant 211 : i32
    %727 = tpu.dynamic_rotate %138 by %c211_i32 dim 1 : vector<8x256xf32>, i32 -> vector<8x256xf32>
    %c42 = arith.constant 42 : index
    %c0_307 = arith.constant 0 : index
    %728 = vector.load %arg18[%c42, %c0_307] : memref<49x256xf32, #tpu.memory_space<vmem>>, vector<1x256xf32>
    %c0_308 = arith.constant 0 : index
    %c42_309 = arith.constant 42 : index
    %729 = memref.load %arg5[%c0_308, %c42_309] : memref<2x49xf32, #tpu.memory_space<smem>>
    %730 = vector.extract_strided_slice %727 {offsets = [0, 0], sizes = [2, 256], strides = [1, 1]} : vector<8x256xf32> to vector<2x256xf32>
    %731 = vector.broadcast %729 : f32 to vector<2x256xf32>
    %732 = arith.mulf %731, %730 : vector<2x256xf32>
    %c1_310 = arith.constant 1 : index
    %c42_311 = arith.constant 42 : index
    %733 = memref.load %arg5[%c1_310, %c42_311] : memref<2x49xf32, #tpu.memory_space<smem>>
    %734 = vector.extract_strided_slice %727 {offsets = [2, 0], sizes = [2, 256], strides = [1, 1]} : vector<8x256xf32> to vector<2x256xf32>
    %735 = vector.broadcast %733 : f32 to vector<2x256xf32>
    %736 = arith.mulf %735, %734 : vector<2x256xf32>
    %737 = arith.addf %732, %736 : vector<2x256xf32>
    %738 = vector.broadcast %728 : vector<1x256xf32> to vector<2x256xf32>
    %739 = arith.mulf %738, %737 : vector<2x256xf32>
    %740 = arith.addf %726, %739 : vector<2x256xf32>
    %c210_i32 = arith.constant 210 : i32
    %741 = tpu.dynamic_rotate %138 by %c210_i32 dim 1 : vector<8x256xf32>, i32 -> vector<8x256xf32>
    %c43 = arith.constant 43 : index
    %c0_312 = arith.constant 0 : index
    %742 = vector.load %arg18[%c43, %c0_312] : memref<49x256xf32, #tpu.memory_space<vmem>>, vector<1x256xf32>
    %c0_313 = arith.constant 0 : index
    %c43_314 = arith.constant 43 : index
    %743 = memref.load %arg5[%c0_313, %c43_314] : memref<2x49xf32, #tpu.memory_space<smem>>
    %744 = vector.extract_strided_slice %741 {offsets = [0, 0], sizes = [2, 256], strides = [1, 1]} : vector<8x256xf32> to vector<2x256xf32>
    %745 = vector.broadcast %743 : f32 to vector<2x256xf32>
    %746 = arith.mulf %745, %744 : vector<2x256xf32>
    %c1_315 = arith.constant 1 : index
    %c43_316 = arith.constant 43 : index
    %747 = memref.load %arg5[%c1_315, %c43_316] : memref<2x49xf32, #tpu.memory_space<smem>>
    %748 = vector.extract_strided_slice %741 {offsets = [2, 0], sizes = [2, 256], strides = [1, 1]} : vector<8x256xf32> to vector<2x256xf32>
    %749 = vector.broadcast %747 : f32 to vector<2x256xf32>
    %750 = arith.mulf %749, %748 : vector<2x256xf32>
    %751 = arith.addf %746, %750 : vector<2x256xf32>
    %752 = vector.broadcast %742 : vector<1x256xf32> to vector<2x256xf32>
    %753 = arith.mulf %752, %751 : vector<2x256xf32>
    %754 = arith.addf %740, %753 : vector<2x256xf32>
    %c209_i32 = arith.constant 209 : i32
    %755 = tpu.dynamic_rotate %138 by %c209_i32 dim 1 : vector<8x256xf32>, i32 -> vector<8x256xf32>
    %c44 = arith.constant 44 : index
    %c0_317 = arith.constant 0 : index
    %756 = vector.load %arg18[%c44, %c0_317] : memref<49x256xf32, #tpu.memory_space<vmem>>, vector<1x256xf32>
    %c0_318 = arith.constant 0 : index
    %c44_319 = arith.constant 44 : index
    %757 = memref.load %arg5[%c0_318, %c44_319] : memref<2x49xf32, #tpu.memory_space<smem>>
    %758 = vector.extract_strided_slice %755 {offsets = [0, 0], sizes = [2, 256], strides = [1, 1]} : vector<8x256xf32> to vector<2x256xf32>
    %759 = vector.broadcast %757 : f32 to vector<2x256xf32>
    %760 = arith.mulf %759, %758 : vector<2x256xf32>
    %c1_320 = arith.constant 1 : index
    %c44_321 = arith.constant 44 : index
    %761 = memref.load %arg5[%c1_320, %c44_321] : memref<2x49xf32, #tpu.memory_space<smem>>
    %762 = vector.extract_strided_slice %755 {offsets = [2, 0], sizes = [2, 256], strides = [1, 1]} : vector<8x256xf32> to vector<2x256xf32>
    %763 = vector.broadcast %761 : f32 to vector<2x256xf32>
    %764 = arith.mulf %763, %762 : vector<2x256xf32>
    %765 = arith.addf %760, %764 : vector<2x256xf32>
    %766 = vector.broadcast %756 : vector<1x256xf32> to vector<2x256xf32>
    %767 = arith.mulf %766, %765 : vector<2x256xf32>
    %768 = arith.addf %754, %767 : vector<2x256xf32>
    %c208_i32 = arith.constant 208 : i32
    %769 = tpu.dynamic_rotate %138 by %c208_i32 dim 1 : vector<8x256xf32>, i32 -> vector<8x256xf32>
    %c45 = arith.constant 45 : index
    %c0_322 = arith.constant 0 : index
    %770 = vector.load %arg18[%c45, %c0_322] : memref<49x256xf32, #tpu.memory_space<vmem>>, vector<1x256xf32>
    %c0_323 = arith.constant 0 : index
    %c45_324 = arith.constant 45 : index
    %771 = memref.load %arg5[%c0_323, %c45_324] : memref<2x49xf32, #tpu.memory_space<smem>>
    %772 = vector.extract_strided_slice %769 {offsets = [0, 0], sizes = [2, 256], strides = [1, 1]} : vector<8x256xf32> to vector<2x256xf32>
    %773 = vector.broadcast %771 : f32 to vector<2x256xf32>
    %774 = arith.mulf %773, %772 : vector<2x256xf32>
    %c1_325 = arith.constant 1 : index
    %c45_326 = arith.constant 45 : index
    %775 = memref.load %arg5[%c1_325, %c45_326] : memref<2x49xf32, #tpu.memory_space<smem>>
    %776 = vector.extract_strided_slice %769 {offsets = [2, 0], sizes = [2, 256], strides = [1, 1]} : vector<8x256xf32> to vector<2x256xf32>
    %777 = vector.broadcast %775 : f32 to vector<2x256xf32>
    %778 = arith.mulf %777, %776 : vector<2x256xf32>
    %779 = arith.addf %774, %778 : vector<2x256xf32>
    %780 = vector.broadcast %770 : vector<1x256xf32> to vector<2x256xf32>
    %781 = arith.mulf %780, %779 : vector<2x256xf32>
    %782 = arith.addf %768, %781 : vector<2x256xf32>
    %c207_i32 = arith.constant 207 : i32
    %783 = tpu.dynamic_rotate %138 by %c207_i32 dim 1 : vector<8x256xf32>, i32 -> vector<8x256xf32>
    %c46 = arith.constant 46 : index
    %c0_327 = arith.constant 0 : index
    %784 = vector.load %arg18[%c46, %c0_327] : memref<49x256xf32, #tpu.memory_space<vmem>>, vector<1x256xf32>
    %c0_328 = arith.constant 0 : index
    %c46_329 = arith.constant 46 : index
    %785 = memref.load %arg5[%c0_328, %c46_329] : memref<2x49xf32, #tpu.memory_space<smem>>
    %786 = vector.extract_strided_slice %783 {offsets = [0, 0], sizes = [2, 256], strides = [1, 1]} : vector<8x256xf32> to vector<2x256xf32>
    %787 = vector.broadcast %785 : f32 to vector<2x256xf32>
    %788 = arith.mulf %787, %786 : vector<2x256xf32>
    %c1_330 = arith.constant 1 : index
    %c46_331 = arith.constant 46 : index
    %789 = memref.load %arg5[%c1_330, %c46_331] : memref<2x49xf32, #tpu.memory_space<smem>>
    %790 = vector.extract_strided_slice %783 {offsets = [2, 0], sizes = [2, 256], strides = [1, 1]} : vector<8x256xf32> to vector<2x256xf32>
    %791 = vector.broadcast %789 : f32 to vector<2x256xf32>
    %792 = arith.mulf %791, %790 : vector<2x256xf32>
    %793 = arith.addf %788, %792 : vector<2x256xf32>
    %794 = vector.broadcast %784 : vector<1x256xf32> to vector<2x256xf32>
    %795 = arith.mulf %794, %793 : vector<2x256xf32>
    %796 = arith.addf %782, %795 : vector<2x256xf32>
    %c206_i32 = arith.constant 206 : i32
    %797 = tpu.dynamic_rotate %138 by %c206_i32 dim 1 : vector<8x256xf32>, i32 -> vector<8x256xf32>
    %c47 = arith.constant 47 : index
    %c0_332 = arith.constant 0 : index
    %798 = vector.load %arg18[%c47, %c0_332] : memref<49x256xf32, #tpu.memory_space<vmem>>, vector<1x256xf32>
    %c0_333 = arith.constant 0 : index
    %c47_334 = arith.constant 47 : index
    %799 = memref.load %arg5[%c0_333, %c47_334] : memref<2x49xf32, #tpu.memory_space<smem>>
    %800 = vector.extract_strided_slice %797 {offsets = [0, 0], sizes = [2, 256], strides = [1, 1]} : vector<8x256xf32> to vector<2x256xf32>
    %801 = vector.broadcast %799 : f32 to vector<2x256xf32>
    %802 = arith.mulf %801, %800 : vector<2x256xf32>
    %c1_335 = arith.constant 1 : index
    %c47_336 = arith.constant 47 : index
    %803 = memref.load %arg5[%c1_335, %c47_336] : memref<2x49xf32, #tpu.memory_space<smem>>
    %804 = vector.extract_strided_slice %797 {offsets = [2, 0], sizes = [2, 256], strides = [1, 1]} : vector<8x256xf32> to vector<2x256xf32>
    %805 = vector.broadcast %803 : f32 to vector<2x256xf32>
    %806 = arith.mulf %805, %804 : vector<2x256xf32>
    %807 = arith.addf %802, %806 : vector<2x256xf32>
    %808 = vector.broadcast %798 : vector<1x256xf32> to vector<2x256xf32>
    %809 = arith.mulf %808, %807 : vector<2x256xf32>
    %810 = arith.addf %796, %809 : vector<2x256xf32>
    %c205_i32 = arith.constant 205 : i32
    %811 = tpu.dynamic_rotate %138 by %c205_i32 dim 1 : vector<8x256xf32>, i32 -> vector<8x256xf32>
    %c48 = arith.constant 48 : index
    %c0_337 = arith.constant 0 : index
    %812 = vector.load %arg18[%c48, %c0_337] : memref<49x256xf32, #tpu.memory_space<vmem>>, vector<1x256xf32>
    %c0_338 = arith.constant 0 : index
    %c48_339 = arith.constant 48 : index
    %813 = memref.load %arg5[%c0_338, %c48_339] : memref<2x49xf32, #tpu.memory_space<smem>>
    %814 = vector.extract_strided_slice %811 {offsets = [0, 0], sizes = [2, 256], strides = [1, 1]} : vector<8x256xf32> to vector<2x256xf32>
    %815 = vector.broadcast %813 : f32 to vector<2x256xf32>
    %816 = arith.mulf %815, %814 : vector<2x256xf32>
    %c1_340 = arith.constant 1 : index
    %c48_341 = arith.constant 48 : index
    %817 = memref.load %arg5[%c1_340, %c48_341] : memref<2x49xf32, #tpu.memory_space<smem>>
    %818 = vector.extract_strided_slice %811 {offsets = [2, 0], sizes = [2, 256], strides = [1, 1]} : vector<8x256xf32> to vector<2x256xf32>
    %819 = vector.broadcast %817 : f32 to vector<2x256xf32>
    %820 = arith.mulf %819, %818 : vector<2x256xf32>
    %821 = arith.addf %816, %820 : vector<2x256xf32>
    %822 = vector.broadcast %812 : vector<1x256xf32> to vector<2x256xf32>
    %823 = arith.mulf %822, %821 : vector<2x256xf32>
    %824 = arith.addf %810, %823 : vector<2x256xf32>
    %825 = arith.negf %824 : vector<2x256xf32>
    %826 = math.exp %825 : vector<2x256xf32>
    %cst_342 = arith.constant 1.000000e+00 : f32
    %827 = vector.broadcast %cst_342 : f32 to vector<2x256xf32>
    %828 = arith.addf %827, %826 : vector<2x256xf32>
    %829 = arith.divf %827, %828 : vector<2x256xf32>
    %830 = vector.extract_strided_slice %829 {offsets = [0, 0], sizes = [1, 256], strides = [1, 1]} : vector<2x256xf32> to vector<1x256xf32>
    %831 = vector.broadcast %830 : vector<1x256xf32> to vector<32x256xf32>
    %832 = arith.mulf %61, %831 : vector<32x256xf32>
    %c0_343 = arith.constant 0 : index
    %c0_344 = arith.constant 0 : index
    %c0_345 = arith.constant 0 : index
    %833 = vector.load %arg0[%c0_343, %c0_344, %c0_345] : memref<2x32x256xf32, #tpu.memory_space<vmem>>, vector<1x32x256xf32>
    %834 = vector.shape_cast %833 : vector<1x32x256xf32> to vector<32x256xf32>
    %835 = arith.addf %832, %834 : vector<32x256xf32>
    %836 = vector.extract_strided_slice %829 {offsets = [1, 0], sizes = [1, 256], strides = [1, 1]} : vector<2x256xf32> to vector<1x256xf32>
    %837 = vector.broadcast %836 : vector<1x256xf32> to vector<32x256xf32>
    %838 = arith.mulf %129, %837 : vector<32x256xf32>
    %c1_346 = arith.constant 1 : index
    %c0_347 = arith.constant 0 : index
    %c0_348 = arith.constant 0 : index
    %839 = vector.load %arg0[%c1_346, %c0_347, %c0_348] : memref<2x32x256xf32, #tpu.memory_space<vmem>>, vector<1x32x256xf32>
    %840 = vector.shape_cast %839 : vector<1x32x256xf32> to vector<32x256xf32>
    %841 = arith.addf %838, %840 : vector<32x256xf32>
    %c0_349 = arith.constant 0 : index
    %c0_350 = arith.constant 0 : index
    %842 = vector.load %arg16[%c0_349, %c0_350] : memref<9x256xf32, #tpu.memory_space<vmem>>, vector<1x256xf32>
    %c17_i32_351 = arith.constant 17 : i32
    %843 = tpu.dynamic_rotate %835 by %c17_i32_351 dim 1 : vector<32x256xf32>, i32 -> vector<32x256xf32>
    %844 = vector.broadcast %842 : vector<1x256xf32> to vector<32x256xf32>
    %845 = arith.mulf %843, %844 : vector<32x256xf32>
    %c1_352 = arith.constant 1 : index
    %c0_353 = arith.constant 0 : index
    %846 = vector.load %arg16[%c1_352, %c0_353] : memref<9x256xf32, #tpu.memory_space<vmem>>, vector<1x256xf32>
    %c16_i32_354 = arith.constant 16 : i32
    %847 = tpu.dynamic_rotate %835 by %c16_i32_354 dim 1 : vector<32x256xf32>, i32 -> vector<32x256xf32>
    %848 = vector.broadcast %846 : vector<1x256xf32> to vector<32x256xf32>
    %849 = arith.mulf %847, %848 : vector<32x256xf32>
    %c2_355 = arith.constant 2 : index
    %c0_356 = arith.constant 0 : index
    %850 = vector.load %arg16[%c2_355, %c0_356] : memref<9x256xf32, #tpu.memory_space<vmem>>, vector<1x256xf32>
    %c15_i32_357 = arith.constant 15 : i32
    %851 = tpu.dynamic_rotate %835 by %c15_i32_357 dim 1 : vector<32x256xf32>, i32 -> vector<32x256xf32>
    %852 = vector.broadcast %850 : vector<1x256xf32> to vector<32x256xf32>
    %853 = arith.mulf %851, %852 : vector<32x256xf32>
    %c3_358 = arith.constant 3 : index
    %c0_359 = arith.constant 0 : index
    %854 = vector.load %arg16[%c3_358, %c0_359] : memref<9x256xf32, #tpu.memory_space<vmem>>, vector<1x256xf32>
    %c1_i32_360 = arith.constant 1 : i32
    %855 = tpu.dynamic_rotate %835 by %c1_i32_360 dim 1 : vector<32x256xf32>, i32 -> vector<32x256xf32>
    %856 = vector.broadcast %854 : vector<1x256xf32> to vector<32x256xf32>
    %857 = arith.mulf %855, %856 : vector<32x256xf32>
    %c4_361 = arith.constant 4 : index
    %c0_362 = arith.constant 0 : index
    %858 = vector.load %arg16[%c4_361, %c0_362] : memref<9x256xf32, #tpu.memory_space<vmem>>, vector<1x256xf32>
    %859 = vector.broadcast %858 : vector<1x256xf32> to vector<32x256xf32>
    %860 = arith.mulf %835, %859 : vector<32x256xf32>
    %c5_363 = arith.constant 5 : index
    %c0_364 = arith.constant 0 : index
    %861 = vector.load %arg16[%c5_363, %c0_364] : memref<9x256xf32, #tpu.memory_space<vmem>>, vector<1x256xf32>
    %c255_i32_365 = arith.constant 255 : i32
    %862 = tpu.dynamic_rotate %835 by %c255_i32_365 dim 1 : vector<32x256xf32>, i32 -> vector<32x256xf32>
    %863 = vector.broadcast %861 : vector<1x256xf32> to vector<32x256xf32>
    %864 = arith.mulf %862, %863 : vector<32x256xf32>
    %c6_366 = arith.constant 6 : index
    %c0_367 = arith.constant 0 : index
    %865 = vector.load %arg16[%c6_366, %c0_367] : memref<9x256xf32, #tpu.memory_space<vmem>>, vector<1x256xf32>
    %c241_i32_368 = arith.constant 241 : i32
    %866 = tpu.dynamic_rotate %835 by %c241_i32_368 dim 1 : vector<32x256xf32>, i32 -> vector<32x256xf32>
    %867 = vector.broadcast %865 : vector<1x256xf32> to vector<32x256xf32>
    %868 = arith.mulf %866, %867 : vector<32x256xf32>
    %c7_369 = arith.constant 7 : index
    %c0_370 = arith.constant 0 : index
    %869 = vector.load %arg16[%c7_369, %c0_370] : memref<9x256xf32, #tpu.memory_space<vmem>>, vector<1x256xf32>
    %c240_i32_371 = arith.constant 240 : i32
    %870 = tpu.dynamic_rotate %835 by %c240_i32_371 dim 1 : vector<32x256xf32>, i32 -> vector<32x256xf32>
    %871 = vector.broadcast %869 : vector<1x256xf32> to vector<32x256xf32>
    %872 = arith.mulf %870, %871 : vector<32x256xf32>
    %c8_372 = arith.constant 8 : index
    %c0_373 = arith.constant 0 : index
    %873 = vector.load %arg16[%c8_372, %c0_373] : memref<9x256xf32, #tpu.memory_space<vmem>>, vector<1x256xf32>
    %c239_i32_374 = arith.constant 239 : i32
    %874 = tpu.dynamic_rotate %835 by %c239_i32_374 dim 1 : vector<32x256xf32>, i32 -> vector<32x256xf32>
    %875 = vector.broadcast %873 : vector<1x256xf32> to vector<32x256xf32>
    %876 = arith.mulf %874, %875 : vector<32x256xf32>
    %877 = tpu.concatenate %845, %849, %853, %857, %860, %864, %868, %872, %876 in 0 : vector<32x256xf32>, vector<32x256xf32>, vector<32x256xf32>, vector<32x256xf32>, vector<32x256xf32>, vector<32x256xf32>, vector<32x256xf32>, vector<32x256xf32>, vector<32x256xf32> -> vector<288x256xf32>
    %c0_375 = arith.constant 0 : index
    %c0_376 = arith.constant 0 : index
    %878 = vector.load %arg6[%c0_375, %c0_376] : memref<32x288xf32, #tpu.memory_space<vmem>>, vector<32x288xf32>
    %cst_377 = arith.constant dense<0.000000e+00> : vector<32x256xf32>
    %879 = tpu.matmul %878, %877, %cst_377 {dimension_numbers = #tpu.dot_dimension_numbers<[1], [0], [0], [1], [0, 0, 1, 1], [], []>} : vector<32x288xf32>, vector<288x256xf32>, vector<32x256xf32> -> vector<32x256xf32>
    %c0_378 = arith.constant 0 : index
    %c0_379 = arith.constant 0 : index
    %880 = vector.load %arg7[%c0_378, %c0_379] : memref<32x1xf32, #tpu.memory_space<vmem>>, vector<32x1xf32>
    %881 = vector.broadcast %880 : vector<32x1xf32> to vector<32x256xf32>
    %882 = arith.addf %879, %881 : vector<32x256xf32>
    %cst_380 = arith.constant 0.000000e+00 : f32
    %883 = vector.broadcast %cst_380 : f32 to vector<32x256xf32>
    %884 = arith.maximumf %882, %883 : vector<32x256xf32>
    %c0_381 = arith.constant 0 : index
    %c0_382 = arith.constant 0 : index
    %885 = vector.load %arg16[%c0_381, %c0_382] : memref<9x256xf32, #tpu.memory_space<vmem>>, vector<1x256xf32>
    %c17_i32_383 = arith.constant 17 : i32
    %886 = tpu.dynamic_rotate %841 by %c17_i32_383 dim 1 : vector<32x256xf32>, i32 -> vector<32x256xf32>
    %887 = vector.broadcast %885 : vector<1x256xf32> to vector<32x256xf32>
    %888 = arith.mulf %886, %887 : vector<32x256xf32>
    %c1_384 = arith.constant 1 : index
    %c0_385 = arith.constant 0 : index
    %889 = vector.load %arg16[%c1_384, %c0_385] : memref<9x256xf32, #tpu.memory_space<vmem>>, vector<1x256xf32>
    %c16_i32_386 = arith.constant 16 : i32
    %890 = tpu.dynamic_rotate %841 by %c16_i32_386 dim 1 : vector<32x256xf32>, i32 -> vector<32x256xf32>
    %891 = vector.broadcast %889 : vector<1x256xf32> to vector<32x256xf32>
    %892 = arith.mulf %890, %891 : vector<32x256xf32>
    %c2_387 = arith.constant 2 : index
    %c0_388 = arith.constant 0 : index
    %893 = vector.load %arg16[%c2_387, %c0_388] : memref<9x256xf32, #tpu.memory_space<vmem>>, vector<1x256xf32>
    %c15_i32_389 = arith.constant 15 : i32
    %894 = tpu.dynamic_rotate %841 by %c15_i32_389 dim 1 : vector<32x256xf32>, i32 -> vector<32x256xf32>
    %895 = vector.broadcast %893 : vector<1x256xf32> to vector<32x256xf32>
    %896 = arith.mulf %894, %895 : vector<32x256xf32>
    %c3_390 = arith.constant 3 : index
    %c0_391 = arith.constant 0 : index
    %897 = vector.load %arg16[%c3_390, %c0_391] : memref<9x256xf32, #tpu.memory_space<vmem>>, vector<1x256xf32>
    %c1_i32_392 = arith.constant 1 : i32
    %898 = tpu.dynamic_rotate %841 by %c1_i32_392 dim 1 : vector<32x256xf32>, i32 -> vector<32x256xf32>
    %899 = vector.broadcast %897 : vector<1x256xf32> to vector<32x256xf32>
    %900 = arith.mulf %898, %899 : vector<32x256xf32>
    %c4_393 = arith.constant 4 : index
    %c0_394 = arith.constant 0 : index
    %901 = vector.load %arg16[%c4_393, %c0_394] : memref<9x256xf32, #tpu.memory_space<vmem>>, vector<1x256xf32>
    %902 = vector.broadcast %901 : vector<1x256xf32> to vector<32x256xf32>
    %903 = arith.mulf %841, %902 : vector<32x256xf32>
    %c5_395 = arith.constant 5 : index
    %c0_396 = arith.constant 0 : index
    %904 = vector.load %arg16[%c5_395, %c0_396] : memref<9x256xf32, #tpu.memory_space<vmem>>, vector<1x256xf32>
    %c255_i32_397 = arith.constant 255 : i32
    %905 = tpu.dynamic_rotate %841 by %c255_i32_397 dim 1 : vector<32x256xf32>, i32 -> vector<32x256xf32>
    %906 = vector.broadcast %904 : vector<1x256xf32> to vector<32x256xf32>
    %907 = arith.mulf %905, %906 : vector<32x256xf32>
    %c6_398 = arith.constant 6 : index
    %c0_399 = arith.constant 0 : index
    %908 = vector.load %arg16[%c6_398, %c0_399] : memref<9x256xf32, #tpu.memory_space<vmem>>, vector<1x256xf32>
    %c241_i32_400 = arith.constant 241 : i32
    %909 = tpu.dynamic_rotate %841 by %c241_i32_400 dim 1 : vector<32x256xf32>, i32 -> vector<32x256xf32>
    %910 = vector.broadcast %908 : vector<1x256xf32> to vector<32x256xf32>
    %911 = arith.mulf %909, %910 : vector<32x256xf32>
    %c7_401 = arith.constant 7 : index
    %c0_402 = arith.constant 0 : index
    %912 = vector.load %arg16[%c7_401, %c0_402] : memref<9x256xf32, #tpu.memory_space<vmem>>, vector<1x256xf32>
    %c240_i32_403 = arith.constant 240 : i32
    %913 = tpu.dynamic_rotate %841 by %c240_i32_403 dim 1 : vector<32x256xf32>, i32 -> vector<32x256xf32>
    %914 = vector.broadcast %912 : vector<1x256xf32> to vector<32x256xf32>
    %915 = arith.mulf %913, %914 : vector<32x256xf32>
    %c8_404 = arith.constant 8 : index
    %c0_405 = arith.constant 0 : index
    %916 = vector.load %arg16[%c8_404, %c0_405] : memref<9x256xf32, #tpu.memory_space<vmem>>, vector<1x256xf32>
    %c239_i32_406 = arith.constant 239 : i32
    %917 = tpu.dynamic_rotate %841 by %c239_i32_406 dim 1 : vector<32x256xf32>, i32 -> vector<32x256xf32>
    %918 = vector.broadcast %916 : vector<1x256xf32> to vector<32x256xf32>
    %919 = arith.mulf %917, %918 : vector<32x256xf32>
    %920 = tpu.concatenate %888, %892, %896, %900, %903, %907, %911, %915, %919 in 0 : vector<32x256xf32>, vector<32x256xf32>, vector<32x256xf32>, vector<32x256xf32>, vector<32x256xf32>, vector<32x256xf32>, vector<32x256xf32>, vector<32x256xf32>, vector<32x256xf32> -> vector<288x256xf32>
    %c0_407 = arith.constant 0 : index
    %c0_408 = arith.constant 0 : index
    %921 = vector.load %arg6[%c0_407, %c0_408] : memref<32x288xf32, #tpu.memory_space<vmem>>, vector<32x288xf32>
    %cst_409 = arith.constant dense<0.000000e+00> : vector<32x256xf32>
    %922 = tpu.matmul %921, %920, %cst_409 {dimension_numbers = #tpu.dot_dimension_numbers<[1], [0], [0], [1], [0, 0, 1, 1], [], []>} : vector<32x288xf32>, vector<288x256xf32>, vector<32x256xf32> -> vector<32x256xf32>
    %c0_410 = arith.constant 0 : index
    %c0_411 = arith.constant 0 : index
    %923 = vector.load %arg7[%c0_410, %c0_411] : memref<32x1xf32, #tpu.memory_space<vmem>>, vector<32x1xf32>
    %924 = vector.broadcast %923 : vector<32x1xf32> to vector<32x256xf32>
    %925 = arith.addf %922, %924 : vector<32x256xf32>
    %cst_412 = arith.constant 0.000000e+00 : f32
    %926 = vector.broadcast %cst_412 : f32 to vector<32x256xf32>
    %927 = arith.maximumf %925, %926 : vector<32x256xf32>
    %928 = tpu.concatenate %884, %927 in 0 : vector<32x256xf32>, vector<32x256xf32> -> vector<64x256xf32>
    %c0_413 = arith.constant 0 : index
    %c0_414 = arith.constant 0 : index
    %929 = vector.load %arg10[%c0_413, %c0_414] : memref<256x512xf32, #tpu.memory_space<vmem>>, vector<256x512xf32>
    %cst_415 = arith.constant dense<0.000000e+00> : vector<64x512xf32>
    %930 = tpu.matmul %928, %929, %cst_415 {dimension_numbers = #tpu.dot_dimension_numbers<[1], [0], [0], [1], [0, 0, 1, 1], [], []>} : vector<64x256xf32>, vector<256x512xf32>, vector<64x512xf32> -> vector<64x512xf32>
    %931 = vector.extract_strided_slice %930 {offsets = [0, 0], sizes = [64, 256], strides = [1, 1]} : vector<64x512xf32> to vector<64x256xf32>
    %932 = vector.extract_strided_slice %930 {offsets = [0, 256], sizes = [64, 256], strides = [1, 1]} : vector<64x512xf32> to vector<64x256xf32>
    %933 = vector.extract_strided_slice %931 {offsets = [0, 0], sizes = [32, 256], strides = [1, 1]} : vector<64x256xf32> to vector<32x256xf32>
    %934 = vector.extract_strided_slice %932 {offsets = [0, 0], sizes = [32, 256], strides = [1, 1]} : vector<64x256xf32> to vector<32x256xf32>
    %c0_416 = arith.constant 0 : index
    %c0_417 = arith.constant 0 : index
    %935 = vector.load %arg17[%c0_416, %c0_417] : memref<9x256xf32, #tpu.memory_space<vmem>>, vector<1x256xf32>
    %c17_i32_418 = arith.constant 17 : i32
    %936 = tpu.dynamic_rotate %933 by %c17_i32_418 dim 1 : vector<32x256xf32>, i32 -> vector<32x256xf32>
    %937 = vector.broadcast %935 : vector<1x256xf32> to vector<32x256xf32>
    %938 = arith.mulf %936, %937 : vector<32x256xf32>
    %c17_i32_419 = arith.constant 17 : i32
    %939 = tpu.dynamic_rotate %934 by %c17_i32_419 dim 1 : vector<32x256xf32>, i32 -> vector<32x256xf32>
    %940 = vector.broadcast %935 : vector<1x256xf32> to vector<32x256xf32>
    %941 = arith.mulf %939, %940 : vector<32x256xf32>
    %c1_420 = arith.constant 1 : index
    %c0_421 = arith.constant 0 : index
    %942 = vector.load %arg17[%c1_420, %c0_421] : memref<9x256xf32, #tpu.memory_space<vmem>>, vector<1x256xf32>
    %c16_i32_422 = arith.constant 16 : i32
    %943 = tpu.dynamic_rotate %933 by %c16_i32_422 dim 1 : vector<32x256xf32>, i32 -> vector<32x256xf32>
    %944 = vector.broadcast %942 : vector<1x256xf32> to vector<32x256xf32>
    %945 = arith.mulf %943, %944 : vector<32x256xf32>
    %c16_i32_423 = arith.constant 16 : i32
    %946 = tpu.dynamic_rotate %934 by %c16_i32_423 dim 1 : vector<32x256xf32>, i32 -> vector<32x256xf32>
    %947 = vector.broadcast %942 : vector<1x256xf32> to vector<32x256xf32>
    %948 = arith.mulf %946, %947 : vector<32x256xf32>
    %c2_424 = arith.constant 2 : index
    %c0_425 = arith.constant 0 : index
    %949 = vector.load %arg17[%c2_424, %c0_425] : memref<9x256xf32, #tpu.memory_space<vmem>>, vector<1x256xf32>
    %c15_i32_426 = arith.constant 15 : i32
    %950 = tpu.dynamic_rotate %933 by %c15_i32_426 dim 1 : vector<32x256xf32>, i32 -> vector<32x256xf32>
    %951 = vector.broadcast %949 : vector<1x256xf32> to vector<32x256xf32>
    %952 = arith.mulf %950, %951 : vector<32x256xf32>
    %c15_i32_427 = arith.constant 15 : i32
    %953 = tpu.dynamic_rotate %934 by %c15_i32_427 dim 1 : vector<32x256xf32>, i32 -> vector<32x256xf32>
    %954 = vector.broadcast %949 : vector<1x256xf32> to vector<32x256xf32>
    %955 = arith.mulf %953, %954 : vector<32x256xf32>
    %c3_428 = arith.constant 3 : index
    %c0_429 = arith.constant 0 : index
    %956 = vector.load %arg17[%c3_428, %c0_429] : memref<9x256xf32, #tpu.memory_space<vmem>>, vector<1x256xf32>
    %c1_i32_430 = arith.constant 1 : i32
    %957 = tpu.dynamic_rotate %933 by %c1_i32_430 dim 1 : vector<32x256xf32>, i32 -> vector<32x256xf32>
    %958 = vector.broadcast %956 : vector<1x256xf32> to vector<32x256xf32>
    %959 = arith.mulf %957, %958 : vector<32x256xf32>
    %c1_i32_431 = arith.constant 1 : i32
    %960 = tpu.dynamic_rotate %934 by %c1_i32_431 dim 1 : vector<32x256xf32>, i32 -> vector<32x256xf32>
    %961 = vector.broadcast %956 : vector<1x256xf32> to vector<32x256xf32>
    %962 = arith.mulf %960, %961 : vector<32x256xf32>
    %c4_432 = arith.constant 4 : index
    %c0_433 = arith.constant 0 : index
    %963 = vector.load %arg17[%c4_432, %c0_433] : memref<9x256xf32, #tpu.memory_space<vmem>>, vector<1x256xf32>
    %964 = vector.broadcast %963 : vector<1x256xf32> to vector<32x256xf32>
    %965 = arith.mulf %933, %964 : vector<32x256xf32>
    %966 = vector.broadcast %963 : vector<1x256xf32> to vector<32x256xf32>
    %967 = arith.mulf %934, %966 : vector<32x256xf32>
    %c5_434 = arith.constant 5 : index
    %c0_435 = arith.constant 0 : index
    %968 = vector.load %arg17[%c5_434, %c0_435] : memref<9x256xf32, #tpu.memory_space<vmem>>, vector<1x256xf32>
    %c255_i32_436 = arith.constant 255 : i32
    %969 = tpu.dynamic_rotate %933 by %c255_i32_436 dim 1 : vector<32x256xf32>, i32 -> vector<32x256xf32>
    %970 = vector.broadcast %968 : vector<1x256xf32> to vector<32x256xf32>
    %971 = arith.mulf %969, %970 : vector<32x256xf32>
    %c255_i32_437 = arith.constant 255 : i32
    %972 = tpu.dynamic_rotate %934 by %c255_i32_437 dim 1 : vector<32x256xf32>, i32 -> vector<32x256xf32>
    %973 = vector.broadcast %968 : vector<1x256xf32> to vector<32x256xf32>
    %974 = arith.mulf %972, %973 : vector<32x256xf32>
    %c6_438 = arith.constant 6 : index
    %c0_439 = arith.constant 0 : index
    %975 = vector.load %arg17[%c6_438, %c0_439] : memref<9x256xf32, #tpu.memory_space<vmem>>, vector<1x256xf32>
    %c241_i32_440 = arith.constant 241 : i32
    %976 = tpu.dynamic_rotate %933 by %c241_i32_440 dim 1 : vector<32x256xf32>, i32 -> vector<32x256xf32>
    %977 = vector.broadcast %975 : vector<1x256xf32> to vector<32x256xf32>
    %978 = arith.mulf %976, %977 : vector<32x256xf32>
    %c241_i32_441 = arith.constant 241 : i32
    %979 = tpu.dynamic_rotate %934 by %c241_i32_441 dim 1 : vector<32x256xf32>, i32 -> vector<32x256xf32>
    %980 = vector.broadcast %975 : vector<1x256xf32> to vector<32x256xf32>
    %981 = arith.mulf %979, %980 : vector<32x256xf32>
    %c7_442 = arith.constant 7 : index
    %c0_443 = arith.constant 0 : index
    %982 = vector.load %arg17[%c7_442, %c0_443] : memref<9x256xf32, #tpu.memory_space<vmem>>, vector<1x256xf32>
    %c240_i32_444 = arith.constant 240 : i32
    %983 = tpu.dynamic_rotate %933 by %c240_i32_444 dim 1 : vector<32x256xf32>, i32 -> vector<32x256xf32>
    %984 = vector.broadcast %982 : vector<1x256xf32> to vector<32x256xf32>
    %985 = arith.mulf %983, %984 : vector<32x256xf32>
    %c240_i32_445 = arith.constant 240 : i32
    %986 = tpu.dynamic_rotate %934 by %c240_i32_445 dim 1 : vector<32x256xf32>, i32 -> vector<32x256xf32>
    %987 = vector.broadcast %982 : vector<1x256xf32> to vector<32x256xf32>
    %988 = arith.mulf %986, %987 : vector<32x256xf32>
    %c8_446 = arith.constant 8 : index
    %c0_447 = arith.constant 0 : index
    %989 = vector.load %arg17[%c8_446, %c0_447] : memref<9x256xf32, #tpu.memory_space<vmem>>, vector<1x256xf32>
    %c239_i32_448 = arith.constant 239 : i32
    %990 = tpu.dynamic_rotate %933 by %c239_i32_448 dim 1 : vector<32x256xf32>, i32 -> vector<32x256xf32>
    %991 = vector.broadcast %989 : vector<1x256xf32> to vector<32x256xf32>
    %992 = arith.mulf %990, %991 : vector<32x256xf32>
    %c239_i32_449 = arith.constant 239 : i32
    %993 = tpu.dynamic_rotate %934 by %c239_i32_449 dim 1 : vector<32x256xf32>, i32 -> vector<32x256xf32>
    %994 = vector.broadcast %989 : vector<1x256xf32> to vector<32x256xf32>
    %995 = arith.mulf %993, %994 : vector<32x256xf32>
    %996 = tpu.concatenate %938, %941, %945, %948, %952, %955, %959, %962, %965, %967, %971, %974, %978, %981, %985, %988 in 0 : vector<32x256xf32>, vector<32x256xf32>, vector<32x256xf32>, vector<32x256xf32>, vector<32x256xf32>, vector<32x256xf32>, vector<32x256xf32>, vector<32x256xf32>, vector<32x256xf32>, vector<32x256xf32>, vector<32x256xf32>, vector<32x256xf32>, vector<32x256xf32>, vector<32x256xf32>, vector<32x256xf32>, vector<32x256xf32> -> vector<512x256xf32>
    %997 = tpu.concatenate %992, %995 in 0 : vector<32x256xf32>, vector<32x256xf32> -> vector<64x256xf32>
    %998 = tpu.concatenate %996, %997 in 0 : vector<512x256xf32>, vector<64x256xf32> -> vector<576x256xf32>
    %c0_450 = arith.constant 0 : index
    %c0_451 = arith.constant 0 : index
    %999 = vector.load %arg8[%c0_450, %c0_451] : memref<32x576xf32, #tpu.memory_space<vmem>>, vector<32x576xf32>
    %cst_452 = arith.constant dense<0.000000e+00> : vector<32x256xf32>
    %1000 = tpu.matmul %999, %998, %cst_452 {dimension_numbers = #tpu.dot_dimension_numbers<[1], [0], [0], [1], [0, 0, 1, 1], [], []>} : vector<32x576xf32>, vector<576x256xf32>, vector<32x256xf32> -> vector<32x256xf32>
    %c0_453 = arith.constant 0 : index
    %c0_454 = arith.constant 0 : index
    %1001 = vector.load %arg9[%c0_453, %c0_454] : memref<32x1xf32, #tpu.memory_space<vmem>>, vector<32x1xf32>
    %1002 = vector.broadcast %1001 : vector<32x1xf32> to vector<32x256xf32>
    %1003 = arith.addf %1000, %1002 : vector<32x256xf32>
    %cst_455 = arith.constant 0.000000e+00 : f32
    %1004 = vector.broadcast %cst_455 : f32 to vector<32x256xf32>
    %1005 = arith.maximumf %1003, %1004 : vector<32x256xf32>
    %1006 = vector.extract_strided_slice %931 {offsets = [32, 0], sizes = [32, 256], strides = [1, 1]} : vector<64x256xf32> to vector<32x256xf32>
    %1007 = vector.extract_strided_slice %932 {offsets = [32, 0], sizes = [32, 256], strides = [1, 1]} : vector<64x256xf32> to vector<32x256xf32>
    %c0_456 = arith.constant 0 : index
    %c0_457 = arith.constant 0 : index
    %1008 = vector.load %arg17[%c0_456, %c0_457] : memref<9x256xf32, #tpu.memory_space<vmem>>, vector<1x256xf32>
    %c17_i32_458 = arith.constant 17 : i32
    %1009 = tpu.dynamic_rotate %1006 by %c17_i32_458 dim 1 : vector<32x256xf32>, i32 -> vector<32x256xf32>
    %1010 = vector.broadcast %1008 : vector<1x256xf32> to vector<32x256xf32>
    %1011 = arith.mulf %1009, %1010 : vector<32x256xf32>
    %c17_i32_459 = arith.constant 17 : i32
    %1012 = tpu.dynamic_rotate %1007 by %c17_i32_459 dim 1 : vector<32x256xf32>, i32 -> vector<32x256xf32>
    %1013 = vector.broadcast %1008 : vector<1x256xf32> to vector<32x256xf32>
    %1014 = arith.mulf %1012, %1013 : vector<32x256xf32>
    %c1_460 = arith.constant 1 : index
    %c0_461 = arith.constant 0 : index
    %1015 = vector.load %arg17[%c1_460, %c0_461] : memref<9x256xf32, #tpu.memory_space<vmem>>, vector<1x256xf32>
    %c16_i32_462 = arith.constant 16 : i32
    %1016 = tpu.dynamic_rotate %1006 by %c16_i32_462 dim 1 : vector<32x256xf32>, i32 -> vector<32x256xf32>
    %1017 = vector.broadcast %1015 : vector<1x256xf32> to vector<32x256xf32>
    %1018 = arith.mulf %1016, %1017 : vector<32x256xf32>
    %c16_i32_463 = arith.constant 16 : i32
    %1019 = tpu.dynamic_rotate %1007 by %c16_i32_463 dim 1 : vector<32x256xf32>, i32 -> vector<32x256xf32>
    %1020 = vector.broadcast %1015 : vector<1x256xf32> to vector<32x256xf32>
    %1021 = arith.mulf %1019, %1020 : vector<32x256xf32>
    %c2_464 = arith.constant 2 : index
    %c0_465 = arith.constant 0 : index
    %1022 = vector.load %arg17[%c2_464, %c0_465] : memref<9x256xf32, #tpu.memory_space<vmem>>, vector<1x256xf32>
    %c15_i32_466 = arith.constant 15 : i32
    %1023 = tpu.dynamic_rotate %1006 by %c15_i32_466 dim 1 : vector<32x256xf32>, i32 -> vector<32x256xf32>
    %1024 = vector.broadcast %1022 : vector<1x256xf32> to vector<32x256xf32>
    %1025 = arith.mulf %1023, %1024 : vector<32x256xf32>
    %c15_i32_467 = arith.constant 15 : i32
    %1026 = tpu.dynamic_rotate %1007 by %c15_i32_467 dim 1 : vector<32x256xf32>, i32 -> vector<32x256xf32>
    %1027 = vector.broadcast %1022 : vector<1x256xf32> to vector<32x256xf32>
    %1028 = arith.mulf %1026, %1027 : vector<32x256xf32>
    %c3_468 = arith.constant 3 : index
    %c0_469 = arith.constant 0 : index
    %1029 = vector.load %arg17[%c3_468, %c0_469] : memref<9x256xf32, #tpu.memory_space<vmem>>, vector<1x256xf32>
    %c1_i32_470 = arith.constant 1 : i32
    %1030 = tpu.dynamic_rotate %1006 by %c1_i32_470 dim 1 : vector<32x256xf32>, i32 -> vector<32x256xf32>
    %1031 = vector.broadcast %1029 : vector<1x256xf32> to vector<32x256xf32>
    %1032 = arith.mulf %1030, %1031 : vector<32x256xf32>
    %c1_i32_471 = arith.constant 1 : i32
    %1033 = tpu.dynamic_rotate %1007 by %c1_i32_471 dim 1 : vector<32x256xf32>, i32 -> vector<32x256xf32>
    %1034 = vector.broadcast %1029 : vector<1x256xf32> to vector<32x256xf32>
    %1035 = arith.mulf %1033, %1034 : vector<32x256xf32>
    %c4_472 = arith.constant 4 : index
    %c0_473 = arith.constant 0 : index
    %1036 = vector.load %arg17[%c4_472, %c0_473] : memref<9x256xf32, #tpu.memory_space<vmem>>, vector<1x256xf32>
    %1037 = vector.broadcast %1036 : vector<1x256xf32> to vector<32x256xf32>
    %1038 = arith.mulf %1006, %1037 : vector<32x256xf32>
    %1039 = vector.broadcast %1036 : vector<1x256xf32> to vector<32x256xf32>
    %1040 = arith.mulf %1007, %1039 : vector<32x256xf32>
    %c5_474 = arith.constant 5 : index
    %c0_475 = arith.constant 0 : index
    %1041 = vector.load %arg17[%c5_474, %c0_475] : memref<9x256xf32, #tpu.memory_space<vmem>>, vector<1x256xf32>
    %c255_i32_476 = arith.constant 255 : i32
    %1042 = tpu.dynamic_rotate %1006 by %c255_i32_476 dim 1 : vector<32x256xf32>, i32 -> vector<32x256xf32>
    %1043 = vector.broadcast %1041 : vector<1x256xf32> to vector<32x256xf32>
    %1044 = arith.mulf %1042, %1043 : vector<32x256xf32>
    %c255_i32_477 = arith.constant 255 : i32
    %1045 = tpu.dynamic_rotate %1007 by %c255_i32_477 dim 1 : vector<32x256xf32>, i32 -> vector<32x256xf32>
    %1046 = vector.broadcast %1041 : vector<1x256xf32> to vector<32x256xf32>
    %1047 = arith.mulf %1045, %1046 : vector<32x256xf32>
    %c6_478 = arith.constant 6 : index
    %c0_479 = arith.constant 0 : index
    %1048 = vector.load %arg17[%c6_478, %c0_479] : memref<9x256xf32, #tpu.memory_space<vmem>>, vector<1x256xf32>
    %c241_i32_480 = arith.constant 241 : i32
    %1049 = tpu.dynamic_rotate %1006 by %c241_i32_480 dim 1 : vector<32x256xf32>, i32 -> vector<32x256xf32>
    %1050 = vector.broadcast %1048 : vector<1x256xf32> to vector<32x256xf32>
    %1051 = arith.mulf %1049, %1050 : vector<32x256xf32>
    %c241_i32_481 = arith.constant 241 : i32
    %1052 = tpu.dynamic_rotate %1007 by %c241_i32_481 dim 1 : vector<32x256xf32>, i32 -> vector<32x256xf32>
    %1053 = vector.broadcast %1048 : vector<1x256xf32> to vector<32x256xf32>
    %1054 = arith.mulf %1052, %1053 : vector<32x256xf32>
    %c7_482 = arith.constant 7 : index
    %c0_483 = arith.constant 0 : index
    %1055 = vector.load %arg17[%c7_482, %c0_483] : memref<9x256xf32, #tpu.memory_space<vmem>>, vector<1x256xf32>
    %c240_i32_484 = arith.constant 240 : i32
    %1056 = tpu.dynamic_rotate %1006 by %c240_i32_484 dim 1 : vector<32x256xf32>, i32 -> vector<32x256xf32>
    %1057 = vector.broadcast %1055 : vector<1x256xf32> to vector<32x256xf32>
    %1058 = arith.mulf %1056, %1057 : vector<32x256xf32>
    %c240_i32_485 = arith.constant 240 : i32
    %1059 = tpu.dynamic_rotate %1007 by %c240_i32_485 dim 1 : vector<32x256xf32>, i32 -> vector<32x256xf32>
    %1060 = vector.broadcast %1055 : vector<1x256xf32> to vector<32x256xf32>
    %1061 = arith.mulf %1059, %1060 : vector<32x256xf32>
    %c8_486 = arith.constant 8 : index
    %c0_487 = arith.constant 0 : index
    %1062 = vector.load %arg17[%c8_486, %c0_487] : memref<9x256xf32, #tpu.memory_space<vmem>>, vector<1x256xf32>
    %c239_i32_488 = arith.constant 239 : i32
    %1063 = tpu.dynamic_rotate %1006 by %c239_i32_488 dim 1 : vector<32x256xf32>, i32 -> vector<32x256xf32>
    %1064 = vector.broadcast %1062 : vector<1x256xf32> to vector<32x256xf32>
    %1065 = arith.mulf %1063, %1064 : vector<32x256xf32>
    %c239_i32_489 = arith.constant 239 : i32
    %1066 = tpu.dynamic_rotate %1007 by %c239_i32_489 dim 1 : vector<32x256xf32>, i32 -> vector<32x256xf32>
    %1067 = vector.broadcast %1062 : vector<1x256xf32> to vector<32x256xf32>
    %1068 = arith.mulf %1066, %1067 : vector<32x256xf32>
    %1069 = tpu.concatenate %1011, %1014, %1018, %1021, %1025, %1028, %1032, %1035, %1038, %1040, %1044, %1047, %1051, %1054, %1058, %1061 in 0 : vector<32x256xf32>, vector<32x256xf32>, vector<32x256xf32>, vector<32x256xf32>, vector<32x256xf32>, vector<32x256xf32>, vector<32x256xf32>, vector<32x256xf32>, vector<32x256xf32>, vector<32x256xf32>, vector<32x256xf32>, vector<32x256xf32>, vector<32x256xf32>, vector<32x256xf32>, vector<32x256xf32>, vector<32x256xf32> -> vector<512x256xf32>
    %1070 = tpu.concatenate %1065, %1068 in 0 : vector<32x256xf32>, vector<32x256xf32> -> vector<64x256xf32>
    %1071 = tpu.concatenate %1069, %1070 in 0 : vector<512x256xf32>, vector<64x256xf32> -> vector<576x256xf32>
    %c0_490 = arith.constant 0 : index
    %c0_491 = arith.constant 0 : index
    %1072 = vector.load %arg8[%c0_490, %c0_491] : memref<32x576xf32, #tpu.memory_space<vmem>>, vector<32x576xf32>
    %cst_492 = arith.constant dense<0.000000e+00> : vector<32x256xf32>
    %1073 = tpu.matmul %1072, %1071, %cst_492 {dimension_numbers = #tpu.dot_dimension_numbers<[1], [0], [0], [1], [0, 0, 1, 1], [], []>} : vector<32x576xf32>, vector<576x256xf32>, vector<32x256xf32> -> vector<32x256xf32>
    %c0_493 = arith.constant 0 : index
    %c0_494 = arith.constant 0 : index
    %1074 = vector.load %arg9[%c0_493, %c0_494] : memref<32x1xf32, #tpu.memory_space<vmem>>, vector<32x1xf32>
    %1075 = vector.broadcast %1074 : vector<32x1xf32> to vector<32x256xf32>
    %1076 = arith.addf %1073, %1075 : vector<32x256xf32>
    %cst_495 = arith.constant 0.000000e+00 : f32
    %1077 = vector.broadcast %cst_495 : f32 to vector<32x256xf32>
    %1078 = arith.maximumf %1076, %1077 : vector<32x256xf32>
    %1079 = tpu.concatenate %1005, %1078 in 0 : vector<32x256xf32>, vector<32x256xf32> -> vector<64x256xf32>
    %c0_496 = arith.constant 0 : index
    %c0_497 = arith.constant 0 : index
    %1080 = vector.load %arg11[%c0_496, %c0_497] : memref<256x256xf32, #tpu.memory_space<vmem>>, vector<256x256xf32>
    %cst_498 = arith.constant dense<0.000000e+00> : vector<64x256xf32>
    %1081 = tpu.matmul %1079, %1080, %cst_498 {dimension_numbers = #tpu.dot_dimension_numbers<[1], [0], [0], [1], [0, 0, 1, 1], [], []>} : vector<64x256xf32>, vector<256x256xf32>, vector<64x256xf32> -> vector<64x256xf32>
    %1082 = vector.extract_strided_slice %1081 {offsets = [0, 0], sizes = [32, 256], strides = [1, 1]} : vector<64x256xf32> to vector<32x256xf32>
    %c0_499 = arith.constant 0 : index
    %c0_500 = arith.constant 0 : index
    %1083 = vector.load %arg12[%c0_499, %c0_500] : memref<32x32xf32, #tpu.memory_space<vmem>>, vector<32x32xf32>
    %cst_501 = arith.constant dense<0.000000e+00> : vector<32x256xf32>
    %1084 = tpu.matmul %1083, %1082, %cst_501 {dimension_numbers = #tpu.dot_dimension_numbers<[1], [0], [0], [1], [0, 0, 1, 1], [], []>} : vector<32x32xf32>, vector<32x256xf32>, vector<32x256xf32> -> vector<32x256xf32>
    %c0_502 = arith.constant 0 : index
    %c0_503 = arith.constant 0 : index
    %1085 = vector.load %arg13[%c0_502, %c0_503] : memref<32x1xf32, #tpu.memory_space<vmem>>, vector<32x1xf32>
    %1086 = vector.broadcast %1085 : vector<32x1xf32> to vector<32x256xf32>
    %1087 = arith.addf %1084, %1086 : vector<32x256xf32>
    %1088 = arith.addf %1087, %835 : vector<32x256xf32>
    %c0_504 = arith.constant 0 : index
    %c0_505 = arith.constant 0 : index
    %1089 = vector.load %arg14[%c0_504, %c0_505] : memref<32x32xf32, #tpu.memory_space<vmem>>, vector<32x32xf32>
    %cst_506 = arith.constant dense<0.000000e+00> : vector<32x256xf32>
    %1090 = tpu.matmul %1089, %1088, %cst_506 {dimension_numbers = #tpu.dot_dimension_numbers<[1], [0], [0], [1], [0, 0, 1, 1], [], []>} : vector<32x32xf32>, vector<32x256xf32>, vector<32x256xf32> -> vector<32x256xf32>
    %c0_507 = arith.constant 0 : index
    %c0_508 = arith.constant 0 : index
    %1091 = vector.load %arg15[%c0_507, %c0_508] : memref<32x1xf32, #tpu.memory_space<vmem>>, vector<32x1xf32>
    %1092 = vector.broadcast %1091 : vector<32x1xf32> to vector<32x256xf32>
    %1093 = arith.addf %1090, %1092 : vector<32x256xf32>
    %c0_509 = arith.constant 0 : index
    %c0_510 = arith.constant 0 : index
    %c0_511 = arith.constant 0 : index
    %1094 = vector.load %arg19[%c0_509, %c0_510, %c0_511] : memref<2x32x256xf32, #tpu.memory_space<vmem>>, vector<1x32x256xf32>
    %1095 = vector.shape_cast %1094 : vector<1x32x256xf32> to vector<32x256xf32>
    %1096 = vector.shape_cast %1093 : vector<32x256xf32> to vector<1x32x256xf32>
    tpu.vector_store %arg19[%c0_509, %c0_510, %c0_511], %1096 {strides = array<i32>} : memref<2x32x256xf32, #tpu.memory_space<vmem>>, vector<1x32x256xf32>,
    %1097 = vector.extract_strided_slice %1081 {offsets = [32, 0], sizes = [32, 256], strides = [1, 1]} : vector<64x256xf32> to vector<32x256xf32>
    %c0_512 = arith.constant 0 : index
    %c0_513 = arith.constant 0 : index
    %1098 = vector.load %arg12[%c0_512, %c0_513] : memref<32x32xf32, #tpu.memory_space<vmem>>, vector<32x32xf32>
    %cst_514 = arith.constant dense<0.000000e+00> : vector<32x256xf32>
    %1099 = tpu.matmul %1098, %1097, %cst_514 {dimension_numbers = #tpu.dot_dimension_numbers<[1], [0], [0], [1], [0, 0, 1, 1], [], []>} : vector<32x32xf32>, vector<32x256xf32>, vector<32x256xf32> -> vector<32x256xf32>
    %c0_515 = arith.constant 0 : index
    %c0_516 = arith.constant 0 : index
    %1100 = vector.load %arg13[%c0_515, %c0_516] : memref<32x1xf32, #tpu.memory_space<vmem>>, vector<32x1xf32>
    %1101 = vector.broadcast %1100 : vector<32x1xf32> to vector<32x256xf32>
    %1102 = arith.addf %1099, %1101 : vector<32x256xf32>
    %1103 = arith.addf %1102, %841 : vector<32x256xf32>
    %c0_517 = arith.constant 0 : index
    %c0_518 = arith.constant 0 : index
    %1104 = vector.load %arg14[%c0_517, %c0_518] : memref<32x32xf32, #tpu.memory_space<vmem>>, vector<32x32xf32>
    %cst_519 = arith.constant dense<0.000000e+00> : vector<32x256xf32>
    %1105 = tpu.matmul %1104, %1103, %cst_519 {dimension_numbers = #tpu.dot_dimension_numbers<[1], [0], [0], [1], [0, 0, 1, 1], [], []>} : vector<32x32xf32>, vector<32x256xf32>, vector<32x256xf32> -> vector<32x256xf32>
    %c0_520 = arith.constant 0 : index
    %c0_521 = arith.constant 0 : index
    %1106 = vector.load %arg15[%c0_520, %c0_521] : memref<32x1xf32, #tpu.memory_space<vmem>>, vector<32x1xf32>
    %1107 = vector.broadcast %1106 : vector<32x1xf32> to vector<32x256xf32>
    %1108 = arith.addf %1105, %1107 : vector<32x256xf32>
    %c1_522 = arith.constant 1 : index
    %c0_523 = arith.constant 0 : index
    %c0_524 = arith.constant 0 : index
    %1109 = vector.load %arg19[%c1_522, %c0_523, %c0_524] : memref<2x32x256xf32, #tpu.memory_space<vmem>>, vector<1x32x256xf32>
    %1110 = vector.shape_cast %1109 : vector<1x32x256xf32> to vector<32x256xf32>
    %1111 = vector.shape_cast %1108 : vector<32x256xf32> to vector<1x32x256xf32>
    tpu.vector_store %arg19[%c1_522, %c0_523, %c0_524], %1111 {strides = array<i32>} : memref<2x32x256xf32, #tpu.memory_space<vmem>>, vector<1x32x256xf32>,
    return
  }
}

</mosaic_0001>

<llo_original>
// kernel: fga_forward_pallas.1
$region0: #{fga_forward_pallas.1}
  #allocation0 [shape = 'u32[]', space=smem, size = 0x4, offset = 0x4, fixed_abs, tag = 'smem constant byte address 0x4 - core index']
  #allocation1 [shape = 'u32[144,128]{1,0:T(1,128)}', space=vmem, size = 0x12000, scoped, tag = 'internal scratch']
  %s0 = inlined_call_operand.vmem [shape: f32[2,32,256], index: 0, kind: input, shape index: {}]
  %s1 = inlined_call_operand.vmem [shape: f32[32,288], index: 1, kind: input, shape index: {}]
  %s2 = inlined_call_operand.vmem [shape: f32[32,1], index: 2, kind: input, shape index: {}]
  %s3 = inlined_call_operand.vmem [shape: f32[2,32], index: 3, kind: input, shape index: {}]
  %s4 = inlined_call_operand.vmem [shape: f32[32,2], index: 4, kind: input, shape index: {}]
  %s5 = inlined_call_operand.vmem [shape: f32[2,49], index: 5, kind: input, shape index: {}]
  %s6 = inlined_call_operand.vmem [shape: f32[32,288], index: 6, kind: input, shape index: {}]
  %s7 = inlined_call_operand.vmem [shape: f32[32,1], index: 7, kind: input, shape index: {}]
  %s8 = inlined_call_operand.vmem [shape: f32[32,576], index: 8, kind: input, shape index: {}]
  %s9 = inlined_call_operand.vmem [shape: f32[32,1], index: 9, kind: input, shape index: {}]
  %s10 = inlined_call_operand.vmem [shape: f32[256,512], index: 10, kind: input, shape index: {}]
  %s11 = inlined_call_operand.vmem [shape: f32[256,256], index: 11, kind: input, shape index: {}]
  %s12 = inlined_call_operand.vmem [shape: f32[32,32], index: 12, kind: input, shape index: {}]
  %s13 = inlined_call_operand.vmem [shape: f32[32,1], index: 13, kind: input, shape index: {}]
  %s14 = inlined_call_operand.vmem [shape: f32[32,32], index: 14, kind: input, shape index: {}]
  %s15 = inlined_call_operand.vmem [shape: f32[32,1], index: 15, kind: input, shape index: {}]
  %s16 = inlined_call_operand.vmem [shape: f32[9,256], index: 16, kind: input, shape index: {}]
  %s17 = inlined_call_operand.vmem [shape: f32[9,256], index: 17, kind: input, shape index: {}]
  %s18 = inlined_call_operand.vmem [shape: f32[49,256], index: 18, kind: input, shape index: {}]
  %s19 = inlined_call_operand.vmem [shape: f32[2,32,256], index: 19, kind: output, shape index: {}]
  %s20 = sld [smem:[#allocation0]]
  $region90: #{fga_forward_pallas.1} parent=0
    _
  %s22 = ssub.s32 1, %s20
  %s23 = scalar_select 0, %s22, %s20
  $region1: #{fga_forward_pallas.1} parent=0
    #allocation2 [shape = 'u8[1024]{0}', space=smem, size = 0x400, scoped, tag = 'input window, operand 5, single buffered']
    #allocation3 [shape = 's32[1]{0}', space=sflag, size = 0x4, scoped, tag = 'scoped memory for fga_forward_pallas.1']
    %24 = vsyncpa [#allocation3], 0
    // Predicated region
    $region2: #{fga_forward_pallas.1} parent=1 // pred_check
      _
    $region3: #{fga_forward_pallas.1} parent=1 // pred_check_branch
      %26 = sbr.rel (0) target = $region5
    $region4: #{fga_forward_pallas.1} parent=1 // pred_region
      _
    $region5: #{fga_forward_pallas.1} parent=1 // pred_fallthru
      _
    // Predicated region
    $region6: #{fga_forward_pallas.1} parent=1 // pred_check
      _
    $region7: #{fga_forward_pallas.1} parent=1 // pred_check_branch
      %28 = sbr.rel (0) target = $region9
    $region8: #{fga_forward_pallas.1} parent=1 // pred_region
      _
    $region9: #{fga_forward_pallas.1} parent=1 // pred_fallthru
      _
    // Predicated region
    $region10: #{fga_forward_pallas.1} parent=1 // pred_check
      _
    $region11: #{fga_forward_pallas.1} parent=1 // pred_check_branch
      %30 = sbr.rel (0) target = $region13
    $region12: #{fga_forward_pallas.1} parent=1 // pred_region
      _
    $region13: #{fga_forward_pallas.1} parent=1 // pred_fallthru
      _
    // Predicated region
    $region14: #{fga_forward_pallas.1} parent=1 // pred_check
      _
    $region15: #{fga_forward_pallas.1} parent=1 // pred_check_branch
      %32 = sbr.rel (0) target = $region17
    $region16: #{fga_forward_pallas.1} parent=1 // pred_region
      _
    $region17: #{fga_forward_pallas.1} parent=1 // pred_fallthru
      _
    // Predicated region
    $region18: #{fga_forward_pallas.1} parent=1 // pred_check
      _
    $region19: #{fga_forward_pallas.1} parent=1 // pred_check_branch
      %34 = sbr.rel (0) target = $region21
    $region20: #{fga_forward_pallas.1} parent=1 // pred_region
      _
    $region21: #{fga_forward_pallas.1} parent=1 // pred_fallthru
      _
    // Predicated region
    $region22: #{fga_forward_pallas.1} parent=1 // pred_check
      _
    $region23: #{fga_forward_pallas.1} parent=1 // pred_check_branch
      %36 = sbr.rel (0) target = $region25
    $region24: #{fga_forward_pallas.1} parent=1 // pred_region
      %s38 = ssub.s32 32, 32
      %39 = vsyncadd [#allocation3], %s38
      %s41 = sshll.u32 %s5, 4
      %s42 = int_to_ptr.vmem [resolvable:$true] %s41
      %44 = dma.vmem_to_smem %s42, 32, [#allocation2], [#allocation3]
    $region25: #{fga_forward_pallas.1} parent=1 // pred_fallthru
      _
    // Predicated region
    $region26: #{fga_forward_pallas.1} parent=1 // pred_check
      _
    $region27: #{fga_forward_pallas.1} parent=1 // pred_check_branch
      %46 = sbr.rel (0) target = $region29
    $region28: #{fga_forward_pallas.1} parent=1 // pred_region
      _
    $region29: #{fga_forward_pallas.1} parent=1 // pred_fallthru
      _
    // Predicated region
    $region30: #{fga_forward_pallas.1} parent=1 // pred_check
      _
    $region31: #{fga_forward_pallas.1} parent=1 // pred_check_branch
      %48 = sbr.rel (0) target = $region33
    $region32: #{fga_forward_pallas.1} parent=1 // pred_region
      _
    $region33: #{fga_forward_pallas.1} parent=1 // pred_fallthru
      _
    // Predicated region
    $region34: #{fga_forward_pallas.1} parent=1 // pred_check
      _
    $region35: #{fga_forward_pallas.1} parent=1 // pred_check_branch
      %50 = sbr.rel (0) target = $region37
    $region36: #{fga_forward_pallas.1} parent=1 // pred_region
      _
    $region37: #{fga_forward_pallas.1} parent=1 // pred_fallthru
      _
    // Predicated region
    $region38: #{fga_forward_pallas.1} parent=1 // pred_check
      _
    $region39: #{fga_forward_pallas.1} parent=1 // pred_check_branch
      %52 = sbr.rel (0) target = $region41
    $region40: #{fga_forward_pallas.1} parent=1 // pred_region
      _
    $region41: #{fga_forward_pallas.1} parent=1 // pred_fallthru
      _
    // Predicated region
    $region42: #{fga_forward_pallas.1} parent=1 // pred_check
      _
    $region43: #{fga_forward_pallas.1} parent=1 // pred_check_branch
      %54 = sbr.rel (0) target = $region45
    $region44: #{fga_forward_pallas.1} parent=1 // pred_region
      _
    $region45: #{fga_forward_pallas.1} parent=1 // pred_fallthru
      _
    // Predicated region
    $region46: #{fga_forward_pallas.1} parent=1 // pred_check
      _
    $region47: #{fga_forward_pallas.1} parent=1 // pred_check_branch
      %56 = sbr.rel (0) target = $region49
    $region48: #{fga_forward_pallas.1} parent=1 // pred_region
      _
    $region49: #{fga_forward_pallas.1} parent=1 // pred_fallthru
      _
    // Predicated region
    $region50: #{fga_forward_pallas.1} parent=1 // pred_check
      _
    $region51: #{fga_forward_pallas.1} parent=1 // pred_check_branch
      %58 = sbr.rel (0) target = $region53
    $region52: #{fga_forward_pallas.1} parent=1 // pred_region
      _
    $region53: #{fga_forward_pallas.1} parent=1 // pred_fallthru
      _
    // Predicated region
    $region54: #{fga_forward_pallas.1} parent=1 // pred_check
      _
    $region55: #{fga_forward_pallas.1} parent=1 // pred_check_branch
      %60 = sbr.rel (0) target = $region57
    $region56: #{fga_forward_pallas.1} parent=1 // pred_region
      _
    $region57: #{fga_forward_pallas.1} parent=1 // pred_fallthru
      _
    // Predicated region
    $region58: #{fga_forward_pallas.1} parent=1 // pred_check
      _
    $region59: #{fga_forward_pallas.1} parent=1 // pred_check_branch
      %62 = sbr.rel (0) target = $region61
    $region60: #{fga_forward_pallas.1} parent=1 // pred_region
      _
    $region61: #{fga_forward_pallas.1} parent=1 // pred_fallthru
      _
    // Predicated region
    $region62: #{fga_forward_pallas.1} parent=1 // pred_check
      _
    $region63: #{fga_forward_pallas.1} parent=1 // pred_check_branch
      %64 = sbr.rel (0) target = $region65
    $region64: #{fga_forward_pallas.1} parent=1 // pred_region
      _
    $region65: #{fga_forward_pallas.1} parent=1 // pred_fallthru
      _
    // Predicated region
    $region66: #{fga_forward_pallas.1} parent=1 // pred_check
      _
    $region67: #{fga_forward_pallas.1} parent=1 // pred_check_branch
      %66 = sbr.rel (0) target = $region69
    $region68: #{fga_forward_pallas.1} parent=1 // pred_region
      _
    $region69: #{fga_forward_pallas.1} parent=1 // pred_fallthru
      _
    // Predicated region
    $region70: #{fga_forward_pallas.1} parent=1 // pred_check
      _
    $region71: #{fga_forward_pallas.1} parent=1 // pred_check_branch
      %68 = sbr.rel (0) target = $region73
    $region72: #{fga_forward_pallas.1} parent=1 // pred_region
      _
    $region73: #{fga_forward_pallas.1} parent=1 // pred_fallthru
      _
    // Predicated region
    $region74: #{fga_forward_pallas.1} parent=1 // pred_check
      _
    $region75: #{fga_forward_pallas.1} parent=1 // pred_check_branch
      %70 = sbr.rel (0) target = $region77
    $region76: #{fga_forward_pallas.1} parent=1 // pred_region
      _
    $region77: #{fga_forward_pallas.1} parent=1 // pred_fallthru
      _
    // Predicated region
    $region78: #{fga_forward_pallas.1} parent=1 // pred_check
      _
    $region79: #{fga_forward_pallas.1} parent=1 // pred_check_branch
      %72 = sbr.rel (0) target = $region81
    $region80: #{fga_forward_pallas.1} parent=1 // pred_region
      %73 = dma.done [#allocation3], 32
    $region81: #{fga_forward_pallas.1} parent=1 // pred_fallthru
      _
    %74 = sfence
    %v75 = vld [vmem:[%s0] sm:$0xff]
    %v76 = vld [vmem:[%s0 + $0x8] sm:$0xff]
    %v77 = vld [vmem:[%s0 + $0x10] sm:$0xff]
    %v78 = vld [vmem:[%s0 + $0x18] sm:$0xff]
    %v79 = vld [vmem:[%s0 + $0x20] sm:$0xff]
    %v80 = vld [vmem:[%s0 + $0x28] sm:$0xff]
    %v81 = vld [vmem:[%s0 + $0x30] sm:$0xff]
    %v82 = vld [vmem:[%s0 + $0x38] sm:$0xff]
    %v83 = vld [vmem:[%s16] ss:$8 sm:$0x3]
    %84 = vrot.lane.b32.xlu0 %v75, 17
    %v85 = vpop.permute.xlu0 %84
    %86 = vrot.lane.b32.xlu0 %v77, 17
    %v87 = vpop.permute.xlu0 %86
    %88 = vrot.lane.b32.xlu0 %v79, 17
    %v89 = vpop.permute.xlu0 %88
    %90 = vrot.lane.b32.xlu0 %v81, 17
    %v91 = vpop.permute.xlu0 %90
    %92 = vrot.lane.b32.xlu0 %v76, 17
    %v93 = vpop.permute.xlu0 %92
    %94 = vrot.lane.b32.xlu0 %v78, 17
    %v95 = vpop.permute.xlu0 %94
    %96 = vrot.lane.b32.xlu0 %v80, 17
    %v97 = vpop.permute.xlu0 %96
    %98 = vrot.lane.b32.xlu0 %v82, 17
    %v99 = vpop.permute.xlu0 %98
    %v100 = vlaneseq
    %v101 = vand.u32 %v100, 127
    %vm102 = vcmp.lt.s32.totalorder %v101, 17
    %v103 = vsel %vm102, %v85, %v93
    %v104 = vsel %vm102, %v87, %v95
    %v105 = vsel %vm102, %v89, %v97
    %v106 = vsel %vm102, %v91, %v99
    %v107 = vsel %vm102, %v93, %v85
    %v108 = vsel %vm102, %v95, %v87
    %v109 = vsel %vm102, %v97, %v89
    %v110 = vsel %vm102, %v99, %v91
    %v112 = vlaneseq
    %v113 = vshrl.u32 %v112, 7
    %v114 = vsub.s32 0, %v113
    %v115 = vrot.slane %v83, %v114
    %v116 = vlaneseq
    %v117 = vshrl.u32 %v116, 7
    %v118 = vsub.s32 1, %v117
    %v119 = vrot.slane %v83, %v118
    %v122 = vmul.f32 %v107, %v115
    %v123 = vmul.f32 %v103, %v119
    %v124 = vmul.f32 %v108, %v115
    %v125 = vmul.f32 %v104, %v119
    %v126 = vmul.f32 %v109, %v115
    %v127 = vmul.f32 %v105, %v119
    %v128 = vmul.f32 %v110, %v115
    %v129 = vmul.f32 %v106, %v119
    %s130 = scalar_lea.vmem %s16, 1
    %v131 = vld [vmem:[%s130] ss:$8 sm:$0x3]
    %132 = vrot.lane.b32.xlu0 %v75, 16
    %v133 = vpop.permute.xlu0 %132
    %134 = vrot.lane.b32.xlu0 %v77, 16
    %v135 = vpop.permute.xlu0 %134
    %136 = vrot.lane.b32.xlu0 %v79, 16
    %v137 = vpop.permute.xlu0 %136
    %138 = vrot.lane.b32.xlu0 %v81, 16
    %v139 = vpop.permute.xlu0 %138
    %140 = vrot.lane.b32.xlu0 %v76, 16
    %v141 = vpop.permute.xlu0 %140
    %142 = vrot.lane.b32.xlu0 %v78, 16
    %v143 = vpop.permute.xlu0 %142
    %144 = vrot.lane.b32.xlu0 %v80, 16
    %v145 = vpop.permute.xlu0 %144
    %146 = vrot.lane.b32.xlu0 %v82, 16
    %v147 = vpop.permute.xlu0 %146
    %vm148 = vcmp.lt.s32.totalorder %v101, 16
    %v149 = vsel %vm148, %v133, %v141
    %v150 = vsel %vm148, %v135, %v143
    %v151 = vsel %vm148, %v137, %v145
    %v152 = vsel %vm148, %v139, %v147
    %v153 = vsel %vm148, %v141, %v133
    %v154 = vsel %vm148, %v143, %v135
    %v155 = vsel %vm148, %v145, %v137
    %v156 = vsel %vm148, %v147, %v139
    %v158 = vlaneseq
    %v159 = vshrl.u32 %v158, 7
    %v160 = vsub.s32 0, %v159
    %v161 = vrot.slane %v131, %v160
    %v162 = vlaneseq
    %v163 = vshrl.u32 %v162, 7
    %v164 = vsub.s32 1, %v163
    %v165 = vrot.slane %v131, %v164
    %v168 = vmul.f32 %v153, %v161
    %v169 = vmul.f32 %v149, %v165
    %v170 = vmul.f32 %v154, %v161
    %v171 = vmul.f32 %v150, %v165
    %v172 = vmul.f32 %v155, %v161
    %v173 = vmul.f32 %v151, %v165
    %v174 = vmul.f32 %v156, %v161
    %v175 = vmul.f32 %v152, %v165
    %s176 = scalar_lea.vmem %s16, 2
    %v177 = vld [vmem:[%s176] ss:$8 sm:$0x3]
    %178 = vrot.lane.b32.xlu0 %v75, 15
    %v179 = vpop.permute.xlu0 %178
    %180 = vrot.lane.b32.xlu0 %v77, 15
    %v181 = vpop.permute.xlu0 %180
    %182 = vrot.lane.b32.xlu0 %v79, 15
    %v183 = vpop.permute.xlu0 %182
    %184 = vrot.lane.b32.xlu0 %v81, 15
    %v185 = vpop.permute.xlu0 %184
    %186 = vrot.lane.b32.xlu0 %v76, 15
    %v187 = vpop.permute.xlu0 %186
    %188 = vrot.lane.b32.xlu0 %v78, 15
    %v189 = vpop.permute.xlu0 %188
    %190 = vrot.lane.b32.xlu0 %v80, 15
    %v191 = vpop.permute.xlu0 %190
    %192 = vrot.lane.b32.xlu0 %v82, 15
    %v193 = vpop.permute.xlu0 %192
    %vm194 = vcmp.lt.s32.totalorder %v101, 15
    %v195 = vsel %vm194, %v179, %v187
    %v196 = vsel %vm194, %v181, %v189
    %v197 = vsel %vm194, %v183, %v191
    %v198 = vsel %vm194, %v185, %v193
    %v199 = vsel %vm194, %v187, %v179
    %v200 = vsel %vm194, %v189, %v181
    %v201 = vsel %vm194, %v191, %v183
    %v202 = vsel %vm194, %v193, %v185
    %v204 = vlaneseq
    %v205 = vshrl.u32 %v204, 7
    %v206 = vsub.s32 0, %v205
    %v207 = vrot.slane %v177, %v206
    %v208 = vlaneseq
    %v209 = vshrl.u32 %v208, 7
    %v210 = vsub.s32 1, %v209
    %v211 = vrot.slane %v177, %v210
    %v214 = vmul.f32 %v199, %v207
    %v215 = vmul.f32 %v195, %v211
    %v216 = vmul.f32 %v200, %v207
    %v217 = vmul.f32 %v196, %v211
    %v218 = vmul.f32 %v201, %v207
    %v219 = vmul.f32 %v197, %v211
    %v220 = vmul.f32 %v202, %v207
    %v221 = vmul.f32 %v198, %v211
    %s222 = scalar_lea.vmem %s16, 3
    %v223 = vld [vmem:[%s222] ss:$8 sm:$0x3]
    %224 = vrot.lane.b32.xlu0 %v75, 1
    %v225 = vpop.permute.xlu0 %224
    %226 = vrot.lane.b32.xlu0 %v77, 1
    %v227 = vpop.permute.xlu0 %226
    %228 = vrot.lane.b32.xlu0 %v79, 1
    %v229 = vpop.permute.xlu0 %228
    %230 = vrot.lane.b32.xlu0 %v81, 1
    %v231 = vpop.permute.xlu0 %230
    %232 = vrot.lane.b32.xlu0 %v76, 1
    %v233 = vpop.permute.xlu0 %232
    %234 = vrot.lane.b32.xlu0 %v78, 1
    %v235 = vpop.permute.xlu0 %234
    %236 = vrot.lane.b32.xlu0 %v80, 1
    %v237 = vpop.permute.xlu0 %236
    %238 = vrot.lane.b32.xlu0 %v82, 1
    %v239 = vpop.permute.xlu0 %238
    %vm240 = vcmp.lt.s32.totalorder %v101, 1
    %v241 = vsel %vm240, %v225, %v233
    %v242 = vsel %vm240, %v227, %v235
    %v243 = vsel %vm240, %v229, %v237
    %v244 = vsel %vm240, %v231, %v239
    %v245 = vsel %vm240, %v233, %v225
    %v246 = vsel %vm240, %v235, %v227
    %v247 = vsel %vm240, %v237, %v229
    %v248 = vsel %vm240, %v239, %v231
    %v250 = vlaneseq
    %v251 = vshrl.u32 %v250, 7
    %v252 = vsub.s32 0, %v251
    %v253 = vrot.slane %v223, %v252
    %v254 = vlaneseq
    %v255 = vshrl.u32 %v254, 7
    %v256 = vsub.s32 1, %v255
    %v257 = vrot.slane %v223, %v256
    %v260 = vmul.f32 %v245, %v253
    %v261 = vmul.f32 %v241, %v257
    %v262 = vmul.f32 %v246, %v253
    %v263 = vmul.f32 %v242, %v257
    %v264 = vmul.f32 %v247, %v253
    %v265 = vmul.f32 %v243, %v257
    %v266 = vmul.f32 %v248, %v253
    %v267 = vmul.f32 %v244, %v257
    %s268 = scalar_lea.vmem %s16, 4
    %v269 = vld [vmem:[%s268] ss:$8 sm:$0x3]
    %v271 = vlaneseq
    %v272 = vshrl.u32 %v271, 7
    %v273 = vsub.s32 0, %v272
    %v274 = vrot.slane %v269, %v273
    %v275 = vlaneseq
    %v276 = vshrl.u32 %v275, 7
    %v277 = vsub.s32 1, %v276
    %v278 = vrot.slane %v269, %v277
    %v281 = vmul.f32 %v75, %v274
    %v282 = vmul.f32 %v76, %v278
    %v283 = vmul.f32 %v77, %v274
    %v284 = vmul.f32 %v78, %v278
    %v285 = vmul.f32 %v79, %v274
    %v286 = vmul.f32 %v80, %v278
    %v287 = vmul.f32 %v81, %v274
    %v288 = vmul.f32 %v82, %v278
    %s289 = scalar_lea.vmem %s16, 5
    %v290 = vld [vmem:[%s289] ss:$8 sm:$0x3]
    %291 = vrot.lane.b32.xlu0 %v75, 127
    %v292 = vpop.permute.xlu0 %291
    %293 = vrot.lane.b32.xlu0 %v77, 127
    %v294 = vpop.permute.xlu0 %293
    %295 = vrot.lane.b32.xlu0 %v79, 127
    %v296 = vpop.permute.xlu0 %295
    %297 = vrot.lane.b32.xlu0 %v81, 127
    %v298 = vpop.permute.xlu0 %297
    %299 = vrot.lane.b32.xlu0 %v76, 127
    %v300 = vpop.permute.xlu0 %299
    %301 = vrot.lane.b32.xlu0 %v78, 127
    %v302 = vpop.permute.xlu0 %301
    %303 = vrot.lane.b32.xlu0 %v80, 127
    %v304 = vpop.permute.xlu0 %303
    %305 = vrot.lane.b32.xlu0 %v82, 127
    %v306 = vpop.permute.xlu0 %305
    %vm307 = vcmp.lt.s32.totalorder %v101, 127
    %v308 = vsel %vm307, %v292, %v300
    %v309 = vsel %vm307, %v294, %v302
    %v310 = vsel %vm307, %v296, %v304
    %v311 = vsel %vm307, %v298, %v306
    %v312 = vsel %vm307, %v300, %v292
    %v313 = vsel %vm307, %v302, %v294
    %v314 = vsel %vm307, %v304, %v296
    %v315 = vsel %vm307, %v306, %v298
    %v317 = vlaneseq
    %v318 = vshrl.u32 %v317, 7
    %v319 = vsub.s32 0, %v318
    %v320 = vrot.slane %v290, %v319
    %v321 = vlaneseq
    %v322 = vshrl.u32 %v321, 7
    %v323 = vsub.s32 1, %v322
    %v324 = vrot.slane %v290, %v323
    %v327 = vmul.f32 %v308, %v320
    %v328 = vmul.f32 %v312, %v324
    %v329 = vmul.f32 %v309, %v320
    %v330 = vmul.f32 %v313, %v324
    %v331 = vmul.f32 %v310, %v320
    %v332 = vmul.f32 %v314, %v324
    %v333 = vmul.f32 %v311, %v320
    %v334 = vmul.f32 %v315, %v324
    %s335 = scalar_lea.vmem %s16, 6
    %v336 = vld [vmem:[%s335] ss:$8 sm:$0x3]
    %337 = vrot.lane.b32.xlu0 %v75, 113
    %v338 = vpop.permute.xlu0 %337
    %339 = vrot.lane.b32.xlu0 %v77, 113
    %v340 = vpop.permute.xlu0 %339
    %341 = vrot.lane.b32.xlu0 %v79, 113
    %v342 = vpop.permute.xlu0 %341
    %343 = vrot.lane.b32.xlu0 %v81, 113
    %v344 = vpop.permute.xlu0 %343
    %345 = vrot.lane.b32.xlu0 %v76, 113
    %v346 = vpop.permute.xlu0 %345
    %347 = vrot.lane.b32.xlu0 %v78, 113
    %v348 = vpop.permute.xlu0 %347
    %349 = vrot.lane.b32.xlu0 %v80, 113
    %v350 = vpop.permute.xlu0 %349
    %351 = vrot.lane.b32.xlu0 %v82, 113
    %v352 = vpop.permute.xlu0 %351
    %vm353 = vcmp.lt.s32.totalorder %v101, 113
    %v354 = vsel %vm353, %v338, %v346
    %v355 = vsel %vm353, %v340, %v348
    %v356 = vsel %vm353, %v342, %v350
    %v357 = vsel %vm353, %v344, %v352
    %v358 = vsel %vm353, %v346, %v338
    %v359 = vsel %vm353, %v348, %v340
    %v360 = vsel %vm353, %v350, %v342
    %v361 = vsel %vm353, %v352, %v344
    %v363 = vlaneseq
    %v364 = vshrl.u32 %v363, 7
    %v365 = vsub.s32 0, %v364
    %v366 = vrot.slane %v336, %v365
    %v367 = vlaneseq
    %v368 = vshrl.u32 %v367, 7
    %v369 = vsub.s32 1, %v368
    %v370 = vrot.slane %v336, %v369
    %v373 = vmul.f32 %v354, %v366
    %v374 = vmul.f32 %v358, %v370
    %v375 = vmul.f32 %v355, %v366
    %v376 = vmul.f32 %v359, %v370
    %v377 = vmul.f32 %v356, %v366
    %v378 = vmul.f32 %v360, %v370
    %v379 = vmul.f32 %v357, %v366
    %v380 = vmul.f32 %v361, %v370
    %s381 = scalar_lea.vmem %s16, 7
    %v382 = vld [vmem:[%s381] ss:$8 sm:$0x3]
    %383 = vrot.lane.b32.xlu0 %v75, 112
    %v384 = vpop.permute.xlu0 %383
    %385 = vrot.lane.b32.xlu0 %v77, 112
    %v386 = vpop.permute.xlu0 %385
    %387 = vrot.lane.b32.xlu0 %v79, 112
    %v388 = vpop.permute.xlu0 %387
    %389 = vrot.lane.b32.xlu0 %v81, 112
    %v390 = vpop.permute.xlu0 %389
    %391 = vrot.lane.b32.xlu0 %v76, 112
    %v392 = vpop.permute.xlu0 %391
    %393 = vrot.lane.b32.xlu0 %v78, 112
    %v394 = vpop.permute.xlu0 %393
    %395 = vrot.lane.b32.xlu0 %v80, 112
    %v396 = vpop.permute.xlu0 %395
    %397 = vrot.lane.b32.xlu0 %v82, 112
    %v398 = vpop.permute.xlu0 %397
    %vm399 = vcmp.lt.s32.totalorder %v101, 112
    %v400 = vsel %vm399, %v384, %v392
    %v401 = vsel %vm399, %v386, %v394
    %v402 = vsel %vm399, %v388, %v396
    %v403 = vsel %vm399, %v390, %v398
    %v404 = vsel %vm399, %v392, %v384
    %v405 = vsel %vm399, %v394, %v386
    %v406 = vsel %vm399, %v396, %v388
    %v407 = vsel %vm399, %v398, %v390
    %v409 = vlaneseq
    %v410 = vshrl.u32 %v409, 7
    %v411 = vsub.s32 0, %v410
    %v412 = vrot.slane %v382, %v411
    %v413 = vlaneseq
    %v414 = vshrl.u32 %v413, 7
    %v415 = vsub.s32 1, %v414
    %v416 = vrot.slane %v382, %v415
    %v419 = vmul.f32 %v400, %v412
    %v420 = vmul.f32 %v404, %v416
    %v421 = vmul.f32 %v401, %v412
    %v422 = vmul.f32 %v405, %v416
    %v423 = vmul.f32 %v402, %v412
    %v424 = vmul.f32 %v406, %v416
    %v425 = vmul.f32 %v403, %v412
    %v426 = vmul.f32 %v407, %v416
    %s427 = scalar_lea.vmem %s16, 16
    %v428 = vld [vmem:[%s427] ss:$8 sm:$0x3]
    %429 = vrot.lane.b32.xlu0 %v75, 111
    %v430 = vpop.permute.xlu0 %429
    %431 = vrot.lane.b32.xlu0 %v77, 111
    %v432 = vpop.permute.xlu0 %431
    %433 = vrot.lane.b32.xlu0 %v79, 111
    %v434 = vpop.permute.xlu0 %433
    %435 = vrot.lane.b32.xlu0 %v81, 111
    %v436 = vpop.permute.xlu0 %435
    %437 = vrot.lane.b32.xlu0 %v76, 111
    %v438 = vpop.permute.xlu0 %437
    %439 = vrot.lane.b32.xlu0 %v78, 111
    %v440 = vpop.permute.xlu0 %439
    %441 = vrot.lane.b32.xlu0 %v80, 111
    %v442 = vpop.permute.xlu0 %441
    %443 = vrot.lane.b32.xlu0 %v82, 111
    %v444 = vpop.permute.xlu0 %443
    %vm445 = vcmp.lt.s32.totalorder %v101, 111
    %v446 = vsel %vm445, %v430, %v438
    %v447 = vsel %vm445, %v432, %v440
    %v448 = vsel %vm445, %v434, %v442
    %v449 = vsel %vm445, %v436, %v444
    %v450 = vsel %vm445, %v438, %v430
    %v451 = vsel %vm445, %v440, %v432
    %v452 = vsel %vm445, %v442, %v434
    %v453 = vsel %vm445, %v444, %v436
    %v455 = vlaneseq
    %v456 = vshrl.u32 %v455, 7
    %v457 = vsub.s32 0, %v456
    %v458 = vrot.slane %v428, %v457
    %v459 = vlaneseq
    %v460 = vshrl.u32 %v459, 7
    %v461 = vsub.s32 1, %v460
    %v462 = vrot.slane %v428, %v461
    %v465 = vmul.f32 %v446, %v458
    %v466 = vmul.f32 %v450, %v462
    %v467 = vmul.f32 %v447, %v458
    %v468 = vmul.f32 %v451, %v462
    %v469 = vmul.f32 %v448, %v458
    %v470 = vmul.f32 %v452, %v462
    %v471 = vmul.f32 %v449, %v458
    %v472 = vmul.f32 %v453, %v462
    %v473 = vld [vmem:[%s1] sm:$0xff]
    %v474 = vld [vmem:[%s1 + $0x8] sm:$0xff]
    %v475 = vld [vmem:[%s1 + $0x10] sm:$0xff]
    %v476 = vld [vmem:[%s1 + $0x18] sm:$0xff]
    %v477 = vld [vmem:[%s1 + $0x20] sm:$0xff]
    %v478 = vld [vmem:[%s1 + $0x28] sm:$0xff]
    %v479 = vld [vmem:[%s1 + $0x30] sm:$0xff]
    %v480 = vld [vmem:[%s1 + $0x38] sm:$0xff]
    %v481 = vld [vmem:[%s1 + $0x40] sm:$0xff]
    %v482 = vld [vmem:[%s1 + $0x48] sm:$0xff]
    %v483 = vld [vmem:[%s1 + $0x50] sm:$0xff]
    %v484 = vld [vmem:[%s1 + $0x58] sm:$0xff]
    %v485 = vld [vmem:[%s2] sm:$0xff]
    %v486 = vld [vmem:[%s2 + $0x8] sm:$0xff]
    %v487 = vld [vmem:[%s2 + $0x10] sm:$0xff]
    %v488 = vld [vmem:[%s2 + $0x18] sm:$0xff]
    %490 = vset.pattern.permute.xlu0 0
    %491 = vperm.xlu0 %490, %v485
    %v492 = vpop.permute.xlu0 %491
    %495 = vset.pattern.permute.xlu0 0
    %496 = vperm.xlu0 %495, %v486
    %v497 = vpop.permute.xlu0 %496
    %500 = vset.pattern.permute.xlu0 0
    %501 = vperm.xlu0 %500, %v487
    %v502 = vpop.permute.xlu0 %501
    %505 = vset.pattern.permute.xlu0 0
    %506 = vperm.xlu0 %505, %v488
    %v507 = vpop.permute.xlu0 %506
    %vm509 = vcmask 261120
    %v511 = vsel %vm509, %v475, 0
    %v514 = vsel %vm509, %v478, 0
    %v517 = vsel %vm509, %v481, 0
    %v520 = vsel %vm509, %v484, 0
    %522 = vmatprep.subr.mxu0 %v123
    %523 = vmatpush1.msra.mxu0 %v122
    %524 = vmatprep.subr.mxu0 %v125
    %525 = vmatpush1.msra.mxu0 %v124
    %526 = vmatprep.subr.mxu0 %v127
    %527 = vmatpush1.msra.mxu0 %v126
    %528 = vmatprep.subr.mxu0 %v129
    %529 = vmatpush1.msra.mxu0 %v128
    %530 = vmatprep.subr.mxu0 %v169
    %531 = vmatpush1.msra.mxu0 %v168
    %532 = vmatprep.subr.mxu0 %v171
    %533 = vmatpush1.msra.mxu0 %v170
    %534 = vmatprep.subr.mxu0 %v173
    %535 = vmatpush1.msra.mxu0 %v172
    %536 = vmatprep.subr.mxu0 %v175
    %537 = vmatpush1.msra.mxu0 %v174
    %538 = vmatprep.subr.mxu0 %v215
    %539 = vmatpush1.msra.mxu0 %v214
    %540 = vmatprep.subr.mxu0 %v217
    %541 = vmatpush1.msra.mxu0 %v216
    %542 = vmatprep.subr.mxu0 %v219
    %543 = vmatpush1.msra.mxu0 %v218
    %544 = vmatprep.subr.mxu0 %v221
    %545 = vmatpush1.msra.mxu0 %v220
    %546 = vmatprep.subr.mxu0 %v261
    %547 = vmatpush1.msra.mxu0 %v260
    %548 = vmatprep.subr.mxu0 %v263
    %549 = vmatpush1.msra.mxu0 %v262
    %550 = vmatprep.subr.mxu0 %v265
    %551 = vmatpush1.msra.mxu0 %v264
    %552 = vmatprep.subr.mxu0 %v267
    %553 = vmatpush1.msra.mxu0 %v266
    %554 = vmatprep.subr.mxu0 %v282
    %555 = vmatpush1.msra.mxu0 %v281
    %556 = vmatprep.subr.mxu0 %v284
    %557 = vmatpush1.msra.mxu0 %v283
    %558 = vmatprep.subr.mxu0 %v286
    %559 = vmatpush1.msra.mxu0 %v285
    %560 = vmatprep.subr.mxu0 %v288
    %561 = vmatpush1.msra.mxu0 %v287
    %562 = vmatprep.subr.mxu0 %v328
    %563 = vmatpush1.msra.mxu0 %v327
    %564 = vmatprep.subr.mxu0 %v330
    %565 = vmatpush1.msra.mxu0 %v329
    %566 = vmatprep.subr.mxu0 %v332
    %567 = vmatpush1.msra.mxu0 %v331
    %568 = vmatprep.subr.mxu0 %v334
    %569 = vmatpush1.msra.mxu0 %v333
    %570 = vmatprep.subr.mxu0 %v374
    %571 = vmatpush1.msra.mxu0 %v373
    %572 = vmatprep.subr.mxu0 %v376
    %573 = vmatpush1.msra.mxu0 %v375
    %574 = vmatprep.subr.mxu0 %v378
    %575 = vmatpush1.msra.mxu0 %v377
    %576 = vmatprep.subr.mxu0 %v380
    %577 = vmatpush1.msra.mxu0 %v379
    %578 = vmatprep.subr.mxu0 %v420
    %579 = vmatpush1.msra.mxu0 %v419
    %580 = vmatprep.subr.mxu0 %v422
    %581 = vmatpush1.msra.mxu0 %v421
    %582 = vmatprep.subr.mxu0 %v424
    %583 = vmatpush1.msra.mxu0 %v423
    %584 = vmatprep.subr.mxu0 %v426
    %585 = vmatpush1.msra.mxu0 %v425
    %586 = vmatprep.mubr.f32.mxu0 %v474
    %587 = vmatmul.mubr.f32.gmra.mrb[0].mxu0 %v473
    %v588 = vpop.f32.mrb[0].mxu0
    %v589 = vadd.f32 %v492, %v588
    %v590 = vpop.f32.mrb[0].mxu0
    %v591 = vadd.f32 %v492, %v590
    %592 = vmatprep.mubr.f32.mxu0 %v477
    %593 = vmatmul.mubr.f32.gmra.mrb[0].mxu0 %v476
    %v594 = vpop.f32.mrb[0].mxu0
    %v595 = vadd.f32 %v497, %v594
    %v596 = vpop.f32.mrb[0].mxu0
    %v597 = vadd.f32 %v497, %v596
    %598 = vmatprep.mubr.f32.mxu0 %v480
    %599 = vmatmul.mubr.f32.gmra.mrb[0].mxu0 %v479
    %v600 = vpop.f32.mrb[0].mxu0
    %v601 = vadd.f32 %v502, %v600
    %v602 = vpop.f32.mrb[0].mxu0
    %v603 = vadd.f32 %v502, %v602
    %604 = vmatprep.mubr.f32.mxu0 %v483
    %605 = vmatmul.mubr.f32.gmra.mrb[0].mxu0 %v482
    %v606 = vpop.f32.mrb[0].mxu0
    %v607 = vadd.f32 %v507, %v606
    %v608 = vpop.f32.mrb[0].mxu0
    %v609 = vadd.f32 %v507, %v608
    %610 = vdwg.mxu0
    %611 = vmatprep.subr.mxu0 %v466
    %612 = vmatpush1.msra.mxu0 %v465
    %613 = vmatprep.subr.mxu0 %v468
    %614 = vmatpush1.msra.mxu0 %v467
    %615 = vmatprep.subr.mxu0 %v470
    %616 = vmatpush1.msra.mxu0 %v469
    %617 = vmatprep.subr.mxu0 %v472
    %618 = vmatpush1.msra.mxu0 %v471
    %619 = vmatprep.subr.mxu0 0.0
    %620 = vmatpush1.msra.mxu0 0.0
    %621 = vmatprep.subr.mxu0 0.0
    %622 = vmatpush1.msra.mxu0 0.0
    %623 = vmatprep.subr.mxu0 0.0
    %624 = vmatpush1.msra.mxu0 0.0
    %625 = vmatprep.subr.mxu0 0.0
    %626 = vmatpush1.msra.mxu0 0.0
    %627 = vmatprep.subr.mxu0 0.0
    %628 = vmatpush1.msra.mxu0 0.0
    %629 = vmatprep.subr.mxu0 0.0
    %630 = vmatpush1.msra.mxu0 0.0
    %631 = vmatprep.subr.mxu0 0.0
    %632 = vmatpush1.msra.mxu0 0.0
    %633 = vmatprep.subr.mxu0 0.0
    %634 = vmatpush1.msra.mxu0 0.0
    %635 = vmatprep.subr.mxu0 0.0
    %636 = vmatpush1.msra.mxu0 0.0
    %637 = vmatprep.subr.mxu0 0.0
    %638 = vmatpush1.msra.mxu0 0.0
    %639 = vmatprep.subr.mxu0 0.0
    %640 = vmatpush1.msra.mxu0 0.0
    %641 = vmatprep.subr.mxu0 0.0
    %642 = vmatpush1.msra.mxu0 0.0
    %643 = vmatprep.subr.mxu0 0.0
    %644 = vmatpush1.msra.mxu0 0.0
    %645 = vmatprep.subr.mxu0 0.0
    %646 = vmatpush1.msra.mxu0 0.0
    %647 = vmatprep.subr.mxu0 0.0
    %648 = vmatpush1.msra.mxu0 0.0
    %649 = vmatprep.subr.mxu0 0.0
    %650 = vmatpush1.msra.mxu0 0.0
    %651 = vmatprep.subr.mxu0 0.0
    %652 = vmatpush1.msra.mxu0 0.0
    %653 = vmatprep.subr.mxu0 0.0
    %654 = vmatpush1.msra.mxu0 0.0
    %655 = vmatprep.subr.mxu0 0.0
    %656 = vmatpush1.msra.mxu0 0.0
    %657 = vmatprep.subr.mxu0 0.0
    %658 = vmatpush1.msra.mxu0 0.0
    %659 = vmatprep.subr.mxu0 0.0
    %660 = vmatpush1.msra.mxu0 0.0
    %661 = vmatprep.subr.mxu0 0.0
    %662 = vmatpush1.msra.mxu0 0.0
    %663 = vmatprep.subr.mxu0 0.0
    %664 = vmatpush1.msra.mxu0 0.0
    %665 = vmatprep.subr.mxu0 0.0
    %666 = vmatpush1.msra.mxu0 0.0
    %667 = vmatprep.subr.mxu0 0.0
    %668 = vmatpush1.msra.mxu0 0.0
    %669 = vmatprep.subr.mxu0 0.0
    %670 = vmatpush1.msra.mxu0 0.0
    %671 = vmatprep.subr.mxu0 0.0
    %672 = vmatpush1.msra.mxu0 0.0
    %673 = vmatprep.subr.mxu0 0.0
    %674 = vmatpush1.msra.mxu0 0.0
    %675 = vmatprep.mubr.f32.mxu0 0.0
    %676 = vmatmul.mubr.f32.gmra.mrb[0].mxu0 %v511
    %v677 = vpop.f32.mrb[0].mxu0
    %v678 = vadd.f32 %v589, %v677
    %v679 = vpop.f32.mrb[0].mxu0
    %v680 = vadd.f32 %v591, %v679
    %681 = vmatprep.mubr.f32.mxu0 0.0
    %682 = vmatmul.mubr.f32.gmra.mrb[0].mxu0 %v514
    %v683 = vpop.f32.mrb[0].mxu0
    %v684 = vadd.f32 %v595, %v683
    %v685 = vpop.f32.mrb[0].mxu0
    %v686 = vadd.f32 %v597, %v685
    %687 = vmatprep.mubr.f32.mxu0 0.0
    %688 = vmatmul.mubr.f32.gmra.mrb[0].mxu0 %v517
    %v689 = vpop.f32.mrb[0].mxu0
    %v690 = vadd.f32 %v601, %v689
    %v691 = vpop.f32.mrb[0].mxu0
    %v692 = vadd.f32 %v603, %v691
    %693 = vmatprep.mubr.f32.mxu0 0.0
    %694 = vmatmul.mubr.f32.gmra.mrb[0].mxu0 %v520
    %v695 = vpop.f32.mrb[0].mxu0
    %v696 = vadd.f32 %v607, %v695
    %v697 = vpop.f32.mrb[0].mxu0
    %v698 = vadd.f32 %v609, %v697
    %699 = vdwg.mxu0
    %v700 = vmax.f32 %v678, 0.0
    %v701 = vmax.f32 %v680, 0.0
    %v702 = vmax.f32 %v684, 0.0
    %v703 = vmax.f32 %v686, 0.0
    %v704 = vmax.f32 %v690, 0.0
    %v705 = vmax.f32 %v692, 0.0
    %v706 = vmax.f32 %v696, 0.0
    %v707 = vmax.f32 %v698, 0.0
    %v708 = vadd.f32 %v700, %v701
    %709 = vadd.xlane.f32.xlu0 %v708
    %v710 = vpop.xlane.xlu0 %709
    %v711 = vadd.f32 %v702, %v703
    %712 = vadd.xlane.f32.xlu0 %v711
    %v713 = vpop.xlane.xlu0 %712
    %v714 = vadd.f32 %v704, %v705
    %715 = vadd.xlane.f32.xlu0 %v714
    %v716 = vpop.xlane.xlu0 %715
    %v717 = vadd.f32 %v706, %v707
    %718 = vadd.xlane.f32.xlu0 %v717
    %v719 = vpop.xlane.xlu0 %718
    %v720 = vrcp.pop 256.0
    %v721 = vmul.f32 %v710, %v720
    %v722 = vmul.f32 %v713, %v720
    %v723 = vmul.f32 %v716, %v720
    %v724 = vmul.f32 %v719, %v720
    %v725 = vld [vmem:[%s3] sm:$0x3]
    %v727 = vsel %vm509, %v725, 0
    %729 = vmatprep.subr.mxu0 0.0
    %730 = vmatpush1.msra.mxu0 %v721
    %731 = vmatprep.subr.mxu0 0.0
    %732 = vmatpush1.msra.mxu0 %v722
    %733 = vmatprep.subr.mxu0 0.0
    %734 = vmatpush1.msra.mxu0 %v723
    %735 = vmatprep.subr.mxu0 0.0
    %736 = vmatpush1.msra.mxu0 %v724
    %737 = vmatprep.subr.mxu0 0.0
    %738 = vmatpush1.msra.mxu0 0.0
    %739 = vmatprep.subr.mxu0 0.0
    %740 = vmatpush1.msra.mxu0 0.0
    %741 = vmatprep.subr.mxu0 0.0
    %742 = vmatpush1.msra.mxu0 0.0
    %743 = vmatprep.subr.mxu0 0.0
    %744 = vmatpush1.msra.mxu0 0.0
    %745 = vmatprep.subr.mxu0 0.0
    %746 = vmatpush1.msra.mxu0 0.0
    %747 = vmatprep.subr.mxu0 0.0
    %748 = vmatpush1.msra.mxu0 0.0
    %749 = vmatprep.subr.mxu0 0.0
    %750 = vmatpush1.msra.mxu0 0.0
    %751 = vmatprep.subr.mxu0 0.0
    %752 = vmatpush1.msra.mxu0 0.0
    %753 = vmatprep.subr.mxu0 0.0
    %754 = vmatpush1.msra.mxu0 0.0
    %755 = vmatprep.subr.mxu0 0.0
    %756 = vmatpush1.msra.mxu0 0.0
    %757 = vmatprep.subr.mxu0 0.0
    %758 = vmatpush1.msra.mxu0 0.0
    %759 = vmatprep.subr.mxu0 0.0
    %760 = vmatpush1.msra.mxu0 0.0
    %761 = vmatprep.subr.mxu0 0.0
    %762 = vmatpush1.msra.mxu0 0.0
    %763 = vmatprep.subr.mxu0 0.0
    %764 = vmatpush1.msra.mxu0 0.0
    %765 = vmatprep.subr.mxu0 0.0
    %766 = vmatpush1.msra.mxu0 0.0
    %767 = vmatprep.subr.mxu0 0.0
    %768 = vmatpush1.msra.mxu0 0.0
    %769 = vmatprep.subr.mxu0 0.0
    %770 = vmatpush1.msra.mxu0 0.0
    %771 = vmatprep.subr.mxu0 0.0
    %772 = vmatpush1.msra.mxu0 0.0
    %773 = vmatprep.subr.mxu0 0.0
    %774 = vmatpush1.msra.mxu0 0.0
    %775 = vmatprep.subr.mxu0 0.0
    %776 = vmatpush1.msra.mxu0 0.0
    %777 = vmatprep.subr.mxu0 0.0
    %778 = vmatpush1.msra.mxu0 0.0
    %779 = vmatprep.subr.mxu0 0.0
    %780 = vmatpush1.msra.mxu0 0.0
    %781 = vmatprep.subr.mxu0 0.0
    %782 = vmatpush1.msra.mxu0 0.0
    %783 = vmatprep.subr.mxu0 0.0
    %784 = vmatpush1.msra.mxu0 0.0
    %785 = vmatprep.subr.mxu0 0.0
    %786 = vmatpush1.msra.mxu0 0.0
    %787 = vmatprep.subr.mxu0 0.0
    %788 = vmatpush1.msra.mxu0 0.0
    %789 = vmatprep.subr.mxu0 0.0
    %790 = vmatpush1.msra.mxu0 0.0
    %791 = vmatprep.subr.mxu0 0.0
    %792 = vmatpush1.msra.mxu0 0.0
    %793 = vmatprep.mubr.f32.mxu0 0.0
    %794 = vmatmul.mubr.f32.gmra.mrb[0].mxu0 %v727
    %v795 = vpop.f32.mrb[0].mxu0
    %v796 = vadd.f32 0.0, %v795
    %v797 = vpop.f32.mrb[0].mxu0
    %798 = vdwg.mxu0
    %v799 = vmax.f32 %v796, 0.0
    %v800 = vld [vmem:[%s4] sm:$0xff]
    %v801 = vld [vmem:[%s4 + $0x8] sm:$0xff]
    %v802 = vld [vmem:[%s4 + $0x10] sm:$0xff]
    %v803 = vld [vmem:[%s4 + $0x18] sm:$0xff]
    %vm804 = vcmask 15360
    %v806 = vsel %vm804, %v800, 0
    %v809 = vsel %vm804, %v801, 0
    %v812 = vsel %vm804, %v802, 0
    %v815 = vsel %vm804, %v803, 0
    %vm817 = vcmask 1041408
    %v819 = vsel %vm817, %v799, 0
    %821 = vmatprep.subr.mxu0 0.0
    %822 = vmatpush1.msra.mxu0 %v819
    %823 = vmatprep.subr.mxu0 0.0
    %824 = vmatpush1.msra.mxu0 0.0
    %825 = vmatprep.subr.mxu0 0.0
    %826 = vmatpush1.msra.mxu0 0.0
    %827 = vmatprep.subr.mxu0 0.0
    %828 = vmatpush1.msra.mxu0 0.0
    %829 = vmatprep.subr.mxu0 0.0
    %830 = vmatpush1.msra.mxu0 0.0
    %831 = vmatprep.subr.mxu0 0.0
    %832 = vmatpush1.msra.mxu0 0.0
    %833 = vmatprep.subr.mxu0 0.0
    %834 = vmatpush1.msra.mxu0 0.0
    %835 = vmatprep.subr.mxu0 0.0
    %836 = vmatpush1.msra.mxu0 0.0
    %837 = vmatprep.subr.mxu0 0.0
    %838 = vmatpush1.msra.mxu0 0.0
    %839 = vmatprep.subr.mxu0 0.0
    %840 = vmatpush1.msra.mxu0 0.0
    %841 = vmatprep.subr.mxu0 0.0
    %842 = vmatpush1.msra.mxu0 0.0
    %843 = vmatprep.subr.mxu0 0.0
    %844 = vmatpush1.msra.mxu0 0.0
    %845 = vmatprep.subr.mxu0 0.0
    %846 = vmatpush1.msra.mxu0 0.0
    %847 = vmatprep.subr.mxu0 0.0
    %848 = vmatpush1.msra.mxu0 0.0
    %849 = vmatprep.subr.mxu0 0.0
    %850 = vmatpush1.msra.mxu0 0.0
    %851 = vmatprep.subr.mxu0 0.0
    %852 = vmatpush1.msra.mxu0 0.0
    %853 = vmatprep.subr.mxu0 0.0
    %854 = vmatpush1.msra.mxu0 0.0
    %855 = vmatprep.subr.mxu0 0.0
    %856 = vmatpush1.msra.mxu0 0.0
    %857 = vmatprep.subr.mxu0 0.0
    %858 = vmatpush1.msra.mxu0 0.0
    %859 = vmatprep.subr.mxu0 0.0
    %860 = vmatpush1.msra.mxu0 0.0
    %861 = vmatprep.subr.mxu0 0.0
    %862 = vmatpush1.msra.mxu0 0.0
    %863 = vmatprep.subr.mxu0 0.0
    %864 = vmatpush1.msra.mxu0 0.0
    %865 = vmatprep.subr.mxu0 0.0
    %866 = vmatpush1.msra.mxu0 0.0
    %867 = vmatprep.subr.mxu0 0.0
    %868 = vmatpush1.msra.mxu0 0.0
    %869 = vmatprep.subr.mxu0 0.0
    %870 = vmatpush1.msra.mxu0 0.0
    %871 = vmatprep.subr.mxu0 0.0
    %872 = vmatpush1.msra.mxu0 0.0
    %873 = vmatprep.subr.mxu0 0.0
    %874 = vmatpush1.msra.mxu0 0.0
    %875 = vmatprep.subr.mxu0 0.0
    %876 = vmatpush1.msra.mxu0 0.0
    %877 = vmatprep.subr.mxu0 0.0
    %878 = vmatpush1.msra.mxu0 0.0
    %879 = vmatprep.subr.mxu0 0.0
    %880 = vmatpush1.msra.mxu0 0.0
    %881 = vmatprep.subr.mxu0 0.0
    %882 = vmatpush1.msra.mxu0 0.0
    %883 = vmatprep.subr.mxu0 0.0
    %884 = vmatpush1.msra.mxu0 0.0
    %885 = vmatprep.mubr.f32.mxu0 0.0
    %886 = vmatmul.mubr.f32.gmra.mrb[0].mxu0 %v806
    %v887 = vpop.f32.mrb[0].mxu0
    %v888 = vadd.f32 0.0, %v887
    %v889 = vpop.f32.mrb[0].mxu0
    %890 = vmatprep.mubr.f32.mxu0 0.0
    %891 = vmatmul.mubr.f32.gmra.mrb[0].mxu0 %v809
    %v892 = vpop.f32.mrb[0].mxu0
    %v893 = vadd.f32 0.0, %v892
    %v894 = vpop.f32.mrb[0].mxu0
    %895 = vmatprep.mubr.f32.mxu0 0.0
    %896 = vmatmul.mubr.f32.gmra.mrb[0].mxu0 %v812
    %v897 = vpop.f32.mrb[0].mxu0
    %v898 = vadd.f32 0.0, %v897
    %v899 = vpop.f32.mrb[0].mxu0
    %900 = vmatprep.mubr.f32.mxu0 0.0
    %901 = vmatmul.mubr.f32.gmra.mrb[0].mxu0 %v815
    %v902 = vpop.f32.mrb[0].mxu0
    %v903 = vadd.f32 0.0, %v902
    %v904 = vpop.f32.mrb[0].mxu0
    %905 = vdwg.mxu0
    %v906 = vxor.u32 %v888, 2147483648
    %v907 = vxor.u32 %v893, 2147483648
    %v908 = vxor.u32 %v898, 2147483648
    %v909 = vxor.u32 %v903, 2147483648
    %v910 = vmul.f32 %v906, 1.442695
    %v911 = vpow.pop %v910
    %v912 = vmul.f32 %v907, 1.442695
    %v913 = vpow.pop %v912
    %v914 = vmul.f32 %v908, 1.442695
    %v915 = vpow.pop %v914
    %v916 = vmul.f32 %v909, 1.442695
    %v917 = vpow.pop %v916
    %v918 = vadd.f32 %v911, 1.0
    %v919 = vadd.f32 %v913, 1.0
    %v920 = vadd.f32 %v915, 1.0
    %v921 = vadd.f32 %v917, 1.0
    %v922 = vrcp.pop %v918
    %v923 = vmul.f32 1.0, %v922
    %v924 = vrcp.pop %v919
    %v925 = vmul.f32 1.0, %v924
    %v926 = vrcp.pop %v920
    %v927 = vmul.f32 1.0, %v926
    %v928 = vrcp.pop %v921
    %v929 = vmul.f32 1.0, %v928
    %931 = vset.pattern.permute.xlu0 0
    %932 = vperm.xlu0 %931, %v923
    %v933 = vpop.permute.xlu0 %932
    %936 = vset.pattern.permute.xlu0 0
    %937 = vperm.xlu0 %936, %v925
    %v938 = vpop.permute.xlu0 %937
    %941 = vset.pattern.permute.xlu0 0
    %942 = vperm.xlu0 %941, %v927
    %v943 = vpop.permute.xlu0 %942
    %946 = vset.pattern.permute.xlu0 0
    %947 = vperm.xlu0 %946, %v929
    %v948 = vpop.permute.xlu0 %947
    %v950 = vmul.f32 %v700, %v933
    %v951 = vmul.f32 %v701, %v933
    %v952 = vmul.f32 %v702, %v938
    %v953 = vmul.f32 %v703, %v938
    %v954 = vmul.f32 %v704, %v943
    %v955 = vmul.f32 %v705, %v943
    %v956 = vmul.f32 %v706, %v948
    %v957 = vmul.f32 %v707, %v948
    %v958 = vadd.f32 %v950, %v952
    %v959 = vadd.f32 %v958, %v954
    %v960 = vadd.f32 %v959, %v956
    %v961 = vrot.slane %v960, 4
    %v962 = vadd.f32 %v960, %v961
    %v963 = vrot.slane %v962, 2
    %v964 = vadd.f32 %v962, %v963
    %v965 = vrot.slane %v964, 1
    %v966 = vadd.f32 %v964, %v965
    %v967 = vadd.f32 %v951, %v953
    %v968 = vadd.f32 %v967, %v955
    %v969 = vadd.f32 %v968, %v957
    %v970 = vrot.slane %v969, 4
    %v971 = vadd.f32 %v969, %v970
    %v972 = vrot.slane %v971, 2
    %v973 = vadd.f32 %v971, %v972
    %v974 = vrot.slane %v973, 1
    %v975 = vadd.f32 %v973, %v974
    %v976 = vrcp.pop 32.0
    %v977 = vmul.f32 %v966, %v976
    %v978 = vmul.f32 %v975, %v976
    %v979 = vmax.f32 %v950, %v954
    %v980 = vmax.f32 %v952, %v956
    %v981 = vmax.f32 %v979, %v980
    %v982 = vrot.slane %v981, 4
    %v983 = vmax.f32 %v981, %v982
    %v984 = vrot.slane %v983, 2
    %v985 = vmax.f32 %v983, %v984
    %v986 = vrot.slane %v985, 1
    %v987 = vmax.f32 %v985, %v986
    %v988 = vmax.f32 %v951, %v955
    %v989 = vmax.f32 %v953, %v957
    %v990 = vmax.f32 %v988, %v989
    %v991 = vrot.slane %v990, 4
    %v992 = vmax.f32 %v990, %v991
    %v993 = vrot.slane %v992, 2
    %v994 = vmax.f32 %v992, %v993
    %v995 = vrot.slane %v994, 1
    %v996 = vmax.f32 %v994, %v995
    %s997 = scalar_lea.vmem %s0, 64
    %v998 = vld [vmem:[%s997] sm:$0xff]
    %v999 = vld [vmem:[%s997 + $0x8] sm:$0xff]
    %v1000 = vld [vmem:[%s997 + $0x10] sm:$0xff]
    %v1001 = vld [vmem:[%s997 + $0x18] sm:$0xff]
    %v1002 = vld [vmem:[%s997 + $0x20] sm:$0xff]
    %v1003 = vld [vmem:[%s997 + $0x28] sm:$0xff]
    %v1004 = vld [vmem:[%s997 + $0x30] sm:$0xff]
    %v1005 = vld [vmem:[%s997 + $0x38] sm:$0xff]
    %1006 = vrot.lane.b32.xlu0 %v998, 17
    %v1007 = vpop.permute.xlu0 %1006
    %1008 = vrot.lane.b32.xlu0 %v1000, 17
    %v1009 = vpop.permute.xlu0 %1008
    %1010 = vrot.lane.b32.xlu0 %v1002, 17
    %v1011 = vpop.permute.xlu0 %1010
    %1012 = vrot.lane.b32.xlu0 %v1004, 17
    %v1013 = vpop.permute.xlu0 %1012
    %1014 = vrot.lane.b32.xlu0 %v999, 17
    %v1015 = vpop.permute.xlu0 %1014
    %1016 = vrot.lane.b32.xlu0 %v1001, 17
    %v1017 = vpop.permute.xlu0 %1016
    %1018 = vrot.lane.b32.xlu0 %v1003, 17
    %v1019 = vpop.permute.xlu0 %1018
    %1020 = vrot.lane.b32.xlu0 %v1005, 17
    %v1021 = vpop.permute.xlu0 %1020
    %v1022 = vsel %vm102, %v1007, %v1015
    %v1023 = vsel %vm102, %v1009, %v1017
    %v1024 = vsel %vm102, %v1011, %v1019
    %v1025 = vsel %vm102, %v1013, %v1021
    %v1026 = vsel %vm102, %v1015, %v1007
    %v1027 = vsel %vm102, %v1017, %v1009
    %v1028 = vsel %vm102, %v1019, %v1011
    %v1029 = vsel %vm102, %v1021, %v1013
    %v1030 = vmul.f32 %v1026, %v115
    %v1031 = vmul.f32 %v1022, %v119
    %v1032 = vmul.f32 %v1027, %v115
    %v1033 = vmul.f32 %v1023, %v119
    %v1034 = vmul.f32 %v1028, %v115
    %v1035 = vmul.f32 %v1024, %v119
    %v1036 = vmul.f32 %v1029, %v115
    %v1037 = vmul.f32 %v1025, %v119
    %1038 = vrot.lane.b32.xlu0 %v998, 16
    %v1039 = vpop.permute.xlu0 %1038
    %1040 = vrot.lane.b32.xlu0 %v1000, 16
    %v1041 = vpop.permute.xlu0 %1040
    %1042 = vrot.lane.b32.xlu0 %v1002, 16
    %v1043 = vpop.permute.xlu0 %1042
    %1044 = vrot.lane.b32.xlu0 %v1004, 16
    %v1045 = vpop.permute.xlu0 %1044
    %1046 = vrot.lane.b32.xlu0 %v999, 16
    %v1047 = vpop.permute.xlu0 %1046
    %1048 = vrot.lane.b32.xlu0 %v1001, 16
    %v1049 = vpop.permute.xlu0 %1048
    %1050 = vrot.lane.b32.xlu0 %v1003, 16
    %v1051 = vpop.permute.xlu0 %1050
    %1052 = vrot.lane.b32.xlu0 %v1005, 16
    %v1053 = vpop.permute.xlu0 %1052
    %v1054 = vsel %vm148, %v1039, %v1047
    %v1055 = vsel %vm148, %v1041, %v1049
    %v1056 = vsel %vm148, %v1043, %v1051
    %v1057 = vsel %vm148, %v1045, %v1053
    %v1058 = vsel %vm148, %v1047, %v1039
    %v1059 = vsel %vm148, %v1049, %v1041
    %v1060 = vsel %vm148, %v1051, %v1043
    %v1061 = vsel %vm148, %v1053, %v1045
    %v1062 = vmul.f32 %v1058, %v161
    %v1063 = vmul.f32 %v1054, %v165
    %v1064 = vmul.f32 %v1059, %v161
    %v1065 = vmul.f32 %v1055, %v165
    %v1066 = vmul.f32 %v1060, %v161
    %v1067 = vmul.f32 %v1056, %v165
    %v1068 = vmul.f32 %v1061, %v161
    %v1069 = vmul.f32 %v1057, %v165
    %1070 = vrot.lane.b32.xlu0 %v998, 15
    %v1071 = vpop.permute.xlu0 %1070
    %1072 = vrot.lane.b32.xlu0 %v1000, 15
    %v1073 = vpop.permute.xlu0 %1072
    %1074 = vrot.lane.b32.xlu0 %v1002, 15
    %v1075 = vpop.permute.xlu0 %1074
    %1076 = vrot.lane.b32.xlu0 %v1004, 15
    %v1077 = vpop.permute.xlu0 %1076
    %1078 = vrot.lane.b32.xlu0 %v999, 15
    %v1079 = vpop.permute.xlu0 %1078
    %1080 = vrot.lane.b32.xlu0 %v1001, 15
    %v1081 = vpop.permute.xlu0 %1080
    %1082 = vrot.lane.b32.xlu0 %v1003, 15
    %v1083 = vpop.permute.xlu0 %1082
    %1084 = vrot.lane.b32.xlu0 %v1005, 15
    %v1085 = vpop.permute.xlu0 %1084
    %v1086 = vsel %vm194, %v1071, %v1079
    %v1087 = vsel %vm194, %v1073, %v1081
    %v1088 = vsel %vm194, %v1075, %v1083
    %v1089 = vsel %vm194, %v1077, %v1085
    %v1090 = vsel %vm194, %v1079, %v1071
    %v1091 = vsel %vm194, %v1081, %v1073
    %v1092 = vsel %vm194, %v1083, %v1075
    %v1093 = vsel %vm194, %v1085, %v1077
    %v1094 = vmul.f32 %v1090, %v207
    %v1095 = vmul.f32 %v1086, %v211
    %v1096 = vmul.f32 %v1091, %v207
    %v1097 = vmul.f32 %v1087, %v211
    %v1098 = vmul.f32 %v1092, %v207
    %v1099 = vmul.f32 %v1088, %v211
    %v1100 = vmul.f32 %v1093, %v207
    %v1101 = vmul.f32 %v1089, %v211
    %1102 = vrot.lane.b32.xlu0 %v998, 1
    %v1103 = vpop.permute.xlu0 %1102
    %1104 = vrot.lane.b32.xlu0 %v1000, 1
    %v1105 = vpop.permute.xlu0 %1104
    %1106 = vrot.lane.b32.xlu0 %v1002, 1
    %v1107 = vpop.permute.xlu0 %1106
    %1108 = vrot.lane.b32.xlu0 %v1004, 1
    %v1109 = vpop.permute.xlu0 %1108
    %1110 = vrot.lane.b32.xlu0 %v999, 1
    %v1111 = vpop.permute.xlu0 %1110
    %1112 = vrot.lane.b32.xlu0 %v1001, 1
    %v1113 = vpop.permute.xlu0 %1112
    %1114 = vrot.lane.b32.xlu0 %v1003, 1
    %v1115 = vpop.permute.xlu0 %1114
    %1116 = vrot.lane.b32.xlu0 %v1005, 1
    %v1117 = vpop.permute.xlu0 %1116
    %v1118 = vsel %vm240, %v1103, %v1111
    %v1119 = vsel %vm240, %v1105, %v1113
    %v1120 = vsel %vm240, %v1107, %v1115
    %v1121 = vsel %vm240, %v1109, %v1117
    %v1122 = vsel %vm240, %v1111, %v1103
    %v1123 = vsel %vm240, %v1113, %v1105
    %v1124 = vsel %vm240, %v1115, %v1107
    %v1125 = vsel %vm240, %v1117, %v1109
    %v1126 = vmul.f32 %v1122, %v253
    %v1127 = vmul.f32 %v1118, %v257
    %v1128 = vmul.f32 %v1123, %v253
    %v1129 = vmul.f32 %v1119, %v257
    %v1130 = vmul.f32 %v1124, %v253
    %v1131 = vmul.f32 %v1120, %v257
    %v1132 = vmul.f32 %v1125, %v253
    %v1133 = vmul.f32 %v1121, %v257
    %v1134 = vmul.f32 %v998, %v274
    %v1135 = vmul.f32 %v999, %v278
    %v1136 = vmul.f32 %v1000, %v274
    %v1137 = vmul.f32 %v1001, %v278
    %v1138 = vmul.f32 %v1002, %v274
    %v1139 = vmul.f32 %v1003, %v278
    %v1140 = vmul.f32 %v1004, %v274
    %v1141 = vmul.f32 %v1005, %v278
    %1142 = vrot.lane.b32.xlu0 %v998, 127
    %v1143 = vpop.permute.xlu0 %1142
    %1144 = vrot.lane.b32.xlu0 %v1000, 127
    %v1145 = vpop.permute.xlu0 %1144
    %1146 = vrot.lane.b32.xlu0 %v1002, 127
    %v1147 = vpop.permute.xlu0 %1146
    %1148 = vrot.lane.b32.xlu0 %v1004, 127
    %v1149 = vpop.permute.xlu0 %1148
    %1150 = vrot.lane.b32.xlu0 %v999, 127
    %v1151 = vpop.permute.xlu0 %1150
    %1152 = vrot.lane.b32.xlu0 %v1001, 127
    %v1153 = vpop.permute.xlu0 %1152
    %1154 = vrot.lane.b32.xlu0 %v1003, 127
    %v1155 = vpop.permute.xlu0 %1154
    %1156 = vrot.lane.b32.xlu0 %v1005, 127
    %v1157 = vpop.permute.xlu0 %1156
    %v1158 = vsel %vm307, %v1143, %v1151
    %v1159 = vsel %vm307, %v1145, %v1153
    %v1160 = vsel %vm307, %v1147, %v1155
    %v1161 = vsel %vm307, %v1149, %v1157
    %v1162 = vsel %vm307, %v1151, %v1143
    %v1163 = vsel %vm307, %v1153, %v1145
    %v1164 = vsel %vm307, %v1155, %v1147
    %v1165 = vsel %vm307, %v1157, %v1149
    %v1166 = vmul.f32 %v1158, %v320
    %v1167 = vmul.f32 %v1162, %v324
    %v1168 = vmul.f32 %v1159, %v320
    %v1169 = vmul.f32 %v1163, %v324
    %v1170 = vmul.f32 %v1160, %v320
    %v1171 = vmul.f32 %v1164, %v324
    %v1172 = vmul.f32 %v1161, %v320
    %v1173 = vmul.f32 %v1165, %v324
    %1174 = vrot.lane.b32.xlu0 %v998, 113
    %v1175 = vpop.permute.xlu0 %1174
    %1176 = vrot.lane.b32.xlu0 %v1000, 113
    %v1177 = vpop.permute.xlu0 %1176
    %1178 = vrot.lane.b32.xlu0 %v1002, 113
    %v1179 = vpop.permute.xlu0 %1178
    %1180 = vrot.lane.b32.xlu0 %v1004, 113
    %v1181 = vpop.permute.xlu0 %1180
    %1182 = vrot.lane.b32.xlu0 %v999, 113
    %v1183 = vpop.permute.xlu0 %1182
    %1184 = vrot.lane.b32.xlu0 %v1001, 113
    %v1185 = vpop.permute.xlu0 %1184
    %1186 = vrot.lane.b32.xlu0 %v1003, 113
    %v1187 = vpop.permute.xlu0 %1186
    %1188 = vrot.lane.b32.xlu0 %v1005, 113
    %v1189 = vpop.permute.xlu0 %1188
    %v1190 = vsel %vm353, %v1175, %v1183
    %v1191 = vsel %vm353, %v1177, %v1185
    %v1192 = vsel %vm353, %v1179, %v1187
    %v1193 = vsel %vm353, %v1181, %v1189
    %v1194 = vsel %vm353, %v1183, %v1175
    %v1195 = vsel %vm353, %v1185, %v1177
    %v1196 = vsel %vm353, %v1187, %v1179
    %v1197 = vsel %vm353, %v1189, %v1181
    %v1198 = vmul.f32 %v1190, %v366
    %v1199 = vmul.f32 %v1194, %v370
    %v1200 = vmul.f32 %v1191, %v366
    %v1201 = vmul.f32 %v1195, %v370
    %v1202 = vmul.f32 %v1192, %v366
    %v1203 = vmul.f32 %v1196, %v370
    %v1204 = vmul.f32 %v1193, %v366
    %v1205 = vmul.f32 %v1197, %v370
    %1206 = vrot.lane.b32.xlu0 %v998, 112
    %v1207 = vpop.permute.xlu0 %1206
    %1208 = vrot.lane.b32.xlu0 %v1000, 112
    %v1209 = vpop.permute.xlu0 %1208
    %1210 = vrot.lane.b32.xlu0 %v1002, 112
    %v1211 = vpop.permute.xlu0 %1210
    %1212 = vrot.lane.b32.xlu0 %v1004, 112
    %v1213 = vpop.permute.xlu0 %1212
    %1214 = vrot.lane.b32.xlu0 %v999, 112
    %v1215 = vpop.permute.xlu0 %1214
    %1216 = vrot.lane.b32.xlu0 %v1001, 112
    %v1217 = vpop.permute.xlu0 %1216
    %1218 = vrot.lane.b32.xlu0 %v1003, 112
    %v1219 = vpop.permute.xlu0 %1218
    %1220 = vrot.lane.b32.xlu0 %v1005, 112
    %v1221 = vpop.permute.xlu0 %1220
    %v1222 = vsel %vm399, %v1207, %v1215
    %v1223 = vsel %vm399, %v1209, %v1217
    %v1224 = vsel %vm399, %v1211, %v1219
    %v1225 = vsel %vm399, %v1213, %v1221
    %v1226 = vsel %vm399, %v1215, %v1207
    %v1227 = vsel %vm399, %v1217, %v1209
    %v1228 = vsel %vm399, %v1219, %v1211
    %v1229 = vsel %vm399, %v1221, %v1213
    %v1230 = vmul.f32 %v1222, %v412
    %v1231 = vmul.f32 %v1226, %v416
    %v1232 = vmul.f32 %v1223, %v412
    %v1233 = vmul.f32 %v1227, %v416
    %v1234 = vmul.f32 %v1224, %v412
    %v1235 = vmul.f32 %v1228, %v416
    %v1236 = vmul.f32 %v1225, %v412
    %v1237 = vmul.f32 %v1229, %v416
    %1238 = vrot.lane.b32.xlu0 %v998, 111
    %v1239 = vpop.permute.xlu0 %1238
    %1240 = vrot.lane.b32.xlu0 %v1000, 111
    %v1241 = vpop.permute.xlu0 %1240
    %1242 = vrot.lane.b32.xlu0 %v1002, 111
    %v1243 = vpop.permute.xlu0 %1242
    %1244 = vrot.lane.b32.xlu0 %v1004, 111
    %v1245 = vpop.permute.xlu0 %1244
    %1246 = vrot.lane.b32.xlu0 %v999, 111
    %v1247 = vpop.permute.xlu0 %1246
    %1248 = vrot.lane.b32.xlu0 %v1001, 111
    %v1249 = vpop.permute.xlu0 %1248
    %1250 = vrot.lane.b32.xlu0 %v1003, 111
    %v1251 = vpop.permute.xlu0 %1250
    %1252 = vrot.lane.b32.xlu0 %v1005, 111
    %v1253 = vpop.permute.xlu0 %1252
    %v1254 = vsel %vm445, %v1239, %v1247
    %v1255 = vsel %vm445, %v1241, %v1249
    %v1256 = vsel %vm445, %v1243, %v1251
    %v1257 = vsel %vm445, %v1245, %v1253
    %v1258 = vsel %vm445, %v1247, %v1239
    %v1259 = vsel %vm445, %v1249, %v1241
    %v1260 = vsel %vm445, %v1251, %v1243
    %v1261 = vsel %vm445, %v1253, %v1245
    %v1262 = vmul.f32 %v1254, %v458
    %v1263 = vmul.f32 %v1258, %v462
    %v1264 = vmul.f32 %v1255, %v458
    %v1265 = vmul.f32 %v1259, %v462
    %v1266 = vmul.f32 %v1256, %v458
    %v1267 = vmul.f32 %v1260, %v462
    %v1268 = vmul.f32 %v1257, %v458
    %v1269 = vmul.f32 %v1261, %v462
    %1270 = vmatprep.subr.mxu0 %v1031
    %1271 = vmatpush1.msra.mxu0 %v1030
    %1272 = vmatprep.subr.mxu0 %v1033
    %1273 = vmatpush1.msra.mxu0 %v1032
    %1274 = vmatprep.subr.mxu0 %v1035
    %1275 = vmatpush1.msra.mxu0 %v1034
    %1276 = vmatprep.subr.mxu0 %v1037
    %1277 = vmatpush1.msra.mxu0 %v1036
    %1278 = vmatprep.subr.mxu0 %v1063
    %1279 = vmatpush1.msra.mxu0 %v1062
    %1280 = vmatprep.subr.mxu0 %v1065
    %1281 = vmatpush1.msra.mxu0 %v1064
    %1282 = vmatprep.subr.mxu0 %v1067
    %1283 = vmatpush1.msra.mxu0 %v1066
    %1284 = vmatprep.subr.mxu0 %v1069
    %1285 = vmatpush1.msra.mxu0 %v1068
    %1286 = vmatprep.subr.mxu0 %v1095
    %1287 = vmatpush1.msra.mxu0 %v1094
    %1288 = vmatprep.subr.mxu0 %v1097
    %1289 = vmatpush1.msra.mxu0 %v1096
    %1290 = vmatprep.subr.mxu0 %v1099
    %1291 = vmatpush1.msra.mxu0 %v1098
    %1292 = vmatprep.subr.mxu0 %v1101
    %1293 = vmatpush1.msra.mxu0 %v1100
    %1294 = vmatprep.subr.mxu0 %v1127
    %1295 = vmatpush1.msra.mxu0 %v1126
    %1296 = vmatprep.subr.mxu0 %v1129
    %1297 = vmatpush1.msra.mxu0 %v1128
    %1298 = vmatprep.subr.mxu0 %v1131
    %1299 = vmatpush1.msra.mxu0 %v1130
    %1300 = vmatprep.subr.mxu0 %v1133
    %1301 = vmatpush1.msra.mxu0 %v1132
    %1302 = vmatprep.subr.mxu0 %v1135
    %1303 = vmatpush1.msra.mxu0 %v1134
    %1304 = vmatprep.subr.mxu0 %v1137
    %1305 = vmatpush1.msra.mxu0 %v1136
    %1306 = vmatprep.subr.mxu0 %v1139
    %1307 = vmatpush1.msra.mxu0 %v1138
    %1308 = vmatprep.subr.mxu0 %v1141
    %1309 = vmatpush1.msra.mxu0 %v1140
    %1310 = vmatprep.subr.mxu0 %v1167
    %1311 = vmatpush1.msra.mxu0 %v1166
    %1312 = vmatprep.subr.mxu0 %v1169
    %1313 = vmatpush1.msra.mxu0 %v1168
    %1314 = vmatprep.subr.mxu0 %v1171
    %1315 = vmatpush1.msra.mxu0 %v1170
    %1316 = vmatprep.subr.mxu0 %v1173
    %1317 = vmatpush1.msra.mxu0 %v1172
    %1318 = vmatprep.subr.mxu0 %v1199
    %1319 = vmatpush1.msra.mxu0 %v1198
    %1320 = vmatprep.subr.mxu0 %v1201
    %1321 = vmatpush1.msra.mxu0 %v1200
    %1322 = vmatprep.subr.mxu0 %v1203
    %1323 = vmatpush1.msra.mxu0 %v1202
    %1324 = vmatprep.subr.mxu0 %v1205
    %1325 = vmatpush1.msra.mxu0 %v1204
    %1326 = vmatprep.subr.mxu0 %v1231
    %1327 = vmatpush1.msra.mxu0 %v1230
    %1328 = vmatprep.subr.mxu0 %v1233
    %1329 = vmatpush1.msra.mxu0 %v1232
    %1330 = vmatprep.subr.mxu0 %v1235
    %1331 = vmatpush1.msra.mxu0 %v1234
    %1332 = vmatprep.subr.mxu0 %v1237
    %1333 = vmatpush1.msra.mxu0 %v1236
    %1334 = vmatprep.mubr.f32.mxu0 %v474
    %1335 = vmatmul.mubr.f32.gmra.mrb[0].mxu0 %v473
    %v1336 = vpop.f32.mrb[0].mxu0
    %v1337 = vadd.f32 %v492, %v1336
    %v1338 = vpop.f32.mrb[0].mxu0
    %v1339 = vadd.f32 %v492, %v1338
    %1340 = vmatprep.mubr.f32.mxu0 %v477
    %1341 = vmatmul.mubr.f32.gmra.mrb[0].mxu0 %v476
    %v1342 = vpop.f32.mrb[0].mxu0
    %v1343 = vadd.f32 %v497, %v1342
    %v1344 = vpop.f32.mrb[0].mxu0
    %v1345 = vadd.f32 %v497, %v1344
    %1346 = vmatprep.mubr.f32.mxu0 %v480
    %1347 = vmatmul.mubr.f32.gmra.mrb[0].mxu0 %v479
    %v1348 = vpop.f32.mrb[0].mxu0
    %v1349 = vadd.f32 %v502, %v1348
    %v1350 = vpop.f32.mrb[0].mxu0
    %v1351 = vadd.f32 %v502, %v1350
    %1352 = vmatprep.mubr.f32.mxu0 %v483
    %1353 = vmatmul.mubr.f32.gmra.mrb[0].mxu0 %v482
    %v1354 = vpop.f32.mrb[0].mxu0
    %v1355 = vadd.f32 %v507, %v1354
    %v1356 = vpop.f32.mrb[0].mxu0
    %v1357 = vadd.f32 %v507, %v1356
    %1358 = vdwg.mxu0
    %1359 = vmatprep.subr.mxu0 %v1263
    %1360 = vmatpush1.msra.mxu0 %v1262
    %1361 = vmatprep.subr.mxu0 %v1265
    %1362 = vmatpush1.msra.mxu0 %v1264
    %1363 = vmatprep.subr.mxu0 %v1267
    %1364 = vmatpush1.msra.mxu0 %v1266
    %1365 = vmatprep.subr.mxu0 %v1269
    %1366 = vmatpush1.msra.mxu0 %v1268
    %1367 = vmatprep.subr.mxu0 0.0
    %1368 = vmatpush1.msra.mxu0 0.0
    %1369 = vmatprep.subr.mxu0 0.0
    %1370 = vmatpush1.msra.mxu0 0.0
    %1371 = vmatprep.subr.mxu0 0.0
    %1372 = vmatpush1.msra.mxu0 0.0
    %1373 = vmatprep.subr.mxu0 0.0
    %1374 = vmatpush1.msra.mxu0 0.0
    %1375 = vmatprep.subr.mxu0 0.0
    %1376 = vmatpush1.msra.mxu0 0.0
    %1377 = vmatprep.subr.mxu0 0.0
    %1378 = vmatpush1.msra.mxu0 0.0
    %1379 = vmatprep.subr.mxu0 0.0
    %1380 = vmatpush1.msra.mxu0 0.0
    %1381 = vmatprep.subr.mxu0 0.0
    %1382 = vmatpush1.msra.mxu0 0.0
    %1383 = vmatprep.subr.mxu0 0.0
    %1384 = vmatpush1.msra.mxu0 0.0
    %1385 = vmatprep.subr.mxu0 0.0
    %1386 = vmatpush1.msra.mxu0 0.0
    %1387 = vmatprep.subr.mxu0 0.0
    %1388 = vmatpush1.msra.mxu0 0.0
    %1389 = vmatprep.subr.mxu0 0.0
    %1390 = vmatpush1.msra.mxu0 0.0
    %1391 = vmatprep.subr.mxu0 0.0
    %1392 = vmatpush1.msra.mxu0 0.0
    %1393 = vmatprep.subr.mxu0 0.0
    %1394 = vmatpush1.msra.mxu0 0.0
    %1395 = vmatprep.subr.mxu0 0.0
    %1396 = vmatpush1.msra.mxu0 0.0
    %1397 = vmatprep.subr.mxu0 0.0
    %1398 = vmatpush1.msra.mxu0 0.0
    %1399 = vmatprep.subr.mxu0 0.0
    %1400 = vmatpush1.msra.mxu0 0.0
    %1401 = vmatprep.subr.mxu0 0.0
    %1402 = vmatpush1.msra.mxu0 0.0
    %1403 = vmatprep.subr.mxu0 0.0
    %1404 = vmatpush1.msra.mxu0 0.0
    %1405 = vmatprep.subr.mxu0 0.0
    %1406 = vmatpush1.msra.mxu0 0.0
    %1407 = vmatprep.subr.mxu0 0.0
    %1408 = vmatpush1.msra.mxu0 0.0
    %1409 = vmatprep.subr.mxu0 0.0
    %1410 = vmatpush1.msra.mxu0 0.0
    %1411 = vmatprep.subr.mxu0 0.0
    %1412 = vmatpush1.msra.mxu0 0.0
    %1413 = vmatprep.subr.mxu0 0.0
    %1414 = vmatpush1.msra.mxu0 0.0
    %1415 = vmatprep.subr.mxu0 0.0
    %1416 = vmatpush1.msra.mxu0 0.0
    %1417 = vmatprep.subr.mxu0 0.0
    %1418 = vmatpush1.msra.mxu0 0.0
    %1419 = vmatprep.subr.mxu0 0.0
    %1420 = vmatpush1.msra.mxu0 0.0
    %1421 = vmatprep.subr.mxu0 0.0
    %1422 = vmatpush1.msra.mxu0 0.0
    %1423 = vmatprep.mubr.f32.mxu0 0.0
    %1424 = vmatmul.mubr.f32.gmra.mrb[0].mxu0 %v511
    %v1425 = vpop.f32.mrb[0].mxu0
    %v1426 = vadd.f32 %v1337, %v1425
    %v1427 = vpop.f32.mrb[0].mxu0
    %v1428 = vadd.f32 %v1339, %v1427
    %1429 = vmatprep.mubr.f32.mxu0 0.0
    %1430 = vmatmul.mubr.f32.gmra.mrb[0].mxu0 %v514
    %v1431 = vpop.f32.mrb[0].mxu0
    %v1432 = vadd.f32 %v1343, %v1431
    %v1433 = vpop.f32.mrb[0].mxu0
    %v1434 = vadd.f32 %v1345, %v1433
    %1435 = vmatprep.mubr.f32.mxu0 0.0
    %1436 = vmatmul.mubr.f32.gmra.mrb[0].mxu0 %v517
    %v1437 = vpop.f32.mrb[0].mxu0
    %v1438 = vadd.f32 %v1349, %v1437
    %v1439 = vpop.f32.mrb[0].mxu0
    %v1440 = vadd.f32 %v1351, %v1439
    %1441 = vmatprep.mubr.f32.mxu0 0.0
    %1442 = vmatmul.mubr.f32.gmra.mrb[0].mxu0 %v520
    %v1443 = vpop.f32.mrb[0].mxu0
    %v1444 = vadd.f32 %v1355, %v1443
    %v1445 = vpop.f32.mrb[0].mxu0
    %v1446 = vadd.f32 %v1357, %v1445
    %1447 = vdwg.mxu0
    %v1448 = vmax.f32 %v1426, 0.0
    %v1449 = vmax.f32 %v1428, 0.0
    %v1450 = vmax.f32 %v1432, 0.0
    %v1451 = vmax.f32 %v1434, 0.0
    %v1452 = vmax.f32 %v1438, 0.0
    %v1453 = vmax.f32 %v1440, 0.0
    %v1454 = vmax.f32 %v1444, 0.0
    %v1455 = vmax.f32 %v1446, 0.0
    %v1456 = vadd.f32 %v1448, %v1449
    %1457 = vadd.xlane.f32.xlu0 %v1456
    %v1458 = vpop.xlane.xlu0 %1457
    %v1459 = vadd.f32 %v1450, %v1451
    %1460 = vadd.xlane.f32.xlu0 %v1459
    %v1461 = vpop.xlane.xlu0 %1460
    %v1462 = vadd.f32 %v1452, %v1453
    %1463 = vadd.xlane.f32.xlu0 %v1462
    %v1464 = vpop.xlane.xlu0 %1463
    %v1465 = vadd.f32 %v1454, %v1455
    %1466 = vadd.xlane.f32.xlu0 %v1465
    %v1467 = vpop.xlane.xlu0 %1466
    %v1468 = vmul.f32 %v1458, %v720
    %v1469 = vmul.f32 %v1461, %v720
    %v1470 = vmul.f32 %v1464, %v720
    %v1471 = vmul.f32 %v1467, %v720
    %1472 = vmatprep.subr.mxu0 0.0
    %1473 = vmatpush1.msra.mxu0 %v1468
    %1474 = vmatprep.subr.mxu0 0.0
    %1475 = vmatpush1.msra.mxu0 %v1469
    %1476 = vmatprep.subr.mxu0 0.0
    %1477 = vmatpush1.msra.mxu0 %v1470
    %1478 = vmatprep.subr.mxu0 0.0
    %1479 = vmatpush1.msra.mxu0 %v1471
    %1480 = vmatprep.subr.mxu0 0.0
    %1481 = vmatpush1.msra.mxu0 0.0
    %1482 = vmatprep.subr.mxu0 0.0
    %1483 = vmatpush1.msra.mxu0 0.0
    %1484 = vmatprep.subr.mxu0 0.0
    %1485 = vmatpush1.msra.mxu0 0.0
    %1486 = vmatprep.subr.mxu0 0.0
    %1487 = vmatpush1.msra.mxu0 0.0
    %1488 = vmatprep.subr.mxu0 0.0
    %1489 = vmatpush1.msra.mxu0 0.0
    %1490 = vmatprep.subr.mxu0 0.0
    %1491 = vmatpush1.msra.mxu0 0.0
    %1492 = vmatprep.subr.mxu0 0.0
    %1493 = vmatpush1.msra.mxu0 0.0
    %1494 = vmatprep.subr.mxu0 0.0
    %1495 = vmatpush1.msra.mxu0 0.0
    %1496 = vmatprep.subr.mxu0 0.0
    %1497 = vmatpush1.msra.mxu0 0.0
    %1498 = vmatprep.subr.mxu0 0.0
    %1499 = vmatpush1.msra.mxu0 0.0
    %1500 = vmatprep.subr.mxu0 0.0
    %1501 = vmatpush1.msra.mxu0 0.0
    %1502 = vmatprep.subr.mxu0 0.0
    %1503 = vmatpush1.msra.mxu0 0.0
    %1504 = vmatprep.subr.mxu0 0.0
    %1505 = vmatpush1.msra.mxu0 0.0
    %1506 = vmatprep.subr.mxu0 0.0
    %1507 = vmatpush1.msra.mxu0 0.0
    %1508 = vmatprep.subr.mxu0 0.0
    %1509 = vmatpush1.msra.mxu0 0.0
    %1510 = vmatprep.subr.mxu0 0.0
    %1511 = vmatpush1.msra.mxu0 0.0
    %1512 = vmatprep.subr.mxu0 0.0
    %1513 = vmatpush1.msra.mxu0 0.0
    %1514 = vmatprep.subr.mxu0 0.0
    %1515 = vmatpush1.msra.mxu0 0.0
    %1516 = vmatprep.subr.mxu0 0.0
    %1517 = vmatpush1.msra.mxu0 0.0
    %1518 = vmatprep.subr.mxu0 0.0
    %1519 = vmatpush1.msra.mxu0 0.0
    %1520 = vmatprep.subr.mxu0 0.0
    %1521 = vmatpush1.msra.mxu0 0.0
    %1522 = vmatprep.subr.mxu0 0.0
    %1523 = vmatpush1.msra.mxu0 0.0
    %1524 = vmatprep.subr.mxu0 0.0
    %1525 = vmatpush1.msra.mxu0 0.0
    %1526 = vmatprep.subr.mxu0 0.0
    %1527 = vmatpush1.msra.mxu0 0.0
    %1528 = vmatprep.subr.mxu0 0.0
    %1529 = vmatpush1.msra.mxu0 0.0
    %1530 = vmatprep.subr.mxu0 0.0
    %1531 = vmatpush1.msra.mxu0 0.0
    %1532 = vmatprep.subr.mxu0 0.0
    %1533 = vmatpush1.msra.mxu0 0.0
    %1534 = vmatprep.subr.mxu0 0.0
    %1535 = vmatpush1.msra.mxu0 0.0
    %1536 = vmatprep.mubr.f32.mxu0 0.0
    %1537 = vmatmul.mubr.f32.gmra.mrb[0].mxu0 %v727
    %v1538 = vpop.f32.mrb[0].mxu0
    %v1539 = vadd.f32 0.0, %v1538
    %v1540 = vpop.f32.mrb[0].mxu0
    %1541 = vdwg.mxu0
    %v1542 = vmax.f32 %v1539, 0.0
    %v1544 = vsel %vm817, %v1542, 0
    %1546 = vmatprep.subr.mxu0 0.0
    %1547 = vmatpush1.msra.mxu0 %v1544
    %1548 = vmatprep.subr.mxu0 0.0
    %1549 = vmatpush1.msra.mxu0 0.0
    %1550 = vmatprep.subr.mxu0 0.0
    %1551 = vmatpush1.msra.mxu0 0.0
    %1552 = vmatprep.subr.mxu0 0.0
    %1553 = vmatpush1.msra.mxu0 0.0
    %1554 = vmatprep.subr.mxu0 0.0
    %1555 = vmatpush1.msra.mxu0 0.0
    %1556 = vmatprep.subr.mxu0 0.0
    %1557 = vmatpush1.msra.mxu0 0.0
    %1558 = vmatprep.subr.mxu0 0.0
    %1559 = vmatpush1.msra.mxu0 0.0
    %1560 = vmatprep.subr.mxu0 0.0
    %1561 = vmatpush1.msra.mxu0 0.0
    %1562 = vmatprep.subr.mxu0 0.0
    %1563 = vmatpush1.msra.mxu0 0.0
    %1564 = vmatprep.subr.mxu0 0.0
    %1565 = vmatpush1.msra.mxu0 0.0
    %1566 = vmatprep.subr.mxu0 0.0
    %1567 = vmatpush1.msra.mxu0 0.0
    %1568 = vmatprep.subr.mxu0 0.0
    %1569 = vmatpush1.msra.mxu0 0.0
    %1570 = vmatprep.subr.mxu0 0.0
    %1571 = vmatpush1.msra.mxu0 0.0
    %1572 = vmatprep.subr.mxu0 0.0
    %1573 = vmatpush1.msra.mxu0 0.0
    %1574 = vmatprep.subr.mxu0 0.0
    %1575 = vmatpush1.msra.mxu0 0.0
    %1576 = vmatprep.subr.mxu0 0.0
    %1577 = vmatpush1.msra.mxu0 0.0
    %1578 = vmatprep.subr.mxu0 0.0
    %1579 = vmatpush1.msra.mxu0 0.0
    %1580 = vmatprep.subr.mxu0 0.0
    %1581 = vmatpush1.msra.mxu0 0.0
    %1582 = vmatprep.subr.mxu0 0.0
    %1583 = vmatpush1.msra.mxu0 0.0
    %1584 = vmatprep.subr.mxu0 0.0
    %1585 = vmatpush1.msra.mxu0 0.0
    %1586 = vmatprep.subr.mxu0 0.0
    %1587 = vmatpush1.msra.mxu0 0.0
    %1588 = vmatprep.subr.mxu0 0.0
    %1589 = vmatpush1.msra.mxu0 0.0
    %1590 = vmatprep.subr.mxu0 0.0
    %1591 = vmatpush1.msra.mxu0 0.0
    %1592 = vmatprep.subr.mxu0 0.0
    %1593 = vmatpush1.msra.mxu0 0.0
    %1594 = vmatprep.subr.mxu0 0.0
    %1595 = vmatpush1.msra.mxu0 0.0
    %1596 = vmatprep.subr.mxu0 0.0
    %1597 = vmatpush1.msra.mxu0 0.0
    %1598 = vmatprep.subr.mxu0 0.0
    %1599 = vmatpush1.msra.mxu0 0.0
    %1600 = vmatprep.subr.mxu0 0.0
    %1601 = vmatpush1.msra.mxu0 0.0
    %1602 = vmatprep.subr.mxu0 0.0
    %1603 = vmatpush1.msra.mxu0 0.0
    %1604 = vmatprep.subr.mxu0 0.0
    %1605 = vmatpush1.msra.mxu0 0.0
    %1606 = vmatprep.subr.mxu0 0.0
    %1607 = vmatpush1.msra.mxu0 0.0
    %1608 = vmatprep.subr.mxu0 0.0
    %1609 = vmatpush1.msra.mxu0 0.0
    %1610 = vmatprep.mubr.f32.mxu0 0.0
    %1611 = vmatmul.mubr.f32.gmra.mrb[0].mxu0 %v806
    %v1612 = vpop.f32.mrb[0].mxu0
    %v1613 = vadd.f32 0.0, %v1612
    %v1614 = vpop.f32.mrb[0].mxu0
    %1615 = vmatprep.mubr.f32.mxu0 0.0
    %1616 = vmatmul.mubr.f32.gmra.mrb[0].mxu0 %v809
    %v1617 = vpop.f32.mrb[0].mxu0
    %v1618 = vadd.f32 0.0, %v1617
    %v1619 = vpop.f32.mrb[0].mxu0
    %1620 = vmatprep.mubr.f32.mxu0 0.0
    %1621 = vmatmul.mubr.f32.gmra.mrb[0].mxu0 %v812
    %v1622 = vpop.f32.mrb[0].mxu0
    %v1623 = vadd.f32 0.0, %v1622
    %v1624 = vpop.f32.mrb[0].mxu0
    %1625 = vmatprep.mubr.f32.mxu0 0.0
    %1626 = vmatmul.mubr.f32.gmra.mrb[0].mxu0 %v815
    %v1627 = vpop.f32.mrb[0].mxu0
    %v1628 = vadd.f32 0.0, %v1627
    %v1629 = vpop.f32.mrb[0].mxu0
    %1630 = vdwg.mxu0
    %v1631 = vxor.u32 %v1613, 2147483648
    %v1632 = vxor.u32 %v1618, 2147483648
    %v1633 = vxor.u32 %v1623, 2147483648
    %v1634 = vxor.u32 %v1628, 2147483648
    %v1635 = vmul.f32 %v1631, 1.442695
    %v1636 = vpow.pop %v1635
    %v1637 = vmul.f32 %v1632, 1.442695
    %v1638 = vpow.pop %v1637
    %v1639 = vmul.f32 %v1633, 1.442695
    %v1640 = vpow.pop %v1639
    %v1641 = vmul.f32 %v1634, 1.442695
    %v1642 = vpow.pop %v1641
    %v1643 = vadd.f32 %v1636, 1.0
    %v1644 = vadd.f32 %v1638, 1.0
    %v1645 = vadd.f32 %v1640, 1.0
    %v1646 = vadd.f32 %v1642, 1.0
    %v1647 = vrcp.pop %v1643
    %v1648 = vmul.f32 1.0, %v1647
    %v1649 = vrcp.pop %v1644
    %v1650 = vmul.f32 1.0, %v1649
    %v1651 = vrcp.pop %v1645
    %v1652 = vmul.f32 1.0, %v1651
    %v1653 = vrcp.pop %v1646
    %v1654 = vmul.f32 1.0, %v1653
    %1656 = vset.pattern.permute.xlu0 0
    %1657 = vperm.xlu0 %1656, %v1648
    %v1658 = vpop.permute.xlu0 %1657
    %1661 = vset.pattern.permute.xlu0 0
    %1662 = vperm.xlu0 %1661, %v1650
    %v1663 = vpop.permute.xlu0 %1662
    %1666 = vset.pattern.permute.xlu0 0
    %1667 = vperm.xlu0 %1666, %v1652
    %v1668 = vpop.permute.xlu0 %1667
    %1671 = vset.pattern.permute.xlu0 0
    %1672 = vperm.xlu0 %1671, %v1654
    %v1673 = vpop.permute.xlu0 %1672
    %v1675 = vmul.f32 %v1448, %v1658
    %v1676 = vmul.f32 %v1449, %v1658
    %v1677 = vmul.f32 %v1450, %v1663
    %v1678 = vmul.f32 %v1451, %v1663
    %v1679 = vmul.f32 %v1452, %v1668
    %v1680 = vmul.f32 %v1453, %v1668
    %v1681 = vmul.f32 %v1454, %v1673
    %v1682 = vmul.f32 %v1455, %v1673
    %v1683 = vadd.f32 %v1675, %v1677
    %v1684 = vadd.f32 %v1683, %v1679
    %v1685 = vadd.f32 %v1684, %v1681
    %v1686 = vrot.slane %v1685, 4
    %v1687 = vadd.f32 %v1685, %v1686
    %v1688 = vrot.slane %v1687, 2
    %v1689 = vadd.f32 %v1687, %v1688
    %v1690 = vrot.slane %v1689, 1
    %v1691 = vadd.f32 %v1689, %v1690
    %v1692 = vadd.f32 %v1676, %v1678
    %v1693 = vadd.f32 %v1692, %v1680
    %v1694 = vadd.f32 %v1693, %v1682
    %v1695 = vrot.slane %v1694, 4
    %v1696 = vadd.f32 %v1694, %v1695
    %v1697 = vrot.slane %v1696, 2
    %v1698 = vadd.f32 %v1696, %v1697
    %v1699 = vrot.slane %v1698, 1
    %v1700 = vadd.f32 %v1698, %v1699
    %v1701 = vmul.f32 %v1691, %v976
    %v1702 = vmul.f32 %v1700, %v976
    %v1703 = vmax.f32 %v1675, %v1679
    %v1704 = vmax.f32 %v1677, %v1681
    %v1705 = vmax.f32 %v1703, %v1704
    %v1706 = vrot.slane %v1705, 4
    %v1707 = vmax.f32 %v1705, %v1706
    %v1708 = vrot.slane %v1707, 2
    %v1709 = vmax.f32 %v1707, %v1708
    %v1710 = vrot.slane %v1709, 1
    %v1711 = vmax.f32 %v1709, %v1710
    %v1712 = vmax.f32 %v1676, %v1680
    %v1713 = vmax.f32 %v1678, %v1682
    %v1714 = vmax.f32 %v1712, %v1713
    %v1715 = vrot.slane %v1714, 4
    %v1716 = vmax.f32 %v1714, %v1715
    %v1717 = vrot.slane %v1716, 2
    %v1718 = vmax.f32 %v1716, %v1717
    %v1719 = vrot.slane %v1718, 1
    %v1720 = vmax.f32 %v1718, %v1719
    %vm1721 = vcmask 1040384
    %v1722 = vsel %vm1721, %v977, %v1701
    %v1723 = vsel %vm1721, %v978, %v1702
    %v1724 = vsel %vm817, %v1722, %v987
    %v1725 = vsel %vm817, %v1723, %v996
    %vm1726 = vcmask 1042432
    %v1727 = vsel %vm1726, %v1724, %v1711
    %v1728 = vsel %vm1726, %v1725, %v1720
    %vm1729 = vcmask 1043456
    %v1730 = vsel %vm1729, %v1727, 0.0
    %v1731 = vsel %vm1729, %v1728, 0.0
    %1732 = vrot.lane.b32.xlu0 %v1730, 51
    %v1733 = vpop.permute.xlu0 %1732
    %1734 = vrot.lane.b32.xlu0 %v1731, 51
    %v1735 = vpop.permute.xlu0 %1734
    %vm1736 = vcmp.lt.s32.totalorder %v101, 51
    %v1737 = vsel %vm1736, %v1733, %v1735
    %v1738 = vsel %vm1736, %v1735, %v1733
    %v1739 = vld [vmem:[%s18] ss:$8 sm:$0x3]
    %s1740 = sld [smem:[#allocation2]]
    %v1741 = vstv %s1740
    %v1742 = vmul.f32 %v1741, %v1738
    %v1743 = vmul.f32 %v1741, %v1737
    %s1744 = sld [smem:[#allocation2 + $0x80]]
    %v1745 = vstv %s1744
    %v1746 = vmul.f32 %v1745, %v1738
    %v1747 = vmul.f32 %v1745, %v1737
    %v1750 = vrot.slane %v1746, 2
    %v1751 = vrot.slane %v1747, 2
    %v1754 = vadd.f32 %v1742, %v1750
    %v1755 = vadd.f32 %v1743, %v1751
    %v1757 = vlaneseq
    %v1758 = vshrl.u32 %v1757, 7
    %v1759 = vsub.s32 0, %v1758
    %v1760 = vrot.slane %v1739, %v1759
    %v1761 = vlaneseq
    %v1762 = vshrl.u32 %v1761, 7
    %v1763 = vsub.s32 1, %v1762
    %v1764 = vrot.slane %v1739, %v1763
    %v1767 = vmul.f32 %v1760, %v1754
    %v1768 = vmul.f32 %v1764, %v1755
    %v1769 = vadd.f32 %v1767, 0.0
    %v1770 = vadd.f32 %v1768, 0.0
    %1771 = vrot.lane.b32.xlu0 %v1730, 50
    %v1772 = vpop.permute.xlu0 %1771
    %1773 = vrot.lane.b32.xlu0 %v1731, 50
    %v1774 = vpop.permute.xlu0 %1773
    %vm1775 = vcmp.lt.s32.totalorder %v101, 50
    %v1776 = vsel %vm1775, %v1772, %v1774
    %v1777 = vsel %vm1775, %v1774, %v1772
    %s1778 = scalar_lea.vmem %s18, 1
    %v1779 = vld [vmem:[%s1778] ss:$8 sm:$0x3]
    %s1780 = sld [smem:[#allocation2 + $0x1]]
    %v1781 = vstv %s1780
    %v1782 = vmul.f32 %v1781, %v1777
    %v1783 = vmul.f32 %v1781, %v1776
    %s1784 = sld [smem:[#allocation2 + $0x81]]
    %v1785 = vstv %s1784
    %v1786 = vmul.f32 %v1785, %v1777
    %v1787 = vmul.f32 %v1785, %v1776
    %v1790 = vrot.slane %v1786, 2
    %v1791 = vrot.slane %v1787, 2
    %v1794 = vadd.f32 %v1782, %v1790
    %v1795 = vadd.f32 %v1783, %v1791
    %v1797 = vlaneseq
    %v1798 = vshrl.u32 %v1797, 7
    %v1799 = vsub.s32 0, %v1798
    %v1800 = vrot.slane %v1779, %v1799
    %v1801 = vlaneseq
    %v1802 = vshrl.u32 %v1801, 7
    %v1803 = vsub.s32 1, %v1802
    %v1804 = vrot.slane %v1779, %v1803
    %v1807 = vmul.f32 %v1800, %v1794
    %v1808 = vmul.f32 %v1804, %v1795
    %v1809 = vadd.f32 %v1769, %v1807
    %v1810 = vadd.f32 %v1770, %v1808
    %1811 = vrot.lane.b32.xlu0 %v1730, 49
    %v1812 = vpop.permute.xlu0 %1811
    %1813 = vrot.lane.b32.xlu0 %v1731, 49
    %v1814 = vpop.permute.xlu0 %1813
    %vm1815 = vcmp.lt.s32.totalorder %v101, 49
    %v1816 = vsel %vm1815, %v1812, %v1814
    %v1817 = vsel %vm1815, %v1814, %v1812
    %s1818 = scalar_lea.vmem %s18, 2
    %v1819 = vld [vmem:[%s1818] ss:$8 sm:$0x3]
    %s1820 = sld [smem:[#allocation2 + $0x2]]
    %v1821 = vstv %s1820
    %v1822 = vmul.f32 %v1821, %v1817
    %v1823 = vmul.f32 %v1821, %v1816
    %s1824 = sld [smem:[#allocation2 + $0x82]]
    %v1825 = vstv %s1824
    %v1826 = vmul.f32 %v1825, %v1817
    %v1827 = vmul.f32 %v1825, %v1816
    %v1830 = vrot.slane %v1826, 2
    %v1831 = vrot.slane %v1827, 2
    %v1834 = vadd.f32 %v1822, %v1830
    %v1835 = vadd.f32 %v1823, %v1831
    %v1837 = vlaneseq
    %v1838 = vshrl.u32 %v1837, 7
    %v1839 = vsub.s32 0, %v1838
    %v1840 = vrot.slane %v1819, %v1839
    %v1841 = vlaneseq
    %v1842 = vshrl.u32 %v1841, 7
    %v1843 = vsub.s32 1, %v1842
    %v1844 = vrot.slane %v1819, %v1843
    %v1847 = vmul.f32 %v1840, %v1834
    %v1848 = vmul.f32 %v1844, %v1835
    %v1849 = vadd.f32 %v1809, %v1847
    %v1850 = vadd.f32 %v1810, %v1848
    %1851 = vrot.lane.b32.xlu0 %v1730, 48
    %v1852 = vpop.permute.xlu0 %1851
    %1853 = vrot.lane.b32.xlu0 %v1731, 48
    %v1854 = vpop.permute.xlu0 %1853
    %vm1855 = vcmp.lt.s32.totalorder %v101, 48
    %v1856 = vsel %vm1855, %v1852, %v1854
    %v1857 = vsel %vm1855, %v1854, %v1852
    %s1858 = scalar_lea.vmem %s18, 3
    %v1859 = vld [vmem:[%s1858] ss:$8 sm:$0x3]
    %s1860 = sld [smem:[#allocation2 + $0x3]]
    %v1861 = vstv %s1860
    %v1862 = vmul.f32 %v1861, %v1857
    %v1863 = vmul.f32 %v1861, %v1856
    %s1864 = sld [smem:[#allocation2 + $0x83]]
    %v1865 = vstv %s1864
    %v1866 = vmul.f32 %v1865, %v1857
    %v1867 = vmul.f32 %v1865, %v1856
    %v1870 = vrot.slane %v1866, 2
    %v1871 = vrot.slane %v1867, 2
    %v1874 = vadd.f32 %v1862, %v1870
    %v1875 = vadd.f32 %v1863, %v1871
    %v1877 = vlaneseq
    %v1878 = vshrl.u32 %v1877, 7
    %v1879 = vsub.s32 0, %v1878
    %v1880 = vrot.slane %v1859, %v1879
    %v1881 = vlaneseq
    %v1882 = vshrl.u32 %v1881, 7
    %v1883 = vsub.s32 1, %v1882
    %v1884 = vrot.slane %v1859, %v1883
    %v1887 = vmul.f32 %v1880, %v1874
    %v1888 = vmul.f32 %v1884, %v1875
    %v1889 = vadd.f32 %v1849, %v1887
    %v1890 = vadd.f32 %v1850, %v1888
    %1891 = vrot.lane.b32.xlu0 %v1730, 47
    %v1892 = vpop.permute.xlu0 %1891
    %1893 = vrot.lane.b32.xlu0 %v1731, 47
    %v1894 = vpop.permute.xlu0 %1893
    %vm1895 = vcmp.lt.s32.totalorder %v101, 47
    %v1896 = vsel %vm1895, %v1892, %v1894
    %v1897 = vsel %vm1895, %v1894, %v1892
    %s1898 = scalar_lea.vmem %s18, 4
    %v1899 = vld [vmem:[%s1898] ss:$8 sm:$0x3]
    %s1900 = sld [smem:[#allocation2 + $0x4]]
    %v1901 = vstv %s1900
    %v1902 = vmul.f32 %v1901, %v1897
    %v1903 = vmul.f32 %v1901, %v1896
    %s1904 = sld [smem:[#allocation2 + $0x84]]
    %v1905 = vstv %s1904
    %v1906 = vmul.f32 %v1905, %v1897
    %v1907 = vmul.f32 %v1905, %v1896
    %v1910 = vrot.slane %v1906, 2
    %v1911 = vrot.slane %v1907, 2
    %v1914 = vadd.f32 %v1902, %v1910
    %v1915 = vadd.f32 %v1903, %v1911
    %v1917 = vlaneseq
    %v1918 = vshrl.u32 %v1917, 7
    %v1919 = vsub.s32 0, %v1918
    %v1920 = vrot.slane %v1899, %v1919
    %v1921 = vlaneseq
    %v1922 = vshrl.u32 %v1921, 7
    %v1923 = vsub.s32 1, %v1922
    %v1924 = vrot.slane %v1899, %v1923
    %v1927 = vmul.f32 %v1920, %v1914
    %v1928 = vmul.f32 %v1924, %v1915
    %v1929 = vadd.f32 %v1889, %v1927
    %v1930 = vadd.f32 %v1890, %v1928
    %1931 = vrot.lane.b32.xlu0 %v1730, 46
    %v1932 = vpop.permute.xlu0 %1931
    %1933 = vrot.lane.b32.xlu0 %v1731, 46
    %v1934 = vpop.permute.xlu0 %1933
    %vm1935 = vcmp.lt.s32.totalorder %v101, 46
    %v1936 = vsel %vm1935, %v1932, %v1934
    %v1937 = vsel %vm1935, %v1934, %v1932
    %s1938 = scalar_lea.vmem %s18, 5
    %v1939 = vld [vmem:[%s1938] ss:$8 sm:$0x3]
    %s1940 = sld [smem:[#allocation2 + $0x5]]
    %v1941 = vstv %s1940
    %v1942 = vmul.f32 %v1941, %v1937
    %v1943 = vmul.f32 %v1941, %v1936
    %s1944 = sld [smem:[#allocation2 + $0x85]]
    %v1945 = vstv %s1944
    %v1946 = vmul.f32 %v1945, %v1937
    %v1947 = vmul.f32 %v1945, %v1936
    %v1950 = vrot.slane %v1946, 2
    %v1951 = vrot.slane %v1947, 2
    %v1954 = vadd.f32 %v1942, %v1950
    %v1955 = vadd.f32 %v1943, %v1951
    %v1957 = vlaneseq
    %v1958 = vshrl.u32 %v1957, 7
    %v1959 = vsub.s32 0, %v1958
    %v1960 = vrot.slane %v1939, %v1959
    %v1961 = vlaneseq
    %v1962 = vshrl.u32 %v1961, 7
    %v1963 = vsub.s32 1, %v1962
    %v1964 = vrot.slane %v1939, %v1963
    %v1967 = vmul.f32 %v1960, %v1954
    %v1968 = vmul.f32 %v1964, %v1955
    %v1969 = vadd.f32 %v1929, %v1967
    %v1970 = vadd.f32 %v1930, %v1968
    %1971 = vrot.lane.b32.xlu0 %v1730, 45
    %v1972 = vpop.permute.xlu0 %1971
    %1973 = vrot.lane.b32.xlu0 %v1731, 45
    %v1974 = vpop.permute.xlu0 %1973
    %vm1975 = vcmp.lt.s32.totalorder %v101, 45
    %v1976 = vsel %vm1975, %v1972, %v1974
    %v1977 = vsel %vm1975, %v1974, %v1972
    %s1978 = scalar_lea.vmem %s18, 6
    %v1979 = vld [vmem:[%s1978] ss:$8 sm:$0x3]
    %s1980 = sld [smem:[#allocation2 + $0x6]]
    %v1981 = vstv %s1980
    %v1982 = vmul.f32 %v1981, %v1977
    %v1983 = vmul.f32 %v1981, %v1976
    %s1984 = sld [smem:[#allocation2 + $0x86]]
    %v1985 = vstv %s1984
    %v1986 = vmul.f32 %v1985, %v1977
    %v1987 = vmul.f32 %v1985, %v1976
    %v1990 = vrot.slane %v1986, 2
    %v1991 = vrot.slane %v1987, 2
    %v1994 = vadd.f32 %v1982, %v1990
    %v1995 = vadd.f32 %v1983, %v1991
    %v1997 = vlaneseq
    %v1998 = vshrl.u32 %v1997, 7
    %v1999 = vsub.s32 0, %v1998
    %v2000 = vrot.slane %v1979, %v1999
    %v2001 = vlaneseq
    %v2002 = vshrl.u32 %v2001, 7
    %v2003 = vsub.s32 1, %v2002
    %v2004 = vrot.slane %v1979, %v2003
    %v2007 = vmul.f32 %v2000, %v1994
    %v2008 = vmul.f32 %v2004, %v1995
    %v2009 = vadd.f32 %v1969, %v2007
    %v2010 = vadd.f32 %v1970, %v2008
    %2011 = vrot.lane.b32.xlu0 %v1730, 35
    %v2012 = vpop.permute.xlu0 %2011
    %2013 = vrot.lane.b32.xlu0 %v1731, 35
    %v2014 = vpop.permute.xlu0 %2013
    %vm2015 = vcmp.lt.s32.totalorder %v101, 35
    %v2016 = vsel %vm2015, %v2012, %v2014
    %v2017 = vsel %vm2015, %v2014, %v2012
    %s2018 = scalar_lea.vmem %s18, 7
    %v2019 = vld [vmem:[%s2018] ss:$8 sm:$0x3]
    %s2020 = sld [smem:[#allocation2 + $0x7]]
    %v2021 = vstv %s2020
    %v2022 = vmul.f32 %v2021, %v2017
    %v2023 = vmul.f32 %v2021, %v2016
    %s2024 = sld [smem:[#allocation2 + $0x87]]
    %v2025 = vstv %s2024
    %v2026 = vmul.f32 %v2025, %v2017
    %v2027 = vmul.f32 %v2025, %v2016
    %v2030 = vrot.slane %v2026, 2
    %v2031 = vrot.slane %v2027, 2
    %v2034 = vadd.f32 %v2022, %v2030
    %v2035 = vadd.f32 %v2023, %v2031
    %v2037 = vlaneseq
    %v2038 = vshrl.u32 %v2037, 7
    %v2039 = vsub.s32 0, %v2038
    %v2040 = vrot.slane %v2019, %v2039
    %v2041 = vlaneseq
    %v2042 = vshrl.u32 %v2041, 7
    %v2043 = vsub.s32 1, %v2042
    %v2044 = vrot.slane %v2019, %v2043
    %v2047 = vmul.f32 %v2040, %v2034
    %v2048 = vmul.f32 %v2044, %v2035
    %v2049 = vadd.f32 %v2009, %v2047
    %v2050 = vadd.f32 %v2010, %v2048
    %2051 = vrot.lane.b32.xlu0 %v1730, 34
    %v2052 = vpop.permute.xlu0 %2051
    %2053 = vrot.lane.b32.xlu0 %v1731, 34
    %v2054 = vpop.permute.xlu0 %2053
    %vm2055 = vcmp.lt.s32.totalorder %v101, 34
    %v2056 = vsel %vm2055, %v2052, %v2054
    %v2057 = vsel %vm2055, %v2054, %v2052
    %s2058 = scalar_lea.vmem %s18, 16
    %v2059 = vld [vmem:[%s2058] ss:$8 sm:$0x3]
    %s2060 = sld [smem:[#allocation2 + $0x8]]
    %v2061 = vstv %s2060
    %v2062 = vmul.f32 %v2061, %v2057
    %v2063 = vmul.f32 %v2061, %v2056
    %s2064 = sld [smem:[#allocation2 + $0x88]]
    %v2065 = vstv %s2064
    %v2066 = vmul.f32 %v2065, %v2057
    %v2067 = vmul.f32 %v2065, %v2056
    %v2070 = vrot.slane %v2066, 2
    %v2071 = vrot.slane %v2067, 2
    %v2074 = vadd.f32 %v2062, %v2070
    %v2075 = vadd.f32 %v2063, %v2071
    %v2077 = vlaneseq
    %v2078 = vshrl.u32 %v2077, 7
    %v2079 = vsub.s32 0, %v2078
    %v2080 = vrot.slane %v2059, %v2079
    %v2081 = vlaneseq
    %v2082 = vshrl.u32 %v2081, 7
    %v2083 = vsub.s32 1, %v2082
    %v2084 = vrot.slane %v2059, %v2083
    %v2087 = vmul.f32 %v2080, %v2074
    %v2088 = vmul.f32 %v2084, %v2075
    %v2089 = vadd.f32 %v2049, %v2087
    %v2090 = vadd.f32 %v2050, %v2088
    %2091 = vrot.lane.b32.xlu0 %v1730, 33
    %v2092 = vpop.permute.xlu0 %2091
    %2093 = vrot.lane.b32.xlu0 %v1731, 33
    %v2094 = vpop.permute.xlu0 %2093
    %vm2095 = vcmp.lt.s32.totalorder %v101, 33
    %v2096 = vsel %vm2095, %v2092, %v2094
    %v2097 = vsel %vm2095, %v2094, %v2092
    %s2098 = scalar_lea.vmem %s18, 17
    %v2099 = vld [vmem:[%s2098] ss:$8 sm:$0x3]
    %s2100 = sld [smem:[#allocation2 + $0x9]]
    %v2101 = vstv %s2100
    %v2102 = vmul.f32 %v2101, %v2097
    %v2103 = vmul.f32 %v2101, %v2096
    %s2104 = sld [smem:[#allocation2 + $0x89]]
    %v2105 = vstv %s2104
    %v2106 = vmul.f32 %v2105, %v2097
    %v2107 = vmul.f32 %v2105, %v2096
    %v2110 = vrot.slane %v2106, 2
    %v2111 = vrot.slane %v2107, 2
    %v2114 = vadd.f32 %v2102, %v2110
    %v2115 = vadd.f32 %v2103, %v2111
    %v2117 = vlaneseq
    %v2118 = vshrl.u32 %v2117, 7
    %v2119 = vsub.s32 0, %v2118
    %v2120 = vrot.slane %v2099, %v2119
    %v2121 = vlaneseq
    %v2122 = vshrl.u32 %v2121, 7
    %v2123 = vsub.s32 1, %v2122
    %v2124 = vrot.slane %v2099, %v2123
    %v2127 = vmul.f32 %v2120, %v2114
    %v2128 = vmul.f32 %v2124, %v2115
    %v2129 = vadd.f32 %v2089, %v2127
    %v2130 = vadd.f32 %v2090, %v2128
    %2131 = vrot.lane.b32.xlu0 %v1730, 32
    %v2132 = vpop.permute.xlu0 %2131
    %2133 = vrot.lane.b32.xlu0 %v1731, 32
    %v2134 = vpop.permute.xlu0 %2133
    %vm2135 = vcmp.lt.s32.totalorder %v101, 32
    %v2136 = vsel %vm2135, %v2132, %v2134
    %v2137 = vsel %vm2135, %v2134, %v2132
    %s2138 = scalar_lea.vmem %s18, 18
    %v2139 = vld [vmem:[%s2138] ss:$8 sm:$0x3]
    %s2140 = sld [smem:[#allocation2 + $0xa]]
    %v2141 = vstv %s2140
    %v2142 = vmul.f32 %v2141, %v2137
    %v2143 = vmul.f32 %v2141, %v2136
    %s2144 = sld [smem:[#allocation2 + $0x8a]]
    %v2145 = vstv %s2144
    %v2146 = vmul.f32 %v2145, %v2137
    %v2147 = vmul.f32 %v2145, %v2136
    %v2150 = vrot.slane %v2146, 2
    %v2151 = vrot.slane %v2147, 2
    %v2154 = vadd.f32 %v2142, %v2150
    %v2155 = vadd.f32 %v2143, %v2151
    %v2157 = vlaneseq
    %v2158 = vshrl.u32 %v2157, 7
    %v2159 = vsub.s32 0, %v2158
    %v2160 = vrot.slane %v2139, %v2159
    %v2161 = vlaneseq
    %v2162 = vshrl.u32 %v2161, 7
    %v2163 = vsub.s32 1, %v2162
    %v2164 = vrot.slane %v2139, %v2163
    %v2167 = vmul.f32 %v2160, %v2154
    %v2168 = vmul.f32 %v2164, %v2155
    %v2169 = vadd.f32 %v2129, %v2167
    %v2170 = vadd.f32 %v2130, %v2168
    %2171 = vrot.lane.b32.xlu0 %v1730, 31
    %v2172 = vpop.permute.xlu0 %2171
    %2173 = vrot.lane.b32.xlu0 %v1731, 31
    %v2174 = vpop.permute.xlu0 %2173
    %vm2175 = vcmp.lt.s32.totalorder %v101, 31
    %v2176 = vsel %vm2175, %v2172, %v2174
    %v2177 = vsel %vm2175, %v2174, %v2172
    %s2178 = scalar_lea.vmem %s18, 19
    %v2179 = vld [vmem:[%s2178] ss:$8 sm:$0x3]
    %s2180 = sld [smem:[#allocation2 + $0xb]]
    %v2181 = vstv %s2180
    %v2182 = vmul.f32 %v2181, %v2177
    %v2183 = vmul.f32 %v2181, %v2176
    %s2184 = sld [smem:[#allocation2 + $0x8b]]
    %v2185 = vstv %s2184
    %v2186 = vmul.f32 %v2185, %v2177
    %v2187 = vmul.f32 %v2185, %v2176
    %v2190 = vrot.slane %v2186, 2
    %v2191 = vrot.slane %v2187, 2
    %v2194 = vadd.f32 %v2182, %v2190
    %v2195 = vadd.f32 %v2183, %v2191
    %v2197 = vlaneseq
    %v2198 = vshrl.u32 %v2197, 7
    %v2199 = vsub.s32 0, %v2198
    %v2200 = vrot.slane %v2179, %v2199
    %v2201 = vlaneseq
    %v2202 = vshrl.u32 %v2201, 7
    %v2203 = vsub.s32 1, %v2202
    %v2204 = vrot.slane %v2179, %v2203
    %v2207 = vmul.f32 %v2200, %v2194
    %v2208 = vmul.f32 %v2204, %v2195
    %v2209 = vadd.f32 %v2169, %v2207
    %v2210 = vadd.f32 %v2170, %v2208
    %2211 = vrot.lane.b32.xlu0 %v1730, 30
    %v2212 = vpop.permute.xlu0 %2211
    %2213 = vrot.lane.b32.xlu0 %v1731, 30
    %v2214 = vpop.permute.xlu0 %2213
    %vm2215 = vcmp.lt.s32.totalorder %v101, 30
    %v2216 = vsel %vm2215, %v2212, %v2214
    %v2217 = vsel %vm2215, %v2214, %v2212
    %s2218 = scalar_lea.vmem %s18, 20
    %v2219 = vld [vmem:[%s2218] ss:$8 sm:$0x3]
    %s2220 = sld [smem:[#allocation2 + $0xc]]
    %v2221 = vstv %s2220
    %v2222 = vmul.f32 %v2221, %v2217
    %v2223 = vmul.f32 %v2221, %v2216
    %s2224 = sld [smem:[#allocation2 + $0x8c]]
    %v2225 = vstv %s2224
    %v2226 = vmul.f32 %v2225, %v2217
    %v2227 = vmul.f32 %v2225, %v2216
    %v2230 = vrot.slane %v2226, 2
    %v2231 = vrot.slane %v2227, 2
    %v2234 = vadd.f32 %v2222, %v2230
    %v2235 = vadd.f32 %v2223, %v2231
    %v2237 = vlaneseq
    %v2238 = vshrl.u32 %v2237, 7
    %v2239 = vsub.s32 0, %v2238
    %v2240 = vrot.slane %v2219, %v2239
    %v2241 = vlaneseq
    %v2242 = vshrl.u32 %v2241, 7
    %v2243 = vsub.s32 1, %v2242
    %v2244 = vrot.slane %v2219, %v2243
    %v2247 = vmul.f32 %v2240, %v2234
    %v2248 = vmul.f32 %v2244, %v2235
    %v2249 = vadd.f32 %v2209, %v2247
    %v2250 = vadd.f32 %v2210, %v2248
    %2251 = vrot.lane.b32.xlu0 %v1730, 29
    %v2252 = vpop.permute.xlu0 %2251
    %2253 = vrot.lane.b32.xlu0 %v1731, 29
    %v2254 = vpop.permute.xlu0 %2253
    %vm2255 = vcmp.lt.s32.totalorder %v101, 29
    %v2256 = vsel %vm2255, %v2252, %v2254
    %v2257 = vsel %vm2255, %v2254, %v2252
    %s2258 = scalar_lea.vmem %s18, 21
    %v2259 = vld [vmem:[%s2258] ss:$8 sm:$0x3]
    %s2260 = sld [smem:[#allocation2 + $0xd]]
    %v2261 = vstv %s2260
    %v2262 = vmul.f32 %v2261, %v2257
    %v2263 = vmul.f32 %v2261, %v2256
    %s2264 = sld [smem:[#allocation2 + $0x8d]]
    %v2265 = vstv %s2264
    %v2266 = vmul.f32 %v2265, %v2257
    %v2267 = vmul.f32 %v2265, %v2256
    %v2270 = vrot.slane %v2266, 2
    %v2271 = vrot.slane %v2267, 2
    %v2274 = vadd.f32 %v2262, %v2270
    %v2275 = vadd.f32 %v2263, %v2271
    %v2277 = vlaneseq
    %v2278 = vshrl.u32 %v2277, 7
    %v2279 = vsub.s32 0, %v2278
    %v2280 = vrot.slane %v2259, %v2279
    %v2281 = vlaneseq
    %v2282 = vshrl.u32 %v2281, 7
    %v2283 = vsub.s32 1, %v2282
    %v2284 = vrot.slane %v2259, %v2283
    %v2287 = vmul.f32 %v2280, %v2274
    %v2288 = vmul.f32 %v2284, %v2275
    %v2289 = vadd.f32 %v2249, %v2287
    %v2290 = vadd.f32 %v2250, %v2288
    %2291 = vrot.lane.b32.xlu0 %v1730, 19
    %v2292 = vpop.permute.xlu0 %2291
    %2293 = vrot.lane.b32.xlu0 %v1731, 19
    %v2294 = vpop.permute.xlu0 %2293
    %vm2295 = vcmp.lt.s32.totalorder %v101, 19
    %v2296 = vsel %vm2295, %v2292, %v2294
    %v2297 = vsel %vm2295, %v2294, %v2292
    %s2298 = scalar_lea.vmem %s18, 22
    %v2299 = vld [vmem:[%s2298] ss:$8 sm:$0x3]
    %s2300 = sld [smem:[#allocation2 + $0xe]]
    %v2301 = vstv %s2300
    %v2302 = vmul.f32 %v2301, %v2297
    %v2303 = vmul.f32 %v2301, %v2296
    %s2304 = sld [smem:[#allocation2 + $0x8e]]
    %v2305 = vstv %s2304
    %v2306 = vmul.f32 %v2305, %v2297
    %v2307 = vmul.f32 %v2305, %v2296
    %v2310 = vrot.slane %v2306, 2
    %v2311 = vrot.slane %v2307, 2
    %v2314 = vadd.f32 %v2302, %v2310
    %v2315 = vadd.f32 %v2303, %v2311
    %v2317 = vlaneseq
    %v2318 = vshrl.u32 %v2317, 7
    %v2319 = vsub.s32 0, %v2318
    %v2320 = vrot.slane %v2299, %v2319
    %v2321 = vlaneseq
    %v2322 = vshrl.u32 %v2321, 7
    %v2323 = vsub.s32 1, %v2322
    %v2324 = vrot.slane %v2299, %v2323
    %v2327 = vmul.f32 %v2320, %v2314
    %v2328 = vmul.f32 %v2324, %v2315
    %v2329 = vadd.f32 %v2289, %v2327
    %v2330 = vadd.f32 %v2290, %v2328
    %2331 = vrot.lane.b32.xlu0 %v1730, 18
    %v2332 = vpop.permute.xlu0 %2331
    %2333 = vrot.lane.b32.xlu0 %v1731, 18
    %v2334 = vpop.permute.xlu0 %2333
    %vm2335 = vcmp.lt.s32.totalorder %v101, 18
    %v2336 = vsel %vm2335, %v2332, %v2334
    %v2337 = vsel %vm2335, %v2334, %v2332
    %s2338 = scalar_lea.vmem %s18, 23
    %v2339 = vld [vmem:[%s2338] ss:$8 sm:$0x3]
    %s2340 = sld [smem:[#allocation2 + $0xf]]
    %v2341 = vstv %s2340
    %v2342 = vmul.f32 %v2341, %v2337
    %v2343 = vmul.f32 %v2341, %v2336
    %s2344 = sld [smem:[#allocation2 + $0x8f]]
    %v2345 = vstv %s2344
    %v2346 = vmul.f32 %v2345, %v2337
    %v2347 = vmul.f32 %v2345, %v2336
    %v2350 = vrot.slane %v2346, 2
    %v2351 = vrot.slane %v2347, 2
    %v2354 = vadd.f32 %v2342, %v2350
    %v2355 = vadd.f32 %v2343, %v2351
    %v2357 = vlaneseq
    %v2358 = vshrl.u32 %v2357, 7
    %v2359 = vsub.s32 0, %v2358
    %v2360 = vrot.slane %v2339, %v2359
    %v2361 = vlaneseq
    %v2362 = vshrl.u32 %v2361, 7
    %v2363 = vsub.s32 1, %v2362
    %v2364 = vrot.slane %v2339, %v2363
    %v2367 = vmul.f32 %v2360, %v2354
    %v2368 = vmul.f32 %v2364, %v2355
    %v2369 = vadd.f32 %v2329, %v2367
    %v2370 = vadd.f32 %v2330, %v2368
    %2371 = vrot.lane.b32.xlu0 %v1730, 17
    %v2372 = vpop.permute.xlu0 %2371
    %2373 = vrot.lane.b32.xlu0 %v1731, 17
    %v2374 = vpop.permute.xlu0 %2373
    %v2375 = vsel %vm102, %v2372, %v2374
    %v2376 = vsel %vm102, %v2374, %v2372
    %s2377 = scalar_lea.vmem %s18, 32
    %v2378 = vld [vmem:[%s2377] ss:$8 sm:$0x3]
    %s2379 = sld [smem:[#allocation2 + $0x10]]
    %v2380 = vstv %s2379
    %v2381 = vmul.f32 %v2380, %v2376
    %v2382 = vmul.f32 %v2380, %v2375
    %s2383 = sld [smem:[#allocation2 + $0x90]]
    %v2384 = vstv %s2383
    %v2385 = vmul.f32 %v2384, %v2376
    %v2386 = vmul.f32 %v2384, %v2375
    %v2389 = vrot.slane %v2385, 2
    %v2390 = vrot.slane %v2386, 2
    %v2393 = vadd.f32 %v2381, %v2389
    %v2394 = vadd.f32 %v2382, %v2390
    %v2396 = vlaneseq
    %v2397 = vshrl.u32 %v2396, 7
    %v2398 = vsub.s32 0, %v2397
    %v2399 = vrot.slane %v2378, %v2398
    %v2400 = vlaneseq
    %v2401 = vshrl.u32 %v2400, 7
    %v2402 = vsub.s32 1, %v2401
    %v2403 = vrot.slane %v2378, %v2402
    %v2406 = vmul.f32 %v2399, %v2393
    %v2407 = vmul.f32 %v2403, %v2394
    %v2408 = vadd.f32 %v2369, %v2406
    %v2409 = vadd.f32 %v2370, %v2407
    %2410 = vrot.lane.b32.xlu0 %v1730, 16
    %v2411 = vpop.permute.xlu0 %2410
    %2412 = vrot.lane.b32.xlu0 %v1731, 16
    %v2413 = vpop.permute.xlu0 %2412
    %v2414 = vsel %vm148, %v2411, %v2413
    %v2415 = vsel %vm148, %v2413, %v2411
    %s2416 = scalar_lea.vmem %s18, 33
    %v2417 = vld [vmem:[%s2416] ss:$8 sm:$0x3]
    %s2418 = sld [smem:[#allocation2 + $0x11]]
    %v2419 = vstv %s2418
    %v2420 = vmul.f32 %v2419, %v2415
    %v2421 = vmul.f32 %v2419, %v2414
    %s2422 = sld [smem:[#allocation2 + $0x91]]
    %v2423 = vstv %s2422
    %v2424 = vmul.f32 %v2423, %v2415
    %v2425 = vmul.f32 %v2423, %v2414
    %v2428 = vrot.slane %v2424, 2
    %v2429 = vrot.slane %v2425, 2
    %v2432 = vadd.f32 %v2420, %v2428
    %v2433 = vadd.f32 %v2421, %v2429
    %v2435 = vlaneseq
    %v2436 = vshrl.u32 %v2435, 7
    %v2437 = vsub.s32 0, %v2436
    %v2438 = vrot.slane %v2417, %v2437
    %v2439 = vlaneseq
    %v2440 = vshrl.u32 %v2439, 7
    %v2441 = vsub.s32 1, %v2440
    %v2442 = vrot.slane %v2417, %v2441
    %v2445 = vmul.f32 %v2438, %v2432
    %v2446 = vmul.f32 %v2442, %v2433
    %v2447 = vadd.f32 %v2408, %v2445
    %v2448 = vadd.f32 %v2409, %v2446
    %2449 = vrot.lane.b32.xlu0 %v1730, 15
    %v2450 = vpop.permute.xlu0 %2449
    %2451 = vrot.lane.b32.xlu0 %v1731, 15
    %v2452 = vpop.permute.xlu0 %2451
    %v2453 = vsel %vm194, %v2450, %v2452
    %v2454 = vsel %vm194, %v2452, %v2450
    %s2455 = scalar_lea.vmem %s18, 34
    %v2456 = vld [vmem:[%s2455] ss:$8 sm:$0x3]
    %s2457 = sld [smem:[#allocation2 + $0x12]]
    %v2458 = vstv %s2457
    %v2459 = vmul.f32 %v2458, %v2454
    %v2460 = vmul.f32 %v2458, %v2453
    %s2461 = sld [smem:[#allocation2 + $0x92]]
    %v2462 = vstv %s2461
    %v2463 = vmul.f32 %v2462, %v2454
    %v2464 = vmul.f32 %v2462, %v2453
    %v2467 = vrot.slane %v2463, 2
    %v2468 = vrot.slane %v2464, 2
    %v2471 = vadd.f32 %v2459, %v2467
    %v2472 = vadd.f32 %v2460, %v2468
    %v2474 = vlaneseq
    %v2475 = vshrl.u32 %v2474, 7
    %v2476 = vsub.s32 0, %v2475
    %v2477 = vrot.slane %v2456, %v2476
    %v2478 = vlaneseq
    %v2479 = vshrl.u32 %v2478, 7
    %v2480 = vsub.s32 1, %v2479
    %v2481 = vrot.slane %v2456, %v2480
    %v2484 = vmul.f32 %v2477, %v2471
    %v2485 = vmul.f32 %v2481, %v2472
    %v2486 = vadd.f32 %v2447, %v2484
    %v2487 = vadd.f32 %v2448, %v2485
    %2488 = vrot.lane.b32.xlu0 %v1730, 14
    %v2489 = vpop.permute.xlu0 %2488
    %2490 = vrot.lane.b32.xlu0 %v1731, 14
    %v2491 = vpop.permute.xlu0 %2490
    %vm2492 = vcmp.lt.s32.totalorder %v101, 14
    %v2493 = vsel %vm2492, %v2489, %v2491
    %v2494 = vsel %vm2492, %v2491, %v2489
    %s2495 = scalar_lea.vmem %s18, 35
    %v2496 = vld [vmem:[%s2495] ss:$8 sm:$0x3]
    %s2497 = sld [smem:[#allocation2 + $0x13]]
    %v2498 = vstv %s2497
    %v2499 = vmul.f32 %v2498, %v2494
    %v2500 = vmul.f32 %v2498, %v2493
    %s2501 = sld [smem:[#allocation2 + $0x93]]
    %v2502 = vstv %s2501
    %v2503 = vmul.f32 %v2502, %v2494
    %v2504 = vmul.f32 %v2502, %v2493
    %v2507 = vrot.slane %v2503, 2
    %v2508 = vrot.slane %v2504, 2
    %v2511 = vadd.f32 %v2499, %v2507
    %v2512 = vadd.f32 %v2500, %v2508
    %v2514 = vlaneseq
    %v2515 = vshrl.u32 %v2514, 7
    %v2516 = vsub.s32 0, %v2515
    %v2517 = vrot.slane %v2496, %v2516
    %v2518 = vlaneseq
    %v2519 = vshrl.u32 %v2518, 7
    %v2520 = vsub.s32 1, %v2519
    %v2521 = vrot.slane %v2496, %v2520
    %v2524 = vmul.f32 %v2517, %v2511
    %v2525 = vmul.f32 %v2521, %v2512
    %v2526 = vadd.f32 %v2486, %v2524
    %v2527 = vadd.f32 %v2487, %v2525
    %2528 = vrot.lane.b32.xlu0 %v1730, 13
    %v2529 = vpop.permute.xlu0 %2528
    %2530 = vrot.lane.b32.xlu0 %v1731, 13
    %v2531 = vpop.permute.xlu0 %2530
    %vm2532 = vcmp.lt.s32.totalorder %v101, 13
    %v2533 = vsel %vm2532, %v2529, %v2531
    %v2534 = vsel %vm2532, %v2531, %v2529
    %s2535 = scalar_lea.vmem %s18, 36
    %v2536 = vld [vmem:[%s2535] ss:$8 sm:$0x3]
    %s2537 = sld [smem:[#allocation2 + $0x14]]
    %v2538 = vstv %s2537
    %v2539 = vmul.f32 %v2538, %v2534
    %v2540 = vmul.f32 %v2538, %v2533
    %s2541 = sld [smem:[#allocation2 + $0x94]]
    %v2542 = vstv %s2541
    %v2543 = vmul.f32 %v2542, %v2534
    %v2544 = vmul.f32 %v2542, %v2533
    %v2547 = vrot.slane %v2543, 2
    %v2548 = vrot.slane %v2544, 2
    %v2551 = vadd.f32 %v2539, %v2547
    %v2552 = vadd.f32 %v2540, %v2548
    %v2554 = vlaneseq
    %v2555 = vshrl.u32 %v2554, 7
    %v2556 = vsub.s32 0, %v2555
    %v2557 = vrot.slane %v2536, %v2556
    %v2558 = vlaneseq
    %v2559 = vshrl.u32 %v2558, 7
    %v2560 = vsub.s32 1, %v2559
    %v2561 = vrot.slane %v2536, %v2560
    %v2564 = vmul.f32 %v2557, %v2551
    %v2565 = vmul.f32 %v2561, %v2552
    %v2566 = vadd.f32 %v2526, %v2564
    %v2567 = vadd.f32 %v2527, %v2565
    %2568 = vrot.lane.b32.xlu0 %v1730, 3
    %v2569 = vpop.permute.xlu0 %2568
    %2570 = vrot.lane.b32.xlu0 %v1731, 3
    %v2571 = vpop.permute.xlu0 %2570
    %vm2572 = vcmp.lt.s32.totalorder %v101, 3
    %v2573 = vsel %vm2572, %v2569, %v2571
    %v2574 = vsel %vm2572, %v2571, %v2569
    %s2575 = scalar_lea.vmem %s18, 37
    %v2576 = vld [vmem:[%s2575] ss:$8 sm:$0x3]
    %s2577 = sld [smem:[#allocation2 + $0x15]]
    %v2578 = vstv %s2577
    %v2579 = vmul.f32 %v2578, %v2574
    %v2580 = vmul.f32 %v2578, %v2573
    %s2581 = sld [smem:[#allocation2 + $0x95]]
    %v2582 = vstv %s2581
    %v2583 = vmul.f32 %v2582, %v2574
    %v2584 = vmul.f32 %v2582, %v2573
    %v2587 = vrot.slane %v2583, 2
    %v2588 = vrot.slane %v2584, 2
    %v2591 = vadd.f32 %v2579, %v2587
    %v2592 = vadd.f32 %v2580, %v2588
    %v2594 = vlaneseq
    %v2595 = vshrl.u32 %v2594, 7
    %v2596 = vsub.s32 0, %v2595
    %v2597 = vrot.slane %v2576, %v2596
    %v2598 = vlaneseq
    %v2599 = vshrl.u32 %v2598, 7
    %v2600 = vsub.s32 1, %v2599
    %v2601 = vrot.slane %v2576, %v2600
    %v2604 = vmul.f32 %v2597, %v2591
    %v2605 = vmul.f32 %v2601, %v2592
    %v2606 = vadd.f32 %v2566, %v2604
    %v2607 = vadd.f32 %v2567, %v2605
    %2608 = vrot.lane.b32.xlu0 %v1730, 2
    %v2609 = vpop.permute.xlu0 %2608
    %2610 = vrot.lane.b32.xlu0 %v1731, 2
    %v2611 = vpop.permute.xlu0 %2610
    %vm2612 = vcmp.lt.s32.totalorder %v101, 2
    %v2613 = vsel %vm2612, %v2609, %v2611
    %v2614 = vsel %vm2612, %v2611, %v2609
    %s2615 = scalar_lea.vmem %s18, 38
    %v2616 = vld [vmem:[%s2615] ss:$8 sm:$0x3]
    %s2617 = sld [smem:[#allocation2 + $0x16]]
    %v2618 = vstv %s2617
    %v2619 = vmul.f32 %v2618, %v2614
    %v2620 = vmul.f32 %v2618, %v2613
    %s2621 = sld [smem:[#allocation2 + $0x96]]
    %v2622 = vstv %s2621
    %v2623 = vmul.f32 %v2622, %v2614
    %v2624 = vmul.f32 %v2622, %v2613
    %v2627 = vrot.slane %v2623, 2
    %v2628 = vrot.slane %v2624, 2
    %v2631 = vadd.f32 %v2619, %v2627
    %v2632 = vadd.f32 %v2620, %v2628
    %v2634 = vlaneseq
    %v2635 = vshrl.u32 %v2634, 7
    %v2636 = vsub.s32 0, %v2635
    %v2637 = vrot.slane %v2616, %v2636
    %v2638 = vlaneseq
    %v2639 = vshrl.u32 %v2638, 7
    %v2640 = vsub.s32 1, %v2639
    %v2641 = vrot.slane %v2616, %v2640
    %v2644 = vmul.f32 %v2637, %v2631
    %v2645 = vmul.f32 %v2641, %v2632
    %v2646 = vadd.f32 %v2606, %v2644
    %v2647 = vadd.f32 %v2607, %v2645
    %2648 = vrot.lane.b32.xlu0 %v1730, 1
    %v2649 = vpop.permute.xlu0 %2648
    %2650 = vrot.lane.b32.xlu0 %v1731, 1
    %v2651 = vpop.permute.xlu0 %2650
    %v2652 = vsel %vm240, %v2649, %v2651
    %v2653 = vsel %vm240, %v2651, %v2649
    %s2654 = scalar_lea.vmem %s18, 39
    %v2655 = vld [vmem:[%s2654] ss:$8 sm:$0x3]
    %s2656 = sld [smem:[#allocation2 + $0x17]]
    %v2657 = vstv %s2656
    %v2658 = vmul.f32 %v2657, %v2653
    %v2659 = vmul.f32 %v2657, %v2652
    %s2660 = sld [smem:[#allocation2 + $0x97]]
    %v2661 = vstv %s2660
    %v2662 = vmul.f32 %v2661, %v2653
    %v2663 = vmul.f32 %v2661, %v2652
    %v2666 = vrot.slane %v2662, 2
    %v2667 = vrot.slane %v2663, 2
    %v2670 = vadd.f32 %v2658, %v2666
    %v2671 = vadd.f32 %v2659, %v2667
    %v2673 = vlaneseq
    %v2674 = vshrl.u32 %v2673, 7
    %v2675 = vsub.s32 0, %v2674
    %v2676 = vrot.slane %v2655, %v2675
    %v2677 = vlaneseq
    %v2678 = vshrl.u32 %v2677, 7
    %v2679 = vsub.s32 1, %v2678
    %v2680 = vrot.slane %v2655, %v2679
    %v2683 = vmul.f32 %v2676, %v2670
    %v2684 = vmul.f32 %v2680, %v2671
    %v2685 = vadd.f32 %v2646, %v2683
    %v2686 = vadd.f32 %v2647, %v2684
    %s2687 = scalar_lea.vmem %s18, 48
    %v2688 = vld [vmem:[%s2687] ss:$8 sm:$0x3]
    %s2689 = sld [smem:[#allocation2 + $0x18]]
    %v2690 = vstv %s2689
    %v2691 = vmul.f32 %v2690, %v1730
    %v2692 = vmul.f32 %v2690, %v1731
    %s2693 = sld [smem:[#allocation2 + $0x98]]
    %v2694 = vstv %s2693
    %v2695 = vmul.f32 %v2694, %v1730
    %v2696 = vmul.f32 %v2694, %v1731
    %v2699 = vrot.slane %v2695, 2
    %v2700 = vrot.slane %v2696, 2
    %v2703 = vadd.f32 %v2691, %v2699
    %v2704 = vadd.f32 %v2692, %v2700
    %v2706 = vlaneseq
    %v2707 = vshrl.u32 %v2706, 7
    %v2708 = vsub.s32 0, %v2707
    %v2709 = vrot.slane %v2688, %v2708
    %v2710 = vlaneseq
    %v2711 = vshrl.u32 %v2710, 7
    %v2712 = vsub.s32 1, %v2711
    %v2713 = vrot.slane %v2688, %v2712
    %v2716 = vmul.f32 %v2709, %v2703
    %v2717 = vmul.f32 %v2713, %v2704
    %v2718 = vadd.f32 %v2685, %v2716
    %v2719 = vadd.f32 %v2686, %v2717
    %2720 = vrot.lane.b32.xlu0 %v1730, 127
    %v2721 = vpop.permute.xlu0 %2720
    %2722 = vrot.lane.b32.xlu0 %v1731, 127
    %v2723 = vpop.permute.xlu0 %2722
    %v2724 = vsel %vm307, %v2721, %v2723
    %v2725 = vsel %vm307, %v2723, %v2721
    %s2726 = scalar_lea.vmem %s18, 49
    %v2727 = vld [vmem:[%s2726] ss:$8 sm:$0x3]
    %s2728 = sld [smem:[#allocation2 + $0x19]]
    %v2729 = vstv %s2728
    %v2730 = vmul.f32 %v2729, %v2724
    %v2731 = vmul.f32 %v2729, %v2725
    %s2732 = sld [smem:[#allocation2 + $0x99]]
    %v2733 = vstv %s2732
    %v2734 = vmul.f32 %v2733, %v2724
    %v2735 = vmul.f32 %v2733, %v2725
    %v2738 = vrot.slane %v2734, 2
    %v2739 = vrot.slane %v2735, 2
    %v2742 = vadd.f32 %v2730, %v2738
    %v2743 = vadd.f32 %v2731, %v2739
    %v2745 = vlaneseq
    %v2746 = vshrl.u32 %v2745, 7
    %v2747 = vsub.s32 0, %v2746
    %v2748 = vrot.slane %v2727, %v2747
    %v2749 = vlaneseq
    %v2750 = vshrl.u32 %v2749, 7
    %v2751 = vsub.s32 1, %v2750
    %v2752 = vrot.slane %v2727, %v2751
    %v2755 = vmul.f32 %v2748, %v2742
    %v2756 = vmul.f32 %v2752, %v2743
    %v2757 = vadd.f32 %v2718, %v2755
    %v2758 = vadd.f32 %v2719, %v2756
    %2759 = vrot.lane.b32.xlu0 %v1730, 126
    %v2760 = vpop.permute.xlu0 %2759
    %2761 = vrot.lane.b32.xlu0 %v1731, 126
    %v2762 = vpop.permute.xlu0 %2761
    %vm2763 = vcmp.lt.s32.totalorder %v101, 126
    %v2764 = vsel %vm2763, %v2760, %v2762
    %v2765 = vsel %vm2763, %v2762, %v2760
    %s2766 = scalar_lea.vmem %s18, 50
    %v2767 = vld [vmem:[%s2766] ss:$8 sm:$0x3]
    %s2768 = sld [smem:[#allocation2 + $0x1a]]
    %v2769 = vstv %s2768
    %v2770 = vmul.f32 %v2769, %v2764
    %v2771 = vmul.f32 %v2769, %v2765
    %s2772 = sld [smem:[#allocation2 + $0x9a]]
    %v2773 = vstv %s2772
    %v2774 = vmul.f32 %v2773, %v2764
    %v2775 = vmul.f32 %v2773, %v2765
    %v2778 = vrot.slane %v2774, 2
    %v2779 = vrot.slane %v2775, 2
    %v2782 = vadd.f32 %v2770, %v2778
    %v2783 = vadd.f32 %v2771, %v2779
    %v2785 = vlaneseq
    %v2786 = vshrl.u32 %v2785, 7
    %v2787 = vsub.s32 0, %v2786
    %v2788 = vrot.slane %v2767, %v2787
    %v2789 = vlaneseq
    %v2790 = vshrl.u32 %v2789, 7
    %v2791 = vsub.s32 1, %v2790
    %v2792 = vrot.slane %v2767, %v2791
    %v2795 = vmul.f32 %v2788, %v2782
    %v2796 = vmul.f32 %v2792, %v2783
    %v2797 = vadd.f32 %v2757, %v2795
    %v2798 = vadd.f32 %v2758, %v2796
    %2799 = vrot.lane.b32.xlu0 %v1730, 125
    %v2800 = vpop.permute.xlu0 %2799
    %2801 = vrot.lane.b32.xlu0 %v1731, 125
    %v2802 = vpop.permute.xlu0 %2801
    %vm2803 = vcmp.lt.s32.totalorder %v101, 125
    %v2804 = vsel %vm2803, %v2800, %v2802
    %v2805 = vsel %vm2803, %v2802, %v2800
    %s2806 = scalar_lea.vmem %s18, 51
    %v2807 = vld [vmem:[%s2806] ss:$8 sm:$0x3]
    %s2808 = sld [smem:[#allocation2 + $0x1b]]
    %v2809 = vstv %s2808
    %v2810 = vmul.f32 %v2809, %v2804
    %v2811 = vmul.f32 %v2809, %v2805
    %s2812 = sld [smem:[#allocation2 + $0x9b]]
    %v2813 = vstv %s2812
    %v2814 = vmul.f32 %v2813, %v2804
    %v2815 = vmul.f32 %v2813, %v2805
    %v2818 = vrot.slane %v2814, 2
    %v2819 = vrot.slane %v2815, 2
    %v2822 = vadd.f32 %v2810, %v2818
    %v2823 = vadd.f32 %v2811, %v2819
    %v2825 = vlaneseq
    %v2826 = vshrl.u32 %v2825, 7
    %v2827 = vsub.s32 0, %v2826
    %v2828 = vrot.slane %v2807, %v2827
    %v2829 = vlaneseq
    %v2830 = vshrl.u32 %v2829, 7
    %v2831 = vsub.s32 1, %v2830
    %v2832 = vrot.slane %v2807, %v2831
    %v2835 = vmul.f32 %v2828, %v2822
    %v2836 = vmul.f32 %v2832, %v2823
    %v2837 = vadd.f32 %v2797, %v2835
    %v2838 = vadd.f32 %v2798, %v2836
    %2839 = vrot.lane.b32.xlu0 %v1730, 115
    %v2840 = vpop.permute.xlu0 %2839
    %2841 = vrot.lane.b32.xlu0 %v1731, 115
    %v2842 = vpop.permute.xlu0 %2841
    %vm2843 = vcmp.lt.s32.totalorder %v101, 115
    %v2844 = vsel %vm2843, %v2840, %v2842
    %v2845 = vsel %vm2843, %v2842, %v2840
    %s2846 = scalar_lea.vmem %s18, 52
    %v2847 = vld [vmem:[%s2846] ss:$8 sm:$0x3]
    %s2848 = sld [smem:[#allocation2 + $0x1c]]
    %v2849 = vstv %s2848
    %v2850 = vmul.f32 %v2849, %v2844
    %v2851 = vmul.f32 %v2849, %v2845
    %s2852 = sld [smem:[#allocation2 + $0x9c]]
    %v2853 = vstv %s2852
    %v2854 = vmul.f32 %v2853, %v2844
    %v2855 = vmul.f32 %v2853, %v2845
    %v2858 = vrot.slane %v2854, 2
    %v2859 = vrot.slane %v2855, 2
    %v2862 = vadd.f32 %v2850, %v2858
    %v2863 = vadd.f32 %v2851, %v2859
    %v2865 = vlaneseq
    %v2866 = vshrl.u32 %v2865, 7
    %v2867 = vsub.s32 0, %v2866
    %v2868 = vrot.slane %v2847, %v2867
    %v2869 = vlaneseq
    %v2870 = vshrl.u32 %v2869, 7
    %v2871 = vsub.s32 1, %v2870
    %v2872 = vrot.slane %v2847, %v2871
    %v2875 = vmul.f32 %v2868, %v2862
    %v2876 = vmul.f32 %v2872, %v2863
    %v2877 = vadd.f32 %v2837, %v2875
    %v2878 = vadd.f32 %v2838, %v2876
    %2879 = vrot.lane.b32.xlu0 %v1730, 114
    %v2880 = vpop.permute.xlu0 %2879
    %2881 = vrot.lane.b32.xlu0 %v1731, 114
    %v2882 = vpop.permute.xlu0 %2881
    %vm2883 = vcmp.lt.s32.totalorder %v101, 114
    %v2884 = vsel %vm2883, %v2880, %v2882
    %v2885 = vsel %vm2883, %v2882, %v2880
    %s2886 = scalar_lea.vmem %s18, 53
    %v2887 = vld [vmem:[%s2886] ss:$8 sm:$0x3]
    %s2888 = sld [smem:[#allocation2 + $0x1d]]
    %v2889 = vstv %s2888
    %v2890 = vmul.f32 %v2889, %v2884
    %v2891 = vmul.f32 %v2889, %v2885
    %s2892 = sld [smem:[#allocation2 + $0x9d]]
    %v2893 = vstv %s2892
    %v2894 = vmul.f32 %v2893, %v2884
    %v2895 = vmul.f32 %v2893, %v2885
    %v2898 = vrot.slane %v2894, 2
    %v2899 = vrot.slane %v2895, 2
    %v2902 = vadd.f32 %v2890, %v2898
    %v2903 = vadd.f32 %v2891, %v2899
    %v2905 = vlaneseq
    %v2906 = vshrl.u32 %v2905, 7
    %v2907 = vsub.s32 0, %v2906
    %v2908 = vrot.slane %v2887, %v2907
    %v2909 = vlaneseq
    %v2910 = vshrl.u32 %v2909, 7
    %v2911 = vsub.s32 1, %v2910
    %v2912 = vrot.slane %v2887, %v2911
    %v2915 = vmul.f32 %v2908, %v2902
    %v2916 = vmul.f32 %v2912, %v2903
    %v2917 = vadd.f32 %v2877, %v2915
    %v2918 = vadd.f32 %v2878, %v2916
    %2919 = vrot.lane.b32.xlu0 %v1730, 113
    %v2920 = vpop.permute.xlu0 %2919
    %2921 = vrot.lane.b32.xlu0 %v1731, 113
    %v2922 = vpop.permute.xlu0 %2921
    %v2923 = vsel %vm353, %v2920, %v2922
    %v2924 = vsel %vm353, %v2922, %v2920
    %s2925 = scalar_lea.vmem %s18, 54
    %v2926 = vld [vmem:[%s2925] ss:$8 sm:$0x3]
    %s2927 = sld [smem:[#allocation2 + $0x1e]]
    %v2928 = vstv %s2927
    %v2929 = vmul.f32 %v2928, %v2923
    %v2930 = vmul.f32 %v2928, %v2924
    %s2931 = sld [smem:[#allocation2 + $0x9e]]
    %v2932 = vstv %s2931
    %v2933 = vmul.f32 %v2932, %v2923
    %v2934 = vmul.f32 %v2932, %v2924
    %v2937 = vrot.slane %v2933, 2
    %v2938 = vrot.slane %v2934, 2
    %v2941 = vadd.f32 %v2929, %v2937
    %v2942 = vadd.f32 %v2930, %v2938
    %v2944 = vlaneseq
    %v2945 = vshrl.u32 %v2944, 7
    %v2946 = vsub.s32 0, %v2945
    %v2947 = vrot.slane %v2926, %v2946
    %v2948 = vlaneseq
    %v2949 = vshrl.u32 %v2948, 7
    %v2950 = vsub.s32 1, %v2949
    %v2951 = vrot.slane %v2926, %v2950
    %v2954 = vmul.f32 %v2947, %v2941
    %v2955 = vmul.f32 %v2951, %v2942
    %v2956 = vadd.f32 %v2917, %v2954
    %v2957 = vadd.f32 %v2918, %v2955
    %2958 = vrot.lane.b32.xlu0 %v1730, 112
    %v2959 = vpop.permute.xlu0 %2958
    %2960 = vrot.lane.b32.xlu0 %v1731, 112
    %v2961 = vpop.permute.xlu0 %2960
    %v2962 = vsel %vm399, %v2959, %v2961
    %v2963 = vsel %vm399, %v2961, %v2959
    %s2964 = scalar_lea.vmem %s18, 55
    %v2965 = vld [vmem:[%s2964] ss:$8 sm:$0x3]
    %s2966 = sld [smem:[#allocation2 + $0x1f]]
    %v2967 = vstv %s2966
    %v2968 = vmul.f32 %v2967, %v2962
    %v2969 = vmul.f32 %v2967, %v2963
    %s2970 = sld [smem:[#allocation2 + $0x9f]]
    %v2971 = vstv %s2970
    %v2972 = vmul.f32 %v2971, %v2962
    %v2973 = vmul.f32 %v2971, %v2963
    %v2976 = vrot.slane %v2972, 2
    %v2977 = vrot.slane %v2973, 2
    %v2980 = vadd.f32 %v2968, %v2976
    %v2981 = vadd.f32 %v2969, %v2977
    %v2983 = vlaneseq
    %v2984 = vshrl.u32 %v2983, 7
    %v2985 = vsub.s32 0, %v2984
    %v2986 = vrot.slane %v2965, %v2985
    %v2987 = vlaneseq
    %v2988 = vshrl.u32 %v2987, 7
    %v2989 = vsub.s32 1, %v2988
    %v2990 = vrot.slane %v2965, %v2989
    %v2993 = vmul.f32 %v2986, %v2980
    %v2994 = vmul.f32 %v2990, %v2981
    %v2995 = vadd.f32 %v2956, %v2993
    %v2996 = vadd.f32 %v2957, %v2994
    %2997 = vrot.lane.b32.xlu0 %v1730, 111
    %v2998 = vpop.permute.xlu0 %2997
    %2999 = vrot.lane.b32.xlu0 %v1731, 111
    %v3000 = vpop.permute.xlu0 %2999
    %v3001 = vsel %vm445, %v2998, %v3000
    %v3002 = vsel %vm445, %v3000, %v2998
    %s3003 = scalar_lea.vmem %s18, 64
    %v3004 = vld [vmem:[%s3003] ss:$8 sm:$0x3]
    %s3005 = sld [smem:[#allocation2 + $0x20]]
    %v3006 = vstv %s3005
    %v3007 = vmul.f32 %v3006, %v3001
    %v3008 = vmul.f32 %v3006, %v3002
    %s3009 = sld [smem:[#allocation2 + $0xa0]]
    %v3010 = vstv %s3009
    %v3011 = vmul.f32 %v3010, %v3001
    %v3012 = vmul.f32 %v3010, %v3002
    %v3015 = vrot.slane %v3011, 2
    %v3016 = vrot.slane %v3012, 2
    %v3019 = vadd.f32 %v3007, %v3015
    %v3020 = vadd.f32 %v3008, %v3016
    %v3022 = vlaneseq
    %v3023 = vshrl.u32 %v3022, 7
    %v3024 = vsub.s32 0, %v3023
    %v3025 = vrot.slane %v3004, %v3024
    %v3026 = vlaneseq
    %v3027 = vshrl.u32 %v3026, 7
    %v3028 = vsub.s32 1, %v3027
    %v3029 = vrot.slane %v3004, %v3028
    %v3032 = vmul.f32 %v3025, %v3019
    %v3033 = vmul.f32 %v3029, %v3020
    %v3034 = vadd.f32 %v2995, %v3032
    %v3035 = vadd.f32 %v2996, %v3033
    %3036 = vrot.lane.b32.xlu0 %v1730, 110
    %v3037 = vpop.permute.xlu0 %3036
    %3038 = vrot.lane.b32.xlu0 %v1731, 110
    %v3039 = vpop.permute.xlu0 %3038
    %vm3040 = vcmp.lt.s32.totalorder %v101, 110
    %v3041 = vsel %vm3040, %v3037, %v3039
    %v3042 = vsel %vm3040, %v3039, %v3037
    %s3043 = scalar_lea.vmem %s18, 65
    %v3044 = vld [vmem:[%s3043] ss:$8 sm:$0x3]
    %s3045 = sld [smem:[#allocation2 + $0x21]]
    %v3046 = vstv %s3045
    %v3047 = vmul.f32 %v3046, %v3041
    %v3048 = vmul.f32 %v3046, %v3042
    %s3049 = sld [smem:[#allocation2 + $0xa1]]
    %v3050 = vstv %s3049
    %v3051 = vmul.f32 %v3050, %v3041
    %v3052 = vmul.f32 %v3050, %v3042
    %v3055 = vrot.slane %v3051, 2
    %v3056 = vrot.slane %v3052, 2
    %v3059 = vadd.f32 %v3047, %v3055
    %v3060 = vadd.f32 %v3048, %v3056
    %v3062 = vlaneseq
    %v3063 = vshrl.u32 %v3062, 7
    %v3064 = vsub.s32 0, %v3063
    %v3065 = vrot.slane %v3044, %v3064
    %v3066 = vlaneseq
    %v3067 = vshrl.u32 %v3066, 7
    %v3068 = vsub.s32 1, %v3067
    %v3069 = vrot.slane %v3044, %v3068
    %v3072 = vmul.f32 %v3065, %v3059
    %v3073 = vmul.f32 %v3069, %v3060
    %v3074 = vadd.f32 %v3034, %v3072
    %v3075 = vadd.f32 %v3035, %v3073
    %3076 = vrot.lane.b32.xlu0 %v1730, 109
    %v3077 = vpop.permute.xlu0 %3076
    %3078 = vrot.lane.b32.xlu0 %v1731, 109
    %v3079 = vpop.permute.xlu0 %3078
    %vm3080 = vcmp.lt.s32.totalorder %v101, 109
    %v3081 = vsel %vm3080, %v3077, %v3079
    %v3082 = vsel %vm3080, %v3079, %v3077
    %s3083 = scalar_lea.vmem %s18, 66
    %v3084 = vld [vmem:[%s3083] ss:$8 sm:$0x3]
    %s3085 = sld [smem:[#allocation2 + $0x22]]
    %v3086 = vstv %s3085
    %v3087 = vmul.f32 %v3086, %v3081
    %v3088 = vmul.f32 %v3086, %v3082
    %s3089 = sld [smem:[#allocation2 + $0xa2]]
    %v3090 = vstv %s3089
    %v3091 = vmul.f32 %v3090, %v3081
    %v3092 = vmul.f32 %v3090, %v3082
    %v3095 = vrot.slane %v3091, 2
    %v3096 = vrot.slane %v3092, 2
    %v3099 = vadd.f32 %v3087, %v3095
    %v3100 = vadd.f32 %v3088, %v3096
    %v3102 = vlaneseq
    %v3103 = vshrl.u32 %v3102, 7
    %v3104 = vsub.s32 0, %v3103
    %v3105 = vrot.slane %v3084, %v3104
    %v3106 = vlaneseq
    %v3107 = vshrl.u32 %v3106, 7
    %v3108 = vsub.s32 1, %v3107
    %v3109 = vrot.slane %v3084, %v3108
    %v3112 = vmul.f32 %v3105, %v3099
    %v3113 = vmul.f32 %v3109, %v3100
    %v3114 = vadd.f32 %v3074, %v3112
    %v3115 = vadd.f32 %v3075, %v3113
    %3116 = vrot.lane.b32.xlu0 %v1730, 99
    %v3117 = vpop.permute.xlu0 %3116
    %3118 = vrot.lane.b32.xlu0 %v1731, 99
    %v3119 = vpop.permute.xlu0 %3118
    %vm3120 = vcmp.lt.s32.totalorder %v101, 99
    %v3121 = vsel %vm3120, %v3117, %v3119
    %v3122 = vsel %vm3120, %v3119, %v3117
    %s3123 = scalar_lea.vmem %s18, 67
    %v3124 = vld [vmem:[%s3123] ss:$8 sm:$0x3]
    %s3125 = sld [smem:[#allocation2 + $0x23]]
    %v3126 = vstv %s3125
    %v3127 = vmul.f32 %v3126, %v3121
    %v3128 = vmul.f32 %v3126, %v3122
    %s3129 = sld [smem:[#allocation2 + $0xa3]]
    %v3130 = vstv %s3129
    %v3131 = vmul.f32 %v3130, %v3121
    %v3132 = vmul.f32 %v3130, %v3122
    %v3135 = vrot.slane %v3131, 2
    %v3136 = vrot.slane %v3132, 2
    %v3139 = vadd.f32 %v3127, %v3135
    %v3140 = vadd.f32 %v3128, %v3136
    %v3142 = vlaneseq
    %v3143 = vshrl.u32 %v3142, 7
    %v3144 = vsub.s32 0, %v3143
    %v3145 = vrot.slane %v3124, %v3144
    %v3146 = vlaneseq
    %v3147 = vshrl.u32 %v3146, 7
    %v3148 = vsub.s32 1, %v3147
    %v3149 = vrot.slane %v3124, %v3148
    %v3152 = vmul.f32 %v3145, %v3139
    %v3153 = vmul.f32 %v3149, %v3140
    %v3154 = vadd.f32 %v3114, %v3152
    %v3155 = vadd.f32 %v3115, %v3153
    %3156 = vrot.lane.b32.xlu0 %v1730, 98
    %v3157 = vpop.permute.xlu0 %3156
    %3158 = vrot.lane.b32.xlu0 %v1731, 98
    %v3159 = vpop.permute.xlu0 %3158
    %vm3160 = vcmp.lt.s32.totalorder %v101, 98
    %v3161 = vsel %vm3160, %v3157, %v3159
    %v3162 = vsel %vm3160, %v3159, %v3157
    %s3163 = scalar_lea.vmem %s18, 68
    %v3164 = vld [vmem:[%s3163] ss:$8 sm:$0x3]
    %s3165 = sld [smem:[#allocation2 + $0x24]]
    %v3166 = vstv %s3165
    %v3167 = vmul.f32 %v3166, %v3161
    %v3168 = vmul.f32 %v3166, %v3162
    %s3169 = sld [smem:[#allocation2 + $0xa4]]
    %v3170 = vstv %s3169
    %v3171 = vmul.f32 %v3170, %v3161
    %v3172 = vmul.f32 %v3170, %v3162
    %v3175 = vrot.slane %v3171, 2
    %v3176 = vrot.slane %v3172, 2
    %v3179 = vadd.f32 %v3167, %v3175
    %v3180 = vadd.f32 %v3168, %v3176
    %v3182 = vlaneseq
    %v3183 = vshrl.u32 %v3182, 7
    %v3184 = vsub.s32 0, %v3183
    %v3185 = vrot.slane %v3164, %v3184
    %v3186 = vlaneseq
    %v3187 = vshrl.u32 %v3186, 7
    %v3188 = vsub.s32 1, %v3187
    %v3189 = vrot.slane %v3164, %v3188
    %v3192 = vmul.f32 %v3185, %v3179
    %v3193 = vmul.f32 %v3189, %v3180
    %v3194 = vadd.f32 %v3154, %v3192
    %v3195 = vadd.f32 %v3155, %v3193
    %3196 = vrot.lane.b32.xlu0 %v1730, 97
    %v3197 = vpop.permute.xlu0 %3196
    %3198 = vrot.lane.b32.xlu0 %v1731, 97
    %v3199 = vpop.permute.xlu0 %3198
    %vm3200 = vcmp.lt.s32.totalorder %v101, 97
    %v3201 = vsel %vm3200, %v3197, %v3199
    %v3202 = vsel %vm3200, %v3199, %v3197
    %s3203 = scalar_lea.vmem %s18, 69
    %v3204 = vld [vmem:[%s3203] ss:$8 sm:$0x3]
    %s3205 = sld [smem:[#allocation2 + $0x25]]
    %v3206 = vstv %s3205
    %v3207 = vmul.f32 %v3206, %v3201
    %v3208 = vmul.f32 %v3206, %v3202
    %s3209 = sld [smem:[#allocation2 + $0xa5]]
    %v3210 = vstv %s3209
    %v3211 = vmul.f32 %v3210, %v3201
    %v3212 = vmul.f32 %v3210, %v3202
    %v3215 = vrot.slane %v3211, 2
    %v3216 = vrot.slane %v3212, 2
    %v3219 = vadd.f32 %v3207, %v3215
    %v3220 = vadd.f32 %v3208, %v3216
    %v3222 = vlaneseq
    %v3223 = vshrl.u32 %v3222, 7
    %v3224 = vsub.s32 0, %v3223
    %v3225 = vrot.slane %v3204, %v3224
    %v3226 = vlaneseq
    %v3227 = vshrl.u32 %v3226, 7
    %v3228 = vsub.s32 1, %v3227
    %v3229 = vrot.slane %v3204, %v3228
    %v3232 = vmul.f32 %v3225, %v3219
    %v3233 = vmul.f32 %v3229, %v3220
    %v3234 = vadd.f32 %v3194, %v3232
    %v3235 = vadd.f32 %v3195, %v3233
    %3236 = vrot.lane.b32.xlu0 %v1730, 96
    %v3237 = vpop.permute.xlu0 %3236
    %3238 = vrot.lane.b32.xlu0 %v1731, 96
    %v3239 = vpop.permute.xlu0 %3238
    %vm3240 = vcmp.lt.s32.totalorder %v101, 96
    %v3241 = vsel %vm3240, %v3237, %v3239
    %v3242 = vsel %vm3240, %v3239, %v3237
    %s3243 = scalar_lea.vmem %s18, 70
    %v3244 = vld [vmem:[%s3243] ss:$8 sm:$0x3]
    %s3245 = sld [smem:[#allocation2 + $0x26]]
    %v3246 = vstv %s3245
    %v3247 = vmul.f32 %v3246, %v3241
    %v3248 = vmul.f32 %v3246, %v3242
    %s3249 = sld [smem:[#allocation2 + $0xa6]]
    %v3250 = vstv %s3249
    %v3251 = vmul.f32 %v3250, %v3241
    %v3252 = vmul.f32 %v3250, %v3242
    %v3255 = vrot.slane %v3251, 2
    %v3256 = vrot.slane %v3252, 2
    %v3259 = vadd.f32 %v3247, %v3255
    %v3260 = vadd.f32 %v3248, %v3256
    %v3262 = vlaneseq
    %v3263 = vshrl.u32 %v3262, 7
    %v3264 = vsub.s32 0, %v3263
    %v3265 = vrot.slane %v3244, %v3264
    %v3266 = vlaneseq
    %v3267 = vshrl.u32 %v3266, 7
    %v3268 = vsub.s32 1, %v3267
    %v3269 = vrot.slane %v3244, %v3268
    %v3272 = vmul.f32 %v3265, %v3259
    %v3273 = vmul.f32 %v3269, %v3260
    %v3274 = vadd.f32 %v3234, %v3272
    %v3275 = vadd.f32 %v3235, %v3273
    %3276 = vrot.lane.b32.xlu0 %v1730, 95
    %v3277 = vpop.permute.xlu0 %3276
    %3278 = vrot.lane.b32.xlu0 %v1731, 95
    %v3279 = vpop.permute.xlu0 %3278
    %vm3280 = vcmp.lt.s32.totalorder %v101, 95
    %v3281 = vsel %vm3280, %v3277, %v3279
    %v3282 = vsel %vm3280, %v3279, %v3277
    %s3283 = scalar_lea.vmem %s18, 71
    %v3284 = vld [vmem:[%s3283] ss:$8 sm:$0x3]
    %s3285 = sld [smem:[#allocation2 + $0x27]]
    %v3286 = vstv %s3285
    %v3287 = vmul.f32 %v3286, %v3281
    %v3288 = vmul.f32 %v3286, %v3282
    %s3289 = sld [smem:[#allocation2 + $0xa7]]
    %v3290 = vstv %s3289
    %v3291 = vmul.f32 %v3290, %v3281
    %v3292 = vmul.f32 %v3290, %v3282
    %v3295 = vrot.slane %v3291, 2
    %v3296 = vrot.slane %v3292, 2
    %v3299 = vadd.f32 %v3287, %v3295
    %v3300 = vadd.f32 %v3288, %v3296
    %v3302 = vlaneseq
    %v3303 = vshrl.u32 %v3302, 7
    %v3304 = vsub.s32 0, %v3303
    %v3305 = vrot.slane %v3284, %v3304
    %v3306 = vlaneseq
    %v3307 = vshrl.u32 %v3306, 7
    %v3308 = vsub.s32 1, %v3307
    %v3309 = vrot.slane %v3284, %v3308
    %v3312 = vmul.f32 %v3305, %v3299
    %v3313 = vmul.f32 %v3309, %v3300
    %v3314 = vadd.f32 %v3274, %v3312
    %v3315 = vadd.f32 %v3275, %v3313
    %3316 = vrot.lane.b32.xlu0 %v1730, 94
    %v3317 = vpop.permute.xlu0 %3316
    %3318 = vrot.lane.b32.xlu0 %v1731, 94
    %v3319 = vpop.permute.xlu0 %3318
    %vm3320 = vcmp.lt.s32.totalorder %v101, 94
    %v3321 = vsel %vm3320, %v3317, %v3319
    %v3322 = vsel %vm3320, %v3319, %v3317
    %s3323 = scalar_lea.vmem %s18, 80
    %v3324 = vld [vmem:[%s3323] ss:$8 sm:$0x3]
    %s3325 = sld [smem:[#allocation2 + $0x28]]
    %v3326 = vstv %s3325
    %v3327 = vmul.f32 %v3326, %v3321
    %v3328 = vmul.f32 %v3326, %v3322
    %s3329 = sld [smem:[#allocation2 + $0xa8]]
    %v3330 = vstv %s3329
    %v3331 = vmul.f32 %v3330, %v3321
    %v3332 = vmul.f32 %v3330, %v3322
    %v3335 = vrot.slane %v3331, 2
    %v3336 = vrot.slane %v3332, 2
    %v3339 = vadd.f32 %v3327, %v3335
    %v3340 = vadd.f32 %v3328, %v3336
    %v3342 = vlaneseq
    %v3343 = vshrl.u32 %v3342, 7
    %v3344 = vsub.s32 0, %v3343
    %v3345 = vrot.slane %v3324, %v3344
    %v3346 = vlaneseq
    %v3347 = vshrl.u32 %v3346, 7
    %v3348 = vsub.s32 1, %v3347
    %v3349 = vrot.slane %v3324, %v3348
    %v3352 = vmul.f32 %v3345, %v3339
    %v3353 = vmul.f32 %v3349, %v3340
    %v3354 = vadd.f32 %v3314, %v3352
    %v3355 = vadd.f32 %v3315, %v3353
    %3356 = vrot.lane.b32.xlu0 %v1730, 93
    %v3357 = vpop.permute.xlu0 %3356
    %3358 = vrot.lane.b32.xlu0 %v1731, 93
    %v3359 = vpop.permute.xlu0 %3358
    %vm3360 = vcmp.lt.s32.totalorder %v101, 93
    %v3361 = vsel %vm3360, %v3357, %v3359
    %v3362 = vsel %vm3360, %v3359, %v3357
    %s3363 = scalar_lea.vmem %s18, 81
    %v3364 = vld [vmem:[%s3363] ss:$8 sm:$0x3]
    %s3365 = sld [smem:[#allocation2 + $0x29]]
    %v3366 = vstv %s3365
    %v3367 = vmul.f32 %v3366, %v3361
    %v3368 = vmul.f32 %v3366, %v3362
    %s3369 = sld [smem:[#allocation2 + $0xa9]]
    %v3370 = vstv %s3369
    %v3371 = vmul.f32 %v3370, %v3361
    %v3372 = vmul.f32 %v3370, %v3362
    %v3375 = vrot.slane %v3371, 2
    %v3376 = vrot.slane %v3372, 2
    %v3379 = vadd.f32 %v3367, %v3375
    %v3380 = vadd.f32 %v3368, %v3376
    %v3382 = vlaneseq
    %v3383 = vshrl.u32 %v3382, 7
    %v3384 = vsub.s32 0, %v3383
    %v3385 = vrot.slane %v3364, %v3384
    %v3386 = vlaneseq
    %v3387 = vshrl.u32 %v3386, 7
    %v3388 = vsub.s32 1, %v3387
    %v3389 = vrot.slane %v3364, %v3388
    %v3392 = vmul.f32 %v3385, %v3379
    %v3393 = vmul.f32 %v3389, %v3380
    %v3394 = vadd.f32 %v3354, %v3392
    %v3395 = vadd.f32 %v3355, %v3393
    %3396 = vrot.lane.b32.xlu0 %v1730, 83
    %v3397 = vpop.permute.xlu0 %3396
    %3398 = vrot.lane.b32.xlu0 %v1731, 83
    %v3399 = vpop.permute.xlu0 %3398
    %vm3400 = vcmp.lt.s32.totalorder %v101, 83
    %v3401 = vsel %vm3400, %v3397, %v3399
    %v3402 = vsel %vm3400, %v3399, %v3397
    %s3403 = scalar_lea.vmem %s18, 82
    %v3404 = vld [vmem:[%s3403] ss:$8 sm:$0x3]
    %s3405 = sld [smem:[#allocation2 + $0x2a]]
    %v3406 = vstv %s3405
    %v3407 = vmul.f32 %v3406, %v3401
    %v3408 = vmul.f32 %v3406, %v3402
    %s3409 = sld [smem:[#allocation2 + $0xaa]]
    %v3410 = vstv %s3409
    %v3411 = vmul.f32 %v3410, %v3401
    %v3412 = vmul.f32 %v3410, %v3402
    %v3415 = vrot.slane %v3411, 2
    %v3416 = vrot.slane %v3412, 2
    %v3419 = vadd.f32 %v3407, %v3415
    %v3420 = vadd.f32 %v3408, %v3416
    %v3422 = vlaneseq
    %v3423 = vshrl.u32 %v3422, 7
    %v3424 = vsub.s32 0, %v3423
    %v3425 = vrot.slane %v3404, %v3424
    %v3426 = vlaneseq
    %v3427 = vshrl.u32 %v3426, 7
    %v3428 = vsub.s32 1, %v3427
    %v3429 = vrot.slane %v3404, %v3428
    %v3432 = vmul.f32 %v3425, %v3419
    %v3433 = vmul.f32 %v3429, %v3420
    %v3434 = vadd.f32 %v3394, %v3432
    %v3435 = vadd.f32 %v3395, %v3433
    %3436 = vrot.lane.b32.xlu0 %v1730, 82
    %v3437 = vpop.permute.xlu0 %3436
    %3438 = vrot.lane.b32.xlu0 %v1731, 82
    %v3439 = vpop.permute.xlu0 %3438
    %vm3440 = vcmp.lt.s32.totalorder %v101, 82
    %v3441 = vsel %vm3440, %v3437, %v3439
    %v3442 = vsel %vm3440, %v3439, %v3437
    %s3443 = scalar_lea.vmem %s18, 83
    %v3444 = vld [vmem:[%s3443] ss:$8 sm:$0x3]
    %s3445 = sld [smem:[#allocation2 + $0x2b]]
    %v3446 = vstv %s3445
    %v3447 = vmul.f32 %v3446, %v3441
    %v3448 = vmul.f32 %v3446, %v3442
    %s3449 = sld [smem:[#allocation2 + $0xab]]
    %v3450 = vstv %s3449
    %v3451 = vmul.f32 %v3450, %v3441
    %v3452 = vmul.f32 %v3450, %v3442
    %v3455 = vrot.slane %v3451, 2
    %v3456 = vrot.slane %v3452, 2
    %v3459 = vadd.f32 %v3447, %v3455
    %v3460 = vadd.f32 %v3448, %v3456
    %v3462 = vlaneseq
    %v3463 = vshrl.u32 %v3462, 7
    %v3464 = vsub.s32 0, %v3463
    %v3465 = vrot.slane %v3444, %v3464
    %v3466 = vlaneseq
    %v3467 = vshrl.u32 %v3466, 7
    %v3468 = vsub.s32 1, %v3467
    %v3469 = vrot.slane %v3444, %v3468
    %v3472 = vmul.f32 %v3465, %v3459
    %v3473 = vmul.f32 %v3469, %v3460
    %v3474 = vadd.f32 %v3434, %v3472
    %v3475 = vadd.f32 %v3435, %v3473
    %3476 = vrot.lane.b32.xlu0 %v1730, 81
    %v3477 = vpop.permute.xlu0 %3476
    %3478 = vrot.lane.b32.xlu0 %v1731, 81
    %v3479 = vpop.permute.xlu0 %3478
    %vm3480 = vcmp.lt.s32.totalorder %v101, 81
    %v3481 = vsel %vm3480, %v3477, %v3479
    %v3482 = vsel %vm3480, %v3479, %v3477
    %s3483 = scalar_lea.vmem %s18, 84
    %v3484 = vld [vmem:[%s3483] ss:$8 sm:$0x3]
    %s3485 = sld [smem:[#allocation2 + $0x2c]]
    %v3486 = vstv %s3485
    %v3487 = vmul.f32 %v3486, %v3481
    %v3488 = vmul.f32 %v3486, %v3482
    %s3489 = sld [smem:[#allocation2 + $0xac]]
    %v3490 = vstv %s3489
    %v3491 = vmul.f32 %v3490, %v3481
    %v3492 = vmul.f32 %v3490, %v3482
    %v3495 = vrot.slane %v3491, 2
    %v3496 = vrot.slane %v3492, 2
    %v3499 = vadd.f32 %v3487, %v3495
    %v3500 = vadd.f32 %v3488, %v3496
    %v3502 = vlaneseq
    %v3503 = vshrl.u32 %v3502, 7
    %v3504 = vsub.s32 0, %v3503
    %v3505 = vrot.slane %v3484, %v3504
    %v3506 = vlaneseq
    %v3507 = vshrl.u32 %v3506, 7
    %v3508 = vsub.s32 1, %v3507
    %v3509 = vrot.slane %v3484, %v3508
    %v3512 = vmul.f32 %v3505, %v3499
    %v3513 = vmul.f32 %v3509, %v3500
    %v3514 = vadd.f32 %v3474, %v3512
    %v3515 = vadd.f32 %v3475, %v3513
    %3516 = vrot.lane.b32.xlu0 %v1730, 80
    %v3517 = vpop.permute.xlu0 %3516
    %3518 = vrot.lane.b32.xlu0 %v1731, 80
    %v3519 = vpop.permute.xlu0 %3518
    %vm3520 = vcmp.lt.s32.totalorder %v101, 80
    %v3521 = vsel %vm3520, %v3517, %v3519
    %v3522 = vsel %vm3520, %v3519, %v3517
    %s3523 = scalar_lea.vmem %s18, 85
    %v3524 = vld [vmem:[%s3523] ss:$8 sm:$0x3]
    %s3525 = sld [smem:[#allocation2 + $0x2d]]
    %v3526 = vstv %s3525
    %v3527 = vmul.f32 %v3526, %v3521
    %v3528 = vmul.f32 %v3526, %v3522
    %s3529 = sld [smem:[#allocation2 + $0xad]]
    %v3530 = vstv %s3529
    %v3531 = vmul.f32 %v3530, %v3521
    %v3532 = vmul.f32 %v3530, %v3522
    %v3535 = vrot.slane %v3531, 2
    %v3536 = vrot.slane %v3532, 2
    %v3539 = vadd.f32 %v3527, %v3535
    %v3540 = vadd.f32 %v3528, %v3536
    %v3542 = vlaneseq
    %v3543 = vshrl.u32 %v3542, 7
    %v3544 = vsub.s32 0, %v3543
    %v3545 = vrot.slane %v3524, %v3544
    %v3546 = vlaneseq
    %v3547 = vshrl.u32 %v3546, 7
    %v3548 = vsub.s32 1, %v3547
    %v3549 = vrot.slane %v3524, %v3548
    %v3552 = vmul.f32 %v3545, %v3539
    %v3553 = vmul.f32 %v3549, %v3540
    %v3554 = vadd.f32 %v3514, %v3552
    %v3555 = vadd.f32 %v3515, %v3553
    %3556 = vrot.lane.b32.xlu0 %v1730, 79
    %v3557 = vpop.permute.xlu0 %3556
    %3558 = vrot.lane.b32.xlu0 %v1731, 79
    %v3559 = vpop.permute.xlu0 %3558
    %vm3560 = vcmp.lt.s32.totalorder %v101, 79
    %v3561 = vsel %vm3560, %v3557, %v3559
    %v3562 = vsel %vm3560, %v3559, %v3557
    %s3563 = scalar_lea.vmem %s18, 86
    %v3564 = vld [vmem:[%s3563] ss:$8 sm:$0x3]
    %s3565 = sld [smem:[#allocation2 + $0x2e]]
    %v3566 = vstv %s3565
    %v3567 = vmul.f32 %v3566, %v3561
    %v3568 = vmul.f32 %v3566, %v3562
    %s3569 = sld [smem:[#allocation2 + $0xae]]
    %v3570 = vstv %s3569
    %v3571 = vmul.f32 %v3570, %v3561
    %v3572 = vmul.f32 %v3570, %v3562
    %v3575 = vrot.slane %v3571, 2
    %v3576 = vrot.slane %v3572, 2
    %v3579 = vadd.f32 %v3567, %v3575
    %v3580 = vadd.f32 %v3568, %v3576
    %v3582 = vlaneseq
    %v3583 = vshrl.u32 %v3582, 7
    %v3584 = vsub.s32 0, %v3583
    %v3585 = vrot.slane %v3564, %v3584
    %v3586 = vlaneseq
    %v3587 = vshrl.u32 %v3586, 7
    %v3588 = vsub.s32 1, %v3587
    %v3589 = vrot.slane %v3564, %v3588
    %v3592 = vmul.f32 %v3585, %v3579
    %v3593 = vmul.f32 %v3589, %v3580
    %v3594 = vadd.f32 %v3554, %v3592
    %v3595 = vadd.f32 %v3555, %v3593
    %3596 = vrot.lane.b32.xlu0 %v1730, 78
    %v3597 = vpop.permute.xlu0 %3596
    %3598 = vrot.lane.b32.xlu0 %v1731, 78
    %v3599 = vpop.permute.xlu0 %3598
    %vm3600 = vcmp.lt.s32.totalorder %v101, 78
    %v3601 = vsel %vm3600, %v3597, %v3599
    %v3602 = vsel %vm3600, %v3599, %v3597
    %s3603 = scalar_lea.vmem %s18, 87
    %v3604 = vld [vmem:[%s3603] ss:$8 sm:$0x3]
    %s3605 = sld [smem:[#allocation2 + $0x2f]]
    %v3606 = vstv %s3605
    %v3607 = vmul.f32 %v3606, %v3601
    %v3608 = vmul.f32 %v3606, %v3602
    %s3609 = sld [smem:[#allocation2 + $0xaf]]
    %v3610 = vstv %s3609
    %v3611 = vmul.f32 %v3610, %v3601
    %v3612 = vmul.f32 %v3610, %v3602
    %v3615 = vrot.slane %v3611, 2
    %v3616 = vrot.slane %v3612, 2
    %v3619 = vadd.f32 %v3607, %v3615
    %v3620 = vadd.f32 %v3608, %v3616
    %v3622 = vlaneseq
    %v3623 = vshrl.u32 %v3622, 7
    %v3624 = vsub.s32 0, %v3623
    %v3625 = vrot.slane %v3604, %v3624
    %v3626 = vlaneseq
    %v3627 = vshrl.u32 %v3626, 7
    %v3628 = vsub.s32 1, %v3627
    %v3629 = vrot.slane %v3604, %v3628
    %v3632 = vmul.f32 %v3625, %v3619
    %v3633 = vmul.f32 %v3629, %v3620
    %v3634 = vadd.f32 %v3594, %v3632
    %v3635 = vadd.f32 %v3595, %v3633
    %3636 = vrot.lane.b32.xlu0 %v1730, 77
    %v3637 = vpop.permute.xlu0 %3636
    %3638 = vrot.lane.b32.xlu0 %v1731, 77
    %v3639 = vpop.permute.xlu0 %3638
    %vm3640 = vcmp.lt.s32.totalorder %v101, 77
    %v3641 = vsel %vm3640, %v3637, %v3639
    %v3642 = vsel %vm3640, %v3639, %v3637
    %s3643 = scalar_lea.vmem %s18, 96
    %v3644 = vld [vmem:[%s3643] ss:$8 sm:$0x3]
    %s3645 = sld [smem:[#allocation2 + $0x30]]
    %v3646 = vstv %s3645
    %v3647 = vmul.f32 %v3646, %v3641
    %v3648 = vmul.f32 %v3646, %v3642
    %s3649 = sld [smem:[#allocation2 + $0xb0]]
    %v3650 = vstv %s3649
    %v3651 = vmul.f32 %v3650, %v3641
    %v3652 = vmul.f32 %v3650, %v3642
    %v3655 = vrot.slane %v3651, 2
    %v3656 = vrot.slane %v3652, 2
    %v3659 = vadd.f32 %v3647, %v3655
    %v3660 = vadd.f32 %v3648, %v3656
    %v3662 = vlaneseq
    %v3663 = vshrl.u32 %v3662, 7
    %v3664 = vsub.s32 0, %v3663
    %v3665 = vrot.slane %v3644, %v3664
    %v3666 = vlaneseq
    %v3667 = vshrl.u32 %v3666, 7
    %v3668 = vsub.s32 1, %v3667
    %v3669 = vrot.slane %v3644, %v3668
    %v3672 = vmul.f32 %v3665, %v3659
    %v3673 = vmul.f32 %v3669, %v3660
    %v3674 = vadd.f32 %v3634, %v3672
    %v3675 = vadd.f32 %v3635, %v3673
    %v3676 = vxor.u32 %v3674, 2147483648
    %v3677 = vxor.u32 %v3675, 2147483648
    %v3678 = vmul.f32 %v3676, 1.442695
    %v3679 = vpow.pop %v3678
    %v3680 = vmul.f32 %v3677, 1.442695
    %v3681 = vpow.pop %v3680
    %v3682 = vadd.f32 %v3679, 1.0
    %v3683 = vadd.f32 %v3681, 1.0
    %v3684 = vrcp.pop %v3682
    %v3685 = vmul.f32 1.0, %v3684
    %v3686 = vrcp.pop %v3683
    %v3687 = vmul.f32 1.0, %v3686
    %v3688 = vlaneseq
    %v3689 = vshrl.u32 %v3688, 7
    %v3690 = vsub.s32 0, %v3689
    %v3691 = vrot.slane %v3685, %v3690
    %v3692 = vlaneseq
    %v3693 = vshrl.u32 %v3692, 7
    %v3694 = vsub.s32 0, %v3693
    %v3695 = vrot.slane %v3687, %v3694
    %v3696 = vmul.f32 %v950, %v3691
    %v3697 = vmul.f32 %v951, %v3695
    %v3698 = vmul.f32 %v952, %v3691
    %v3699 = vmul.f32 %v953, %v3695
    %v3700 = vmul.f32 %v954, %v3691
    %v3701 = vmul.f32 %v955, %v3695
    %v3702 = vmul.f32 %v956, %v3691
    %v3703 = vmul.f32 %v957, %v3695
    %v3704 = vadd.f32 %v3696, %v75
    %v3705 = vadd.f32 %v3697, %v76
    %v3706 = vadd.f32 %v3698, %v77
    %v3707 = vadd.f32 %v3699, %v78
    %v3708 = vadd.f32 %v3700, %v79
    %v3709 = vadd.f32 %v3701, %v80
    %v3710 = vadd.f32 %v3702, %v81
    %v3711 = vadd.f32 %v3703, %v82
    %v3712 = vlaneseq
    %v3713 = vshrl.u32 %v3712, 7
    %v3714 = vsub.s32 1, %v3713
    %v3715 = vrot.slane %v3685, %v3714
    %v3716 = vlaneseq
    %v3717 = vshrl.u32 %v3716, 7
    %v3718 = vsub.s32 1, %v3717
    %v3719 = vrot.slane %v3687, %v3718
    %v3720 = vmul.f32 %v1675, %v3715
    %v3721 = vmul.f32 %v1676, %v3719
    %v3722 = vmul.f32 %v1677, %v3715
    %v3723 = vmul.f32 %v1678, %v3719
    %v3724 = vmul.f32 %v1679, %v3715
    %v3725 = vmul.f32 %v1680, %v3719
    %v3726 = vmul.f32 %v1681, %v3715
    %v3727 = vmul.f32 %v1682, %v3719
    %v3728 = vadd.f32 %v3720, %v998
    %v3729 = vadd.f32 %v3721, %v999
    %v3730 = vadd.f32 %v3722, %v1000
    %v3731 = vadd.f32 %v3723, %v1001
    %v3732 = vadd.f32 %v3724, %v1002
    %v3733 = vadd.f32 %v3725, %v1003
    %v3734 = vadd.f32 %v3726, %v1004
    %v3735 = vadd.f32 %v3727, %v1005
    %3736 = vrot.lane.b32.xlu0 %v3704, 17
    %v3737 = vpop.permute.xlu0 %3736
    %3738 = vrot.lane.b32.xlu0 %v3706, 17
    %v3739 = vpop.permute.xlu0 %3738
    %3740 = vrot.lane.b32.xlu0 %v3708, 17
    %v3741 = vpop.permute.xlu0 %3740
    %3742 = vrot.lane.b32.xlu0 %v3710, 17
    %v3743 = vpop.permute.xlu0 %3742
    %3744 = vrot.lane.b32.xlu0 %v3705, 17
    %v3745 = vpop.permute.xlu0 %3744
    %3746 = vrot.lane.b32.xlu0 %v3707, 17
    %v3747 = vpop.permute.xlu0 %3746
    %3748 = vrot.lane.b32.xlu0 %v3709, 17
    %v3749 = vpop.permute.xlu0 %3748
    %3750 = vrot.lane.b32.xlu0 %v3711, 17
    %v3751 = vpop.permute.xlu0 %3750
    %v3752 = vsel %vm102, %v3737, %v3745
    %v3753 = vsel %vm102, %v3739, %v3747
    %v3754 = vsel %vm102, %v3741, %v3749
    %v3755 = vsel %vm102, %v3743, %v3751
    %v3756 = vsel %vm102, %v3745, %v3737
    %v3757 = vsel %vm102, %v3747, %v3739
    %v3758 = vsel %vm102, %v3749, %v3741
    %v3759 = vsel %vm102, %v3751, %v3743
    %v3760 = vmul.f32 %v3756, %v115
    %v3761 = vmul.f32 %v3752, %v119
    %v3762 = vmul.f32 %v3757, %v115
    %v3763 = vmul.f32 %v3753, %v119
    %v3764 = vmul.f32 %v3758, %v115
    %v3765 = vmul.f32 %v3754, %v119
    %v3766 = vmul.f32 %v3759, %v115
    %v3767 = vmul.f32 %v3755, %v119
    %3768 = vrot.lane.b32.xlu0 %v3704, 16
    %v3769 = vpop.permute.xlu0 %3768
    %3770 = vrot.lane.b32.xlu0 %v3706, 16
    %v3771 = vpop.permute.xlu0 %3770
    %3772 = vrot.lane.b32.xlu0 %v3708, 16
    %v3773 = vpop.permute.xlu0 %3772
    %3774 = vrot.lane.b32.xlu0 %v3710, 16
    %v3775 = vpop.permute.xlu0 %3774
    %3776 = vrot.lane.b32.xlu0 %v3705, 16
    %v3777 = vpop.permute.xlu0 %3776
    %3778 = vrot.lane.b32.xlu0 %v3707, 16
    %v3779 = vpop.permute.xlu0 %3778
    %3780 = vrot.lane.b32.xlu0 %v3709, 16
    %v3781 = vpop.permute.xlu0 %3780
    %3782 = vrot.lane.b32.xlu0 %v3711, 16
    %v3783 = vpop.permute.xlu0 %3782
    %v3784 = vsel %vm148, %v3769, %v3777
    %v3785 = vsel %vm148, %v3771, %v3779
    %v3786 = vsel %vm148, %v3773, %v3781
    %v3787 = vsel %vm148, %v3775, %v3783
    %v3788 = vsel %vm148, %v3777, %v3769
    %v3789 = vsel %vm148, %v3779, %v3771
    %v3790 = vsel %vm148, %v3781, %v3773
    %v3791 = vsel %vm148, %v3783, %v3775
    %v3792 = vmul.f32 %v3788, %v161
    %v3793 = vmul.f32 %v3784, %v165
    %v3794 = vmul.f32 %v3789, %v161
    %v3795 = vmul.f32 %v3785, %v165
    %v3796 = vmul.f32 %v3790, %v161
    %v3797 = vmul.f32 %v3786, %v165
    %v3798 = vmul.f32 %v3791, %v161
    %v3799 = vmul.f32 %v3787, %v165
    %3800 = vrot.lane.b32.xlu0 %v3704, 15
    %v3801 = vpop.permute.xlu0 %3800
    %3802 = vrot.lane.b32.xlu0 %v3706, 15
    %v3803 = vpop.permute.xlu0 %3802
    %3804 = vrot.lane.b32.xlu0 %v3708, 15
    %v3805 = vpop.permute.xlu0 %3804
    %3806 = vrot.lane.b32.xlu0 %v3710, 15
    %v3807 = vpop.permute.xlu0 %3806
    %3808 = vrot.lane.b32.xlu0 %v3705, 15
    %v3809 = vpop.permute.xlu0 %3808
    %3810 = vrot.lane.b32.xlu0 %v3707, 15
    %v3811 = vpop.permute.xlu0 %3810
    %3812 = vrot.lane.b32.xlu0 %v3709, 15
    %v3813 = vpop.permute.xlu0 %3812
    %3814 = vrot.lane.b32.xlu0 %v3711, 15
    %v3815 = vpop.permute.xlu0 %3814
    %v3816 = vsel %vm194, %v3801, %v3809
    %v3817 = vsel %vm194, %v3803, %v3811
    %v3818 = vsel %vm194, %v3805, %v3813
    %v3819 = vsel %vm194, %v3807, %v3815
    %v3820 = vsel %vm194, %v3809, %v3801
    %v3821 = vsel %vm194, %v3811, %v3803
    %v3822 = vsel %vm194, %v3813, %v3805
    %v3823 = vsel %vm194, %v3815, %v3807
    %v3824 = vmul.f32 %v3820, %v207
    %v3825 = vmul.f32 %v3816, %v211
    %v3826 = vmul.f32 %v3821, %v207
    %v3827 = vmul.f32 %v3817, %v211
    %v3828 = vmul.f32 %v3822, %v207
    %v3829 = vmul.f32 %v3818, %v211
    %v3830 = vmul.f32 %v3823, %v207
    %v3831 = vmul.f32 %v3819, %v211
    %3832 = vrot.lane.b32.xlu0 %v3704, 1
    %v3833 = vpop.permute.xlu0 %3832
    %3834 = vrot.lane.b32.xlu0 %v3706, 1
    %v3835 = vpop.permute.xlu0 %3834
    %3836 = vrot.lane.b32.xlu0 %v3708, 1
    %v3837 = vpop.permute.xlu0 %3836
    %3838 = vrot.lane.b32.xlu0 %v3710, 1
    %v3839 = vpop.permute.xlu0 %3838
    %3840 = vrot.lane.b32.xlu0 %v3705, 1
    %v3841 = vpop.permute.xlu0 %3840
    %3842 = vrot.lane.b32.xlu0 %v3707, 1
    %v3843 = vpop.permute.xlu0 %3842
    %3844 = vrot.lane.b32.xlu0 %v3709, 1
    %v3845 = vpop.permute.xlu0 %3844
    %3846 = vrot.lane.b32.xlu0 %v3711, 1
    %v3847 = vpop.permute.xlu0 %3846
    %v3848 = vsel %vm240, %v3833, %v3841
    %v3849 = vsel %vm240, %v3835, %v3843
    %v3850 = vsel %vm240, %v3837, %v3845
    %v3851 = vsel %vm240, %v3839, %v3847
    %v3852 = vsel %vm240, %v3841, %v3833
    %v3853 = vsel %vm240, %v3843, %v3835
    %v3854 = vsel %vm240, %v3845, %v3837
    %v3855 = vsel %vm240, %v3847, %v3839
    %v3856 = vmul.f32 %v3852, %v253
    %v3857 = vmul.f32 %v3848, %v257
    %v3858 = vmul.f32 %v3853, %v253
    %v3859 = vmul.f32 %v3849, %v257
    %v3860 = vmul.f32 %v3854, %v253
    %v3861 = vmul.f32 %v3850, %v257
    %v3862 = vmul.f32 %v3855, %v253
    %v3863 = vmul.f32 %v3851, %v257
    %v3864 = vmul.f32 %v3704, %v274
    %v3865 = vmul.f32 %v3705, %v278
    %v3866 = vmul.f32 %v3706, %v274
    %v3867 = vmul.f32 %v3707, %v278
    %v3868 = vmul.f32 %v3708, %v274
    %v3869 = vmul.f32 %v3709, %v278
    %v3870 = vmul.f32 %v3710, %v274
    %v3871 = vmul.f32 %v3711, %v278
    %3872 = vrot.lane.b32.xlu0 %v3704, 127
    %v3873 = vpop.permute.xlu0 %3872
    %3874 = vrot.lane.b32.xlu0 %v3706, 127
    %v3875 = vpop.permute.xlu0 %3874
    %3876 = vrot.lane.b32.xlu0 %v3708, 127
    %v3877 = vpop.permute.xlu0 %3876
    %3878 = vrot.lane.b32.xlu0 %v3710, 127
    %v3879 = vpop.permute.xlu0 %3878
    %3880 = vrot.lane.b32.xlu0 %v3705, 127
    %v3881 = vpop.permute.xlu0 %3880
    %3882 = vrot.lane.b32.xlu0 %v3707, 127
    %v3883 = vpop.permute.xlu0 %3882
    %3884 = vrot.lane.b32.xlu0 %v3709, 127
    %v3885 = vpop.permute.xlu0 %3884
    %3886 = vrot.lane.b32.xlu0 %v3711, 127
    %v3887 = vpop.permute.xlu0 %3886
    %v3888 = vsel %vm307, %v3873, %v3881
    %v3889 = vsel %vm307, %v3875, %v3883
    %v3890 = vsel %vm307, %v3877, %v3885
    %v3891 = vsel %vm307, %v3879, %v3887
    %v3892 = vsel %vm307, %v3881, %v3873
    %v3893 = vsel %vm307, %v3883, %v3875
    %v3894 = vsel %vm307, %v3885, %v3877
    %v3895 = vsel %vm307, %v3887, %v3879
    %v3896 = vmul.f32 %v3888, %v320
    %v3897 = vmul.f32 %v3892, %v324
    %v3898 = vmul.f32 %v3889, %v320
    %v3899 = vmul.f32 %v3893, %v324
    %v3900 = vmul.f32 %v3890, %v320
    %v3901 = vmul.f32 %v3894, %v324
    %v3902 = vmul.f32 %v3891, %v320
    %v3903 = vmul.f32 %v3895, %v324
    %3904 = vrot.lane.b32.xlu0 %v3704, 113
    %v3905 = vpop.permute.xlu0 %3904
    %3906 = vrot.lane.b32.xlu0 %v3706, 113
    %v3907 = vpop.permute.xlu0 %3906
    %3908 = vrot.lane.b32.xlu0 %v3708, 113
    %v3909 = vpop.permute.xlu0 %3908
    %3910 = vrot.lane.b32.xlu0 %v3710, 113
    %v3911 = vpop.permute.xlu0 %3910
    %3912 = vrot.lane.b32.xlu0 %v3705, 113
    %v3913 = vpop.permute.xlu0 %3912
    %3914 = vrot.lane.b32.xlu0 %v3707, 113
    %v3915 = vpop.permute.xlu0 %3914
    %3916 = vrot.lane.b32.xlu0 %v3709, 113
    %v3917 = vpop.permute.xlu0 %3916
    %3918 = vrot.lane.b32.xlu0 %v3711, 113
    %v3919 = vpop.permute.xlu0 %3918
    %v3920 = vsel %vm353, %v3905, %v3913
    %v3921 = vsel %vm353, %v3907, %v3915
    %v3922 = vsel %vm353, %v3909, %v3917
    %v3923 = vsel %vm353, %v3911, %v3919
    %v3924 = vsel %vm353, %v3913, %v3905
    %v3925 = vsel %vm353, %v3915, %v3907
    %v3926 = vsel %vm353, %v3917, %v3909
    %v3927 = vsel %vm353, %v3919, %v3911
    %v3928 = vmul.f32 %v3920, %v366
    %v3929 = vmul.f32 %v3924, %v370
    %v3930 = vmul.f32 %v3921, %v366
    %v3931 = vmul.f32 %v3925, %v370
    %v3932 = vmul.f32 %v3922, %v366
    %v3933 = vmul.f32 %v3926, %v370
    %v3934 = vmul.f32 %v3923, %v366
    %v3935 = vmul.f32 %v3927, %v370
    %3936 = vrot.lane.b32.xlu0 %v3704, 112
    %v3937 = vpop.permute.xlu0 %3936
    %3938 = vrot.lane.b32.xlu0 %v3706, 112
    %v3939 = vpop.permute.xlu0 %3938
    %3940 = vrot.lane.b32.xlu0 %v3708, 112
    %v3941 = vpop.permute.xlu0 %3940
    %3942 = vrot.lane.b32.xlu0 %v3710, 112
    %v3943 = vpop.permute.xlu0 %3942
    %3944 = vrot.lane.b32.xlu0 %v3705, 112
    %v3945 = vpop.permute.xlu0 %3944
    %3946 = vrot.lane.b32.xlu0 %v3707, 112
    %v3947 = vpop.permute.xlu0 %3946
    %3948 = vrot.lane.b32.xlu0 %v3709, 112
    %v3949 = vpop.permute.xlu0 %3948
    %3950 = vrot.lane.b32.xlu0 %v3711, 112
    %v3951 = vpop.permute.xlu0 %3950
    %v3952 = vsel %vm399, %v3937, %v3945
    %v3953 = vsel %vm399, %v3939, %v3947
    %v3954 = vsel %vm399, %v3941, %v3949
    %v3955 = vsel %vm399, %v3943, %v3951
    %v3956 = vsel %vm399, %v3945, %v3937
    %v3957 = vsel %vm399, %v3947, %v3939
    %v3958 = vsel %vm399, %v3949, %v3941
    %v3959 = vsel %vm399, %v3951, %v3943
    %v3960 = vmul.f32 %v3952, %v412
    %v3961 = vmul.f32 %v3956, %v416
    %v3962 = vmul.f32 %v3953, %v412
    %v3963 = vmul.f32 %v3957, %v416
    %v3964 = vmul.f32 %v3954, %v412
    %v3965 = vmul.f32 %v3958, %v416
    %v3966 = vmul.f32 %v3955, %v412
    %v3967 = vmul.f32 %v3959, %v416
    %3968 = vrot.lane.b32.xlu0 %v3704, 111
    %v3969 = vpop.permute.xlu0 %3968
    %3970 = vrot.lane.b32.xlu0 %v3706, 111
    %v3971 = vpop.permute.xlu0 %3970
    %3972 = vrot.lane.b32.xlu0 %v3708, 111
    %v3973 = vpop.permute.xlu0 %3972
    %3974 = vrot.lane.b32.xlu0 %v3710, 111
    %v3975 = vpop.permute.xlu0 %3974
    %3976 = vrot.lane.b32.xlu0 %v3705, 111
    %v3977 = vpop.permute.xlu0 %3976
    %3978 = vrot.lane.b32.xlu0 %v3707, 111
    %v3979 = vpop.permute.xlu0 %3978
    %3980 = vrot.lane.b32.xlu0 %v3709, 111
    %v3981 = vpop.permute.xlu0 %3980
    %3982 = vrot.lane.b32.xlu0 %v3711, 111
    %v3983 = vpop.permute.xlu0 %3982
    %v3984 = vsel %vm445, %v3969, %v3977
    %v3985 = vsel %vm445, %v3971, %v3979
    %v3986 = vsel %vm445, %v3973, %v3981
    %v3987 = vsel %vm445, %v3975, %v3983
    %v3988 = vsel %vm445, %v3977, %v3969
    %v3989 = vsel %vm445, %v3979, %v3971
    %v3990 = vsel %vm445, %v3981, %v3973
    %v3991 = vsel %vm445, %v3983, %v3975
    %v3992 = vmul.f32 %v3984, %v458
    %v3993 = vmul.f32 %v3988, %v462
    %v3994 = vmul.f32 %v3985, %v458
    %v3995 = vmul.f32 %v3989, %v462
    %v3996 = vmul.f32 %v3986, %v458
    %v3997 = vmul.f32 %v3990, %v462
    %v3998 = vmul.f32 %v3987, %v458
    %v3999 = vmul.f32 %v3991, %v462
    %v4000 = vld [vmem:[%s6] sm:$0xff]
    %v4001 = vld [vmem:[%s6 + $0x8] sm:$0xff]
    %v4002 = vld [vmem:[%s6 + $0x10] sm:$0xff]
    %v4003 = vld [vmem:[%s6 + $0x18] sm:$0xff]
    %v4004 = vld [vmem:[%s6 + $0x20] sm:$0xff]
    %v4005 = vld [vmem:[%s6 + $0x28] sm:$0xff]
    %v4006 = vld [vmem:[%s6 + $0x30] sm:$0xff]
    %v4007 = vld [vmem:[%s6 + $0x38] sm:$0xff]
    %v4008 = vld [vmem:[%s6 + $0x40] sm:$0xff]
    %v4009 = vld [vmem:[%s6 + $0x48] sm:$0xff]
    %v4010 = vld [vmem:[%s6 + $0x50] sm:$0xff]
    %v4011 = vld [vmem:[%s6 + $0x58] sm:$0xff]
    %v4012 = vld [vmem:[%s7] sm:$0xff]
    %v4013 = vld [vmem:[%s7 + $0x8] sm:$0xff]
    %v4014 = vld [vmem:[%s7 + $0x10] sm:$0xff]
    %v4015 = vld [vmem:[%s7 + $0x18] sm:$0xff]
    %4017 = vset.pattern.permute.xlu0 0
    %4018 = vperm.xlu0 %4017, %v4012
    %v4019 = vpop.permute.xlu0 %4018
    %4022 = vset.pattern.permute.xlu0 0
    %4023 = vperm.xlu0 %4022, %v4013
    %v4024 = vpop.permute.xlu0 %4023
    %4027 = vset.pattern.permute.xlu0 0
    %4028 = vperm.xlu0 %4027, %v4014
    %v4029 = vpop.permute.xlu0 %4028
    %4032 = vset.pattern.permute.xlu0 0
    %4033 = vperm.xlu0 %4032, %v4015
    %v4034 = vpop.permute.xlu0 %4033
    %v4037 = vsel %vm509, %v4002, 0
    %v4040 = vsel %vm509, %v4005, 0
    %v4043 = vsel %vm509, %v4008, 0
    %v4046 = vsel %vm509, %v4011, 0
    %4048 = vmatprep.subr.mxu0 %v3761
    %4049 = vmatpush1.msra.mxu0 %v3760
    %4050 = vmatprep.subr.mxu0 %v3763
    %4051 = vmatpush1.msra.mxu0 %v3762
    %4052 = vmatprep.subr.mxu0 %v3765
    %4053 = vmatpush1.msra.mxu0 %v3764
    %4054 = vmatprep.subr.mxu0 %v3767
    %4055 = vmatpush1.msra.mxu0 %v3766
    %4056 = vmatprep.subr.mxu0 %v3793
    %4057 = vmatpush1.msra.mxu0 %v3792
    %4058 = vmatprep.subr.mxu0 %v3795
    %4059 = vmatpush1.msra.mxu0 %v3794
    %4060 = vmatprep.subr.mxu0 %v3797
    %4061 = vmatpush1.msra.mxu0 %v3796
    %4062 = vmatprep.subr.mxu0 %v3799
    %4063 = vmatpush1.msra.mxu0 %v3798
    %4064 = vmatprep.subr.mxu0 %v3825
    %4065 = vmatpush1.msra.mxu0 %v3824
    %4066 = vmatprep.subr.mxu0 %v3827
    %4067 = vmatpush1.msra.mxu0 %v3826
    %4068 = vmatprep.subr.mxu0 %v3829
    %4069 = vmatpush1.msra.mxu0 %v3828
    %4070 = vmatprep.subr.mxu0 %v3831
    %4071 = vmatpush1.msra.mxu0 %v3830
    %4072 = vmatprep.subr.mxu0 %v3857
    %4073 = vmatpush1.msra.mxu0 %v3856
    %4074 = vmatprep.subr.mxu0 %v3859
    %4075 = vmatpush1.msra.mxu0 %v3858
    %4076 = vmatprep.subr.mxu0 %v3861
    %4077 = vmatpush1.msra.mxu0 %v3860
    %4078 = vmatprep.subr.mxu0 %v3863
    %4079 = vmatpush1.msra.mxu0 %v3862
    %4080 = vmatprep.subr.mxu0 %v3865
    %4081 = vmatpush1.msra.mxu0 %v3864
    %4082 = vmatprep.subr.mxu0 %v3867
    %4083 = vmatpush1.msra.mxu0 %v3866
    %4084 = vmatprep.subr.mxu0 %v3869
    %4085 = vmatpush1.msra.mxu0 %v3868
    %4086 = vmatprep.subr.mxu0 %v3871
    %4087 = vmatpush1.msra.mxu0 %v3870
    %4088 = vmatprep.subr.mxu0 %v3897
    %4089 = vmatpush1.msra.mxu0 %v3896
    %4090 = vmatprep.subr.mxu0 %v3899
    %4091 = vmatpush1.msra.mxu0 %v3898
    %4092 = vmatprep.subr.mxu0 %v3901
    %4093 = vmatpush1.msra.mxu0 %v3900
    %4094 = vmatprep.subr.mxu0 %v3903
    %4095 = vmatpush1.msra.mxu0 %v3902
    %4096 = vmatprep.subr.mxu0 %v3929
    %4097 = vmatpush1.msra.mxu0 %v3928
    %4098 = vmatprep.subr.mxu0 %v3931
    %4099 = vmatpush1.msra.mxu0 %v3930
    %4100 = vmatprep.subr.mxu0 %v3933
    %4101 = vmatpush1.msra.mxu0 %v3932
    %4102 = vmatprep.subr.mxu0 %v3935
    %4103 = vmatpush1.msra.mxu0 %v3934
    %4104 = vmatprep.subr.mxu0 %v3961
    %4105 = vmatpush1.msra.mxu0 %v3960
    %4106 = vmatprep.subr.mxu0 %v3963
    %4107 = vmatpush1.msra.mxu0 %v3962
    %4108 = vmatprep.subr.mxu0 %v3965
    %4109 = vmatpush1.msra.mxu0 %v3964
    %4110 = vmatprep.subr.mxu0 %v3967
    %4111 = vmatpush1.msra.mxu0 %v3966
    %4112 = vmatprep.mubr.f32.mxu0 %v4001
    %4113 = vmatmul.mubr.f32.gmra.mrb[0].mxu0 %v4000
    %v4114 = vpop.f32.mrb[0].mxu0
    %v4115 = vadd.f32 %v4019, %v4114
    %v4116 = vpop.f32.mrb[0].mxu0
    %v4117 = vadd.f32 %v4019, %v4116
    %4118 = vmatprep.mubr.f32.mxu0 %v4004
    %4119 = vmatmul.mubr.f32.gmra.mrb[0].mxu0 %v4003
    %v4120 = vpop.f32.mrb[0].mxu0
    %v4121 = vadd.f32 %v4024, %v4120
    %v4122 = vpop.f32.mrb[0].mxu0
    %v4123 = vadd.f32 %v4024, %v4122
    %4124 = vmatprep.mubr.f32.mxu0 %v4007
    %4125 = vmatmul.mubr.f32.gmra.mrb[0].mxu0 %v4006
    %v4126 = vpop.f32.mrb[0].mxu0
    %v4127 = vadd.f32 %v4029, %v4126
    %v4128 = vpop.f32.mrb[0].mxu0
    %v4129 = vadd.f32 %v4029, %v4128
    %4130 = vmatprep.mubr.f32.mxu0 %v4010
    %4131 = vmatmul.mubr.f32.gmra.mrb[0].mxu0 %v4009
    %v4132 = vpop.f32.mrb[0].mxu0
    %v4133 = vadd.f32 %v4034, %v4132
    %v4134 = vpop.f32.mrb[0].mxu0
    %v4135 = vadd.f32 %v4034, %v4134
    %4136 = vdwg.mxu0
    %4137 = vmatprep.subr.mxu0 %v3993
    %4138 = vmatpush1.msra.mxu0 %v3992
    %4139 = vmatprep.subr.mxu0 %v3995
    %4140 = vmatpush1.msra.mxu0 %v3994
    %4141 = vmatprep.subr.mxu0 %v3997
    %4142 = vmatpush1.msra.mxu0 %v3996
    %4143 = vmatprep.subr.mxu0 %v3999
    %4144 = vmatpush1.msra.mxu0 %v3998
    %4145 = vmatprep.subr.mxu0 0.0
    %4146 = vmatpush1.msra.mxu0 0.0
    %4147 = vmatprep.subr.mxu0 0.0
    %4148 = vmatpush1.msra.mxu0 0.0
    %4149 = vmatprep.subr.mxu0 0.0
    %4150 = vmatpush1.msra.mxu0 0.0
    %4151 = vmatprep.subr.mxu0 0.0
    %4152 = vmatpush1.msra.mxu0 0.0
    %4153 = vmatprep.subr.mxu0 0.0
    %4154 = vmatpush1.msra.mxu0 0.0
    %4155 = vmatprep.subr.mxu0 0.0
    %4156 = vmatpush1.msra.mxu0 0.0
    %4157 = vmatprep.subr.mxu0 0.0
    %4158 = vmatpush1.msra.mxu0 0.0
    %4159 = vmatprep.subr.mxu0 0.0
    %4160 = vmatpush1.msra.mxu0 0.0
    %4161 = vmatprep.subr.mxu0 0.0
    %4162 = vmatpush1.msra.mxu0 0.0
    %4163 = vmatprep.subr.mxu0 0.0
    %4164 = vmatpush1.msra.mxu0 0.0
    %4165 = vmatprep.subr.mxu0 0.0
    %4166 = vmatpush1.msra.mxu0 0.0
    %4167 = vmatprep.subr.mxu0 0.0
    %4168 = vmatpush1.msra.mxu0 0.0
    %4169 = vmatprep.subr.mxu0 0.0
    %4170 = vmatpush1.msra.mxu0 0.0
    %4171 = vmatprep.subr.mxu0 0.0
    %4172 = vmatpush1.msra.mxu0 0.0
    %4173 = vmatprep.subr.mxu0 0.0
    %4174 = vmatpush1.msra.mxu0 0.0
    %4175 = vmatprep.subr.mxu0 0.0
    %4176 = vmatpush1.msra.mxu0 0.0
    %4177 = vmatprep.subr.mxu0 0.0
    %4178 = vmatpush1.msra.mxu0 0.0
    %4179 = vmatprep.subr.mxu0 0.0
    %4180 = vmatpush1.msra.mxu0 0.0
    %4181 = vmatprep.subr.mxu0 0.0
    %4182 = vmatpush1.msra.mxu0 0.0
    %4183 = vmatprep.subr.mxu0 0.0
    %4184 = vmatpush1.msra.mxu0 0.0
    %4185 = vmatprep.subr.mxu0 0.0
    %4186 = vmatpush1.msra.mxu0 0.0
    %4187 = vmatprep.subr.mxu0 0.0
    %4188 = vmatpush1.msra.mxu0 0.0
    %4189 = vmatprep.subr.mxu0 0.0
    %4190 = vmatpush1.msra.mxu0 0.0
    %4191 = vmatprep.subr.mxu0 0.0
    %4192 = vmatpush1.msra.mxu0 0.0
    %4193 = vmatprep.subr.mxu0 0.0
    %4194 = vmatpush1.msra.mxu0 0.0
    %4195 = vmatprep.subr.mxu0 0.0
    %4196 = vmatpush1.msra.mxu0 0.0
    %4197 = vmatprep.subr.mxu0 0.0
    %4198 = vmatpush1.msra.mxu0 0.0
    %4199 = vmatprep.subr.mxu0 0.0
    %4200 = vmatpush1.msra.mxu0 0.0
    %4201 = vmatprep.mubr.f32.mxu0 0.0
    %4202 = vmatmul.mubr.f32.gmra.mrb[0].mxu0 %v4037
    %v4203 = vpop.f32.mrb[0].mxu0
    %v4204 = vadd.f32 %v4115, %v4203
    %v4205 = vpop.f32.mrb[0].mxu0
    %v4206 = vadd.f32 %v4117, %v4205
    %4207 = vmatprep.mubr.f32.mxu0 0.0
    %4208 = vmatmul.mubr.f32.gmra.mrb[0].mxu0 %v4040
    %v4209 = vpop.f32.mrb[0].mxu0
    %v4210 = vadd.f32 %v4121, %v4209
    %v4211 = vpop.f32.mrb[0].mxu0
    %v4212 = vadd.f32 %v4123, %v4211
    %4213 = vmatprep.mubr.f32.mxu0 0.0
    %4214 = vmatmul.mubr.f32.gmra.mrb[0].mxu0 %v4043
    %v4215 = vpop.f32.mrb[0].mxu0
    %v4216 = vadd.f32 %v4127, %v4215
    %v4217 = vpop.f32.mrb[0].mxu0
    %v4218 = vadd.f32 %v4129, %v4217
    %4219 = vmatprep.mubr.f32.mxu0 0.0
    %4220 = vmatmul.mubr.f32.gmra.mrb[0].mxu0 %v4046
    %v4221 = vpop.f32.mrb[0].mxu0
    %v4222 = vadd.f32 %v4133, %v4221
    %v4223 = vpop.f32.mrb[0].mxu0
    %v4224 = vadd.f32 %v4135, %v4223
    %4225 = vdwg.mxu0
    %v4226 = vmax.f32 %v4204, 0.0
    %v4227 = vmax.f32 %v4206, 0.0
    %v4228 = vmax.f32 %v4210, 0.0
    %v4229 = vmax.f32 %v4212, 0.0
    %v4230 = vmax.f32 %v4216, 0.0
    %v4231 = vmax.f32 %v4218, 0.0
    %v4232 = vmax.f32 %v4222, 0.0
    %v4233 = vmax.f32 %v4224, 0.0
    %4234 = vrot.lane.b32.xlu0 %v3728, 17
    %v4235 = vpop.permute.xlu0 %4234
    %4236 = vrot.lane.b32.xlu0 %v3730, 17
    %v4237 = vpop.permute.xlu0 %4236
    %4238 = vrot.lane.b32.xlu0 %v3732, 17
    %v4239 = vpop.permute.xlu0 %4238
    %4240 = vrot.lane.b32.xlu0 %v3734, 17
    %v4241 = vpop.permute.xlu0 %4240
    %4242 = vrot.lane.b32.xlu0 %v3729, 17
    %v4243 = vpop.permute.xlu0 %4242
    %4244 = vrot.lane.b32.xlu0 %v3731, 17
    %v4245 = vpop.permute.xlu0 %4244
    %4246 = vrot.lane.b32.xlu0 %v3733, 17
    %v4247 = vpop.permute.xlu0 %4246
    %4248 = vrot.lane.b32.xlu0 %v3735, 17
    %v4249 = vpop.permute.xlu0 %4248
    %v4250 = vsel %vm102, %v4235, %v4243
    %v4251 = vsel %vm102, %v4237, %v4245
    %v4252 = vsel %vm102, %v4239, %v4247
    %v4253 = vsel %vm102, %v4241, %v4249
    %v4254 = vsel %vm102, %v4243, %v4235
    %v4255 = vsel %vm102, %v4245, %v4237
    %v4256 = vsel %vm102, %v4247, %v4239
    %v4257 = vsel %vm102, %v4249, %v4241
    %v4258 = vmul.f32 %v4254, %v115
    %v4259 = vmul.f32 %v4250, %v119
    %v4260 = vmul.f32 %v4255, %v115
    %v4261 = vmul.f32 %v4251, %v119
    %v4262 = vmul.f32 %v4256, %v115
    %v4263 = vmul.f32 %v4252, %v119
    %v4264 = vmul.f32 %v4257, %v115
    %v4265 = vmul.f32 %v4253, %v119
    %4266 = vrot.lane.b32.xlu0 %v3728, 16
    %v4267 = vpop.permute.xlu0 %4266
    %4268 = vrot.lane.b32.xlu0 %v3730, 16
    %v4269 = vpop.permute.xlu0 %4268
    %4270 = vrot.lane.b32.xlu0 %v3732, 16
    %v4271 = vpop.permute.xlu0 %4270
    %4272 = vrot.lane.b32.xlu0 %v3734, 16
    %v4273 = vpop.permute.xlu0 %4272
    %4274 = vrot.lane.b32.xlu0 %v3729, 16
    %v4275 = vpop.permute.xlu0 %4274
    %4276 = vrot.lane.b32.xlu0 %v3731, 16
    %v4277 = vpop.permute.xlu0 %4276
    %4278 = vrot.lane.b32.xlu0 %v3733, 16
    %v4279 = vpop.permute.xlu0 %4278
    %4280 = vrot.lane.b32.xlu0 %v3735, 16
    %v4281 = vpop.permute.xlu0 %4280
    %v4282 = vsel %vm148, %v4267, %v4275
    %v4283 = vsel %vm148, %v4269, %v4277
    %v4284 = vsel %vm148, %v4271, %v4279
    %v4285 = vsel %vm148, %v4273, %v4281
    %v4286 = vsel %vm148, %v4275, %v4267
    %v4287 = vsel %vm148, %v4277, %v4269
    %v4288 = vsel %vm148, %v4279, %v4271
    %v4289 = vsel %vm148, %v4281, %v4273
    %v4290 = vmul.f32 %v4286, %v161
    %v4291 = vmul.f32 %v4282, %v165
    %v4292 = vmul.f32 %v4287, %v161
    %v4293 = vmul.f32 %v4283, %v165
    %v4294 = vmul.f32 %v4288, %v161
    %v4295 = vmul.f32 %v4284, %v165
    %v4296 = vmul.f32 %v4289, %v161
    %v4297 = vmul.f32 %v4285, %v165
    %4298 = vrot.lane.b32.xlu0 %v3728, 15
    %v4299 = vpop.permute.xlu0 %4298
    %4300 = vrot.lane.b32.xlu0 %v3730, 15
    %v4301 = vpop.permute.xlu0 %4300
    %4302 = vrot.lane.b32.xlu0 %v3732, 15
    %v4303 = vpop.permute.xlu0 %4302
    %4304 = vrot.lane.b32.xlu0 %v3734, 15
    %v4305 = vpop.permute.xlu0 %4304
    %4306 = vrot.lane.b32.xlu0 %v3729, 15
    %v4307 = vpop.permute.xlu0 %4306
    %4308 = vrot.lane.b32.xlu0 %v3731, 15
    %v4309 = vpop.permute.xlu0 %4308
    %4310 = vrot.lane.b32.xlu0 %v3733, 15
    %v4311 = vpop.permute.xlu0 %4310
    %4312 = vrot.lane.b32.xlu0 %v3735, 15
    %v4313 = vpop.permute.xlu0 %4312
    %v4314 = vsel %vm194, %v4299, %v4307
    %v4315 = vsel %vm194, %v4301, %v4309
    %v4316 = vsel %vm194, %v4303, %v4311
    %v4317 = vsel %vm194, %v4305, %v4313
    %v4318 = vsel %vm194, %v4307, %v4299
    %v4319 = vsel %vm194, %v4309, %v4301
    %v4320 = vsel %vm194, %v4311, %v4303
    %v4321 = vsel %vm194, %v4313, %v4305
    %v4322 = vmul.f32 %v4318, %v207
    %v4323 = vmul.f32 %v4314, %v211
    %v4324 = vmul.f32 %v4319, %v207
    %v4325 = vmul.f32 %v4315, %v211
    %v4326 = vmul.f32 %v4320, %v207
    %v4327 = vmul.f32 %v4316, %v211
    %v4328 = vmul.f32 %v4321, %v207
    %v4329 = vmul.f32 %v4317, %v211
    %4330 = vrot.lane.b32.xlu0 %v3728, 1
    %v4331 = vpop.permute.xlu0 %4330
    %4332 = vrot.lane.b32.xlu0 %v3730, 1
    %v4333 = vpop.permute.xlu0 %4332
    %4334 = vrot.lane.b32.xlu0 %v3732, 1
    %v4335 = vpop.permute.xlu0 %4334
    %4336 = vrot.lane.b32.xlu0 %v3734, 1
    %v4337 = vpop.permute.xlu0 %4336
    %4338 = vrot.lane.b32.xlu0 %v3729, 1
    %v4339 = vpop.permute.xlu0 %4338
    %4340 = vrot.lane.b32.xlu0 %v3731, 1
    %v4341 = vpop.permute.xlu0 %4340
    %4342 = vrot.lane.b32.xlu0 %v3733, 1
    %v4343 = vpop.permute.xlu0 %4342
    %4344 = vrot.lane.b32.xlu0 %v3735, 1
    %v4345 = vpop.permute.xlu0 %4344
    %v4346 = vsel %vm240, %v4331, %v4339
    %v4347 = vsel %vm240, %v4333, %v4341
    %v4348 = vsel %vm240, %v4335, %v4343
    %v4349 = vsel %vm240, %v4337, %v4345
    %v4350 = vsel %vm240, %v4339, %v4331
    %v4351 = vsel %vm240, %v4341, %v4333
    %v4352 = vsel %vm240, %v4343, %v4335
    %v4353 = vsel %vm240, %v4345, %v4337
    %v4354 = vmul.f32 %v4350, %v253
    %v4355 = vmul.f32 %v4346, %v257
    %v4356 = vmul.f32 %v4351, %v253
    %v4357 = vmul.f32 %v4347, %v257
    %v4358 = vmul.f32 %v4352, %v253
    %v4359 = vmul.f32 %v4348, %v257
    %v4360 = vmul.f32 %v4353, %v253
    %v4361 = vmul.f32 %v4349, %v257
    %v4362 = vmul.f32 %v3728, %v274
    %v4363 = vmul.f32 %v3729, %v278
    %v4364 = vmul.f32 %v3730, %v274
    %v4365 = vmul.f32 %v3731, %v278
    %v4366 = vmul.f32 %v3732, %v274
    %v4367 = vmul.f32 %v3733, %v278
    %v4368 = vmul.f32 %v3734, %v274
    %v4369 = vmul.f32 %v3735, %v278
    %4370 = vrot.lane.b32.xlu0 %v3728, 127
    %v4371 = vpop.permute.xlu0 %4370
    %4372 = vrot.lane.b32.xlu0 %v3730, 127
    %v4373 = vpop.permute.xlu0 %4372
    %4374 = vrot.lane.b32.xlu0 %v3732, 127
    %v4375 = vpop.permute.xlu0 %4374
    %4376 = vrot.lane.b32.xlu0 %v3734, 127
    %v4377 = vpop.permute.xlu0 %4376
    %4378 = vrot.lane.b32.xlu0 %v3729, 127
    %v4379 = vpop.permute.xlu0 %4378
    %4380 = vrot.lane.b32.xlu0 %v3731, 127
    %v4381 = vpop.permute.xlu0 %4380
    %4382 = vrot.lane.b32.xlu0 %v3733, 127
    %v4383 = vpop.permute.xlu0 %4382
    %4384 = vrot.lane.b32.xlu0 %v3735, 127
    %v4385 = vpop.permute.xlu0 %4384
    %v4386 = vsel %vm307, %v4371, %v4379
    %v4387 = vsel %vm307, %v4373, %v4381
    %v4388 = vsel %vm307, %v4375, %v4383
    %v4389 = vsel %vm307, %v4377, %v4385
    %v4390 = vsel %vm307, %v4379, %v4371
    %v4391 = vsel %vm307, %v4381, %v4373
    %v4392 = vsel %vm307, %v4383, %v4375
    %v4393 = vsel %vm307, %v4385, %v4377
    %v4394 = vmul.f32 %v4386, %v320
    %v4395 = vmul.f32 %v4390, %v324
    %v4396 = vmul.f32 %v4387, %v320
    %v4397 = vmul.f32 %v4391, %v324
    %v4398 = vmul.f32 %v4388, %v320
    %v4399 = vmul.f32 %v4392, %v324
    %v4400 = vmul.f32 %v4389, %v320
    %v4401 = vmul.f32 %v4393, %v324
    %4402 = vrot.lane.b32.xlu0 %v3728, 113
    %v4403 = vpop.permute.xlu0 %4402
    %4404 = vrot.lane.b32.xlu0 %v3730, 113
    %v4405 = vpop.permute.xlu0 %4404
    %4406 = vrot.lane.b32.xlu0 %v3732, 113
    %v4407 = vpop.permute.xlu0 %4406
    %4408 = vrot.lane.b32.xlu0 %v3734, 113
    %v4409 = vpop.permute.xlu0 %4408
    %4410 = vrot.lane.b32.xlu0 %v3729, 113
    %v4411 = vpop.permute.xlu0 %4410
    %4412 = vrot.lane.b32.xlu0 %v3731, 113
    %v4413 = vpop.permute.xlu0 %4412
    %4414 = vrot.lane.b32.xlu0 %v3733, 113
    %v4415 = vpop.permute.xlu0 %4414
    %4416 = vrot.lane.b32.xlu0 %v3735, 113
    %v4417 = vpop.permute.xlu0 %4416
    %v4418 = vsel %vm353, %v4403, %v4411
    %v4419 = vsel %vm353, %v4405, %v4413
    %v4420 = vsel %vm353, %v4407, %v4415
    %v4421 = vsel %vm353, %v4409, %v4417
    %v4422 = vsel %vm353, %v4411, %v4403
    %v4423 = vsel %vm353, %v4413, %v4405
    %v4424 = vsel %vm353, %v4415, %v4407
    %v4425 = vsel %vm353, %v4417, %v4409
    %v4426 = vmul.f32 %v4418, %v366
    %v4427 = vmul.f32 %v4422, %v370
    %v4428 = vmul.f32 %v4419, %v366
    %v4429 = vmul.f32 %v4423, %v370
    %v4430 = vmul.f32 %v4420, %v366
    %v4431 = vmul.f32 %v4424, %v370
    %v4432 = vmul.f32 %v4421, %v366
    %v4433 = vmul.f32 %v4425, %v370
    %4434 = vrot.lane.b32.xlu0 %v3728, 112
    %v4435 = vpop.permute.xlu0 %4434
    %4436 = vrot.lane.b32.xlu0 %v3730, 112
    %v4437 = vpop.permute.xlu0 %4436
    %4438 = vrot.lane.b32.xlu0 %v3732, 112
    %v4439 = vpop.permute.xlu0 %4438
    %4440 = vrot.lane.b32.xlu0 %v3734, 112
    %v4441 = vpop.permute.xlu0 %4440
    %4442 = vrot.lane.b32.xlu0 %v3729, 112
    %v4443 = vpop.permute.xlu0 %4442
    %4444 = vrot.lane.b32.xlu0 %v3731, 112
    %v4445 = vpop.permute.xlu0 %4444
    %4446 = vrot.lane.b32.xlu0 %v3733, 112
    %v4447 = vpop.permute.xlu0 %4446
    %4448 = vrot.lane.b32.xlu0 %v3735, 112
    %v4449 = vpop.permute.xlu0 %4448
    %v4450 = vsel %vm399, %v4435, %v4443
    %v4451 = vsel %vm399, %v4437, %v4445
    %v4452 = vsel %vm399, %v4439, %v4447
    %v4453 = vsel %vm399, %v4441, %v4449
    %v4454 = vsel %vm399, %v4443, %v4435
    %v4455 = vsel %vm399, %v4445, %v4437
    %v4456 = vsel %vm399, %v4447, %v4439
    %v4457 = vsel %vm399, %v4449, %v4441
    %v4458 = vmul.f32 %v4450, %v412
    %v4459 = vmul.f32 %v4454, %v416
    %v4460 = vmul.f32 %v4451, %v412
    %v4461 = vmul.f32 %v4455, %v416
    %v4462 = vmul.f32 %v4452, %v412
    %v4463 = vmul.f32 %v4456, %v416
    %v4464 = vmul.f32 %v4453, %v412
    %v4465 = vmul.f32 %v4457, %v416
    %4466 = vrot.lane.b32.xlu0 %v3728, 111
    %v4467 = vpop.permute.xlu0 %4466
    %4468 = vrot.lane.b32.xlu0 %v3730, 111
    %v4469 = vpop.permute.xlu0 %4468
    %4470 = vrot.lane.b32.xlu0 %v3732, 111
    %v4471 = vpop.permute.xlu0 %4470
    %4472 = vrot.lane.b32.xlu0 %v3734, 111
    %v4473 = vpop.permute.xlu0 %4472
    %4474 = vrot.lane.b32.xlu0 %v3729, 111
    %v4475 = vpop.permute.xlu0 %4474
    %4476 = vrot.lane.b32.xlu0 %v3731, 111
    %v4477 = vpop.permute.xlu0 %4476
    %4478 = vrot.lane.b32.xlu0 %v3733, 111
    %v4479 = vpop.permute.xlu0 %4478
    %4480 = vrot.lane.b32.xlu0 %v3735, 111
    %v4481 = vpop.permute.xlu0 %4480
    %v4482 = vsel %vm445, %v4467, %v4475
    %v4483 = vsel %vm445, %v4469, %v4477
    %v4484 = vsel %vm445, %v4471, %v4479
    %v4485 = vsel %vm445, %v4473, %v4481
    %v4486 = vsel %vm445, %v4475, %v4467
    %v4487 = vsel %vm445, %v4477, %v4469
    %v4488 = vsel %vm445, %v4479, %v4471
    %v4489 = vsel %vm445, %v4481, %v4473
    %v4490 = vmul.f32 %v4482, %v458
    %v4491 = vmul.f32 %v4486, %v462
    %v4492 = vmul.f32 %v4483, %v458
    %v4493 = vmul.f32 %v4487, %v462
    %v4494 = vmul.f32 %v4484, %v458
    %v4495 = vmul.f32 %v4488, %v462
    %v4496 = vmul.f32 %v4485, %v458
    %v4497 = vmul.f32 %v4489, %v462
    %4498 = vmatprep.subr.mxu0 %v4259
    %4499 = vmatpush1.msra.mxu0 %v4258
    %4500 = vmatprep.subr.mxu0 %v4261
    %4501 = vmatpush1.msra.mxu0 %v4260
    %4502 = vmatprep.subr.mxu0 %v4263
    %4503 = vmatpush1.msra.mxu0 %v4262
    %4504 = vmatprep.subr.mxu0 %v4265
    %4505 = vmatpush1.msra.mxu0 %v4264
    %4506 = vmatprep.subr.mxu0 %v4291
    %4507 = vmatpush1.msra.mxu0 %v4290
    %4508 = vmatprep.subr.mxu0 %v4293
    %4509 = vmatpush1.msra.mxu0 %v4292
    %4510 = vmatprep.subr.mxu0 %v4295
    %4511 = vmatpush1.msra.mxu0 %v4294
    %4512 = vmatprep.subr.mxu0 %v4297
    %4513 = vmatpush1.msra.mxu0 %v4296
    %4514 = vmatprep.subr.mxu0 %v4323
    %4515 = vmatpush1.msra.mxu0 %v4322
    %4516 = vmatprep.subr.mxu0 %v4325
    %4517 = vmatpush1.msra.mxu0 %v4324
    %4518 = vmatprep.subr.mxu0 %v4327
    %4519 = vmatpush1.msra.mxu0 %v4326
    %4520 = vmatprep.subr.mxu0 %v4329
    %4521 = vmatpush1.msra.mxu0 %v4328
    %4522 = vmatprep.subr.mxu0 %v4355
    %4523 = vmatpush1.msra.mxu0 %v4354
    %4524 = vmatprep.subr.mxu0 %v4357
    %4525 = vmatpush1.msra.mxu0 %v4356
    %4526 = vmatprep.subr.mxu0 %v4359
    %4527 = vmatpush1.msra.mxu0 %v4358
    %4528 = vmatprep.subr.mxu0 %v4361
    %4529 = vmatpush1.msra.mxu0 %v4360
    %4530 = vmatprep.subr.mxu0 %v4363
    %4531 = vmatpush1.msra.mxu0 %v4362
    %4532 = vmatprep.subr.mxu0 %v4365
    %4533 = vmatpush1.msra.mxu0 %v4364
    %4534 = vmatprep.subr.mxu0 %v4367
    %4535 = vmatpush1.msra.mxu0 %v4366
    %4536 = vmatprep.subr.mxu0 %v4369
    %4537 = vmatpush1.msra.mxu0 %v4368
    %4538 = vmatprep.subr.mxu0 %v4395
    %4539 = vmatpush1.msra.mxu0 %v4394
    %4540 = vmatprep.subr.mxu0 %v4397
    %4541 = vmatpush1.msra.mxu0 %v4396
    %4542 = vmatprep.subr.mxu0 %v4399
    %4543 = vmatpush1.msra.mxu0 %v4398
    %4544 = vmatprep.subr.mxu0 %v4401
    %4545 = vmatpush1.msra.mxu0 %v4400
    %4546 = vmatprep.subr.mxu0 %v4427
    %4547 = vmatpush1.msra.mxu0 %v4426
    %4548 = vmatprep.subr.mxu0 %v4429
    %4549 = vmatpush1.msra.mxu0 %v4428
    %4550 = vmatprep.subr.mxu0 %v4431
    %4551 = vmatpush1.msra.mxu0 %v4430
    %4552 = vmatprep.subr.mxu0 %v4433
    %4553 = vmatpush1.msra.mxu0 %v4432
    %4554 = vmatprep.subr.mxu0 %v4459
    %4555 = vmatpush1.msra.mxu0 %v4458
    %4556 = vmatprep.subr.mxu0 %v4461
    %4557 = vmatpush1.msra.mxu0 %v4460
    %4558 = vmatprep.subr.mxu0 %v4463
    %4559 = vmatpush1.msra.mxu0 %v4462
    %4560 = vmatprep.subr.mxu0 %v4465
    %4561 = vmatpush1.msra.mxu0 %v4464
    %4562 = vmatprep.mubr.f32.mxu0 %v4001
    %4563 = vmatmul.mubr.f32.gmra.mrb[0].mxu0 %v4000
    %v4564 = vpop.f32.mrb[0].mxu0
    %v4565 = vadd.f32 %v4019, %v4564
    %v4566 = vpop.f32.mrb[0].mxu0
    %v4567 = vadd.f32 %v4019, %v4566
    %4568 = vmatprep.mubr.f32.mxu0 %v4004
    %4569 = vmatmul.mubr.f32.gmra.mrb[0].mxu0 %v4003
    %v4570 = vpop.f32.mrb[0].mxu0
    %v4571 = vadd.f32 %v4024, %v4570
    %v4572 = vpop.f32.mrb[0].mxu0
    %v4573 = vadd.f32 %v4024, %v4572
    %4574 = vmatprep.mubr.f32.mxu0 %v4007
    %4575 = vmatmul.mubr.f32.gmra.mrb[0].mxu0 %v4006
    %v4576 = vpop.f32.mrb[0].mxu0
    %v4577 = vadd.f32 %v4029, %v4576
    %v4578 = vpop.f32.mrb[0].mxu0
    %v4579 = vadd.f32 %v4029, %v4578
    %4580 = vmatprep.mubr.f32.mxu0 %v4010
    %4581 = vmatmul.mubr.f32.gmra.mrb[0].mxu0 %v4009
    %v4582 = vpop.f32.mrb[0].mxu0
    %v4583 = vadd.f32 %v4034, %v4582
    %v4584 = vpop.f32.mrb[0].mxu0
    %v4585 = vadd.f32 %v4034, %v4584
    %4586 = vdwg.mxu0
    %4587 = vmatprep.subr.mxu0 %v4491
    %4588 = vmatpush1.msra.mxu0 %v4490
    %4589 = vmatprep.subr.mxu0 %v4493
    %4590 = vmatpush1.msra.mxu0 %v4492
    %4591 = vmatprep.subr.mxu0 %v4495
    %4592 = vmatpush1.msra.mxu0 %v4494
    %4593 = vmatprep.subr.mxu0 %v4497
    %4594 = vmatpush1.msra.mxu0 %v4496
    %4595 = vmatprep.subr.mxu0 0.0
    %4596 = vmatpush1.msra.mxu0 0.0
    %4597 = vmatprep.subr.mxu0 0.0
    %4598 = vmatpush1.msra.mxu0 0.0
    %4599 = vmatprep.subr.mxu0 0.0
    %4600 = vmatpush1.msra.mxu0 0.0
    %4601 = vmatprep.subr.mxu0 0.0
    %4602 = vmatpush1.msra.mxu0 0.0
    %4603 = vmatprep.subr.mxu0 0.0
    %4604 = vmatpush1.msra.mxu0 0.0
    %4605 = vmatprep.subr.mxu0 0.0
    %4606 = vmatpush1.msra.mxu0 0.0
    %4607 = vmatprep.subr.mxu0 0.0
    %4608 = vmatpush1.msra.mxu0 0.0
    %4609 = vmatprep.subr.mxu0 0.0
    %4610 = vmatpush1.msra.mxu0 0.0
    %4611 = vmatprep.subr.mxu0 0.0
    %4612 = vmatpush1.msra.mxu0 0.0
    %4613 = vmatprep.subr.mxu0 0.0
    %4614 = vmatpush1.msra.mxu0 0.0
    %4615 = vmatprep.subr.mxu0 0.0
    %4616 = vmatpush1.msra.mxu0 0.0
    %4617 = vmatprep.subr.mxu0 0.0
    %4618 = vmatpush1.msra.mxu0 0.0
    %4619 = vmatprep.subr.mxu0 0.0
    %4620 = vmatpush1.msra.mxu0 0.0
    %4621 = vmatprep.subr.mxu0 0.0
    %4622 = vmatpush1.msra.mxu0 0.0
    %4623 = vmatprep.subr.mxu0 0.0
    %4624 = vmatpush1.msra.mxu0 0.0
    %4625 = vmatprep.subr.mxu0 0.0
    %4626 = vmatpush1.msra.mxu0 0.0
    %4627 = vmatprep.subr.mxu0 0.0
    %4628 = vmatpush1.msra.mxu0 0.0
    %4629 = vmatprep.subr.mxu0 0.0
    %4630 = vmatpush1.msra.mxu0 0.0
    %4631 = vmatprep.subr.mxu0 0.0
    %4632 = vmatpush1.msra.mxu0 0.0
    %4633 = vmatprep.subr.mxu0 0.0
    %4634 = vmatpush1.msra.mxu0 0.0
    %4635 = vmatprep.subr.mxu0 0.0
    %4636 = vmatpush1.msra.mxu0 0.0
    %4637 = vmatprep.subr.mxu0 0.0
    %4638 = vmatpush1.msra.mxu0 0.0
    %4639 = vmatprep.subr.mxu0 0.0
    %4640 = vmatpush1.msra.mxu0 0.0
    %4641 = vmatprep.subr.mxu0 0.0
    %4642 = vmatpush1.msra.mxu0 0.0
    %4643 = vmatprep.subr.mxu0 0.0
    %4644 = vmatpush1.msra.mxu0 0.0
    %4645 = vmatprep.subr.mxu0 0.0
    %4646 = vmatpush1.msra.mxu0 0.0
    %4647 = vmatprep.subr.mxu0 0.0
    %4648 = vmatpush1.msra.mxu0 0.0
    %4649 = vmatprep.subr.mxu0 0.0
    %4650 = vmatpush1.msra.mxu0 0.0
    %4651 = vmatprep.mubr.f32.mxu0 0.0
    %4652 = vmatmul.mubr.f32.gmra.mrb[0].mxu0 %v4037
    %v4653 = vpop.f32.mrb[0].mxu0
    %v4654 = vadd.f32 %v4565, %v4653
    %v4655 = vpop.f32.mrb[0].mxu0
    %v4656 = vadd.f32 %v4567, %v4655
    %4657 = vmatprep.mubr.f32.mxu0 0.0
    %4658 = vmatmul.mubr.f32.gmra.mrb[0].mxu0 %v4040
    %v4659 = vpop.f32.mrb[0].mxu0
    %v4660 = vadd.f32 %v4571, %v4659
    %v4661 = vpop.f32.mrb[0].mxu0
    %v4662 = vadd.f32 %v4573, %v4661
    %4663 = vmatprep.mubr.f32.mxu0 0.0
    %4664 = vmatmul.mubr.f32.gmra.mrb[0].mxu0 %v4043
    %v4665 = vpop.f32.mrb[0].mxu0
    %v4666 = vadd.f32 %v4577, %v4665
    %v4667 = vpop.f32.mrb[0].mxu0
    %v4668 = vadd.f32 %v4579, %v4667
    %4669 = vmatprep.mubr.f32.mxu0 0.0
    %4670 = vmatmul.mubr.f32.gmra.mrb[0].mxu0 %v4046
    %v4671 = vpop.f32.mrb[0].mxu0
    %v4672 = vadd.f32 %v4583, %v4671
    %v4673 = vpop.f32.mrb[0].mxu0
    %v4674 = vadd.f32 %v4585, %v4673
    %4675 = vdwg.mxu0
    %v4676 = vmax.f32 %v4654, 0.0
    %v4677 = vmax.f32 %v4656, 0.0
    %v4678 = vmax.f32 %v4660, 0.0
    %v4679 = vmax.f32 %v4662, 0.0
    %v4680 = vmax.f32 %v4666, 0.0
    %v4681 = vmax.f32 %v4668, 0.0
    %v4682 = vmax.f32 %v4672, 0.0
    %v4683 = vmax.f32 %v4674, 0.0
    %v4684 = vld [vmem:[%s10] sm:$0xff]
    %v4685 = vld [vmem:[%s10 + $0x8] sm:$0xff]
    %v4686 = vld [vmem:[%s10 + $0x10] sm:$0xff]
    %v4687 = vld [vmem:[%s10 + $0x18] sm:$0xff]
    %v4688 = vld [vmem:[%s10 + $0x20] sm:$0xff]
    %v4689 = vld [vmem:[%s10 + $0x28] sm:$0xff]
    %v4690 = vld [vmem:[%s10 + $0x30] sm:$0xff]
    %v4691 = vld [vmem:[%s10 + $0x38] sm:$0xff]
    %v4692 = vld [vmem:[%s10 + $0x40] sm:$0xff]
    %v4693 = vld [vmem:[%s10 + $0x48] sm:$0xff]
    %v4694 = vld [vmem:[%s10 + $0x50] sm:$0xff]
    %v4695 = vld [vmem:[%s10 + $0x58] sm:$0xff]
    %v4696 = vld [vmem:[%s10 + $0x60] sm:$0xff]
    %v4697 = vld [vmem:[%s10 + $0x68] sm:$0xff]
    %v4698 = vld [vmem:[%s10 + $0x70] sm:$0xff]
    %v4699 = vld [vmem:[%s10 + $0x78] sm:$0xff]
    %v4700 = vld [vmem:[%s10 + $0x80] sm:$0xff]
    %v4701 = vld [vmem:[%s10 + $0x88] sm:$0xff]
    %v4702 = vld [vmem:[%s10 + $0x90] sm:$0xff]
    %v4703 = vld [vmem:[%s10 + $0x98] sm:$0xff]
    %v4704 = vld [vmem:[%s10 + $0xa0] sm:$0xff]
    %v4705 = vld [vmem:[%s10 + $0xa8] sm:$0xff]
    %v4706 = vld [vmem:[%s10 + $0xb0] sm:$0xff]
    %v4707 = vld [vmem:[%s10 + $0xb8] sm:$0xff]
    %v4708 = vld [vmem:[%s10 + $0xc0] sm:$0xff]
    %v4709 = vld [vmem:[%s10 + $0xc8] sm:$0xff]
    %v4710 = vld [vmem:[%s10 + $0xd0] sm:$0xff]
    %v4711 = vld [vmem:[%s10 + $0xd8] sm:$0xff]
    %v4712 = vld [vmem:[%s10 + $0xe0] sm:$0xff]
    %v4713 = vld [vmem:[%s10 + $0xe8] sm:$0xff]
    %v4714 = vld [vmem:[%s10 + $0xf0] sm:$0xff]
    %v4715 = vld [vmem:[%s10 + $0xf8] sm:$0xff]
    %v4716 = vld [vmem:[%s10 + $0x100] sm:$0xff]
    %v4717 = vld [vmem:[%s10 + $0x108] sm:$0xff]
    %v4718 = vld [vmem:[%s10 + $0x110] sm:$0xff]
    %v4719 = vld [vmem:[%s10 + $0x118] sm:$0xff]
    %v4720 = vld [vmem:[%s10 + $0x120] sm:$0xff]
    %v4721 = vld [vmem:[%s10 + $0x128] sm:$0xff]
    %v4722 = vld [vmem:[%s10 + $0x130] sm:$0xff]
    %v4723 = vld [vmem:[%s10 + $0x138] sm:$0xff]
    %v4724 = vld [vmem:[%s10 + $0x140] sm:$0xff]
    %v4725 = vld [vmem:[%s10 + $0x148] sm:$0xff]
    %v4726 = vld [vmem:[%s10 + $0x150] sm:$0xff]
    %v4727 = vld [vmem:[%s10 + $0x158] sm:$0xff]
    %v4728 = vld [vmem:[%s10 + $0x160] sm:$0xff]
    %v4729 = vld [vmem:[%s10 + $0x168] sm:$0xff]
    %v4730 = vld [vmem:[%s10 + $0x170] sm:$0xff]
    %v4731 = vld [vmem:[%s10 + $0x178] sm:$0xff]
    %v4732 = vld [vmem:[%s10 + $0x180] sm:$0xff]
    %v4733 = vld [vmem:[%s10 + $0x188] sm:$0xff]
    %v4734 = vld [vmem:[%s10 + $0x190] sm:$0xff]
    %v4735 = vld [vmem:[%s10 + $0x198] sm:$0xff]
    %v4736 = vld [vmem:[%s10 + $0x1a0] sm:$0xff]
    %v4737 = vld [vmem:[%s10 + $0x1a8] sm:$0xff]
    %v4738 = vld [vmem:[%s10 + $0x1b0] sm:$0xff]
    %v4739 = vld [vmem:[%s10 + $0x1b8] sm:$0xff]
    %v4740 = vld [vmem:[%s10 + $0x1c0] sm:$0xff]
    %v4741 = vld [vmem:[%s10 + $0x1c8] sm:$0xff]
    %v4742 = vld [vmem:[%s10 + $0x1d0] sm:$0xff]
    %v4743 = vld [vmem:[%s10 + $0x1d8] sm:$0xff]
    %v4744 = vld [vmem:[%s10 + $0x1e0] sm:$0xff]
    %v4745 = vld [vmem:[%s10 + $0x1e8] sm:$0xff]
    %v4746 = vld [vmem:[%s10 + $0x1f0] sm:$0xff]
    %v4747 = vld [vmem:[%s10 + $0x1f8] sm:$0xff]
    %v4748 = vld [vmem:[%s10 + $0x200] sm:$0xff]
    %v4749 = vld [vmem:[%s10 + $0x208] sm:$0xff]
    %v4750 = vld [vmem:[%s10 + $0x210] sm:$0xff]
    %v4751 = vld [vmem:[%s10 + $0x218] sm:$0xff]
    %v4752 = vld [vmem:[%s10 + $0x220] sm:$0xff]
    %v4753 = vld [vmem:[%s10 + $0x228] sm:$0xff]
    %v4754 = vld [vmem:[%s10 + $0x230] sm:$0xff]
    %v4755 = vld [vmem:[%s10 + $0x238] sm:$0xff]
    %v4756 = vld [vmem:[%s10 + $0x240] sm:$0xff]
    %v4757 = vld [vmem:[%s10 + $0x248] sm:$0xff]
    %v4758 = vld [vmem:[%s10 + $0x250] sm:$0xff]
    %v4759 = vld [vmem:[%s10 + $0x258] sm:$0xff]
    %v4760 = vld [vmem:[%s10 + $0x260] sm:$0xff]
    %v4761 = vld [vmem:[%s10 + $0x268] sm:$0xff]
    %v4762 = vld [vmem:[%s10 + $0x270] sm:$0xff]
    %v4763 = vld [vmem:[%s10 + $0x278] sm:$0xff]
    %v4764 = vld [vmem:[%s10 + $0x280] sm:$0xff]
    %v4765 = vld [vmem:[%s10 + $0x288] sm:$0xff]
    %v4766 = vld [vmem:[%s10 + $0x290] sm:$0xff]
    %v4767 = vld [vmem:[%s10 + $0x298] sm:$0xff]
    %v4768 = vld [vmem:[%s10 + $0x2a0] sm:$0xff]
    %v4769 = vld [vmem:[%s10 + $0x2a8] sm:$0xff]
    %v4770 = vld [vmem:[%s10 + $0x2b0] sm:$0xff]
    %v4771 = vld [vmem:[%s10 + $0x2b8] sm:$0xff]
    %v4772 = vld [vmem:[%s10 + $0x2c0] sm:$0xff]
    %v4773 = vld [vmem:[%s10 + $0x2c8] sm:$0xff]
    %v4774 = vld [vmem:[%s10 + $0x2d0] sm:$0xff]
    %v4775 = vld [vmem:[%s10 + $0x2d8] sm:$0xff]
    %v4776 = vld [vmem:[%s10 + $0x2e0] sm:$0xff]
    %v4777 = vld [vmem:[%s10 + $0x2e8] sm:$0xff]
    %v4778 = vld [vmem:[%s10 + $0x2f0] sm:$0xff]
    %v4779 = vld [vmem:[%s10 + $0x2f8] sm:$0xff]
    %v4780 = vld [vmem:[%s10 + $0x300] sm:$0xff]
    %v4781 = vld [vmem:[%s10 + $0x308] sm:$0xff]
    %v4782 = vld [vmem:[%s10 + $0x310] sm:$0xff]
    %v4783 = vld [vmem:[%s10 + $0x318] sm:$0xff]
    %v4784 = vld [vmem:[%s10 + $0x320] sm:$0xff]
    %v4785 = vld [vmem:[%s10 + $0x328] sm:$0xff]
    %v4786 = vld [vmem:[%s10 + $0x330] sm:$0xff]
    %v4787 = vld [vmem:[%s10 + $0x338] sm:$0xff]
    %v4788 = vld [vmem:[%s10 + $0x340] sm:$0xff]
    %v4789 = vld [vmem:[%s10 + $0x348] sm:$0xff]
    %v4790 = vld [vmem:[%s10 + $0x350] sm:$0xff]
    %v4791 = vld [vmem:[%s10 + $0x358] sm:$0xff]
    %v4792 = vld [vmem:[%s10 + $0x360] sm:$0xff]
    %v4793 = vld [vmem:[%s10 + $0x368] sm:$0xff]
    %v4794 = vld [vmem:[%s10 + $0x370] sm:$0xff]
    %v4795 = vld [vmem:[%s10 + $0x378] sm:$0xff]
    %v4796 = vld [vmem:[%s10 + $0x380] sm:$0xff]
    %v4797 = vld [vmem:[%s10 + $0x388] sm:$0xff]
    %v4798 = vld [vmem:[%s10 + $0x390] sm:$0xff]
    %v4799 = vld [vmem:[%s10 + $0x398] sm:$0xff]
    %v4800 = vld [vmem:[%s10 + $0x3a0] sm:$0xff]
    %v4801 = vld [vmem:[%s10 + $0x3a8] sm:$0xff]
    %v4802 = vld [vmem:[%s10 + $0x3b0] sm:$0xff]
    %v4803 = vld [vmem:[%s10 + $0x3b8] sm:$0xff]
    %v4804 = vld [vmem:[%s10 + $0x3c0] sm:$0xff]
    %v4805 = vld [vmem:[%s10 + $0x3c8] sm:$0xff]
    %v4806 = vld [vmem:[%s10 + $0x3d0] sm:$0xff]
    %v4807 = vld [vmem:[%s10 + $0x3d8] sm:$0xff]
    %v4808 = vld [vmem:[%s10 + $0x3e0] sm:$0xff]
    %v4809 = vld [vmem:[%s10 + $0x3e8] sm:$0xff]
    %v4810 = vld [vmem:[%s10 + $0x3f0] sm:$0xff]
    %v4811 = vld [vmem:[%s10 + $0x3f8] sm:$0xff]
    %4812 = vmatprep.subr.mxu0 %v4685
    %4813 = vmatpush1.msra.mxu0 %v4684
    %4814 = vmatprep.subr.mxu0 %v4689
    %4815 = vmatpush1.msra.mxu0 %v4688
    %4816 = vmatprep.subr.mxu0 %v4693
    %4817 = vmatpush1.msra.mxu0 %v4692
    %4818 = vmatprep.subr.mxu0 %v4697
    %4819 = vmatpush1.msra.mxu0 %v4696
    %4820 = vmatprep.subr.mxu0 %v4701
    %4821 = vmatpush1.msra.mxu0 %v4700
    %4822 = vmatprep.subr.mxu0 %v4705
    %4823 = vmatpush1.msra.mxu0 %v4704
    %4824 = vmatprep.subr.mxu0 %v4709
    %4825 = vmatpush1.msra.mxu0 %v4708
    %4826 = vmatprep.subr.mxu0 %v4713
    %4827 = vmatpush1.msra.mxu0 %v4712
    %4828 = vmatprep.subr.mxu0 %v4717
    %4829 = vmatpush1.msra.mxu0 %v4716
    %4830 = vmatprep.subr.mxu0 %v4721
    %4831 = vmatpush1.msra.mxu0 %v4720
    %4832 = vmatprep.subr.mxu0 %v4725
    %4833 = vmatpush1.msra.mxu0 %v4724
    %4834 = vmatprep.subr.mxu0 %v4729
    %4835 = vmatpush1.msra.mxu0 %v4728
    %4836 = vmatprep.subr.mxu0 %v4733
    %4837 = vmatpush1.msra.mxu0 %v4732
    %4838 = vmatprep.subr.mxu0 %v4737
    %4839 = vmatpush1.msra.mxu0 %v4736
    %4840 = vmatprep.subr.mxu0 %v4741
    %4841 = vmatpush1.msra.mxu0 %v4740
    %4842 = vmatprep.subr.mxu0 %v4745
    %4843 = vmatpush1.msra.mxu0 %v4744
    %4844 = vmatprep.subr.mxu0 %v4749
    %4845 = vmatpush1.msra.mxu0 %v4748
    %4846 = vmatprep.subr.mxu0 %v4753
    %4847 = vmatpush1.msra.mxu0 %v4752
    %4848 = vmatprep.subr.mxu0 %v4757
    %4849 = vmatpush1.msra.mxu0 %v4756
    %4850 = vmatprep.subr.mxu0 %v4761
    %4851 = vmatpush1.msra.mxu0 %v4760
    %4852 = vmatprep.subr.mxu0 %v4765
    %4853 = vmatpush1.msra.mxu0 %v4764
    %4854 = vmatprep.subr.mxu0 %v4769
    %4855 = vmatpush1.msra.mxu0 %v4768
    %4856 = vmatprep.subr.mxu0 %v4773
    %4857 = vmatpush1.msra.mxu0 %v4772
    %4858 = vmatprep.subr.mxu0 %v4777
    %4859 = vmatpush1.msra.mxu0 %v4776
    %4860 = vmatprep.subr.mxu0 %v4781
    %4861 = vmatpush1.msra.mxu0 %v4780
    %4862 = vmatprep.subr.mxu0 %v4785
    %4863 = vmatpush1.msra.mxu0 %v4784
    %4864 = vmatprep.subr.mxu0 %v4789
    %4865 = vmatpush1.msra.mxu0 %v4788
    %4866 = vmatprep.subr.mxu0 %v4793
    %4867 = vmatpush1.msra.mxu0 %v4792
    %4868 = vmatprep.subr.mxu0 %v4797
    %4869 = vmatpush1.msra.mxu0 %v4796
    %4870 = vmatprep.subr.mxu0 %v4801
    %4871 = vmatpush1.msra.mxu0 %v4800
    %4872 = vmatprep.subr.mxu0 %v4805
    %4873 = vmatpush1.msra.mxu0 %v4804
    %4874 = vmatprep.subr.mxu0 %v4809
    %4875 = vmatpush1.msra.mxu0 %v4808
    %4876 = vmatprep.mubr.f32.mxu0 %v4227
    %4877 = vmatmul.mubr.f32.gmra.mrb[0].mxu0 %v4226
    %v4878 = vpop.f32.mrb[0].mxu0
    %v4879 = vadd.f32 0.0, %v4878
    %v4880 = vpop.f32.mrb[0].mxu0
    %v4881 = vadd.f32 0.0, %v4880
    %4882 = vmatprep.mubr.f32.mxu0 %v4229
    %4883 = vmatmul.mubr.f32.gmra.mrb[0].mxu0 %v4228
    %v4884 = vpop.f32.mrb[0].mxu0
    %v4885 = vadd.f32 0.0, %v4884
    %v4886 = vpop.f32.mrb[0].mxu0
    %v4887 = vadd.f32 0.0, %v4886
    %4888 = vmatprep.mubr.f32.mxu0 %v4231
    %4889 = vmatmul.mubr.f32.gmra.mrb[0].mxu0 %v4230
    %v4890 = vpop.f32.mrb[0].mxu0
    %v4891 = vadd.f32 0.0, %v4890
    %v4892 = vpop.f32.mrb[0].mxu0
    %v4893 = vadd.f32 0.0, %v4892
    %4894 = vmatprep.mubr.f32.mxu0 %v4233
    %4895 = vmatmul.mubr.f32.gmra.mrb[0].mxu0 %v4232
    %v4896 = vpop.f32.mrb[0].mxu0
    %v4897 = vadd.f32 0.0, %v4896
    %v4898 = vpop.f32.mrb[0].mxu0
    %v4899 = vadd.f32 0.0, %v4898
    %4900 = vmatprep.mubr.f32.mxu0 %v4677
    %4901 = vmatmul.mubr.f32.gmra.mrb[0].mxu0 %v4676
    %v4902 = vpop.f32.mrb[0].mxu0
    %v4903 = vadd.f32 0.0, %v4902
    %v4904 = vpop.f32.mrb[0].mxu0
    %v4905 = vadd.f32 0.0, %v4904
    %4906 = vmatprep.mubr.f32.mxu0 %v4679
    %4907 = vmatmul.mubr.f32.gmra.mrb[0].mxu0 %v4678
    %v4908 = vpop.f32.mrb[0].mxu0
    %v4909 = vadd.f32 0.0, %v4908
    %v4910 = vpop.f32.mrb[0].mxu0
    %v4911 = vadd.f32 0.0, %v4910
    %4912 = vmatprep.mubr.f32.mxu0 %v4681
    %4913 = vmatmul.mubr.f32.gmra.mrb[0].mxu0 %v4680
    %v4914 = vpop.f32.mrb[0].mxu0
    %v4915 = vadd.f32 0.0, %v4914
    %v4916 = vpop.f32.mrb[0].mxu0
    %v4917 = vadd.f32 0.0, %v4916
    %4918 = vmatprep.mubr.f32.mxu0 %v4683
    %4919 = vmatmul.mubr.f32.gmra.mrb[0].mxu0 %v4682
    %v4920 = vpop.f32.mrb[0].mxu0
    %v4921 = vadd.f32 0.0, %v4920
    %v4922 = vpop.f32.mrb[0].mxu0
    %v4923 = vadd.f32 0.0, %v4922
    %4924 = vdwg.mxu0
    %4925 = vmatprep.subr.mxu0 %v4687
    %4926 = vmatpush1.msra.mxu0 %v4686
    %4927 = vmatprep.subr.mxu0 %v4691
    %4928 = vmatpush1.msra.mxu0 %v4690
    %4929 = vmatprep.subr.mxu0 %v4695
    %4930 = vmatpush1.msra.mxu0 %v4694
    %4931 = vmatprep.subr.mxu0 %v4699
    %4932 = vmatpush1.msra.mxu0 %v4698
    %4933 = vmatprep.subr.mxu0 %v4703
    %4934 = vmatpush1.msra.mxu0 %v4702
    %4935 = vmatprep.subr.mxu0 %v4707
    %4936 = vmatpush1.msra.mxu0 %v4706
    %4937 = vmatprep.subr.mxu0 %v4711
    %4938 = vmatpush1.msra.mxu0 %v4710
    %4939 = vmatprep.subr.mxu0 %v4715
    %4940 = vmatpush1.msra.mxu0 %v4714
    %4941 = vmatprep.subr.mxu0 %v4719
    %4942 = vmatpush1.msra.mxu0 %v4718
    %4943 = vmatprep.subr.mxu0 %v4723
    %4944 = vmatpush1.msra.mxu0 %v4722
    %4945 = vmatprep.subr.mxu0 %v4727
    %4946 = vmatpush1.msra.mxu0 %v4726
    %4947 = vmatprep.subr.mxu0 %v4731
    %4948 = vmatpush1.msra.mxu0 %v4730
    %4949 = vmatprep.subr.mxu0 %v4735
    %4950 = vmatpush1.msra.mxu0 %v4734
    %4951 = vmatprep.subr.mxu0 %v4739
    %4952 = vmatpush1.msra.mxu0 %v4738
    %4953 = vmatprep.subr.mxu0 %v4743
    %4954 = vmatpush1.msra.mxu0 %v4742
    %4955 = vmatprep.subr.mxu0 %v4747
    %4956 = vmatpush1.msra.mxu0 %v4746
    %4957 = vmatprep.subr.mxu0 %v4751
    %4958 = vmatpush1.msra.mxu0 %v4750
    %4959 = vmatprep.subr.mxu0 %v4755
    %4960 = vmatpush1.msra.mxu0 %v4754
    %4961 = vmatprep.subr.mxu0 %v4759
    %4962 = vmatpush1.msra.mxu0 %v4758
    %4963 = vmatprep.subr.mxu0 %v4763
    %4964 = vmatpush1.msra.mxu0 %v4762
    %4965 = vmatprep.subr.mxu0 %v4767
    %4966 = vmatpush1.msra.mxu0 %v4766
    %4967 = vmatprep.subr.mxu0 %v4771
    %4968 = vmatpush1.msra.mxu0 %v4770
    %4969 = vmatprep.subr.mxu0 %v4775
    %4970 = vmatpush1.msra.mxu0 %v4774
    %4971 = vmatprep.subr.mxu0 %v4779
    %4972 = vmatpush1.msra.mxu0 %v4778
    %4973 = vmatprep.subr.mxu0 %v4783
    %4974 = vmatpush1.msra.mxu0 %v4782
    %4975 = vmatprep.subr.mxu0 %v4787
    %4976 = vmatpush1.msra.mxu0 %v4786
    %4977 = vmatprep.subr.mxu0 %v4791
    %4978 = vmatpush1.msra.mxu0 %v4790
    %4979 = vmatprep.subr.mxu0 %v4795
    %4980 = vmatpush1.msra.mxu0 %v4794
    %4981 = vmatprep.subr.mxu0 %v4799
    %4982 = vmatpush1.msra.mxu0 %v4798
    %4983 = vmatprep.subr.mxu0 %v4803
    %4984 = vmatpush1.msra.mxu0 %v4802
    %4985 = vmatprep.subr.mxu0 %v4807
    %4986 = vmatpush1.msra.mxu0 %v4806
    %4987 = vmatprep.subr.mxu0 %v4811
    %4988 = vmatpush1.msra.mxu0 %v4810
    %4989 = vmatprep.mubr.f32.mxu0 %v4227
    %4990 = vmatmul.mubr.f32.gmra.mrb[0].mxu0 %v4226
    %v4991 = vpop.f32.mrb[0].mxu0
    %v4992 = vadd.f32 0.0, %v4991
    %v4993 = vpop.f32.mrb[0].mxu0
    %v4994 = vadd.f32 0.0, %v4993
    %4995 = vmatprep.mubr.f32.mxu0 %v4229
    %4996 = vmatmul.mubr.f32.gmra.mrb[0].mxu0 %v4228
    %v4997 = vpop.f32.mrb[0].mxu0
    %v4998 = vadd.f32 0.0, %v4997
    %v4999 = vpop.f32.mrb[0].mxu0
    %v5000 = vadd.f32 0.0, %v4999
    %5001 = vmatprep.mubr.f32.mxu0 %v4231
    %5002 = vmatmul.mubr.f32.gmra.mrb[0].mxu0 %v4230
    %v5003 = vpop.f32.mrb[0].mxu0
    %v5004 = vadd.f32 0.0, %v5003
    %v5005 = vpop.f32.mrb[0].mxu0
    %v5006 = vadd.f32 0.0, %v5005
    %5007 = vmatprep.mubr.f32.mxu0 %v4233
    %5008 = vmatmul.mubr.f32.gmra.mrb[0].mxu0 %v4232
    %v5009 = vpop.f32.mrb[0].mxu0
    %v5010 = vadd.f32 0.0, %v5009
    %v5011 = vpop.f32.mrb[0].mxu0
    %v5012 = vadd.f32 0.0, %v5011
    %5013 = vmatprep.mubr.f32.mxu0 %v4677
    %5014 = vmatmul.mubr.f32.gmra.mrb[0].mxu0 %v4676
    %v5015 = vpop.f32.mrb[0].mxu0
    %v5016 = vadd.f32 0.0, %v5015
    %v5017 = vpop.f32.mrb[0].mxu0
    %v5018 = vadd.f32 0.0, %v5017
    %5019 = vmatprep.mubr.f32.mxu0 %v4679
    %5020 = vmatmul.mubr.f32.gmra.mrb[0].mxu0 %v4678
    %v5021 = vpop.f32.mrb[0].mxu0
    %v5022 = vadd.f32 0.0, %v5021
    %v5023 = vpop.f32.mrb[0].mxu0
    %v5024 = vadd.f32 0.0, %v5023
    %5025 = vmatprep.mubr.f32.mxu0 %v4681
    %5026 = vmatmul.mubr.f32.gmra.mrb[0].mxu0 %v4680
    %v5027 = vpop.f32.mrb[0].mxu0
    %v5028 = vadd.f32 0.0, %v5027
    %v5029 = vpop.f32.mrb[0].mxu0
    %v5030 = vadd.f32 0.0, %v5029
    %5031 = vmatprep.mubr.f32.mxu0 %v4683
    %5032 = vmatmul.mubr.f32.gmra.mrb[0].mxu0 %v4682
    %v5033 = vpop.f32.mrb[0].mxu0
    %v5034 = vadd.f32 0.0, %v5033
    %v5035 = vpop.f32.mrb[0].mxu0
    %v5036 = vadd.f32 0.0, %v5035
    %5037 = vdwg.mxu0
    %v5038 = vld [vmem:[%s17] ss:$8 sm:$0x3]
    %5039 = vrot.lane.b32.xlu0 %v4879, 17
    %v5040 = vpop.permute.xlu0 %5039
    %5041 = vrot.lane.b32.xlu0 %v4885, 17
    %v5042 = vpop.permute.xlu0 %5041
    %5043 = vrot.lane.b32.xlu0 %v4891, 17
    %v5044 = vpop.permute.xlu0 %5043
    %5045 = vrot.lane.b32.xlu0 %v4897, 17
    %v5046 = vpop.permute.xlu0 %5045
    %5047 = vrot.lane.b32.xlu0 %v4881, 17
    %v5048 = vpop.permute.xlu0 %5047
    %5049 = vrot.lane.b32.xlu0 %v4887, 17
    %v5050 = vpop.permute.xlu0 %5049
    %5051 = vrot.lane.b32.xlu0 %v4893, 17
    %v5052 = vpop.permute.xlu0 %5051
    %5053 = vrot.lane.b32.xlu0 %v4899, 17
    %v5054 = vpop.permute.xlu0 %5053
    %v5055 = vsel %vm102, %v5040, %v5048
    %v5056 = vsel %vm102, %v5042, %v5050
    %v5057 = vsel %vm102, %v5044, %v5052
    %v5058 = vsel %vm102, %v5046, %v5054
    %v5059 = vsel %vm102, %v5048, %v5040
    %v5060 = vsel %vm102, %v5050, %v5042
    %v5061 = vsel %vm102, %v5052, %v5044
    %v5062 = vsel %vm102, %v5054, %v5046
    %v5064 = vlaneseq
    %v5065 = vshrl.u32 %v5064, 7
    %v5066 = vsub.s32 0, %v5065
    %v5067 = vrot.slane %v5038, %v5066
    %v5068 = vlaneseq
    %v5069 = vshrl.u32 %v5068, 7
    %v5070 = vsub.s32 1, %v5069
    %v5071 = vrot.slane %v5038, %v5070
    %v5074 = vmul.f32 %v5059, %v5067
    %v5075 = vmul.f32 %v5055, %v5071
    %v5076 = vmul.f32 %v5060, %v5067
    %v5077 = vmul.f32 %v5056, %v5071
    %v5078 = vmul.f32 %v5061, %v5067
    %v5079 = vmul.f32 %v5057, %v5071
    %v5080 = vmul.f32 %v5062, %v5067
    %v5081 = vmul.f32 %v5058, %v5071
    %5082 = vrot.lane.b32.xlu0 %v4992, 17
    %v5083 = vpop.permute.xlu0 %5082
    %5084 = vrot.lane.b32.xlu0 %v4998, 17
    %v5085 = vpop.permute.xlu0 %5084
    %5086 = vrot.lane.b32.xlu0 %v5004, 17
    %v5087 = vpop.permute.xlu0 %5086
    %5088 = vrot.lane.b32.xlu0 %v5010, 17
    %v5089 = vpop.permute.xlu0 %5088
    %5090 = vrot.lane.b32.xlu0 %v4994, 17
    %v5091 = vpop.permute.xlu0 %5090
    %5092 = vrot.lane.b32.xlu0 %v5000, 17
    %v5093 = vpop.permute.xlu0 %5092
    %5094 = vrot.lane.b32.xlu0 %v5006, 17
    %v5095 = vpop.permute.xlu0 %5094
    %5096 = vrot.lane.b32.xlu0 %v5012, 17
    %v5097 = vpop.permute.xlu0 %5096
    %v5098 = vsel %vm102, %v5083, %v5091
    %v5099 = vsel %vm102, %v5085, %v5093
    %v5100 = vsel %vm102, %v5087, %v5095
    %v5101 = vsel %vm102, %v5089, %v5097
    %v5102 = vsel %vm102, %v5091, %v5083
    %v5103 = vsel %vm102, %v5093, %v5085
    %v5104 = vsel %vm102, %v5095, %v5087
    %v5105 = vsel %vm102, %v5097, %v5089
    %v5106 = vmul.f32 %v5102, %v5067
    %v5107 = vmul.f32 %v5098, %v5071
    %v5108 = vmul.f32 %v5103, %v5067
    %v5109 = vmul.f32 %v5099, %v5071
    %v5110 = vmul.f32 %v5104, %v5067
    %v5111 = vmul.f32 %v5100, %v5071
    %v5112 = vmul.f32 %v5105, %v5067
    %v5113 = vmul.f32 %v5101, %v5071
    %s5114 = scalar_lea.vmem %s17, 1
    %v5115 = vld [vmem:[%s5114] ss:$8 sm:$0x3]
    %5116 = vrot.lane.b32.xlu0 %v4879, 16
    %v5117 = vpop.permute.xlu0 %5116
    %5118 = vrot.lane.b32.xlu0 %v4885, 16
    %v5119 = vpop.permute.xlu0 %5118
    %5120 = vrot.lane.b32.xlu0 %v4891, 16
    %v5121 = vpop.permute.xlu0 %5120
    %5122 = vrot.lane.b32.xlu0 %v4897, 16
    %v5123 = vpop.permute.xlu0 %5122
    %5124 = vrot.lane.b32.xlu0 %v4881, 16
    %v5125 = vpop.permute.xlu0 %5124
    %5126 = vrot.lane.b32.xlu0 %v4887, 16
    %v5127 = vpop.permute.xlu0 %5126
    %5128 = vrot.lane.b32.xlu0 %v4893, 16
    %v5129 = vpop.permute.xlu0 %5128
    %5130 = vrot.lane.b32.xlu0 %v4899, 16
    %v5131 = vpop.permute.xlu0 %5130
    %v5132 = vsel %vm148, %v5117, %v5125
    %v5133 = vsel %vm148, %v5119, %v5127
    %v5134 = vsel %vm148, %v5121, %v5129
    %v5135 = vsel %vm148, %v5123, %v5131
    %v5136 = vsel %vm148, %v5125, %v5117
    %v5137 = vsel %vm148, %v5127, %v5119
    %v5138 = vsel %vm148, %v5129, %v5121
    %v5139 = vsel %vm148, %v5131, %v5123
    %v5141 = vlaneseq
    %v5142 = vshrl.u32 %v5141, 7
    %v5143 = vsub.s32 0, %v5142
    %v5144 = vrot.slane %v5115, %v5143
    %v5145 = vlaneseq
    %v5146 = vshrl.u32 %v5145, 7
    %v5147 = vsub.s32 1, %v5146
    %v5148 = vrot.slane %v5115, %v5147
    %v5151 = vmul.f32 %v5136, %v5144
    %v5152 = vmul.f32 %v5132, %v5148
    %v5153 = vmul.f32 %v5137, %v5144
    %v5154 = vmul.f32 %v5133, %v5148
    %v5155 = vmul.f32 %v5138, %v5144
    %v5156 = vmul.f32 %v5134, %v5148
    %v5157 = vmul.f32 %v5139, %v5144
    %v5158 = vmul.f32 %v5135, %v5148
    %5159 = vrot.lane.b32.xlu0 %v4992, 16
    %v5160 = vpop.permute.xlu0 %5159
    %5161 = vrot.lane.b32.xlu0 %v4998, 16
    %v5162 = vpop.permute.xlu0 %5161
    %5163 = vrot.lane.b32.xlu0 %v5004, 16
    %v5164 = vpop.permute.xlu0 %5163
    %5165 = vrot.lane.b32.xlu0 %v5010, 16
    %v5166 = vpop.permute.xlu0 %5165
    %5167 = vrot.lane.b32.xlu0 %v4994, 16
    %v5168 = vpop.permute.xlu0 %5167
    %5169 = vrot.lane.b32.xlu0 %v5000, 16
    %v5170 = vpop.permute.xlu0 %5169
    %5171 = vrot.lane.b32.xlu0 %v5006, 16
    %v5172 = vpop.permute.xlu0 %5171
    %5173 = vrot.lane.b32.xlu0 %v5012, 16
    %v5174 = vpop.permute.xlu0 %5173
    %v5175 = vsel %vm148, %v5160, %v5168
    %v5176 = vsel %vm148, %v5162, %v5170
    %v5177 = vsel %vm148, %v5164, %v5172
    %v5178 = vsel %vm148, %v5166, %v5174
    %v5179 = vsel %vm148, %v5168, %v5160
    %v5180 = vsel %vm148, %v5170, %v5162
    %v5181 = vsel %vm148, %v5172, %v5164
    %v5182 = vsel %vm148, %v5174, %v5166
    %v5183 = vmul.f32 %v5179, %v5144
    %v5184 = vmul.f32 %v5175, %v5148
    %v5185 = vmul.f32 %v5180, %v5144
    %v5186 = vmul.f32 %v5176, %v5148
    %v5187 = vmul.f32 %v5181, %v5144
    %v5188 = vmul.f32 %v5177, %v5148
    %v5189 = vmul.f32 %v5182, %v5144
    %v5190 = vmul.f32 %v5178, %v5148
    %s5191 = scalar_lea.vmem %s17, 2
    %v5192 = vld [vmem:[%s5191] ss:$8 sm:$0x3]
    %5193 = vrot.lane.b32.xlu0 %v4879, 15
    %v5194 = vpop.permute.xlu0 %5193
    %5195 = vrot.lane.b32.xlu0 %v4885, 15
    %v5196 = vpop.permute.xlu0 %5195
    %5197 = vrot.lane.b32.xlu0 %v4891, 15
    %v5198 = vpop.permute.xlu0 %5197
    %5199 = vrot.lane.b32.xlu0 %v4897, 15
    %v5200 = vpop.permute.xlu0 %5199
    %5201 = vrot.lane.b32.xlu0 %v4881, 15
    %v5202 = vpop.permute.xlu0 %5201
    %5203 = vrot.lane.b32.xlu0 %v4887, 15
    %v5204 = vpop.permute.xlu0 %5203
    %5205 = vrot.lane.b32.xlu0 %v4893, 15
    %v5206 = vpop.permute.xlu0 %5205
    %5207 = vrot.lane.b32.xlu0 %v4899, 15
    %v5208 = vpop.permute.xlu0 %5207
    %v5209 = vsel %vm194, %v5194, %v5202
    %v5210 = vsel %vm194, %v5196, %v5204
    %v5211 = vsel %vm194, %v5198, %v5206
    %v5212 = vsel %vm194, %v5200, %v5208
    %v5213 = vsel %vm194, %v5202, %v5194
    %v5214 = vsel %vm194, %v5204, %v5196
    %v5215 = vsel %vm194, %v5206, %v5198
    %v5216 = vsel %vm194, %v5208, %v5200
    %v5218 = vlaneseq
    %v5219 = vshrl.u32 %v5218, 7
    %v5220 = vsub.s32 0, %v5219
    %v5221 = vrot.slane %v5192, %v5220
    %v5222 = vlaneseq
    %v5223 = vshrl.u32 %v5222, 7
    %v5224 = vsub.s32 1, %v5223
    %v5225 = vrot.slane %v5192, %v5224
    %v5228 = vmul.f32 %v5213, %v5221
    %v5229 = vmul.f32 %v5209, %v5225
    %v5230 = vmul.f32 %v5214, %v5221
    %v5231 = vmul.f32 %v5210, %v5225
    %v5232 = vmul.f32 %v5215, %v5221
    %v5233 = vmul.f32 %v5211, %v5225
    %v5234 = vmul.f32 %v5216, %v5221
    %v5235 = vmul.f32 %v5212, %v5225
    %5236 = vrot.lane.b32.xlu0 %v4992, 15
    %v5237 = vpop.permute.xlu0 %5236
    %5238 = vrot.lane.b32.xlu0 %v4998, 15
    %v5239 = vpop.permute.xlu0 %5238
    %5240 = vrot.lane.b32.xlu0 %v5004, 15
    %v5241 = vpop.permute.xlu0 %5240
    %5242 = vrot.lane.b32.xlu0 %v5010, 15
    %v5243 = vpop.permute.xlu0 %5242
    %5244 = vrot.lane.b32.xlu0 %v4994, 15
    %v5245 = vpop.permute.xlu0 %5244
    %5246 = vrot.lane.b32.xlu0 %v5000, 15
    %v5247 = vpop.permute.xlu0 %5246
    %5248 = vrot.lane.b32.xlu0 %v5006, 15
    %v5249 = vpop.permute.xlu0 %5248
    %5250 = vrot.lane.b32.xlu0 %v5012, 15
    %v5251 = vpop.permute.xlu0 %5250
    %v5252 = vsel %vm194, %v5237, %v5245
    %v5253 = vsel %vm194, %v5239, %v5247
    %v5254 = vsel %vm194, %v5241, %v5249
    %v5255 = vsel %vm194, %v5243, %v5251
    %v5256 = vsel %vm194, %v5245, %v5237
    %v5257 = vsel %vm194, %v5247, %v5239
    %v5258 = vsel %vm194, %v5249, %v5241
    %v5259 = vsel %vm194, %v5251, %v5243
    %v5260 = vmul.f32 %v5256, %v5221
    %v5261 = vmul.f32 %v5252, %v5225
    %v5262 = vmul.f32 %v5257, %v5221
    %v5263 = vmul.f32 %v5253, %v5225
    %v5264 = vmul.f32 %v5258, %v5221
    %v5265 = vmul.f32 %v5254, %v5225
    %v5266 = vmul.f32 %v5259, %v5221
    %v5267 = vmul.f32 %v5255, %v5225
    %s5268 = scalar_lea.vmem %s17, 3
    %v5269 = vld [vmem:[%s5268] ss:$8 sm:$0x3]
    %5270 = vrot.lane.b32.xlu0 %v4879, 1
    %v5271 = vpop.permute.xlu0 %5270
    %5272 = vrot.lane.b32.xlu0 %v4885, 1
    %v5273 = vpop.permute.xlu0 %5272
    %5274 = vrot.lane.b32.xlu0 %v4891, 1
    %v5275 = vpop.permute.xlu0 %5274
    %5276 = vrot.lane.b32.xlu0 %v4897, 1
    %v5277 = vpop.permute.xlu0 %5276
    %5278 = vrot.lane.b32.xlu0 %v4881, 1
    %v5279 = vpop.permute.xlu0 %5278
    %5280 = vrot.lane.b32.xlu0 %v4887, 1
    %v5281 = vpop.permute.xlu0 %5280
    %5282 = vrot.lane.b32.xlu0 %v4893, 1
    %v5283 = vpop.permute.xlu0 %5282
    %5284 = vrot.lane.b32.xlu0 %v4899, 1
    %v5285 = vpop.permute.xlu0 %5284
    %v5286 = vsel %vm240, %v5271, %v5279
    %v5287 = vsel %vm240, %v5273, %v5281
    %v5288 = vsel %vm240, %v5275, %v5283
    %v5289 = vsel %vm240, %v5277, %v5285
    %v5290 = vsel %vm240, %v5279, %v5271
    %v5291 = vsel %vm240, %v5281, %v5273
    %v5292 = vsel %vm240, %v5283, %v5275
    %v5293 = vsel %vm240, %v5285, %v5277
    %v5295 = vlaneseq
    %v5296 = vshrl.u32 %v5295, 7
    %v5297 = vsub.s32 0, %v5296
    %v5298 = vrot.slane %v5269, %v5297
    %v5299 = vlaneseq
    %v5300 = vshrl.u32 %v5299, 7
    %v5301 = vsub.s32 1, %v5300
    %v5302 = vrot.slane %v5269, %v5301
    %v5305 = vmul.f32 %v5290, %v5298
    %v5306 = vmul.f32 %v5286, %v5302
    %v5307 = vmul.f32 %v5291, %v5298
    %v5308 = vmul.f32 %v5287, %v5302
    %v5309 = vmul.f32 %v5292, %v5298
    %v5310 = vmul.f32 %v5288, %v5302
    %v5311 = vmul.f32 %v5293, %v5298
    %v5312 = vmul.f32 %v5289, %v5302
    %5313 = vrot.lane.b32.xlu0 %v4992, 1
    %v5314 = vpop.permute.xlu0 %5313
    %5315 = vrot.lane.b32.xlu0 %v4998, 1
    %v5316 = vpop.permute.xlu0 %5315
    %5317 = vrot.lane.b32.xlu0 %v5004, 1
    %v5318 = vpop.permute.xlu0 %5317
    %5319 = vrot.lane.b32.xlu0 %v5010, 1
    %v5320 = vpop.permute.xlu0 %5319
    %5321 = vrot.lane.b32.xlu0 %v4994, 1
    %v5322 = vpop.permute.xlu0 %5321
    %5323 = vrot.lane.b32.xlu0 %v5000, 1
    %v5324 = vpop.permute.xlu0 %5323
    %5325 = vrot.lane.b32.xlu0 %v5006, 1
    %v5326 = vpop.permute.xlu0 %5325
    %5327 = vrot.lane.b32.xlu0 %v5012, 1
    %v5328 = vpop.permute.xlu0 %5327
    %v5329 = vsel %vm240, %v5314, %v5322
    %v5330 = vsel %vm240, %v5316, %v5324
    %v5331 = vsel %vm240, %v5318, %v5326
    %v5332 = vsel %vm240, %v5320, %v5328
    %v5333 = vsel %vm240, %v5322, %v5314
    %v5334 = vsel %vm240, %v5324, %v5316
    %v5335 = vsel %vm240, %v5326, %v5318
    %v5336 = vsel %vm240, %v5328, %v5320
    %v5337 = vmul.f32 %v5333, %v5298
    %v5338 = vmul.f32 %v5329, %v5302
    %v5339 = vmul.f32 %v5334, %v5298
    %v5340 = vmul.f32 %v5330, %v5302
    %v5341 = vmul.f32 %v5335, %v5298
    %v5342 = vmul.f32 %v5331, %v5302
    %v5343 = vmul.f32 %v5336, %v5298
    %v5344 = vmul.f32 %v5332, %v5302
    %s5345 = scalar_lea.vmem %s17, 4
    %v5346 = vld [vmem:[%s5345] ss:$8 sm:$0x3]
    %v5348 = vlaneseq
    %v5349 = vshrl.u32 %v5348, 7
    %v5350 = vsub.s32 0, %v5349
    %v5351 = vrot.slane %v5346, %v5350
    %v5352 = vlaneseq
    %v5353 = vshrl.u32 %v5352, 7
    %v5354 = vsub.s32 1, %v5353
    %v5355 = vrot.slane %v5346, %v5354
    %v5358 = vmul.f32 %v4879, %v5351
    %v5359 = vmul.f32 %v4881, %v5355
    %v5360 = vmul.f32 %v4885, %v5351
    %v5361 = vmul.f32 %v4887, %v5355
    %v5362 = vmul.f32 %v4891, %v5351
    %v5363 = vmul.f32 %v4893, %v5355
    %v5364 = vmul.f32 %v4897, %v5351
    %v5365 = vmul.f32 %v4899, %v5355
    %v5366 = vmul.f32 %v4992, %v5351
    %v5367 = vmul.f32 %v4994, %v5355
    %v5368 = vmul.f32 %v4998, %v5351
    %v5369 = vmul.f32 %v5000, %v5355
    %v5370 = vmul.f32 %v5004, %v5351
    %v5371 = vmul.f32 %v5006, %v5355
    %v5372 = vmul.f32 %v5010, %v5351
    %v5373 = vmul.f32 %v5012, %v5355
    %s5374 = scalar_lea.vmem %s17, 5
    %v5375 = vld [vmem:[%s5374] ss:$8 sm:$0x3]
    %5376 = vrot.lane.b32.xlu0 %v4879, 127
    %v5377 = vpop.permute.xlu0 %5376
    %5378 = vrot.lane.b32.xlu0 %v4885, 127
    %v5379 = vpop.permute.xlu0 %5378
    %5380 = vrot.lane.b32.xlu0 %v4891, 127
    %v5381 = vpop.permute.xlu0 %5380
    %5382 = vrot.lane.b32.xlu0 %v4897, 127
    %v5383 = vpop.permute.xlu0 %5382
    %5384 = vrot.lane.b32.xlu0 %v4881, 127
    %v5385 = vpop.permute.xlu0 %5384
    %5386 = vrot.lane.b32.xlu0 %v4887, 127
    %v5387 = vpop.permute.xlu0 %5386
    %5388 = vrot.lane.b32.xlu0 %v4893, 127
    %v5389 = vpop.permute.xlu0 %5388
    %5390 = vrot.lane.b32.xlu0 %v4899, 127
    %v5391 = vpop.permute.xlu0 %5390
    %v5392 = vsel %vm307, %v5377, %v5385
    %v5393 = vsel %vm307, %v5379, %v5387
    %v5394 = vsel %vm307, %v5381, %v5389
    %v5395 = vsel %vm307, %v5383, %v5391
    %v5396 = vsel %vm307, %v5385, %v5377
    %v5397 = vsel %vm307, %v5387, %v5379
    %v5398 = vsel %vm307, %v5389, %v5381
    %v5399 = vsel %vm307, %v5391, %v5383
    %v5401 = vlaneseq
    %v5402 = vshrl.u32 %v5401, 7
    %v5403 = vsub.s32 0, %v5402
    %v5404 = vrot.slane %v5375, %v5403
    %v5405 = vlaneseq
    %v5406 = vshrl.u32 %v5405, 7
    %v5407 = vsub.s32 1, %v5406
    %v5408 = vrot.slane %v5375, %v5407
    %v5411 = vmul.f32 %v5392, %v5404
    %v5412 = vmul.f32 %v5396, %v5408
    %v5413 = vmul.f32 %v5393, %v5404
    %v5414 = vmul.f32 %v5397, %v5408
    %v5415 = vmul.f32 %v5394, %v5404
    %v5416 = vmul.f32 %v5398, %v5408
    %v5417 = vmul.f32 %v5395, %v5404
    %v5418 = vmul.f32 %v5399, %v5408
    %5419 = vrot.lane.b32.xlu0 %v4992, 127
    %v5420 = vpop.permute.xlu0 %5419
    %5421 = vrot.lane.b32.xlu0 %v4998, 127
    %v5422 = vpop.permute.xlu0 %5421
    %5423 = vrot.lane.b32.xlu0 %v5004, 127
    %v5424 = vpop.permute.xlu0 %5423
    %5425 = vrot.lane.b32.xlu0 %v5010, 127
    %v5426 = vpop.permute.xlu0 %5425
    %5427 = vrot.lane.b32.xlu0 %v4994, 127
    %v5428 = vpop.permute.xlu0 %5427
    %5429 = vrot.lane.b32.xlu0 %v5000, 127
    %v5430 = vpop.permute.xlu0 %5429
    %5431 = vrot.lane.b32.xlu0 %v5006, 127
    %v5432 = vpop.permute.xlu0 %5431
    %5433 = vrot.lane.b32.xlu0 %v5012, 127
    %v5434 = vpop.permute.xlu0 %5433
    %v5435 = vsel %vm307, %v5420, %v5428
    %v5436 = vsel %vm307, %v5422, %v5430
    %v5437 = vsel %vm307, %v5424, %v5432
    %v5438 = vsel %vm307, %v5426, %v5434
    %v5439 = vsel %vm307, %v5428, %v5420
    %v5440 = vsel %vm307, %v5430, %v5422
    %v5441 = vsel %vm307, %v5432, %v5424
    %v5442 = vsel %vm307, %v5434, %v5426
    %v5443 = vmul.f32 %v5435, %v5404
    %v5444 = vmul.f32 %v5439, %v5408
    %v5445 = vmul.f32 %v5436, %v5404
    %v5446 = vmul.f32 %v5440, %v5408
    %v5447 = vmul.f32 %v5437, %v5404
    %v5448 = vmul.f32 %v5441, %v5408
    %v5449 = vmul.f32 %v5438, %v5404
    %v5450 = vmul.f32 %v5442, %v5408
    %s5451 = scalar_lea.vmem %s17, 6
    %v5452 = vld [vmem:[%s5451] ss:$8 sm:$0x3]
    %5453 = vrot.lane.b32.xlu0 %v4879, 113
    %v5454 = vpop.permute.xlu0 %5453
    %5455 = vrot.lane.b32.xlu0 %v4885, 113
    %v5456 = vpop.permute.xlu0 %5455
    %5457 = vrot.lane.b32.xlu0 %v4891, 113
    %v5458 = vpop.permute.xlu0 %5457
    %5459 = vrot.lane.b32.xlu0 %v4897, 113
    %v5460 = vpop.permute.xlu0 %5459
    %5461 = vrot.lane.b32.xlu0 %v4881, 113
    %v5462 = vpop.permute.xlu0 %5461
    %5463 = vrot.lane.b32.xlu0 %v4887, 113
    %v5464 = vpop.permute.xlu0 %5463
    %5465 = vrot.lane.b32.xlu0 %v4893, 113
    %v5466 = vpop.permute.xlu0 %5465
    %5467 = vrot.lane.b32.xlu0 %v4899, 113
    %v5468 = vpop.permute.xlu0 %5467
    %v5469 = vsel %vm353, %v5454, %v5462
    %v5470 = vsel %vm353, %v5456, %v5464
    %v5471 = vsel %vm353, %v5458, %v5466
    %v5472 = vsel %vm353, %v5460, %v5468
    %v5473 = vsel %vm353, %v5462, %v5454
    %v5474 = vsel %vm353, %v5464, %v5456
    %v5475 = vsel %vm353, %v5466, %v5458
    %v5476 = vsel %vm353, %v5468, %v5460
    %v5478 = vlaneseq
    %v5479 = vshrl.u32 %v5478, 7
    %v5480 = vsub.s32 0, %v5479
    %v5481 = vrot.slane %v5452, %v5480
    %v5482 = vlaneseq
    %v5483 = vshrl.u32 %v5482, 7
    %v5484 = vsub.s32 1, %v5483
    %v5485 = vrot.slane %v5452, %v5484
    %v5488 = vmul.f32 %v5469, %v5481
    %v5489 = vmul.f32 %v5473, %v5485
    %v5490 = vmul.f32 %v5470, %v5481
    %v5491 = vmul.f32 %v5474, %v5485
    %v5492 = vmul.f32 %v5471, %v5481
    %v5493 = vmul.f32 %v5475, %v5485
    %v5494 = vmul.f32 %v5472, %v5481
    %v5495 = vmul.f32 %v5476, %v5485
    %5496 = vrot.lane.b32.xlu0 %v4992, 113
    %v5497 = vpop.permute.xlu0 %5496
    %5498 = vrot.lane.b32.xlu0 %v4998, 113
    %v5499 = vpop.permute.xlu0 %5498
    %5500 = vrot.lane.b32.xlu0 %v5004, 113
    %v5501 = vpop.permute.xlu0 %5500
    %5502 = vrot.lane.b32.xlu0 %v5010, 113
    %v5503 = vpop.permute.xlu0 %5502
    %5504 = vrot.lane.b32.xlu0 %v4994, 113
    %v5505 = vpop.permute.xlu0 %5504
    %5506 = vrot.lane.b32.xlu0 %v5000, 113
    %v5507 = vpop.permute.xlu0 %5506
    %5508 = vrot.lane.b32.xlu0 %v5006, 113
    %v5509 = vpop.permute.xlu0 %5508
    %5510 = vrot.lane.b32.xlu0 %v5012, 113
    %v5511 = vpop.permute.xlu0 %5510
    %v5512 = vsel %vm353, %v5497, %v5505
    %v5513 = vsel %vm353, %v5499, %v5507
    %v5514 = vsel %vm353, %v5501, %v5509
    %v5515 = vsel %vm353, %v5503, %v5511
    %v5516 = vsel %vm353, %v5505, %v5497
    %v5517 = vsel %vm353, %v5507, %v5499
    %v5518 = vsel %vm353, %v5509, %v5501
    %v5519 = vsel %vm353, %v5511, %v5503
    %v5520 = vmul.f32 %v5512, %v5481
    %v5521 = vmul.f32 %v5516, %v5485
    %v5522 = vmul.f32 %v5513, %v5481
    %v5523 = vmul.f32 %v5517, %v5485
    %v5524 = vmul.f32 %v5514, %v5481
    %v5525 = vmul.f32 %v5518, %v5485
    %v5526 = vmul.f32 %v5515, %v5481
    %v5527 = vmul.f32 %v5519, %v5485
    %s5528 = scalar_lea.vmem %s17, 7
    %v5529 = vld [vmem:[%s5528] ss:$8 sm:$0x3]
    %5530 = vrot.lane.b32.xlu0 %v4879, 112
    %v5531 = vpop.permute.xlu0 %5530
    %5532 = vrot.lane.b32.xlu0 %v4885, 112
    %v5533 = vpop.permute.xlu0 %5532
    %5534 = vrot.lane.b32.xlu0 %v4891, 112
    %v5535 = vpop.permute.xlu0 %5534
    %5536 = vrot.lane.b32.xlu0 %v4897, 112
    %v5537 = vpop.permute.xlu0 %5536
    %5538 = vrot.lane.b32.xlu0 %v4881, 112
    %v5539 = vpop.permute.xlu0 %5538
    %5540 = vrot.lane.b32.xlu0 %v4887, 112
    %v5541 = vpop.permute.xlu0 %5540
    %5542 = vrot.lane.b32.xlu0 %v4893, 112
    %v5543 = vpop.permute.xlu0 %5542
    %5544 = vrot.lane.b32.xlu0 %v4899, 112
    %v5545 = vpop.permute.xlu0 %5544
    %v5546 = vsel %vm399, %v5531, %v5539
    %v5547 = vsel %vm399, %v5533, %v5541
    %v5548 = vsel %vm399, %v5535, %v5543
    %v5549 = vsel %vm399, %v5537, %v5545
    %v5550 = vsel %vm399, %v5539, %v5531
    %v5551 = vsel %vm399, %v5541, %v5533
    %v5552 = vsel %vm399, %v5543, %v5535
    %v5553 = vsel %vm399, %v5545, %v5537
    %v5555 = vlaneseq
    %v5556 = vshrl.u32 %v5555, 7
    %v5557 = vsub.s32 0, %v5556
    %v5558 = vrot.slane %v5529, %v5557
    %v5559 = vlaneseq
    %v5560 = vshrl.u32 %v5559, 7
    %v5561 = vsub.s32 1, %v5560
    %v5562 = vrot.slane %v5529, %v5561
    %v5565 = vmul.f32 %v5546, %v5558
    %v5566 = vmul.f32 %v5550, %v5562
    %v5567 = vmul.f32 %v5547, %v5558
    %v5568 = vmul.f32 %v5551, %v5562
    %v5569 = vmul.f32 %v5548, %v5558
    %v5570 = vmul.f32 %v5552, %v5562
    %v5571 = vmul.f32 %v5549, %v5558
    %v5572 = vmul.f32 %v5553, %v5562
    %5573 = vrot.lane.b32.xlu0 %v4992, 112
    %v5574 = vpop.permute.xlu0 %5573
    %5575 = vrot.lane.b32.xlu0 %v4998, 112
    %v5576 = vpop.permute.xlu0 %5575
    %5577 = vrot.lane.b32.xlu0 %v5004, 112
    %v5578 = vpop.permute.xlu0 %5577
    %5579 = vrot.lane.b32.xlu0 %v5010, 112
    %v5580 = vpop.permute.xlu0 %5579
    %5581 = vrot.lane.b32.xlu0 %v4994, 112
    %v5582 = vpop.permute.xlu0 %5581
    %5583 = vrot.lane.b32.xlu0 %v5000, 112
    %v5584 = vpop.permute.xlu0 %5583
    %5585 = vrot.lane.b32.xlu0 %v5006, 112
    %v5586 = vpop.permute.xlu0 %5585
    %5587 = vrot.lane.b32.xlu0 %v5012, 112
    %v5588 = vpop.permute.xlu0 %5587
    %v5589 = vsel %vm399, %v5574, %v5582
    %v5590 = vsel %vm399, %v5576, %v5584
    %v5591 = vsel %vm399, %v5578, %v5586
    %v5592 = vsel %vm399, %v5580, %v5588
    %v5593 = vsel %vm399, %v5582, %v5574
    %v5594 = vsel %vm399, %v5584, %v5576
    %v5595 = vsel %vm399, %v5586, %v5578
    %v5596 = vsel %vm399, %v5588, %v5580
    %v5597 = vmul.f32 %v5589, %v5558
    %v5598 = vmul.f32 %v5593, %v5562
    %v5599 = vmul.f32 %v5590, %v5558
    %v5600 = vmul.f32 %v5594, %v5562
    %v5601 = vmul.f32 %v5591, %v5558
    %v5602 = vmul.f32 %v5595, %v5562
    %v5603 = vmul.f32 %v5592, %v5558
    %v5604 = vmul.f32 %v5596, %v5562
    %s5605 = scalar_lea.vmem %s17, 16
    %v5606 = vld [vmem:[%s5605] ss:$8 sm:$0x3]
    %5607 = vrot.lane.b32.xlu0 %v4879, 111
    %v5608 = vpop.permute.xlu0 %5607
    %5609 = vrot.lane.b32.xlu0 %v4885, 111
    %v5610 = vpop.permute.xlu0 %5609
    %5611 = vrot.lane.b32.xlu0 %v4891, 111
    %v5612 = vpop.permute.xlu0 %5611
    %5613 = vrot.lane.b32.xlu0 %v4897, 111
    %v5614 = vpop.permute.xlu0 %5613
    %5615 = vrot.lane.b32.xlu0 %v4881, 111
    %v5616 = vpop.permute.xlu0 %5615
    %5617 = vrot.lane.b32.xlu0 %v4887, 111
    %v5618 = vpop.permute.xlu0 %5617
    %5619 = vrot.lane.b32.xlu0 %v4893, 111
    %v5620 = vpop.permute.xlu0 %5619
    %5621 = vrot.lane.b32.xlu0 %v4899, 111
    %v5622 = vpop.permute.xlu0 %5621
    %v5623 = vsel %vm445, %v5608, %v5616
    %v5624 = vsel %vm445, %v5610, %v5618
    %v5625 = vsel %vm445, %v5612, %v5620
    %v5626 = vsel %vm445, %v5614, %v5622
    %v5627 = vsel %vm445, %v5616, %v5608
    %v5628 = vsel %vm445, %v5618, %v5610
    %v5629 = vsel %vm445, %v5620, %v5612
    %v5630 = vsel %vm445, %v5622, %v5614
    %v5632 = vlaneseq
    %v5633 = vshrl.u32 %v5632, 7
    %v5634 = vsub.s32 0, %v5633
    %v5635 = vrot.slane %v5606, %v5634
    %v5636 = vlaneseq
    %v5637 = vshrl.u32 %v5636, 7
    %v5638 = vsub.s32 1, %v5637
    %v5639 = vrot.slane %v5606, %v5638
    %v5642 = vmul.f32 %v5623, %v5635
    %v5643 = vmul.f32 %v5627, %v5639
    %v5644 = vmul.f32 %v5624, %v5635
    %v5645 = vmul.f32 %v5628, %v5639
    %v5646 = vmul.f32 %v5625, %v5635
    %v5647 = vmul.f32 %v5629, %v5639
    %v5648 = vmul.f32 %v5626, %v5635
    %v5649 = vmul.f32 %v5630, %v5639
    %5650 = vrot.lane.b32.xlu0 %v4992, 111
    %v5651 = vpop.permute.xlu0 %5650
    %5652 = vrot.lane.b32.xlu0 %v4998, 111
    %v5653 = vpop.permute.xlu0 %5652
    %5654 = vrot.lane.b32.xlu0 %v5004, 111
    %v5655 = vpop.permute.xlu0 %5654
    %5656 = vrot.lane.b32.xlu0 %v5010, 111
    %v5657 = vpop.permute.xlu0 %5656
    %5658 = vrot.lane.b32.xlu0 %v4994, 111
    %v5659 = vpop.permute.xlu0 %5658
    %5660 = vrot.lane.b32.xlu0 %v5000, 111
    %v5661 = vpop.permute.xlu0 %5660
    %5662 = vrot.lane.b32.xlu0 %v5006, 111
    %v5663 = vpop.permute.xlu0 %5662
    %5664 = vrot.lane.b32.xlu0 %v5012, 111
    %v5665 = vpop.permute.xlu0 %5664
    %v5666 = vsel %vm445, %v5651, %v5659
    %v5667 = vsel %vm445, %v5653, %v5661
    %v5668 = vsel %vm445, %v5655, %v5663
    %v5669 = vsel %vm445, %v5657, %v5665
    %v5670 = vsel %vm445, %v5659, %v5651
    %v5671 = vsel %vm445, %v5661, %v5653
    %v5672 = vsel %vm445, %v5663, %v5655
    %v5673 = vsel %vm445, %v5665, %v5657
    %v5674 = vmul.f32 %v5666, %v5635
    %v5675 = vmul.f32 %v5670, %v5639
    %v5676 = vmul.f32 %v5667, %v5635
    %v5677 = vmul.f32 %v5671, %v5639
    %v5678 = vmul.f32 %v5668, %v5635
    %v5679 = vmul.f32 %v5672, %v5639
    %v5680 = vmul.f32 %v5669, %v5635
    %v5681 = vmul.f32 %v5673, %v5639
    %v5682 = vld [vmem:[%s8] sm:$0xff]
    %v5683 = vld [vmem:[%s8 + $0x8] sm:$0xff]
    %v5684 = vld [vmem:[%s8 + $0x10] sm:$0xff]
    %v5685 = vld [vmem:[%s8 + $0x18] sm:$0xff]
    %v5686 = vld [vmem:[%s8 + $0x20] sm:$0xff]
    %v5687 = vld [vmem:[%s8 + $0x28] sm:$0xff]
    %v5688 = vld [vmem:[%s8 + $0x30] sm:$0xff]
    %v5689 = vld [vmem:[%s8 + $0x38] sm:$0xff]
    %v5690 = vld [vmem:[%s8 + $0x40] sm:$0xff]
    %v5691 = vld [vmem:[%s8 + $0x48] sm:$0xff]
    %v5692 = vld [vmem:[%s8 + $0x50] sm:$0xff]
    %v5693 = vld [vmem:[%s8 + $0x58] sm:$0xff]
    %v5694 = vld [vmem:[%s8 + $0x60] sm:$0xff]
    %v5695 = vld [vmem:[%s8 + $0x68] sm:$0xff]
    %v5696 = vld [vmem:[%s8 + $0x70] sm:$0xff]
    %v5697 = vld [vmem:[%s8 + $0x78] sm:$0xff]
    %v5698 = vld [vmem:[%s8 + $0x80] sm:$0xff]
    %v5699 = vld [vmem:[%s8 + $0x88] sm:$0xff]
    %v5700 = vld [vmem:[%s8 + $0x90] sm:$0xff]
    %v5701 = vld [vmem:[%s8 + $0x98] sm:$0xff]
    %v5702 = vld [vmem:[%s9] sm:$0xff]
    %v5703 = vld [vmem:[%s9 + $0x8] sm:$0xff]
    %v5704 = vld [vmem:[%s9 + $0x10] sm:$0xff]
    %v5705 = vld [vmem:[%s9 + $0x18] sm:$0xff]
    %5707 = vset.pattern.permute.xlu0 0
    %5708 = vperm.xlu0 %5707, %v5702
    %v5709 = vpop.permute.xlu0 %5708
    %5712 = vset.pattern.permute.xlu0 0
    %5713 = vperm.xlu0 %5712, %v5703
    %v5714 = vpop.permute.xlu0 %5713
    %5717 = vset.pattern.permute.xlu0 0
    %5718 = vperm.xlu0 %5717, %v5704
    %v5719 = vpop.permute.xlu0 %5718
    %5722 = vset.pattern.permute.xlu0 0
    %5723 = vperm.xlu0 %5722, %v5705
    %v5724 = vpop.permute.xlu0 %5723
    %vm5726 = vcmask 523264
    %v5728 = vsel %vm5726, %v5686, 0
    %v5731 = vsel %vm5726, %v5691, 0
    %v5734 = vsel %vm5726, %v5696, 0
    %v5737 = vsel %vm5726, %v5701, 0
    %5739 = vmatprep.subr.mxu0 %v5075
    %5740 = vmatpush1.msra.mxu0 %v5074
    %5741 = vmatprep.subr.mxu0 %v5077
    %5742 = vmatpush1.msra.mxu0 %v5076
    %5743 = vmatprep.subr.mxu0 %v5079
    %5744 = vmatpush1.msra.mxu0 %v5078
    %5745 = vmatprep.subr.mxu0 %v5081
    %5746 = vmatpush1.msra.mxu0 %v5080
    %5747 = vmatprep.subr.mxu0 %v5107
    %5748 = vmatpush1.msra.mxu0 %v5106
    %5749 = vmatprep.subr.mxu0 %v5109
    %5750 = vmatpush1.msra.mxu0 %v5108
    %5751 = vmatprep.subr.mxu0 %v5111
    %5752 = vmatpush1.msra.mxu0 %v5110
    %5753 = vmatprep.subr.mxu0 %v5113
    %5754 = vmatpush1.msra.mxu0 %v5112
    %5755 = vmatprep.subr.mxu0 %v5152
    %5756 = vmatpush1.msra.mxu0 %v5151
    %5757 = vmatprep.subr.mxu0 %v5154
    %5758 = vmatpush1.msra.mxu0 %v5153
    %5759 = vmatprep.subr.mxu0 %v5156
    %5760 = vmatpush1.msra.mxu0 %v5155
    %5761 = vmatprep.subr.mxu0 %v5158
    %5762 = vmatpush1.msra.mxu0 %v5157
    %5763 = vmatprep.subr.mxu0 %v5184
    %5764 = vmatpush1.msra.mxu0 %v5183
    %5765 = vmatprep.subr.mxu0 %v5186
    %5766 = vmatpush1.msra.mxu0 %v5185
    %5767 = vmatprep.subr.mxu0 %v5188
    %5768 = vmatpush1.msra.mxu0 %v5187
    %5769 = vmatprep.subr.mxu0 %v5190
    %5770 = vmatpush1.msra.mxu0 %v5189
    %5771 = vmatprep.subr.mxu0 %v5229
    %5772 = vmatpush1.msra.mxu0 %v5228
    %5773 = vmatprep.subr.mxu0 %v5231
    %5774 = vmatpush1.msra.mxu0 %v5230
    %5775 = vmatprep.subr.mxu0 %v5233
    %5776 = vmatpush1.msra.mxu0 %v5232
    %5777 = vmatprep.subr.mxu0 %v5235
    %5778 = vmatpush1.msra.mxu0 %v5234
    %5779 = vmatprep.subr.mxu0 %v5261
    %5780 = vmatpush1.msra.mxu0 %v5260
    %5781 = vmatprep.subr.mxu0 %v5263
    %5782 = vmatpush1.msra.mxu0 %v5262
    %5783 = vmatprep.subr.mxu0 %v5265
    %5784 = vmatpush1.msra.mxu0 %v5264
    %5785 = vmatprep.subr.mxu0 %v5267
    %5786 = vmatpush1.msra.mxu0 %v5266
    %5787 = vmatprep.subr.mxu0 %v5306
    %5788 = vmatpush1.msra.mxu0 %v5305
    %5789 = vmatprep.subr.mxu0 %v5308
    %5790 = vmatpush1.msra.mxu0 %v5307
    %5791 = vmatprep.subr.mxu0 %v5310
    %5792 = vmatpush1.msra.mxu0 %v5309
    %5793 = vmatprep.subr.mxu0 %v5312
    %5794 = vmatpush1.msra.mxu0 %v5311
    %5795 = vmatprep.subr.mxu0 %v5338
    %5796 = vmatpush1.msra.mxu0 %v5337
    %5797 = vmatprep.subr.mxu0 %v5340
    %5798 = vmatpush1.msra.mxu0 %v5339
    %5799 = vmatprep.subr.mxu0 %v5342
    %5800 = vmatpush1.msra.mxu0 %v5341
    %5801 = vmatprep.subr.mxu0 %v5344
    %5802 = vmatpush1.msra.mxu0 %v5343
    %5803 = vmatprep.mubr.f32.mxu0 %v5683
    %5804 = vmatmul.mubr.f32.gmra.mrb[0].mxu0 %v5682
    %v5805 = vpop.f32.mrb[0].mxu0
    %v5806 = vadd.f32 %v5709, %v5805
    %v5807 = vpop.f32.mrb[0].mxu0
    %v5808 = vadd.f32 %v5709, %v5807
    %5809 = vmatprep.mubr.f32.mxu0 %v5688
    %5810 = vmatmul.mubr.f32.gmra.mrb[0].mxu0 %v5687
    %v5811 = vpop.f32.mrb[0].mxu0
    %v5812 = vadd.f32 %v5714, %v5811
    %v5813 = vpop.f32.mrb[0].mxu0
    %v5814 = vadd.f32 %v5714, %v5813
    %5815 = vmatprep.mubr.f32.mxu0 %v5693
    %5816 = vmatmul.mubr.f32.gmra.mrb[0].mxu0 %v5692
    %v5817 = vpop.f32.mrb[0].mxu0
    %v5818 = vadd.f32 %v5719, %v5817
    %v5819 = vpop.f32.mrb[0].mxu0
    %v5820 = vadd.f32 %v5719, %v5819
    %5821 = vmatprep.mubr.f32.mxu0 %v5698
    %5822 = vmatmul.mubr.f32.gmra.mrb[0].mxu0 %v5697
    %v5823 = vpop.f32.mrb[0].mxu0
    %v5824 = vadd.f32 %v5724, %v5823
    %v5825 = vpop.f32.mrb[0].mxu0
    %v5826 = vadd.f32 %v5724, %v5825
    %5827 = vdwg.mxu0
    %5828 = vmatprep.subr.mxu0 %v5359
    %5829 = vmatpush1.msra.mxu0 %v5358
    %5830 = vmatprep.subr.mxu0 %v5361
    %5831 = vmatpush1.msra.mxu0 %v5360
    %5832 = vmatprep.subr.mxu0 %v5363
    %5833 = vmatpush1.msra.mxu0 %v5362
    %5834 = vmatprep.subr.mxu0 %v5365
    %5835 = vmatpush1.msra.mxu0 %v5364
    %5836 = vmatprep.subr.mxu0 %v5367
    %5837 = vmatpush1.msra.mxu0 %v5366
    %5838 = vmatprep.subr.mxu0 %v5369
    %5839 = vmatpush1.msra.mxu0 %v5368
    %5840 = vmatprep.subr.mxu0 %v5371
    %5841 = vmatpush1.msra.mxu0 %v5370
    %5842 = vmatprep.subr.mxu0 %v5373
    %5843 = vmatpush1.msra.mxu0 %v5372
    %5844 = vmatprep.subr.mxu0 %v5412
    %5845 = vmatpush1.msra.mxu0 %v5411
    %5846 = vmatprep.subr.mxu0 %v5414
    %5847 = vmatpush1.msra.mxu0 %v5413
    %5848 = vmatprep.subr.mxu0 %v5416
    %5849 = vmatpush1.msra.mxu0 %v5415
    %5850 = vmatprep.subr.mxu0 %v5418
    %5851 = vmatpush1.msra.mxu0 %v5417
    %5852 = vmatprep.subr.mxu0 %v5444
    %5853 = vmatpush1.msra.mxu0 %v5443
    %5854 = vmatprep.subr.mxu0 %v5446
    %5855 = vmatpush1.msra.mxu0 %v5445
    %5856 = vmatprep.subr.mxu0 %v5448
    %5857 = vmatpush1.msra.mxu0 %v5447
    %5858 = vmatprep.subr.mxu0 %v5450
    %5859 = vmatpush1.msra.mxu0 %v5449
    %5860 = vmatprep.subr.mxu0 %v5489
    %5861 = vmatpush1.msra.mxu0 %v5488
    %5862 = vmatprep.subr.mxu0 %v5491
    %5863 = vmatpush1.msra.mxu0 %v5490
    %5864 = vmatprep.subr.mxu0 %v5493
    %5865 = vmatpush1.msra.mxu0 %v5492
    %5866 = vmatprep.subr.mxu0 %v5495
    %5867 = vmatpush1.msra.mxu0 %v5494
    %5868 = vmatprep.subr.mxu0 %v5521
    %5869 = vmatpush1.msra.mxu0 %v5520
    %5870 = vmatprep.subr.mxu0 %v5523
    %5871 = vmatpush1.msra.mxu0 %v5522
    %5872 = vmatprep.subr.mxu0 %v5525
    %5873 = vmatpush1.msra.mxu0 %v5524
    %5874 = vmatprep.subr.mxu0 %v5527
    %5875 = vmatpush1.msra.mxu0 %v5526
    %5876 = vmatprep.subr.mxu0 %v5566
    %5877 = vmatpush1.msra.mxu0 %v5565
    %5878 = vmatprep.subr.mxu0 %v5568
    %5879 = vmatpush1.msra.mxu0 %v5567
    %5880 = vmatprep.subr.mxu0 %v5570
    %5881 = vmatpush1.msra.mxu0 %v5569
    %5882 = vmatprep.subr.mxu0 %v5572
    %5883 = vmatpush1.msra.mxu0 %v5571
    %5884 = vmatprep.subr.mxu0 %v5598
    %5885 = vmatpush1.msra.mxu0 %v5597
    %5886 = vmatprep.subr.mxu0 %v5600
    %5887 = vmatpush1.msra.mxu0 %v5599
    %5888 = vmatprep.subr.mxu0 %v5602
    %5889 = vmatpush1.msra.mxu0 %v5601
    %5890 = vmatprep.subr.mxu0 %v5604
    %5891 = vmatpush1.msra.mxu0 %v5603
    %5892 = vmatprep.mubr.f32.mxu0 %v5685
    %5893 = vmatmul.mubr.f32.gmra.mrb[0].mxu0 %v5684
    %v5894 = vpop.f32.mrb[0].mxu0
    %v5895 = vadd.f32 %v5806, %v5894
    %v5896 = vpop.f32.mrb[0].mxu0
    %v5897 = vadd.f32 %v5808, %v5896
    %5898 = vmatprep.mubr.f32.mxu0 %v5690
    %5899 = vmatmul.mubr.f32.gmra.mrb[0].mxu0 %v5689
    %v5900 = vpop.f32.mrb[0].mxu0
    %v5901 = vadd.f32 %v5812, %v5900
    %v5902 = vpop.f32.mrb[0].mxu0
    %v5903 = vadd.f32 %v5814, %v5902
    %5904 = vmatprep.mubr.f32.mxu0 %v5695
    %5905 = vmatmul.mubr.f32.gmra.mrb[0].mxu0 %v5694
    %v5906 = vpop.f32.mrb[0].mxu0
    %v5907 = vadd.f32 %v5818, %v5906
    %v5908 = vpop.f32.mrb[0].mxu0
    %v5909 = vadd.f32 %v5820, %v5908
    %5910 = vmatprep.mubr.f32.mxu0 %v5700
    %5911 = vmatmul.mubr.f32.gmra.mrb[0].mxu0 %v5699
    %v5912 = vpop.f32.mrb[0].mxu0
    %v5913 = vadd.f32 %v5824, %v5912
    %v5914 = vpop.f32.mrb[0].mxu0
    %v5915 = vadd.f32 %v5826, %v5914
    %5916 = vdwg.mxu0
    %5917 = vmatprep.subr.mxu0 %v5643
    %5918 = vmatpush1.msra.mxu0 %v5642
    %5919 = vmatprep.subr.mxu0 %v5645
    %5920 = vmatpush1.msra.mxu0 %v5644
    %5921 = vmatprep.subr.mxu0 %v5647
    %5922 = vmatpush1.msra.mxu0 %v5646
    %5923 = vmatprep.subr.mxu0 %v5649
    %5924 = vmatpush1.msra.mxu0 %v5648
    %5925 = vmatprep.subr.mxu0 %v5675
    %5926 = vmatpush1.msra.mxu0 %v5674
    %5927 = vmatprep.subr.mxu0 %v5677
    %5928 = vmatpush1.msra.mxu0 %v5676
    %5929 = vmatprep.subr.mxu0 %v5679
    %5930 = vmatpush1.msra.mxu0 %v5678
    %5931 = vmatprep.subr.mxu0 %v5681
    %5932 = vmatpush1.msra.mxu0 %v5680
    %5933 = vmatprep.subr.mxu0 0.0
    %5934 = vmatpush1.msra.mxu0 0.0
    %5935 = vmatprep.subr.mxu0 0.0
    %5936 = vmatpush1.msra.mxu0 0.0
    %5937 = vmatprep.subr.mxu0 0.0
    %5938 = vmatpush1.msra.mxu0 0.0
    %5939 = vmatprep.subr.mxu0 0.0
    %5940 = vmatpush1.msra.mxu0 0.0
    %5941 = vmatprep.subr.mxu0 0.0
    %5942 = vmatpush1.msra.mxu0 0.0
    %5943 = vmatprep.subr.mxu0 0.0
    %5944 = vmatpush1.msra.mxu0 0.0
    %5945 = vmatprep.subr.mxu0 0.0
    %5946 = vmatpush1.msra.mxu0 0.0
    %5947 = vmatprep.subr.mxu0 0.0
    %5948 = vmatpush1.msra.mxu0 0.0
    %5949 = vmatprep.subr.mxu0 0.0
    %5950 = vmatpush1.msra.mxu0 0.0
    %5951 = vmatprep.subr.mxu0 0.0
    %5952 = vmatpush1.msra.mxu0 0.0
    %5953 = vmatprep.subr.mxu0 0.0
    %5954 = vmatpush1.msra.mxu0 0.0
    %5955 = vmatprep.subr.mxu0 0.0
    %5956 = vmatpush1.msra.mxu0 0.0
    %5957 = vmatprep.subr.mxu0 0.0
    %5958 = vmatpush1.msra.mxu0 0.0
    %5959 = vmatprep.subr.mxu0 0.0
    %5960 = vmatpush1.msra.mxu0 0.0
    %5961 = vmatprep.subr.mxu0 0.0
    %5962 = vmatpush1.msra.mxu0 0.0
    %5963 = vmatprep.subr.mxu0 0.0
    %5964 = vmatpush1.msra.mxu0 0.0
    %5965 = vmatprep.subr.mxu0 0.0
    %5966 = vmatpush1.msra.mxu0 0.0
    %5967 = vmatprep.subr.mxu0 0.0
    %5968 = vmatpush1.msra.mxu0 0.0
    %5969 = vmatprep.subr.mxu0 0.0
    %5970 = vmatpush1.msra.mxu0 0.0
    %5971 = vmatprep.subr.mxu0 0.0
    %5972 = vmatpush1.msra.mxu0 0.0
    %5973 = vmatprep.subr.mxu0 0.0
    %5974 = vmatpush1.msra.mxu0 0.0
    %5975 = vmatprep.subr.mxu0 0.0
    %5976 = vmatpush1.msra.mxu0 0.0
    %5977 = vmatprep.subr.mxu0 0.0
    %5978 = vmatpush1.msra.mxu0 0.0
    %5979 = vmatprep.subr.mxu0 0.0
    %5980 = vmatpush1.msra.mxu0 0.0
    %5981 = vmatprep.mubr.f32.mxu0 0.0
    %5982 = vmatmul.mubr.f32.gmra.mrb[0].mxu0 %v5728
    %v5983 = vpop.f32.mrb[0].mxu0
    %v5984 = vadd.f32 %v5895, %v5983
    %v5985 = vpop.f32.mrb[0].mxu0
    %v5986 = vadd.f32 %v5897, %v5985
    %5987 = vmatprep.mubr.f32.mxu0 0.0
    %5988 = vmatmul.mubr.f32.gmra.mrb[0].mxu0 %v5731
    %v5989 = vpop.f32.mrb[0].mxu0
    %v5990 = vadd.f32 %v5901, %v5989
    %v5991 = vpop.f32.mrb[0].mxu0
    %v5992 = vadd.f32 %v5903, %v5991
    %5993 = vmatprep.mubr.f32.mxu0 0.0
    %5994 = vmatmul.mubr.f32.gmra.mrb[0].mxu0 %v5734
    %v5995 = vpop.f32.mrb[0].mxu0
    %v5996 = vadd.f32 %v5907, %v5995
    %v5997 = vpop.f32.mrb[0].mxu0
    %v5998 = vadd.f32 %v5909, %v5997
    %5999 = vmatprep.mubr.f32.mxu0 0.0
    %6000 = vmatmul.mubr.f32.gmra.mrb[0].mxu0 %v5737
    %v6001 = vpop.f32.mrb[0].mxu0
    %v6002 = vadd.f32 %v5913, %v6001
    %v6003 = vpop.f32.mrb[0].mxu0
    %v6004 = vadd.f32 %v5915, %v6003
    %6005 = vdwg.mxu0
    %v6006 = vmax.f32 %v5984, 0.0
    %v6007 = vmax.f32 %v5986, 0.0
    %v6008 = vmax.f32 %v5990, 0.0
    %v6009 = vmax.f32 %v5992, 0.0
    %v6010 = vmax.f32 %v5996, 0.0
    %v6011 = vmax.f32 %v5998, 0.0
    %v6012 = vmax.f32 %v6002, 0.0
    %v6013 = vmax.f32 %v6004, 0.0
    %6014 = vrot.lane.b32.xlu0 %v4903, 17
    %v6015 = vpop.permute.xlu0 %6014
    %6016 = vrot.lane.b32.xlu0 %v4909, 17
    %v6017 = vpop.permute.xlu0 %6016
    %6018 = vrot.lane.b32.xlu0 %v4915, 17
    %v6019 = vpop.permute.xlu0 %6018
    %6020 = vrot.lane.b32.xlu0 %v4921, 17
    %v6021 = vpop.permute.xlu0 %6020
    %6022 = vrot.lane.b32.xlu0 %v4905, 17
    %v6023 = vpop.permute.xlu0 %6022
    %6024 = vrot.lane.b32.xlu0 %v4911, 17
    %v6025 = vpop.permute.xlu0 %6024
    %6026 = vrot.lane.b32.xlu0 %v4917, 17
    %v6027 = vpop.permute.xlu0 %6026
    %6028 = vrot.lane.b32.xlu0 %v4923, 17
    %v6029 = vpop.permute.xlu0 %6028
    %v6030 = vsel %vm102, %v6015, %v6023
    %v6031 = vsel %vm102, %v6017, %v6025
    %v6032 = vsel %vm102, %v6019, %v6027
    %v6033 = vsel %vm102, %v6021, %v6029
    %v6034 = vsel %vm102, %v6023, %v6015
    %v6035 = vsel %vm102, %v6025, %v6017
    %v6036 = vsel %vm102, %v6027, %v6019
    %v6037 = vsel %vm102, %v6029, %v6021
    %v6038 = vmul.f32 %v6034, %v5067
    %v6039 = vmul.f32 %v6030, %v5071
    %v6040 = vmul.f32 %v6035, %v5067
    %v6041 = vmul.f32 %v6031, %v5071
    %v6042 = vmul.f32 %v6036, %v5067
    %v6043 = vmul.f32 %v6032, %v5071
    %v6044 = vmul.f32 %v6037, %v5067
    %v6045 = vmul.f32 %v6033, %v5071
    %6046 = vrot.lane.b32.xlu0 %v5016, 17
    %v6047 = vpop.permute.xlu0 %6046
    %6048 = vrot.lane.b32.xlu0 %v5022, 17
    %v6049 = vpop.permute.xlu0 %6048
    %6050 = vrot.lane.b32.xlu0 %v5028, 17
    %v6051 = vpop.permute.xlu0 %6050
    %6052 = vrot.lane.b32.xlu0 %v5034, 17
    %v6053 = vpop.permute.xlu0 %6052
    %6054 = vrot.lane.b32.xlu0 %v5018, 17
    %v6055 = vpop.permute.xlu0 %6054
    %6056 = vrot.lane.b32.xlu0 %v5024, 17
    %v6057 = vpop.permute.xlu0 %6056
    %6058 = vrot.lane.b32.xlu0 %v5030, 17
    %v6059 = vpop.permute.xlu0 %6058
    %6060 = vrot.lane.b32.xlu0 %v5036, 17
    %v6061 = vpop.permute.xlu0 %6060
    %v6062 = vsel %vm102, %v6047, %v6055
    %v6063 = vsel %vm102, %v6049, %v6057
    %v6064 = vsel %vm102, %v6051, %v6059
    %v6065 = vsel %vm102, %v6053, %v6061
    %v6066 = vsel %vm102, %v6055, %v6047
    %v6067 = vsel %vm102, %v6057, %v6049
    %v6068 = vsel %vm102, %v6059, %v6051
    %v6069 = vsel %vm102, %v6061, %v6053
    %v6070 = vmul.f32 %v6066, %v5067
    %v6071 = vmul.f32 %v6062, %v5071
    %v6072 = vmul.f32 %v6067, %v5067
    %v6073 = vmul.f32 %v6063, %v5071
    %v6074 = vmul.f32 %v6068, %v5067
    %v6075 = vmul.f32 %v6064, %v5071
    %v6076 = vmul.f32 %v6069, %v5067
    %v6077 = vmul.f32 %v6065, %v5071
    %6078 = vrot.lane.b32.xlu0 %v4903, 16
    %v6079 = vpop.permute.xlu0 %6078
    %6080 = vrot.lane.b32.xlu0 %v4909, 16
    %v6081 = vpop.permute.xlu0 %6080
    %6082 = vrot.lane.b32.xlu0 %v4915, 16
    %v6083 = vpop.permute.xlu0 %6082
    %6084 = vrot.lane.b32.xlu0 %v4921, 16
    %v6085 = vpop.permute.xlu0 %6084
    %6086 = vrot.lane.b32.xlu0 %v4905, 16
    %v6087 = vpop.permute.xlu0 %6086
    %6088 = vrot.lane.b32.xlu0 %v4911, 16
    %v6089 = vpop.permute.xlu0 %6088
    %6090 = vrot.lane.b32.xlu0 %v4917, 16
    %v6091 = vpop.permute.xlu0 %6090
    %6092 = vrot.lane.b32.xlu0 %v4923, 16
    %v6093 = vpop.permute.xlu0 %6092
    %v6094 = vsel %vm148, %v6079, %v6087
    %v6095 = vsel %vm148, %v6081, %v6089
    %v6096 = vsel %vm148, %v6083, %v6091
    %v6097 = vsel %vm148, %v6085, %v6093
    %v6098 = vsel %vm148, %v6087, %v6079
    %v6099 = vsel %vm148, %v6089, %v6081
    %v6100 = vsel %vm148, %v6091, %v6083
    %v6101 = vsel %vm148, %v6093, %v6085
    %v6102 = vmul.f32 %v6098, %v5144
    %v6103 = vmul.f32 %v6094, %v5148
    %v6104 = vmul.f32 %v6099, %v5144
    %v6105 = vmul.f32 %v6095, %v5148
    %v6106 = vmul.f32 %v6100, %v5144
    %v6107 = vmul.f32 %v6096, %v5148
    %v6108 = vmul.f32 %v6101, %v5144
    %v6109 = vmul.f32 %v6097, %v5148
    %6110 = vrot.lane.b32.xlu0 %v5016, 16
    %v6111 = vpop.permute.xlu0 %6110
    %6112 = vrot.lane.b32.xlu0 %v5022, 16
    %v6113 = vpop.permute.xlu0 %6112
    %6114 = vrot.lane.b32.xlu0 %v5028, 16
    %v6115 = vpop.permute.xlu0 %6114
    %6116 = vrot.lane.b32.xlu0 %v5034, 16
    %v6117 = vpop.permute.xlu0 %6116
    %6118 = vrot.lane.b32.xlu0 %v5018, 16
    %v6119 = vpop.permute.xlu0 %6118
    %6120 = vrot.lane.b32.xlu0 %v5024, 16
    %v6121 = vpop.permute.xlu0 %6120
    %6122 = vrot.lane.b32.xlu0 %v5030, 16
    %v6123 = vpop.permute.xlu0 %6122
    %6124 = vrot.lane.b32.xlu0 %v5036, 16
    %v6125 = vpop.permute.xlu0 %6124
    %v6126 = vsel %vm148, %v6111, %v6119
    %v6127 = vsel %vm148, %v6113, %v6121
    %v6128 = vsel %vm148, %v6115, %v6123
    %v6129 = vsel %vm148, %v6117, %v6125
    %v6130 = vsel %vm148, %v6119, %v6111
    %v6131 = vsel %vm148, %v6121, %v6113
    %v6132 = vsel %vm148, %v6123, %v6115
    %v6133 = vsel %vm148, %v6125, %v6117
    %v6134 = vmul.f32 %v6130, %v5144
    %v6135 = vmul.f32 %v6126, %v5148
    %v6136 = vmul.f32 %v6131, %v5144
    %v6137 = vmul.f32 %v6127, %v5148
    %v6138 = vmul.f32 %v6132, %v5144
    %v6139 = vmul.f32 %v6128, %v5148
    %v6140 = vmul.f32 %v6133, %v5144
    %v6141 = vmul.f32 %v6129, %v5148
    %6142 = vrot.lane.b32.xlu0 %v4903, 15
    %v6143 = vpop.permute.xlu0 %6142
    %6144 = vrot.lane.b32.xlu0 %v4909, 15
    %v6145 = vpop.permute.xlu0 %6144
    %6146 = vrot.lane.b32.xlu0 %v4915, 15
    %v6147 = vpop.permute.xlu0 %6146
    %6148 = vrot.lane.b32.xlu0 %v4921, 15
    %v6149 = vpop.permute.xlu0 %6148
    %6150 = vrot.lane.b32.xlu0 %v4905, 15
    %v6151 = vpop.permute.xlu0 %6150
    %6152 = vrot.lane.b32.xlu0 %v4911, 15
    %v6153 = vpop.permute.xlu0 %6152
    %6154 = vrot.lane.b32.xlu0 %v4917, 15
    %v6155 = vpop.permute.xlu0 %6154
    %6156 = vrot.lane.b32.xlu0 %v4923, 15
    %v6157 = vpop.permute.xlu0 %6156
    %v6158 = vsel %vm194, %v6143, %v6151
    %v6159 = vsel %vm194, %v6145, %v6153
    %v6160 = vsel %vm194, %v6147, %v6155
    %v6161 = vsel %vm194, %v6149, %v6157
    %v6162 = vsel %vm194, %v6151, %v6143
    %v6163 = vsel %vm194, %v6153, %v6145
    %v6164 = vsel %vm194, %v6155, %v6147
    %v6165 = vsel %vm194, %v6157, %v6149
    %v6166 = vmul.f32 %v6162, %v5221
    %v6167 = vmul.f32 %v6158, %v5225
    %v6168 = vmul.f32 %v6163, %v5221
    %v6169 = vmul.f32 %v6159, %v5225
    %v6170 = vmul.f32 %v6164, %v5221
    %v6171 = vmul.f32 %v6160, %v5225
    %v6172 = vmul.f32 %v6165, %v5221
    %v6173 = vmul.f32 %v6161, %v5225
    %6174 = vrot.lane.b32.xlu0 %v5016, 15
    %v6175 = vpop.permute.xlu0 %6174
    %6176 = vrot.lane.b32.xlu0 %v5022, 15
    %v6177 = vpop.permute.xlu0 %6176
    %6178 = vrot.lane.b32.xlu0 %v5028, 15
    %v6179 = vpop.permute.xlu0 %6178
    %6180 = vrot.lane.b32.xlu0 %v5034, 15
    %v6181 = vpop.permute.xlu0 %6180
    %6182 = vrot.lane.b32.xlu0 %v5018, 15
    %v6183 = vpop.permute.xlu0 %6182
    %6184 = vrot.lane.b32.xlu0 %v5024, 15
    %v6185 = vpop.permute.xlu0 %6184
    %6186 = vrot.lane.b32.xlu0 %v5030, 15
    %v6187 = vpop.permute.xlu0 %6186
    %6188 = vrot.lane.b32.xlu0 %v5036, 15
    %v6189 = vpop.permute.xlu0 %6188
    %v6190 = vsel %vm194, %v6175, %v6183
    %v6191 = vsel %vm194, %v6177, %v6185
    %v6192 = vsel %vm194, %v6179, %v6187
    %v6193 = vsel %vm194, %v6181, %v6189
    %v6194 = vsel %vm194, %v6183, %v6175
    %v6195 = vsel %vm194, %v6185, %v6177
    %v6196 = vsel %vm194, %v6187, %v6179
    %v6197 = vsel %vm194, %v6189, %v6181
    %v6198 = vmul.f32 %v6194, %v5221
    %v6199 = vmul.f32 %v6190, %v5225
    %v6200 = vmul.f32 %v6195, %v5221
    %v6201 = vmul.f32 %v6191, %v5225
    %v6202 = vmul.f32 %v6196, %v5221
    %v6203 = vmul.f32 %v6192, %v5225
    %v6204 = vmul.f32 %v6197, %v5221
    %v6205 = vmul.f32 %v6193, %v5225
    %6206 = vrot.lane.b32.xlu0 %v4903, 1
    %v6207 = vpop.permute.xlu0 %6206
    %6208 = vrot.lane.b32.xlu0 %v4909, 1
    %v6209 = vpop.permute.xlu0 %6208
    %6210 = vrot.lane.b32.xlu0 %v4915, 1
    %v6211 = vpop.permute.xlu0 %6210
    %6212 = vrot.lane.b32.xlu0 %v4921, 1
    %v6213 = vpop.permute.xlu0 %6212
    %6214 = vrot.lane.b32.xlu0 %v4905, 1
    %v6215 = vpop.permute.xlu0 %6214
    %6216 = vrot.lane.b32.xlu0 %v4911, 1
    %v6217 = vpop.permute.xlu0 %6216
    %6218 = vrot.lane.b32.xlu0 %v4917, 1
    %v6219 = vpop.permute.xlu0 %6218
    %6220 = vrot.lane.b32.xlu0 %v4923, 1
    %v6221 = vpop.permute.xlu0 %6220
    %v6222 = vsel %vm240, %v6207, %v6215
    %v6223 = vsel %vm240, %v6209, %v6217
    %v6224 = vsel %vm240, %v6211, %v6219
    %v6225 = vsel %vm240, %v6213, %v6221
    %v6226 = vsel %vm240, %v6215, %v6207
    %v6227 = vsel %vm240, %v6217, %v6209
    %v6228 = vsel %vm240, %v6219, %v6211
    %v6229 = vsel %vm240, %v6221, %v6213
    %v6230 = vmul.f32 %v6226, %v5298
    %v6231 = vmul.f32 %v6222, %v5302
    %v6232 = vmul.f32 %v6227, %v5298
    %v6233 = vmul.f32 %v6223, %v5302
    %v6234 = vmul.f32 %v6228, %v5298
    %v6235 = vmul.f32 %v6224, %v5302
    %v6236 = vmul.f32 %v6229, %v5298
    %v6237 = vmul.f32 %v6225, %v5302
    %6238 = vrot.lane.b32.xlu0 %v5016, 1
    %v6239 = vpop.permute.xlu0 %6238
    %6240 = vrot.lane.b32.xlu0 %v5022, 1
    %v6241 = vpop.permute.xlu0 %6240
    %6242 = vrot.lane.b32.xlu0 %v5028, 1
    %v6243 = vpop.permute.xlu0 %6242
    %6244 = vrot.lane.b32.xlu0 %v5034, 1
    %v6245 = vpop.permute.xlu0 %6244
    %6246 = vrot.lane.b32.xlu0 %v5018, 1
    %v6247 = vpop.permute.xlu0 %6246
    %6248 = vrot.lane.b32.xlu0 %v5024, 1
    %v6249 = vpop.permute.xlu0 %6248
    %6250 = vrot.lane.b32.xlu0 %v5030, 1
    %v6251 = vpop.permute.xlu0 %6250
    %6252 = vrot.lane.b32.xlu0 %v5036, 1
    %v6253 = vpop.permute.xlu0 %6252
    %v6254 = vsel %vm240, %v6239, %v6247
    %v6255 = vsel %vm240, %v6241, %v6249
    %v6256 = vsel %vm240, %v6243, %v6251
    %v6257 = vsel %vm240, %v6245, %v6253
    %v6258 = vsel %vm240, %v6247, %v6239
    %v6259 = vsel %vm240, %v6249, %v6241
    %v6260 = vsel %vm240, %v6251, %v6243
    %v6261 = vsel %vm240, %v6253, %v6245
    %v6262 = vmul.f32 %v6258, %v5298
    %v6263 = vmul.f32 %v6254, %v5302
    %v6264 = vmul.f32 %v6259, %v5298
    %v6265 = vmul.f32 %v6255, %v5302
    %v6266 = vmul.f32 %v6260, %v5298
    %v6267 = vmul.f32 %v6256, %v5302
    %v6268 = vmul.f32 %v6261, %v5298
    %v6269 = vmul.f32 %v6257, %v5302
    %v6270 = vmul.f32 %v4903, %v5351
    %v6271 = vmul.f32 %v4905, %v5355
    %v6272 = vmul.f32 %v4909, %v5351
    %v6273 = vmul.f32 %v4911, %v5355
    %v6274 = vmul.f32 %v4915, %v5351
    %v6275 = vmul.f32 %v4917, %v5355
    %v6276 = vmul.f32 %v4921, %v5351
    %v6277 = vmul.f32 %v4923, %v5355
    %v6278 = vmul.f32 %v5016, %v5351
    %v6279 = vmul.f32 %v5018, %v5355
    %v6280 = vmul.f32 %v5022, %v5351
    %v6281 = vmul.f32 %v5024, %v5355
    %v6282 = vmul.f32 %v5028, %v5351
    %v6283 = vmul.f32 %v5030, %v5355
    %v6284 = vmul.f32 %v5034, %v5351
    %v6285 = vmul.f32 %v5036, %v5355
    %6286 = vrot.lane.b32.xlu0 %v4903, 127
    %v6287 = vpop.permute.xlu0 %6286
    %6288 = vrot.lane.b32.xlu0 %v4909, 127
    %v6289 = vpop.permute.xlu0 %6288
    %6290 = vrot.lane.b32.xlu0 %v4915, 127
    %v6291 = vpop.permute.xlu0 %6290
    %6292 = vrot.lane.b32.xlu0 %v4921, 127
    %v6293 = vpop.permute.xlu0 %6292
    %6294 = vrot.lane.b32.xlu0 %v4905, 127
    %v6295 = vpop.permute.xlu0 %6294
    %6296 = vrot.lane.b32.xlu0 %v4911, 127
    %v6297 = vpop.permute.xlu0 %6296
    %6298 = vrot.lane.b32.xlu0 %v4917, 127
    %v6299 = vpop.permute.xlu0 %6298
    %6300 = vrot.lane.b32.xlu0 %v4923, 127
    %v6301 = vpop.permute.xlu0 %6300
    %v6302 = vsel %vm307, %v6287, %v6295
    %v6303 = vsel %vm307, %v6289, %v6297
    %v6304 = vsel %vm307, %v6291, %v6299
    %v6305 = vsel %vm307, %v6293, %v6301
    %v6306 = vsel %vm307, %v6295, %v6287
    %v6307 = vsel %vm307, %v6297, %v6289
    %v6308 = vsel %vm307, %v6299, %v6291
    %v6309 = vsel %vm307, %v6301, %v6293
    %v6310 = vmul.f32 %v6302, %v5404
    %v6311 = vmul.f32 %v6306, %v5408
    %v6312 = vmul.f32 %v6303, %v5404
    %v6313 = vmul.f32 %v6307, %v5408
    %v6314 = vmul.f32 %v6304, %v5404
    %v6315 = vmul.f32 %v6308, %v5408
    %v6316 = vmul.f32 %v6305, %v5404
    %v6317 = vmul.f32 %v6309, %v5408
    %6318 = vrot.lane.b32.xlu0 %v5016, 127
    %v6319 = vpop.permute.xlu0 %6318
    %6320 = vrot.lane.b32.xlu0 %v5022, 127
    %v6321 = vpop.permute.xlu0 %6320
    %6322 = vrot.lane.b32.xlu0 %v5028, 127
    %v6323 = vpop.permute.xlu0 %6322
    %6324 = vrot.lane.b32.xlu0 %v5034, 127
    %v6325 = vpop.permute.xlu0 %6324
    %6326 = vrot.lane.b32.xlu0 %v5018, 127
    %v6327 = vpop.permute.xlu0 %6326
    %6328 = vrot.lane.b32.xlu0 %v5024, 127
    %v6329 = vpop.permute.xlu0 %6328
    %6330 = vrot.lane.b32.xlu0 %v5030, 127
    %v6331 = vpop.permute.xlu0 %6330
    %6332 = vrot.lane.b32.xlu0 %v5036, 127
    %v6333 = vpop.permute.xlu0 %6332
    %v6334 = vsel %vm307, %v6319, %v6327
    %v6335 = vsel %vm307, %v6321, %v6329
    %v6336 = vsel %vm307, %v6323, %v6331
    %v6337 = vsel %vm307, %v6325, %v6333
    %v6338 = vsel %vm307, %v6327, %v6319
    %v6339 = vsel %vm307, %v6329, %v6321
    %v6340 = vsel %vm307, %v6331, %v6323
    %v6341 = vsel %vm307, %v6333, %v6325
    %v6342 = vmul.f32 %v6334, %v5404
    %v6343 = vmul.f32 %v6338, %v5408
    %v6344 = vmul.f32 %v6335, %v5404
    %v6345 = vmul.f32 %v6339, %v5408
    %v6346 = vmul.f32 %v6336, %v5404
    %v6347 = vmul.f32 %v6340, %v5408
    %v6348 = vmul.f32 %v6337, %v5404
    %v6349 = vmul.f32 %v6341, %v5408
    %6350 = vrot.lane.b32.xlu0 %v4903, 113
    %v6351 = vpop.permute.xlu0 %6350
    %6352 = vrot.lane.b32.xlu0 %v4909, 113
    %v6353 = vpop.permute.xlu0 %6352
    %6354 = vrot.lane.b32.xlu0 %v4915, 113
    %v6355 = vpop.permute.xlu0 %6354
    %6356 = vrot.lane.b32.xlu0 %v4921, 113
    %v6357 = vpop.permute.xlu0 %6356
    %6358 = vrot.lane.b32.xlu0 %v4905, 113
    %v6359 = vpop.permute.xlu0 %6358
    %6360 = vrot.lane.b32.xlu0 %v4911, 113
    %v6361 = vpop.permute.xlu0 %6360
    %6362 = vrot.lane.b32.xlu0 %v4917, 113
    %v6363 = vpop.permute.xlu0 %6362
    %6364 = vrot.lane.b32.xlu0 %v4923, 113
    %v6365 = vpop.permute.xlu0 %6364
    %v6366 = vsel %vm353, %v6351, %v6359
    %v6367 = vsel %vm353, %v6353, %v6361
    %v6368 = vsel %vm353, %v6355, %v6363
    %v6369 = vsel %vm353, %v6357, %v6365
    %v6370 = vsel %vm353, %v6359, %v6351
    %v6371 = vsel %vm353, %v6361, %v6353
    %v6372 = vsel %vm353, %v6363, %v6355
    %v6373 = vsel %vm353, %v6365, %v6357
    %v6374 = vmul.f32 %v6366, %v5481
    %v6375 = vmul.f32 %v6370, %v5485
    %v6376 = vmul.f32 %v6367, %v5481
    %v6377 = vmul.f32 %v6371, %v5485
    %v6378 = vmul.f32 %v6368, %v5481
    %v6379 = vmul.f32 %v6372, %v5485
    %v6380 = vmul.f32 %v6369, %v5481
    %v6381 = vmul.f32 %v6373, %v5485
    %6382 = vrot.lane.b32.xlu0 %v5016, 113
    %v6383 = vpop.permute.xlu0 %6382
    %6384 = vrot.lane.b32.xlu0 %v5022, 113
    %v6385 = vpop.permute.xlu0 %6384
    %6386 = vrot.lane.b32.xlu0 %v5028, 113
    %v6387 = vpop.permute.xlu0 %6386
    %6388 = vrot.lane.b32.xlu0 %v5034, 113
    %v6389 = vpop.permute.xlu0 %6388
    %6390 = vrot.lane.b32.xlu0 %v5018, 113
    %v6391 = vpop.permute.xlu0 %6390
    %6392 = vrot.lane.b32.xlu0 %v5024, 113
    %v6393 = vpop.permute.xlu0 %6392
    %6394 = vrot.lane.b32.xlu0 %v5030, 113
    %v6395 = vpop.permute.xlu0 %6394
    %6396 = vrot.lane.b32.xlu0 %v5036, 113
    %v6397 = vpop.permute.xlu0 %6396
    %v6398 = vsel %vm353, %v6383, %v6391
    %v6399 = vsel %vm353, %v6385, %v6393
    %v6400 = vsel %vm353, %v6387, %v6395
    %v6401 = vsel %vm353, %v6389, %v6397
    %v6402 = vsel %vm353, %v6391, %v6383
    %v6403 = vsel %vm353, %v6393, %v6385
    %v6404 = vsel %vm353, %v6395, %v6387
    %v6405 = vsel %vm353, %v6397, %v6389
    %v6406 = vmul.f32 %v6398, %v5481
    %v6407 = vmul.f32 %v6402, %v5485
    %v6408 = vmul.f32 %v6399, %v5481
    %v6409 = vmul.f32 %v6403, %v5485
    %v6410 = vmul.f32 %v6400, %v5481
    %v6411 = vmul.f32 %v6404, %v5485
    %v6412 = vmul.f32 %v6401, %v5481
    %v6413 = vmul.f32 %v6405, %v5485
    %6414 = vrot.lane.b32.xlu0 %v4903, 112
    %v6415 = vpop.permute.xlu0 %6414
    %6416 = vrot.lane.b32.xlu0 %v4909, 112
    %v6417 = vpop.permute.xlu0 %6416
    %6418 = vrot.lane.b32.xlu0 %v4915, 112
    %v6419 = vpop.permute.xlu0 %6418
    %6420 = vrot.lane.b32.xlu0 %v4921, 112
    %v6421 = vpop.permute.xlu0 %6420
    %6422 = vrot.lane.b32.xlu0 %v4905, 112
    %v6423 = vpop.permute.xlu0 %6422
    %6424 = vrot.lane.b32.xlu0 %v4911, 112
    %v6425 = vpop.permute.xlu0 %6424
    %6426 = vrot.lane.b32.xlu0 %v4917, 112
    %v6427 = vpop.permute.xlu0 %6426
    %6428 = vrot.lane.b32.xlu0 %v4923, 112
    %v6429 = vpop.permute.xlu0 %6428
    %v6430 = vsel %vm399, %v6415, %v6423
    %v6431 = vsel %vm399, %v6417, %v6425
    %v6432 = vsel %vm399, %v6419, %v6427
    %v6433 = vsel %vm399, %v6421, %v6429
    %v6434 = vsel %vm399, %v6423, %v6415
    %v6435 = vsel %vm399, %v6425, %v6417
    %v6436 = vsel %vm399, %v6427, %v6419
    %v6437 = vsel %vm399, %v6429, %v6421
    %v6438 = vmul.f32 %v6430, %v5558
    %v6439 = vmul.f32 %v6434, %v5562
    %v6440 = vmul.f32 %v6431, %v5558
    %v6441 = vmul.f32 %v6435, %v5562
    %v6442 = vmul.f32 %v6432, %v5558
    %v6443 = vmul.f32 %v6436, %v5562
    %v6444 = vmul.f32 %v6433, %v5558
    %v6445 = vmul.f32 %v6437, %v5562
    %6446 = vrot.lane.b32.xlu0 %v5016, 112
    %v6447 = vpop.permute.xlu0 %6446
    %6448 = vrot.lane.b32.xlu0 %v5022, 112
    %v6449 = vpop.permute.xlu0 %6448
    %6450 = vrot.lane.b32.xlu0 %v5028, 112
    %v6451 = vpop.permute.xlu0 %6450
    %6452 = vrot.lane.b32.xlu0 %v5034, 112
    %v6453 = vpop.permute.xlu0 %6452
    %6454 = vrot.lane.b32.xlu0 %v5018, 112
    %v6455 = vpop.permute.xlu0 %6454
    %6456 = vrot.lane.b32.xlu0 %v5024, 112
    %v6457 = vpop.permute.xlu0 %6456
    %6458 = vrot.lane.b32.xlu0 %v5030, 112
    %v6459 = vpop.permute.xlu0 %6458
    %6460 = vrot.lane.b32.xlu0 %v5036, 112
    %v6461 = vpop.permute.xlu0 %6460
    %v6462 = vsel %vm399, %v6447, %v6455
    %v6463 = vsel %vm399, %v6449, %v6457
    %v6464 = vsel %vm399, %v6451, %v6459
    %v6465 = vsel %vm399, %v6453, %v6461
    %v6466 = vsel %vm399, %v6455, %v6447
    %v6467 = vsel %vm399, %v6457, %v6449
    %v6468 = vsel %vm399, %v6459, %v6451
    %v6469 = vsel %vm399, %v6461, %v6453
    %v6470 = vmul.f32 %v6462, %v5558
    %v6471 = vmul.f32 %v6466, %v5562
    %v6472 = vmul.f32 %v6463, %v5558
    %v6473 = vmul.f32 %v6467, %v5562
    %v6474 = vmul.f32 %v6464, %v5558
    %v6475 = vmul.f32 %v6468, %v5562
    %v6476 = vmul.f32 %v6465, %v5558
    %v6477 = vmul.f32 %v6469, %v5562
    %6478 = vrot.lane.b32.xlu0 %v4903, 111
    %v6479 = vpop.permute.xlu0 %6478
    %6480 = vrot.lane.b32.xlu0 %v4909, 111
    %v6481 = vpop.permute.xlu0 %6480
    %6482 = vrot.lane.b32.xlu0 %v4915, 111
    %v6483 = vpop.permute.xlu0 %6482
    %6484 = vrot.lane.b32.xlu0 %v4921, 111
    %v6485 = vpop.permute.xlu0 %6484
    %6486 = vrot.lane.b32.xlu0 %v4905, 111
    %v6487 = vpop.permute.xlu0 %6486
    %6488 = vrot.lane.b32.xlu0 %v4911, 111
    %v6489 = vpop.permute.xlu0 %6488
    %6490 = vrot.lane.b32.xlu0 %v4917, 111
    %v6491 = vpop.permute.xlu0 %6490
    %6492 = vrot.lane.b32.xlu0 %v4923, 111
    %v6493 = vpop.permute.xlu0 %6492
    %v6494 = vsel %vm445, %v6479, %v6487
    %v6495 = vsel %vm445, %v6481, %v6489
    %v6496 = vsel %vm445, %v6483, %v6491
    %v6497 = vsel %vm445, %v6485, %v6493
    %v6498 = vsel %vm445, %v6487, %v6479
    %v6499 = vsel %vm445, %v6489, %v6481
    %v6500 = vsel %vm445, %v6491, %v6483
    %v6501 = vsel %vm445, %v6493, %v6485
    %v6502 = vmul.f32 %v6494, %v5635
    %v6503 = vmul.f32 %v6498, %v5639
    %v6504 = vmul.f32 %v6495, %v5635
    %v6505 = vmul.f32 %v6499, %v5639
    %v6506 = vmul.f32 %v6496, %v5635
    %v6507 = vmul.f32 %v6500, %v5639
    %v6508 = vmul.f32 %v6497, %v5635
    %v6509 = vmul.f32 %v6501, %v5639
    %6510 = vrot.lane.b32.xlu0 %v5016, 111
    %v6511 = vpop.permute.xlu0 %6510
    %6512 = vrot.lane.b32.xlu0 %v5022, 111
    %v6513 = vpop.permute.xlu0 %6512
    %6514 = vrot.lane.b32.xlu0 %v5028, 111
    %v6515 = vpop.permute.xlu0 %6514
    %6516 = vrot.lane.b32.xlu0 %v5034, 111
    %v6517 = vpop.permute.xlu0 %6516
    %6518 = vrot.lane.b32.xlu0 %v5018, 111
    %v6519 = vpop.permute.xlu0 %6518
    %6520 = vrot.lane.b32.xlu0 %v5024, 111
    %v6521 = vpop.permute.xlu0 %6520
    %6522 = vrot.lane.b32.xlu0 %v5030, 111
    %v6523 = vpop.permute.xlu0 %6522
    %6524 = vrot.lane.b32.xlu0 %v5036, 111
    %v6525 = vpop.permute.xlu0 %6524
    %v6526 = vsel %vm445, %v6511, %v6519
    %v6527 = vsel %vm445, %v6513, %v6521
    %v6528 = vsel %vm445, %v6515, %v6523
    %v6529 = vsel %vm445, %v6517, %v6525
    %v6530 = vsel %vm445, %v6519, %v6511
    %v6531 = vsel %vm445, %v6521, %v6513
    %v6532 = vsel %vm445, %v6523, %v6515
    %v6533 = vsel %vm445, %v6525, %v6517
    %v6534 = vmul.f32 %v6526, %v5635
    %v6535 = vmul.f32 %v6530, %v5639
    %v6536 = vmul.f32 %v6527, %v5635
    %v6537 = vmul.f32 %v6531, %v5639
    %v6538 = vmul.f32 %v6528, %v5635
    %v6539 = vmul.f32 %v6532, %v5639
    %v6540 = vmul.f32 %v6529, %v5635
    %v6541 = vmul.f32 %v6533, %v5639
    %6542 = vmatprep.subr.mxu0 %v6039
    %6543 = vmatpush1.msra.mxu0 %v6038
    %6544 = vmatprep.subr.mxu0 %v6041
    %6545 = vmatpush1.msra.mxu0 %v6040
    %6546 = vmatprep.subr.mxu0 %v6043
    %6547 = vmatpush1.msra.mxu0 %v6042
    %6548 = vmatprep.subr.mxu0 %v6045
    %6549 = vmatpush1.msra.mxu0 %v6044
    %6550 = vmatprep.subr.mxu0 %v6071
    %6551 = vmatpush1.msra.mxu0 %v6070
    %6552 = vmatprep.subr.mxu0 %v6073
    %6553 = vmatpush1.msra.mxu0 %v6072
    %6554 = vmatprep.subr.mxu0 %v6075
    %6555 = vmatpush1.msra.mxu0 %v6074
    %6556 = vmatprep.subr.mxu0 %v6077
    %6557 = vmatpush1.msra.mxu0 %v6076
    %6558 = vmatprep.subr.mxu0 %v6103
    %6559 = vmatpush1.msra.mxu0 %v6102
    %6560 = vmatprep.subr.mxu0 %v6105
    %6561 = vmatpush1.msra.mxu0 %v6104
    %6562 = vmatprep.subr.mxu0 %v6107
    %6563 = vmatpush1.msra.mxu0 %v6106
    %6564 = vmatprep.subr.mxu0 %v6109
    %6565 = vmatpush1.msra.mxu0 %v6108
    %6566 = vmatprep.subr.mxu0 %v6135
    %6567 = vmatpush1.msra.mxu0 %v6134
    %6568 = vmatprep.subr.mxu0 %v6137
    %6569 = vmatpush1.msra.mxu0 %v6136
    %6570 = vmatprep.subr.mxu0 %v6139
    %6571 = vmatpush1.msra.mxu0 %v6138
    %6572 = vmatprep.subr.mxu0 %v6141
    %6573 = vmatpush1.msra.mxu0 %v6140
    %6574 = vmatprep.subr.mxu0 %v6167
    %6575 = vmatpush1.msra.mxu0 %v6166
    %6576 = vmatprep.subr.mxu0 %v6169
    %6577 = vmatpush1.msra.mxu0 %v6168
    %6578 = vmatprep.subr.mxu0 %v6171
    %6579 = vmatpush1.msra.mxu0 %v6170
    %6580 = vmatprep.subr.mxu0 %v6173
    %6581 = vmatpush1.msra.mxu0 %v6172
    %6582 = vmatprep.subr.mxu0 %v6199
    %6583 = vmatpush1.msra.mxu0 %v6198
    %6584 = vmatprep.subr.mxu0 %v6201
    %6585 = vmatpush1.msra.mxu0 %v6200
    %6586 = vmatprep.subr.mxu0 %v6203
    %6587 = vmatpush1.msra.mxu0 %v6202
    %6588 = vmatprep.subr.mxu0 %v6205
    %6589 = vmatpush1.msra.mxu0 %v6204
    %6590 = vmatprep.subr.mxu0 %v6231
    %6591 = vmatpush1.msra.mxu0 %v6230
    %6592 = vmatprep.subr.mxu0 %v6233
    %6593 = vmatpush1.msra.mxu0 %v6232
    %6594 = vmatprep.subr.mxu0 %v6235
    %6595 = vmatpush1.msra.mxu0 %v6234
    %6596 = vmatprep.subr.mxu0 %v6237
    %6597 = vmatpush1.msra.mxu0 %v6236
    %6598 = vmatprep.subr.mxu0 %v6263
    %6599 = vmatpush1.msra.mxu0 %v6262
    %6600 = vmatprep.subr.mxu0 %v6265
    %6601 = vmatpush1.msra.mxu0 %v6264
    %6602 = vmatprep.subr.mxu0 %v6267
    %6603 = vmatpush1.msra.mxu0 %v6266
    %6604 = vmatprep.subr.mxu0 %v6269
    %6605 = vmatpush1.msra.mxu0 %v6268
    %6606 = vmatprep.mubr.f32.mxu0 %v5683
    %6607 = vmatmul.mubr.f32.gmra.mrb[0].mxu0 %v5682
    %v6608 = vpop.f32.mrb[0].mxu0
    %v6609 = vadd.f32 %v5709, %v6608
    %v6610 = vpop.f32.mrb[0].mxu0
    %v6611 = vadd.f32 %v5709, %v6610
    %6612 = vmatprep.mubr.f32.mxu0 %v5688
    %6613 = vmatmul.mubr.f32.gmra.mrb[0].mxu0 %v5687
    %v6614 = vpop.f32.mrb[0].mxu0
    %v6615 = vadd.f32 %v5714, %v6614
    %v6616 = vpop.f32.mrb[0].mxu0
    %v6617 = vadd.f32 %v5714, %v6616
    %6618 = vmatprep.mubr.f32.mxu0 %v5693
    %6619 = vmatmul.mubr.f32.gmra.mrb[0].mxu0 %v5692
    %v6620 = vpop.f32.mrb[0].mxu0
    %v6621 = vadd.f32 %v5719, %v6620
    %v6622 = vpop.f32.mrb[0].mxu0
    %v6623 = vadd.f32 %v5719, %v6622
    %6624 = vmatprep.mubr.f32.mxu0 %v5698
    %6625 = vmatmul.mubr.f32.gmra.mrb[0].mxu0 %v5697
    %v6626 = vpop.f32.mrb[0].mxu0
    %v6627 = vadd.f32 %v5724, %v6626
    %v6628 = vpop.f32.mrb[0].mxu0
    %v6629 = vadd.f32 %v5724, %v6628
    %6630 = vdwg.mxu0
    %6631 = vmatprep.subr.mxu0 %v6271
    %6632 = vmatpush1.msra.mxu0 %v6270
    %6633 = vmatprep.subr.mxu0 %v6273
    %6634 = vmatpush1.msra.mxu0 %v6272
    %6635 = vmatprep.subr.mxu0 %v6275
    %6636 = vmatpush1.msra.mxu0 %v6274
    %6637 = vmatprep.subr.mxu0 %v6277
    %6638 = vmatpush1.msra.mxu0 %v6276
    %6639 = vmatprep.subr.mxu0 %v6279
    %6640 = vmatpush1.msra.mxu0 %v6278
    %6641 = vmatprep.subr.mxu0 %v6281
    %6642 = vmatpush1.msra.mxu0 %v6280
    %6643 = vmatprep.subr.mxu0 %v6283
    %6644 = vmatpush1.msra.mxu0 %v6282
    %6645 = vmatprep.subr.mxu0 %v6285
    %6646 = vmatpush1.msra.mxu0 %v6284
    %6647 = vmatprep.subr.mxu0 %v6311
    %6648 = vmatpush1.msra.mxu0 %v6310
    %6649 = vmatprep.subr.mxu0 %v6313
    %6650 = vmatpush1.msra.mxu0 %v6312
    %6651 = vmatprep.subr.mxu0 %v6315
    %6652 = vmatpush1.msra.mxu0 %v6314
    %6653 = vmatprep.subr.mxu0 %v6317
    %6654 = vmatpush1.msra.mxu0 %v6316
    %6655 = vmatprep.subr.mxu0 %v6343
    %6656 = vmatpush1.msra.mxu0 %v6342
    %6657 = vmatprep.subr.mxu0 %v6345
    %6658 = vmatpush1.msra.mxu0 %v6344
    %6659 = vmatprep.subr.mxu0 %v6347
    %6660 = vmatpush1.msra.mxu0 %v6346
    %6661 = vmatprep.subr.mxu0 %v6349
    %6662 = vmatpush1.msra.mxu0 %v6348
    %6663 = vmatprep.subr.mxu0 %v6375
    %6664 = vmatpush1.msra.mxu0 %v6374
    %6665 = vmatprep.subr.mxu0 %v6377
    %6666 = vmatpush1.msra.mxu0 %v6376
    %6667 = vmatprep.subr.mxu0 %v6379
    %6668 = vmatpush1.msra.mxu0 %v6378
    %6669 = vmatprep.subr.mxu0 %v6381
    %6670 = vmatpush1.msra.mxu0 %v6380
    %6671 = vmatprep.subr.mxu0 %v6407
    %6672 = vmatpush1.msra.mxu0 %v6406
    %6673 = vmatprep.subr.mxu0 %v6409
    %6674 = vmatpush1.msra.mxu0 %v6408
    %6675 = vmatprep.subr.mxu0 %v6411
    %6676 = vmatpush1.msra.mxu0 %v6410
    %6677 = vmatprep.subr.mxu0 %v6413
    %6678 = vmatpush1.msra.mxu0 %v6412
    %6679 = vmatprep.subr.mxu0 %v6439
    %6680 = vmatpush1.msra.mxu0 %v6438
    %6681 = vmatprep.subr.mxu0 %v6441
    %6682 = vmatpush1.msra.mxu0 %v6440
    %6683 = vmatprep.subr.mxu0 %v6443
    %6684 = vmatpush1.msra.mxu0 %v6442
    %6685 = vmatprep.subr.mxu0 %v6445
    %6686 = vmatpush1.msra.mxu0 %v6444
    %6687 = vmatprep.subr.mxu0 %v6471
    %6688 = vmatpush1.msra.mxu0 %v6470
    %6689 = vmatprep.subr.mxu0 %v6473
    %6690 = vmatpush1.msra.mxu0 %v6472
    %6691 = vmatprep.subr.mxu0 %v6475
    %6692 = vmatpush1.msra.mxu0 %v6474
    %6693 = vmatprep.subr.mxu0 %v6477
    %6694 = vmatpush1.msra.mxu0 %v6476
    %6695 = vmatprep.mubr.f32.mxu0 %v5685
    %6696 = vmatmul.mubr.f32.gmra.mrb[0].mxu0 %v5684
    %v6697 = vpop.f32.mrb[0].mxu0
    %v6698 = vadd.f32 %v6609, %v6697
    %v6699 = vpop.f32.mrb[0].mxu0
    %v6700 = vadd.f32 %v6611, %v6699
    %6701 = vmatprep.mubr.f32.mxu0 %v5690
    %6702 = vmatmul.mubr.f32.gmra.mrb[0].mxu0 %v5689
    %v6703 = vpop.f32.mrb[0].mxu0
    %v6704 = vadd.f32 %v6615, %v6703
    %v6705 = vpop.f32.mrb[0].mxu0
    %v6706 = vadd.f32 %v6617, %v6705
    %6707 = vmatprep.mubr.f32.mxu0 %v5695
    %6708 = vmatmul.mubr.f32.gmra.mrb[0].mxu0 %v5694
    %v6709 = vpop.f32.mrb[0].mxu0
    %v6710 = vadd.f32 %v6621, %v6709
    %v6711 = vpop.f32.mrb[0].mxu0
    %v6712 = vadd.f32 %v6623, %v6711
    %6713 = vmatprep.mubr.f32.mxu0 %v5700
    %6714 = vmatmul.mubr.f32.gmra.mrb[0].mxu0 %v5699
    %v6715 = vpop.f32.mrb[0].mxu0
    %v6716 = vadd.f32 %v6627, %v6715
    %v6717 = vpop.f32.mrb[0].mxu0
    %v6718 = vadd.f32 %v6629, %v6717
    %6719 = vdwg.mxu0
    %6720 = vmatprep.subr.mxu0 %v6503
    %6721 = vmatpush1.msra.mxu0 %v6502
    %6722 = vmatprep.subr.mxu0 %v6505
    %6723 = vmatpush1.msra.mxu0 %v6504
    %6724 = vmatprep.subr.mxu0 %v6507
    %6725 = vmatpush1.msra.mxu0 %v6506
    %6726 = vmatprep.subr.mxu0 %v6509
    %6727 = vmatpush1.msra.mxu0 %v6508
    %6728 = vmatprep.subr.mxu0 %v6535
    %6729 = vmatpush1.msra.mxu0 %v6534
    %6730 = vmatprep.subr.mxu0 %v6537
    %6731 = vmatpush1.msra.mxu0 %v6536
    %6732 = vmatprep.subr.mxu0 %v6539
    %6733 = vmatpush1.msra.mxu0 %v6538
    %6734 = vmatprep.subr.mxu0 %v6541
    %6735 = vmatpush1.msra.mxu0 %v6540
    %6736 = vmatprep.subr.mxu0 0.0
    %6737 = vmatpush1.msra.mxu0 0.0
    %6738 = vmatprep.subr.mxu0 0.0
    %6739 = vmatpush1.msra.mxu0 0.0
    %6740 = vmatprep.subr.mxu0 0.0
    %6741 = vmatpush1.msra.mxu0 0.0
    %6742 = vmatprep.subr.mxu0 0.0
    %6743 = vmatpush1.msra.mxu0 0.0
    %6744 = vmatprep.subr.mxu0 0.0
    %6745 = vmatpush1.msra.mxu0 0.0
    %6746 = vmatprep.subr.mxu0 0.0
    %6747 = vmatpush1.msra.mxu0 0.0
    %6748 = vmatprep.subr.mxu0 0.0
    %6749 = vmatpush1.msra.mxu0 0.0
    %6750 = vmatprep.subr.mxu0 0.0
    %6751 = vmatpush1.msra.mxu0 0.0
    %6752 = vmatprep.subr.mxu0 0.0
    %6753 = vmatpush1.msra.mxu0 0.0
    %6754 = vmatprep.subr.mxu0 0.0
    %6755 = vmatpush1.msra.mxu0 0.0
    %6756 = vmatprep.subr.mxu0 0.0
    %6757 = vmatpush1.msra.mxu0 0.0
    %6758 = vmatprep.subr.mxu0 0.0
    %6759 = vmatpush1.msra.mxu0 0.0
    %6760 = vmatprep.subr.mxu0 0.0
    %6761 = vmatpush1.msra.mxu0 0.0
    %6762 = vmatprep.subr.mxu0 0.0
    %6763 = vmatpush1.msra.mxu0 0.0
    %6764 = vmatprep.subr.mxu0 0.0
    %6765 = vmatpush1.msra.mxu0 0.0
    %6766 = vmatprep.subr.mxu0 0.0
    %6767 = vmatpush1.msra.mxu0 0.0
    %6768 = vmatprep.subr.mxu0 0.0
    %6769 = vmatpush1.msra.mxu0 0.0
    %6770 = vmatprep.subr.mxu0 0.0
    %6771 = vmatpush1.msra.mxu0 0.0
    %6772 = vmatprep.subr.mxu0 0.0
    %6773 = vmatpush1.msra.mxu0 0.0
    %6774 = vmatprep.subr.mxu0 0.0
    %6775 = vmatpush1.msra.mxu0 0.0
    %6776 = vmatprep.subr.mxu0 0.0
    %6777 = vmatpush1.msra.mxu0 0.0
    %6778 = vmatprep.subr.mxu0 0.0
    %6779 = vmatpush1.msra.mxu0 0.0
    %6780 = vmatprep.subr.mxu0 0.0
    %6781 = vmatpush1.msra.mxu0 0.0
    %6782 = vmatprep.subr.mxu0 0.0
    %6783 = vmatpush1.msra.mxu0 0.0
    %6784 = vmatprep.mubr.f32.mxu0 0.0
    %6785 = vmatmul.mubr.f32.gmra.mrb[0].mxu0 %v5728
    %v6786 = vpop.f32.mrb[0].mxu0
    %v6787 = vadd.f32 %v6698, %v6786
    %v6788 = vpop.f32.mrb[0].mxu0
    %v6789 = vadd.f32 %v6700, %v6788
    %6790 = vmatprep.mubr.f32.mxu0 0.0
    %6791 = vmatmul.mubr.f32.gmra.mrb[0].mxu0 %v5731
    %v6792 = vpop.f32.mrb[0].mxu0
    %v6793 = vadd.f32 %v6704, %v6792
    %v6794 = vpop.f32.mrb[0].mxu0
    %v6795 = vadd.f32 %v6706, %v6794
    %6796 = vmatprep.mubr.f32.mxu0 0.0
    %6797 = vmatmul.mubr.f32.gmra.mrb[0].mxu0 %v5734
    %v6798 = vpop.f32.mrb[0].mxu0
    %v6799 = vadd.f32 %v6710, %v6798
    %v6800 = vpop.f32.mrb[0].mxu0
    %v6801 = vadd.f32 %v6712, %v6800
    %6802 = vmatprep.mubr.f32.mxu0 0.0
    %6803 = vmatmul.mubr.f32.gmra.mrb[0].mxu0 %v5737
    %v6804 = vpop.f32.mrb[0].mxu0
    %v6805 = vadd.f32 %v6716, %v6804
    %v6806 = vpop.f32.mrb[0].mxu0
    %v6807 = vadd.f32 %v6718, %v6806
    %6808 = vdwg.mxu0
    %v6809 = vmax.f32 %v6787, 0.0
    %v6810 = vmax.f32 %v6789, 0.0
    %v6811 = vmax.f32 %v6793, 0.0
    %v6812 = vmax.f32 %v6795, 0.0
    %v6813 = vmax.f32 %v6799, 0.0
    %v6814 = vmax.f32 %v6801, 0.0
    %v6815 = vmax.f32 %v6805, 0.0
    %v6816 = vmax.f32 %v6807, 0.0
    %v6817 = vld [vmem:[%s11] sm:$0xff]
    %v6818 = vld [vmem:[%s11 + $0x8] sm:$0xff]
    %v6819 = vld [vmem:[%s11 + $0x10] sm:$0xff]
    %v6820 = vld [vmem:[%s11 + $0x18] sm:$0xff]
    %v6821 = vld [vmem:[%s11 + $0x20] sm:$0xff]
    %v6822 = vld [vmem:[%s11 + $0x28] sm:$0xff]
    %v6823 = vld [vmem:[%s11 + $0x30] sm:$0xff]
    %v6824 = vld [vmem:[%s11 + $0x38] sm:$0xff]
    %v6825 = vld [vmem:[%s11 + $0x40] sm:$0xff]
    %v6826 = vld [vmem:[%s11 + $0x48] sm:$0xff]
    %v6827 = vld [vmem:[%s11 + $0x50] sm:$0xff]
    %v6828 = vld [vmem:[%s11 + $0x58] sm:$0xff]
    %v6829 = vld [vmem:[%s11 + $0x60] sm:$0xff]
    %v6830 = vld [vmem:[%s11 + $0x68] sm:$0xff]
    %v6831 = vld [vmem:[%s11 + $0x70] sm:$0xff]
    %v6832 = vld [vmem:[%s11 + $0x78] sm:$0xff]
    %v6833 = vld [vmem:[%s11 + $0x80] sm:$0xff]
    %v6834 = vld [vmem:[%s11 + $0x88] sm:$0xff]
    %v6835 = vld [vmem:[%s11 + $0x90] sm:$0xff]
    %v6836 = vld [vmem:[%s11 + $0x98] sm:$0xff]
    %v6837 = vld [vmem:[%s11 + $0xa0] sm:$0xff]
    %v6838 = vld [vmem:[%s11 + $0xa8] sm:$0xff]
    %v6839 = vld [vmem:[%s11 + $0xb0] sm:$0xff]
    %v6840 = vld [vmem:[%s11 + $0xb8] sm:$0xff]
    %v6841 = vld [vmem:[%s11 + $0xc0] sm:$0xff]
    %v6842 = vld [vmem:[%s11 + $0xc8] sm:$0xff]
    %v6843 = vld [vmem:[%s11 + $0xd0] sm:$0xff]
    %v6844 = vld [vmem:[%s11 + $0xd8] sm:$0xff]
    %v6845 = vld [vmem:[%s11 + $0xe0] sm:$0xff]
    %v6846 = vld [vmem:[%s11 + $0xe8] sm:$0xff]
    %v6847 = vld [vmem:[%s11 + $0xf0] sm:$0xff]
    %v6848 = vld [vmem:[%s11 + $0xf8] sm:$0xff]
    %v6849 = vld [vmem:[%s11 + $0x100] sm:$0xff]
    %v6850 = vld [vmem:[%s11 + $0x108] sm:$0xff]
    %v6851 = vld [vmem:[%s11 + $0x110] sm:$0xff]
    %v6852 = vld [vmem:[%s11 + $0x118] sm:$0xff]
    %v6853 = vld [vmem:[%s11 + $0x120] sm:$0xff]
    %v6854 = vld [vmem:[%s11 + $0x128] sm:$0xff]
    %v6855 = vld [vmem:[%s11 + $0x130] sm:$0xff]
    %v6856 = vld [vmem:[%s11 + $0x138] sm:$0xff]
    %v6857 = vld [vmem:[%s11 + $0x140] sm:$0xff]
    %v6858 = vld [vmem:[%s11 + $0x148] sm:$0xff]
    %v6859 = vld [vmem:[%s11 + $0x150] sm:$0xff]
    %v6860 = vld [vmem:[%s11 + $0x158] sm:$0xff]
    %v6861 = vld [vmem:[%s11 + $0x160] sm:$0xff]
    %v6862 = vld [vmem:[%s11 + $0x168] sm:$0xff]
    %v6863 = vld [vmem:[%s11 + $0x170] sm:$0xff]
    %v6864 = vld [vmem:[%s11 + $0x178] sm:$0xff]
    %v6865 = vld [vmem:[%s11 + $0x180] sm:$0xff]
    %v6866 = vld [vmem:[%s11 + $0x188] sm:$0xff]
    %v6867 = vld [vmem:[%s11 + $0x190] sm:$0xff]
    %v6868 = vld [vmem:[%s11 + $0x198] sm:$0xff]
    %v6869 = vld [vmem:[%s11 + $0x1a0] sm:$0xff]
    %v6870 = vld [vmem:[%s11 + $0x1a8] sm:$0xff]
    %v6871 = vld [vmem:[%s11 + $0x1b0] sm:$0xff]
    %v6872 = vld [vmem:[%s11 + $0x1b8] sm:$0xff]
    %v6873 = vld [vmem:[%s11 + $0x1c0] sm:$0xff]
    %v6874 = vld [vmem:[%s11 + $0x1c8] sm:$0xff]
    %v6875 = vld [vmem:[%s11 + $0x1d0] sm:$0xff]
    %v6876 = vld [vmem:[%s11 + $0x1d8] sm:$0xff]
    %v6877 = vld [vmem:[%s11 + $0x1e0] sm:$0xff]
    %v6878 = vld [vmem:[%s11 + $0x1e8] sm:$0xff]
    %v6879 = vld [vmem:[%s11 + $0x1f0] sm:$0xff]
    %v6880 = vld [vmem:[%s11 + $0x1f8] sm:$0xff]
    %6881 = vmatprep.subr.mxu0 %v6818
    %6882 = vmatpush1.msra.mxu0 %v6817
    %6883 = vmatprep.subr.mxu0 %v6820
    %6884 = vmatpush1.msra.mxu0 %v6819
    %6885 = vmatprep.subr.mxu0 %v6822
    %6886 = vmatpush1.msra.mxu0 %v6821
    %6887 = vmatprep.subr.mxu0 %v6824
    %6888 = vmatpush1.msra.mxu0 %v6823
    %6889 = vmatprep.subr.mxu0 %v6826
    %6890 = vmatpush1.msra.mxu0 %v6825
    %6891 = vmatprep.subr.mxu0 %v6828
    %6892 = vmatpush1.msra.mxu0 %v6827
    %6893 = vmatprep.subr.mxu0 %v6830
    %6894 = vmatpush1.msra.mxu0 %v6829
    %6895 = vmatprep.subr.mxu0 %v6832
    %6896 = vmatpush1.msra.mxu0 %v6831
    %6897 = vmatprep.subr.mxu0 %v6834
    %6898 = vmatpush1.msra.mxu0 %v6833
    %6899 = vmatprep.subr.mxu0 %v6836
    %6900 = vmatpush1.msra.mxu0 %v6835
    %6901 = vmatprep.subr.mxu0 %v6838
    %6902 = vmatpush1.msra.mxu0 %v6837
    %6903 = vmatprep.subr.mxu0 %v6840
    %6904 = vmatpush1.msra.mxu0 %v6839
    %6905 = vmatprep.subr.mxu0 %v6842
    %6906 = vmatpush1.msra.mxu0 %v6841
    %6907 = vmatprep.subr.mxu0 %v6844
    %6908 = vmatpush1.msra.mxu0 %v6843
    %6909 = vmatprep.subr.mxu0 %v6846
    %6910 = vmatpush1.msra.mxu0 %v6845
    %6911 = vmatprep.subr.mxu0 %v6848
    %6912 = vmatpush1.msra.mxu0 %v6847
    %6913 = vmatprep.subr.mxu0 %v6850
    %6914 = vmatpush1.msra.mxu0 %v6849
    %6915 = vmatprep.subr.mxu0 %v6852
    %6916 = vmatpush1.msra.mxu0 %v6851
    %6917 = vmatprep.subr.mxu0 %v6854
    %6918 = vmatpush1.msra.mxu0 %v6853
    %6919 = vmatprep.subr.mxu0 %v6856
    %6920 = vmatpush1.msra.mxu0 %v6855
    %6921 = vmatprep.subr.mxu0 %v6858
    %6922 = vmatpush1.msra.mxu0 %v6857
    %6923 = vmatprep.subr.mxu0 %v6860
    %6924 = vmatpush1.msra.mxu0 %v6859
    %6925 = vmatprep.subr.mxu0 %v6862
    %6926 = vmatpush1.msra.mxu0 %v6861
    %6927 = vmatprep.subr.mxu0 %v6864
    %6928 = vmatpush1.msra.mxu0 %v6863
    %6929 = vmatprep.subr.mxu0 %v6866
    %6930 = vmatpush1.msra.mxu0 %v6865
    %6931 = vmatprep.subr.mxu0 %v6868
    %6932 = vmatpush1.msra.mxu0 %v6867
    %6933 = vmatprep.subr.mxu0 %v6870
    %6934 = vmatpush1.msra.mxu0 %v6869
    %6935 = vmatprep.subr.mxu0 %v6872
    %6936 = vmatpush1.msra.mxu0 %v6871
    %6937 = vmatprep.subr.mxu0 %v6874
    %6938 = vmatpush1.msra.mxu0 %v6873
    %6939 = vmatprep.subr.mxu0 %v6876
    %6940 = vmatpush1.msra.mxu0 %v6875
    %6941 = vmatprep.subr.mxu0 %v6878
    %6942 = vmatpush1.msra.mxu0 %v6877
    %6943 = vmatprep.subr.mxu0 %v6880
    %6944 = vmatpush1.msra.mxu0 %v6879
    %6945 = vmatprep.mubr.f32.mxu0 %v6007
    %6946 = vmatmul.mubr.f32.gmra.mrb[0].mxu0 %v6006
    %v6947 = vpop.f32.mrb[0].mxu0
    %v6948 = vadd.f32 0.0, %v6947
    %v6949 = vpop.f32.mrb[0].mxu0
    %v6950 = vadd.f32 0.0, %v6949
    %6951 = vmatprep.mubr.f32.mxu0 %v6009
    %6952 = vmatmul.mubr.f32.gmra.mrb[0].mxu0 %v6008
    %v6953 = vpop.f32.mrb[0].mxu0
    %v6954 = vadd.f32 0.0, %v6953
    %v6955 = vpop.f32.mrb[0].mxu0
    %v6956 = vadd.f32 0.0, %v6955
    %6957 = vmatprep.mubr.f32.mxu0 %v6011
    %6958 = vmatmul.mubr.f32.gmra.mrb[0].mxu0 %v6010
    %v6959 = vpop.f32.mrb[0].mxu0
    %v6960 = vadd.f32 0.0, %v6959
    %v6961 = vpop.f32.mrb[0].mxu0
    %v6962 = vadd.f32 0.0, %v6961
    %6963 = vmatprep.mubr.f32.mxu0 %v6013
    %6964 = vmatmul.mubr.f32.gmra.mrb[0].mxu0 %v6012
    %v6965 = vpop.f32.mrb[0].mxu0
    %v6966 = vadd.f32 0.0, %v6965
    %v6967 = vpop.f32.mrb[0].mxu0
    %v6968 = vadd.f32 0.0, %v6967
    %6969 = vmatprep.mubr.f32.mxu0 %v6810
    %6970 = vmatmul.mubr.f32.gmra.mrb[0].mxu0 %v6809
    %v6971 = vpop.f32.mrb[0].mxu0
    %v6972 = vadd.f32 0.0, %v6971
    %v6973 = vpop.f32.mrb[0].mxu0
    %v6974 = vadd.f32 0.0, %v6973
    %6975 = vmatprep.mubr.f32.mxu0 %v6812
    %6976 = vmatmul.mubr.f32.gmra.mrb[0].mxu0 %v6811
    %v6977 = vpop.f32.mrb[0].mxu0
    %v6978 = vadd.f32 0.0, %v6977
    %v6979 = vpop.f32.mrb[0].mxu0
    %v6980 = vadd.f32 0.0, %v6979
    %6981 = vmatprep.mubr.f32.mxu0 %v6814
    %6982 = vmatmul.mubr.f32.gmra.mrb[0].mxu0 %v6813
    %v6983 = vpop.f32.mrb[0].mxu0
    %v6984 = vadd.f32 0.0, %v6983
    %v6985 = vpop.f32.mrb[0].mxu0
    %v6986 = vadd.f32 0.0, %v6985
    %6987 = vmatprep.mubr.f32.mxu0 %v6816
    %6988 = vmatmul.mubr.f32.gmra.mrb[0].mxu0 %v6815
    %v6989 = vpop.f32.mrb[0].mxu0
    %v6990 = vadd.f32 0.0, %v6989
    %v6991 = vpop.f32.mrb[0].mxu0
    %v6992 = vadd.f32 0.0, %v6991
    %6993 = vdwg.mxu0
    %v6994 = vld [vmem:[%s12] sm:$0xff]
    %v6995 = vld [vmem:[%s12 + $0x8] sm:$0xff]
    %v6996 = vld [vmem:[%s12 + $0x10] sm:$0xff]
    %v6997 = vld [vmem:[%s12 + $0x18] sm:$0xff]
    %v6998 = vld [vmem:[%s13] sm:$0xff]
    %v6999 = vld [vmem:[%s13 + $0x8] sm:$0xff]
    %v7000 = vld [vmem:[%s13 + $0x10] sm:$0xff]
    %v7001 = vld [vmem:[%s13 + $0x18] sm:$0xff]
    %7003 = vset.pattern.permute.xlu0 0
    %7004 = vperm.xlu0 %7003, %v6998
    %v7005 = vpop.permute.xlu0 %7004
    %7008 = vset.pattern.permute.xlu0 0
    %7009 = vperm.xlu0 %7008, %v6999
    %v7010 = vpop.permute.xlu0 %7009
    %7013 = vset.pattern.permute.xlu0 0
    %7014 = vperm.xlu0 %7013, %v7000
    %v7015 = vpop.permute.xlu0 %7014
    %7018 = vset.pattern.permute.xlu0 0
    %7019 = vperm.xlu0 %7018, %v7001
    %v7020 = vpop.permute.xlu0 %7019
    %v7023 = vsel %vm509, %v6994, 0
    %v7026 = vsel %vm509, %v6995, 0
    %v7029 = vsel %vm509, %v6996, 0
    %v7032 = vsel %vm509, %v6997, 0
    %7034 = vmatprep.subr.mxu0 %v6950
    %7035 = vmatpush1.msra.mxu0 %v6948
    %7036 = vmatprep.subr.mxu0 %v6956
    %7037 = vmatpush1.msra.mxu0 %v6954
    %7038 = vmatprep.subr.mxu0 %v6962
    %7039 = vmatpush1.msra.mxu0 %v6960
    %7040 = vmatprep.subr.mxu0 %v6968
    %7041 = vmatpush1.msra.mxu0 %v6966
    %7042 = vmatprep.subr.mxu0 0.0
    %7043 = vmatpush1.msra.mxu0 0.0
    %7044 = vmatprep.subr.mxu0 0.0
    %7045 = vmatpush1.msra.mxu0 0.0
    %7046 = vmatprep.subr.mxu0 0.0
    %7047 = vmatpush1.msra.mxu0 0.0
    %7048 = vmatprep.subr.mxu0 0.0
    %7049 = vmatpush1.msra.mxu0 0.0
    %7050 = vmatprep.subr.mxu0 0.0
    %7051 = vmatpush1.msra.mxu0 0.0
    %7052 = vmatprep.subr.mxu0 0.0
    %7053 = vmatpush1.msra.mxu0 0.0
    %7054 = vmatprep.subr.mxu0 0.0
    %7055 = vmatpush1.msra.mxu0 0.0
    %7056 = vmatprep.subr.mxu0 0.0
    %7057 = vmatpush1.msra.mxu0 0.0
    %7058 = vmatprep.subr.mxu0 0.0
    %7059 = vmatpush1.msra.mxu0 0.0
    %7060 = vmatprep.subr.mxu0 0.0
    %7061 = vmatpush1.msra.mxu0 0.0
    %7062 = vmatprep.subr.mxu0 0.0
    %7063 = vmatpush1.msra.mxu0 0.0
    %7064 = vmatprep.subr.mxu0 0.0
    %7065 = vmatpush1.msra.mxu0 0.0
    %7066 = vmatprep.subr.mxu0 0.0
    %7067 = vmatpush1.msra.mxu0 0.0
    %7068 = vmatprep.subr.mxu0 0.0
    %7069 = vmatpush1.msra.mxu0 0.0
    %7070 = vmatprep.subr.mxu0 0.0
    %7071 = vmatpush1.msra.mxu0 0.0
    %7072 = vmatprep.subr.mxu0 0.0
    %7073 = vmatpush1.msra.mxu0 0.0
    %7074 = vmatprep.subr.mxu0 0.0
    %7075 = vmatpush1.msra.mxu0 0.0
    %7076 = vmatprep.subr.mxu0 0.0
    %7077 = vmatpush1.msra.mxu0 0.0
    %7078 = vmatprep.subr.mxu0 0.0
    %7079 = vmatpush1.msra.mxu0 0.0
    %7080 = vmatprep.subr.mxu0 0.0
    %7081 = vmatpush1.msra.mxu0 0.0
    %7082 = vmatprep.subr.mxu0 0.0
    %7083 = vmatpush1.msra.mxu0 0.0
    %7084 = vmatprep.subr.mxu0 0.0
    %7085 = vmatpush1.msra.mxu0 0.0
    %7086 = vmatprep.subr.mxu0 0.0
    %7087 = vmatpush1.msra.mxu0 0.0
    %7088 = vmatprep.subr.mxu0 0.0
    %7089 = vmatpush1.msra.mxu0 0.0
    %7090 = vmatprep.subr.mxu0 0.0
    %7091 = vmatpush1.msra.mxu0 0.0
    %7092 = vmatprep.subr.mxu0 0.0
    %7093 = vmatpush1.msra.mxu0 0.0
    %7094 = vmatprep.subr.mxu0 0.0
    %7095 = vmatpush1.msra.mxu0 0.0
    %7096 = vmatprep.subr.mxu0 0.0
    %7097 = vmatpush1.msra.mxu0 0.0
    %7098 = vmatprep.mubr.f32.mxu0 0.0
    %7099 = vmatmul.mubr.f32.gmra.mrb[0].mxu0 %v7023
    %v7100 = vpop.f32.mrb[0].mxu0
    %v7101 = vadd.f32 %v7005, %v7100
    %v7102 = vpop.f32.mrb[0].mxu0
    %v7103 = vadd.f32 %v7005, %v7102
    %7104 = vmatprep.mubr.f32.mxu0 0.0
    %7105 = vmatmul.mubr.f32.gmra.mrb[0].mxu0 %v7026
    %v7106 = vpop.f32.mrb[0].mxu0
    %v7107 = vadd.f32 %v7010, %v7106
    %v7108 = vpop.f32.mrb[0].mxu0
    %v7109 = vadd.f32 %v7010, %v7108
    %7110 = vmatprep.mubr.f32.mxu0 0.0
    %7111 = vmatmul.mubr.f32.gmra.mrb[0].mxu0 %v7029
    %v7112 = vpop.f32.mrb[0].mxu0
    %v7113 = vadd.f32 %v7015, %v7112
    %v7114 = vpop.f32.mrb[0].mxu0
    %v7115 = vadd.f32 %v7015, %v7114
    %7116 = vmatprep.mubr.f32.mxu0 0.0
    %7117 = vmatmul.mubr.f32.gmra.mrb[0].mxu0 %v7032
    %v7118 = vpop.f32.mrb[0].mxu0
    %v7119 = vadd.f32 %v7020, %v7118
    %v7120 = vpop.f32.mrb[0].mxu0
    %v7121 = vadd.f32 %v7020, %v7120
    %7122 = vdwg.mxu0
    %v7123 = vadd.f32 %v7101, %v3704
    %v7124 = vadd.f32 %v7103, %v3705
    %v7125 = vadd.f32 %v7107, %v3706
    %v7126 = vadd.f32 %v7109, %v3707
    %v7127 = vadd.f32 %v7113, %v3708
    %v7128 = vadd.f32 %v7115, %v3709
    %v7129 = vadd.f32 %v7119, %v3710
    %v7130 = vadd.f32 %v7121, %v3711
    %v7131 = vld [vmem:[%s14] sm:$0xff]
    %v7132 = vld [vmem:[%s14 + $0x8] sm:$0xff]
    %v7133 = vld [vmem:[%s14 + $0x10] sm:$0xff]
    %v7134 = vld [vmem:[%s14 + $0x18] sm:$0xff]
    %v7135 = vld [vmem:[%s15] sm:$0xff]
    %v7136 = vld [vmem:[%s15 + $0x8] sm:$0xff]
    %v7137 = vld [vmem:[%s15 + $0x10] sm:$0xff]
    %v7138 = vld [vmem:[%s15 + $0x18] sm:$0xff]
    %7140 = vset.pattern.permute.xlu0 0
    %7141 = vperm.xlu0 %7140, %v7135
    %v7142 = vpop.permute.xlu0 %7141
    %7145 = vset.pattern.permute.xlu0 0
    %7146 = vperm.xlu0 %7145, %v7136
    %v7147 = vpop.permute.xlu0 %7146
    %7150 = vset.pattern.permute.xlu0 0
    %7151 = vperm.xlu0 %7150, %v7137
    %v7152 = vpop.permute.xlu0 %7151
    %7155 = vset.pattern.permute.xlu0 0
    %7156 = vperm.xlu0 %7155, %v7138
    %v7157 = vpop.permute.xlu0 %7156
    %v7160 = vsel %vm509, %v7131, 0
    %v7163 = vsel %vm509, %v7132, 0
    %v7166 = vsel %vm509, %v7133, 0
    %v7169 = vsel %vm509, %v7134, 0
    %7171 = vmatprep.subr.mxu0 %v7124
    %7172 = vmatpush1.msra.mxu0 %v7123
    %7173 = vmatprep.subr.mxu0 %v7126
    %7174 = vmatpush1.msra.mxu0 %v7125
    %7175 = vmatprep.subr.mxu0 %v7128
    %7176 = vmatpush1.msra.mxu0 %v7127
    %7177 = vmatprep.subr.mxu0 %v7130
    %7178 = vmatpush1.msra.mxu0 %v7129
    %7179 = vmatprep.subr.mxu0 0.0
    %7180 = vmatpush1.msra.mxu0 0.0
    %7181 = vmatprep.subr.mxu0 0.0
    %7182 = vmatpush1.msra.mxu0 0.0
    %7183 = vmatprep.subr.mxu0 0.0
    %7184 = vmatpush1.msra.mxu0 0.0
    %7185 = vmatprep.subr.mxu0 0.0
    %7186 = vmatpush1.msra.mxu0 0.0
    %7187 = vmatprep.subr.mxu0 0.0
    %7188 = vmatpush1.msra.mxu0 0.0
    %7189 = vmatprep.subr.mxu0 0.0
    %7190 = vmatpush1.msra.mxu0 0.0
    %7191 = vmatprep.subr.mxu0 0.0
    %7192 = vmatpush1.msra.mxu0 0.0
    %7193 = vmatprep.subr.mxu0 0.0
    %7194 = vmatpush1.msra.mxu0 0.0
    %7195 = vmatprep.subr.mxu0 0.0
    %7196 = vmatpush1.msra.mxu0 0.0
    %7197 = vmatprep.subr.mxu0 0.0
    %7198 = vmatpush1.msra.mxu0 0.0
    %7199 = vmatprep.subr.mxu0 0.0
    %7200 = vmatpush1.msra.mxu0 0.0
    %7201 = vmatprep.subr.mxu0 0.0
    %7202 = vmatpush1.msra.mxu0 0.0
    %7203 = vmatprep.subr.mxu0 0.0
    %7204 = vmatpush1.msra.mxu0 0.0
    %7205 = vmatprep.subr.mxu0 0.0
    %7206 = vmatpush1.msra.mxu0 0.0
    %7207 = vmatprep.subr.mxu0 0.0
    %7208 = vmatpush1.msra.mxu0 0.0
    %7209 = vmatprep.subr.mxu0 0.0
    %7210 = vmatpush1.msra.mxu0 0.0
    %7211 = vmatprep.subr.mxu0 0.0
    %7212 = vmatpush1.msra.mxu0 0.0
    %7213 = vmatprep.subr.mxu0 0.0
    %7214 = vmatpush1.msra.mxu0 0.0
    %7215 = vmatprep.subr.mxu0 0.0
    %7216 = vmatpush1.msra.mxu0 0.0
    %7217 = vmatprep.subr.mxu0 0.0
    %7218 = vmatpush1.msra.mxu0 0.0
    %7219 = vmatprep.subr.mxu0 0.0
    %7220 = vmatpush1.msra.mxu0 0.0
    %7221 = vmatprep.subr.mxu0 0.0
    %7222 = vmatpush1.msra.mxu0 0.0
    %7223 = vmatprep.subr.mxu0 0.0
    %7224 = vmatpush1.msra.mxu0 0.0
    %7225 = vmatprep.subr.mxu0 0.0
    %7226 = vmatpush1.msra.mxu0 0.0
    %7227 = vmatprep.subr.mxu0 0.0
    %7228 = vmatpush1.msra.mxu0 0.0
    %7229 = vmatprep.subr.mxu0 0.0
    %7230 = vmatpush1.msra.mxu0 0.0
    %7231 = vmatprep.subr.mxu0 0.0
    %7232 = vmatpush1.msra.mxu0 0.0
    %7233 = vmatprep.subr.mxu0 0.0
    %7234 = vmatpush1.msra.mxu0 0.0
    %7235 = vmatprep.mubr.f32.mxu0 0.0
    %7236 = vmatmul.mubr.f32.gmra.mrb[0].mxu0 %v7160
    %v7237 = vpop.f32.mrb[0].mxu0
    %v7238 = vadd.f32 %v7142, %v7237
    %v7239 = vpop.f32.mrb[0].mxu0
    %v7240 = vadd.f32 %v7142, %v7239
    %7241 = vmatprep.mubr.f32.mxu0 0.0
    %7242 = vmatmul.mubr.f32.gmra.mrb[0].mxu0 %v7163
    %v7243 = vpop.f32.mrb[0].mxu0
    %v7244 = vadd.f32 %v7147, %v7243
    %v7245 = vpop.f32.mrb[0].mxu0
    %v7246 = vadd.f32 %v7147, %v7245
    %7247 = vmatprep.mubr.f32.mxu0 0.0
    %7248 = vmatmul.mubr.f32.gmra.mrb[0].mxu0 %v7166
    %v7249 = vpop.f32.mrb[0].mxu0
    %v7250 = vadd.f32 %v7152, %v7249
    %v7251 = vpop.f32.mrb[0].mxu0
    %v7252 = vadd.f32 %v7152, %v7251
    %7253 = vmatprep.mubr.f32.mxu0 0.0
    %7254 = vmatmul.mubr.f32.gmra.mrb[0].mxu0 %v7169
    %v7255 = vpop.f32.mrb[0].mxu0
    %v7256 = vadd.f32 %v7157, %v7255
    %v7257 = vpop.f32.mrb[0].mxu0
    %v7258 = vadd.f32 %v7157, %v7257
    %7259 = vdwg.mxu0
    %7260 = vst [vmem:[%s19] sm:$0xff] %v7238
    %7261 = vst [vmem:[%s19 + $0x8] sm:$0xff] %v7240
    %7262 = vst [vmem:[%s19 + $0x10] sm:$0xff] %v7244
    %7263 = vst [vmem:[%s19 + $0x18] sm:$0xff] %v7246
    %7264 = vst [vmem:[%s19 + $0x20] sm:$0xff] %v7250
    %7265 = vst [vmem:[%s19 + $0x28] sm:$0xff] %v7252
    %7266 = vst [vmem:[%s19 + $0x30] sm:$0xff] %v7256
    %7267 = vst [vmem:[%s19 + $0x38] sm:$0xff] %v7258
    %v7268 = vld [vmem:[%s12] sm:$0xff]
    %v7269 = vld [vmem:[%s12 + $0x8] sm:$0xff]
    %v7270 = vld [vmem:[%s12 + $0x10] sm:$0xff]
    %v7271 = vld [vmem:[%s12 + $0x18] sm:$0xff]
    %v7272 = vld [vmem:[%s13] sm:$0xff]
    %v7273 = vld [vmem:[%s13 + $0x8] sm:$0xff]
    %v7274 = vld [vmem:[%s13 + $0x10] sm:$0xff]
    %v7275 = vld [vmem:[%s13 + $0x18] sm:$0xff]
    %7277 = vset.pattern.permute.xlu0 0
    %7278 = vperm.xlu0 %7277, %v7272
    %v7279 = vpop.permute.xlu0 %7278
    %7282 = vset.pattern.permute.xlu0 0
    %7283 = vperm.xlu0 %7282, %v7273
    %v7284 = vpop.permute.xlu0 %7283
    %7287 = vset.pattern.permute.xlu0 0
    %7288 = vperm.xlu0 %7287, %v7274
    %v7289 = vpop.permute.xlu0 %7288
    %7292 = vset.pattern.permute.xlu0 0
    %7293 = vperm.xlu0 %7292, %v7275
    %v7294 = vpop.permute.xlu0 %7293
    %v7297 = vsel %vm509, %v7268, 0
    %v7300 = vsel %vm509, %v7269, 0
    %v7303 = vsel %vm509, %v7270, 0
    %v7306 = vsel %vm509, %v7271, 0
    %7308 = vmatprep.subr.mxu0 %v6974
    %7309 = vmatpush1.msra.mxu0 %v6972
    %7310 = vmatprep.subr.mxu0 %v6980
    %7311 = vmatpush1.msra.mxu0 %v6978
    %7312 = vmatprep.subr.mxu0 %v6986
    %7313 = vmatpush1.msra.mxu0 %v6984
    %7314 = vmatprep.subr.mxu0 %v6992
    %7315 = vmatpush1.msra.mxu0 %v6990
    %7316 = vmatprep.subr.mxu0 0.0
    %7317 = vmatpush1.msra.mxu0 0.0
    %7318 = vmatprep.subr.mxu0 0.0
    %7319 = vmatpush1.msra.mxu0 0.0
    %7320 = vmatprep.subr.mxu0 0.0
    %7321 = vmatpush1.msra.mxu0 0.0
    %7322 = vmatprep.subr.mxu0 0.0
    %7323 = vmatpush1.msra.mxu0 0.0
    %7324 = vmatprep.subr.mxu0 0.0
    %7325 = vmatpush1.msra.mxu0 0.0
    %7326 = vmatprep.subr.mxu0 0.0
    %7327 = vmatpush1.msra.mxu0 0.0
    %7328 = vmatprep.subr.mxu0 0.0
    %7329 = vmatpush1.msra.mxu0 0.0
    %7330 = vmatprep.subr.mxu0 0.0
    %7331 = vmatpush1.msra.mxu0 0.0
    %7332 = vmatprep.subr.mxu0 0.0
    %7333 = vmatpush1.msra.mxu0 0.0
    %7334 = vmatprep.subr.mxu0 0.0
    %7335 = vmatpush1.msra.mxu0 0.0
    %7336 = vmatprep.subr.mxu0 0.0
    %7337 = vmatpush1.msra.mxu0 0.0
    %7338 = vmatprep.subr.mxu0 0.0
    %7339 = vmatpush1.msra.mxu0 0.0
    %7340 = vmatprep.subr.mxu0 0.0
    %7341 = vmatpush1.msra.mxu0 0.0
    %7342 = vmatprep.subr.mxu0 0.0
    %7343 = vmatpush1.msra.mxu0 0.0
    %7344 = vmatprep.subr.mxu0 0.0
    %7345 = vmatpush1.msra.mxu0 0.0
    %7346 = vmatprep.subr.mxu0 0.0
    %7347 = vmatpush1.msra.mxu0 0.0
    %7348 = vmatprep.subr.mxu0 0.0
    %7349 = vmatpush1.msra.mxu0 0.0
    %7350 = vmatprep.subr.mxu0 0.0
    %7351 = vmatpush1.msra.mxu0 0.0
    %7352 = vmatprep.subr.mxu0 0.0
    %7353 = vmatpush1.msra.mxu0 0.0
    %7354 = vmatprep.subr.mxu0 0.0
    %7355 = vmatpush1.msra.mxu0 0.0
    %7356 = vmatprep.subr.mxu0 0.0
    %7357 = vmatpush1.msra.mxu0 0.0
    %7358 = vmatprep.subr.mxu0 0.0
    %7359 = vmatpush1.msra.mxu0 0.0
    %7360 = vmatprep.subr.mxu0 0.0
    %7361 = vmatpush1.msra.mxu0 0.0
    %7362 = vmatprep.subr.mxu0 0.0
    %7363 = vmatpush1.msra.mxu0 0.0
    %7364 = vmatprep.subr.mxu0 0.0
    %7365 = vmatpush1.msra.mxu0 0.0
    %7366 = vmatprep.subr.mxu0 0.0
    %7367 = vmatpush1.msra.mxu0 0.0
    %7368 = vmatprep.subr.mxu0 0.0
    %7369 = vmatpush1.msra.mxu0 0.0
    %7370 = vmatprep.subr.mxu0 0.0
    %7371 = vmatpush1.msra.mxu0 0.0
    %7372 = vmatprep.mubr.f32.mxu0 0.0
    %7373 = vmatmul.mubr.f32.gmra.mrb[0].mxu0 %v7297
    %v7374 = vpop.f32.mrb[0].mxu0
    %v7375 = vadd.f32 %v7279, %v7374
    %v7376 = vpop.f32.mrb[0].mxu0
    %v7377 = vadd.f32 %v7279, %v7376
    %7378 = vmatprep.mubr.f32.mxu0 0.0
    %7379 = vmatmul.mubr.f32.gmra.mrb[0].mxu0 %v7300
    %v7380 = vpop.f32.mrb[0].mxu0
    %v7381 = vadd.f32 %v7284, %v7380
    %v7382 = vpop.f32.mrb[0].mxu0
    %v7383 = vadd.f32 %v7284, %v7382
    %7384 = vmatprep.mubr.f32.mxu0 0.0
    %7385 = vmatmul.mubr.f32.gmra.mrb[0].mxu0 %v7303
    %v7386 = vpop.f32.mrb[0].mxu0
    %v7387 = vadd.f32 %v7289, %v7386
    %v7388 = vpop.f32.mrb[0].mxu0
    %v7389 = vadd.f32 %v7289, %v7388
    %7390 = vmatprep.mubr.f32.mxu0 0.0
    %7391 = vmatmul.mubr.f32.gmra.mrb[0].mxu0 %v7306
    %v7392 = vpop.f32.mrb[0].mxu0
    %v7393 = vadd.f32 %v7294, %v7392
    %v7394 = vpop.f32.mrb[0].mxu0
    %v7395 = vadd.f32 %v7294, %v7394
    %7396 = vdwg.mxu0
    %v7397 = vadd.f32 %v7375, %v3728
    %v7398 = vadd.f32 %v7377, %v3729
    %v7399 = vadd.f32 %v7381, %v3730
    %v7400 = vadd.f32 %v7383, %v3731
    %v7401 = vadd.f32 %v7387, %v3732
    %v7402 = vadd.f32 %v7389, %v3733
    %v7403 = vadd.f32 %v7393, %v3734
    %v7404 = vadd.f32 %v7395, %v3735
    %v7405 = vld [vmem:[%s14] sm:$0xff]
    %v7406 = vld [vmem:[%s14 + $0x8] sm:$0xff]
    %v7407 = vld [vmem:[%s14 + $0x10] sm:$0xff]
    %v7408 = vld [vmem:[%s14 + $0x18] sm:$0xff]
    %v7409 = vld [vmem:[%s15] sm:$0xff]
    %v7410 = vld [vmem:[%s15 + $0x8] sm:$0xff]
    %v7411 = vld [vmem:[%s15 + $0x10] sm:$0xff]
    %v7412 = vld [vmem:[%s15 + $0x18] sm:$0xff]
    %7414 = vset.pattern.permute.xlu0 0
    %7415 = vperm.xlu0 %7414, %v7409
    %v7416 = vpop.permute.xlu0 %7415
    %7419 = vset.pattern.permute.xlu0 0
    %7420 = vperm.xlu0 %7419, %v7410
    %v7421 = vpop.permute.xlu0 %7420
    %7424 = vset.pattern.permute.xlu0 0
    %7425 = vperm.xlu0 %7424, %v7411
    %v7426 = vpop.permute.xlu0 %7425
    %7429 = vset.pattern.permute.xlu0 0
    %7430 = vperm.xlu0 %7429, %v7412
    %v7431 = vpop.permute.xlu0 %7430
    %v7434 = vsel %vm509, %v7405, 0
    %v7437 = vsel %vm509, %v7406, 0
    %v7440 = vsel %vm509, %v7407, 0
    %v7443 = vsel %vm509, %v7408, 0
    %7445 = vmatprep.subr.mxu0 %v7398
    %7446 = vmatpush1.msra.mxu0 %v7397
    %7447 = vmatprep.subr.mxu0 %v7400
    %7448 = vmatpush1.msra.mxu0 %v7399
    %7449 = vmatprep.subr.mxu0 %v7402
    %7450 = vmatpush1.msra.mxu0 %v7401
    %7451 = vmatprep.subr.mxu0 %v7404
    %7452 = vmatpush1.msra.mxu0 %v7403
    %7453 = vmatprep.subr.mxu0 0.0
    %7454 = vmatpush1.msra.mxu0 0.0
    %7455 = vmatprep.subr.mxu0 0.0
    %7456 = vmatpush1.msra.mxu0 0.0
    %7457 = vmatprep.subr.mxu0 0.0
    %7458 = vmatpush1.msra.mxu0 0.0
    %7459 = vmatprep.subr.mxu0 0.0
    %7460 = vmatpush1.msra.mxu0 0.0
    %7461 = vmatprep.subr.mxu0 0.0
    %7462 = vmatpush1.msra.mxu0 0.0
    %7463 = vmatprep.subr.mxu0 0.0
    %7464 = vmatpush1.msra.mxu0 0.0
    %7465 = vmatprep.subr.mxu0 0.0
    %7466 = vmatpush1.msra.mxu0 0.0
    %7467 = vmatprep.subr.mxu0 0.0
    %7468 = vmatpush1.msra.mxu0 0.0
    %7469 = vmatprep.subr.mxu0 0.0
    %7470 = vmatpush1.msra.mxu0 0.0
    %7471 = vmatprep.subr.mxu0 0.0
    %7472 = vmatpush1.msra.mxu0 0.0
    %7473 = vmatprep.subr.mxu0 0.0
    %7474 = vmatpush1.msra.mxu0 0.0
    %7475 = vmatprep.subr.mxu0 0.0
    %7476 = vmatpush1.msra.mxu0 0.0
    %7477 = vmatprep.subr.mxu0 0.0
    %7478 = vmatpush1.msra.mxu0 0.0
    %7479 = vmatprep.subr.mxu0 0.0
    %7480 = vmatpush1.msra.mxu0 0.0
    %7481 = vmatprep.subr.mxu0 0.0
    %7482 = vmatpush1.msra.mxu0 0.0
    %7483 = vmatprep.subr.mxu0 0.0
    %7484 = vmatpush1.msra.mxu0 0.0
    %7485 = vmatprep.subr.mxu0 0.0
    %7486 = vmatpush1.msra.mxu0 0.0
    %7487 = vmatprep.subr.mxu0 0.0
    %7488 = vmatpush1.msra.mxu0 0.0
    %7489 = vmatprep.subr.mxu0 0.0
    %7490 = vmatpush1.msra.mxu0 0.0
    %7491 = vmatprep.subr.mxu0 0.0
    %7492 = vmatpush1.msra.mxu0 0.0
    %7493 = vmatprep.subr.mxu0 0.0
    %7494 = vmatpush1.msra.mxu0 0.0
    %7495 = vmatprep.subr.mxu0 0.0
    %7496 = vmatpush1.msra.mxu0 0.0
    %7497 = vmatprep.subr.mxu0 0.0
    %7498 = vmatpush1.msra.mxu0 0.0
    %7499 = vmatprep.subr.mxu0 0.0
    %7500 = vmatpush1.msra.mxu0 0.0
    %7501 = vmatprep.subr.mxu0 0.0
    %7502 = vmatpush1.msra.mxu0 0.0
    %7503 = vmatprep.subr.mxu0 0.0
    %7504 = vmatpush1.msra.mxu0 0.0
    %7505 = vmatprep.subr.mxu0 0.0
    %7506 = vmatpush1.msra.mxu0 0.0
    %7507 = vmatprep.subr.mxu0 0.0
    %7508 = vmatpush1.msra.mxu0 0.0
    %7509 = vmatprep.mubr.f32.mxu0 0.0
    %7510 = vmatmul.mubr.f32.gmra.mrb[0].mxu0 %v7434
    %v7511 = vpop.f32.mrb[0].mxu0
    %v7512 = vadd.f32 %v7416, %v7511
    %v7513 = vpop.f32.mrb[0].mxu0
    %v7514 = vadd.f32 %v7416, %v7513
    %7515 = vmatprep.mubr.f32.mxu0 0.0
    %7516 = vmatmul.mubr.f32.gmra.mrb[0].mxu0 %v7437
    %v7517 = vpop.f32.mrb[0].mxu0
    %v7518 = vadd.f32 %v7421, %v7517
    %v7519 = vpop.f32.mrb[0].mxu0
    %v7520 = vadd.f32 %v7421, %v7519
    %7521 = vmatprep.mubr.f32.mxu0 0.0
    %7522 = vmatmul.mubr.f32.gmra.mrb[0].mxu0 %v7440
    %v7523 = vpop.f32.mrb[0].mxu0
    %v7524 = vadd.f32 %v7426, %v7523
    %v7525 = vpop.f32.mrb[0].mxu0
    %v7526 = vadd.f32 %v7426, %v7525
    %7527 = vmatprep.mubr.f32.mxu0 0.0
    %7528 = vmatmul.mubr.f32.gmra.mrb[0].mxu0 %v7443
    %v7529 = vpop.f32.mrb[0].mxu0
    %v7530 = vadd.f32 %v7431, %v7529
    %v7531 = vpop.f32.mrb[0].mxu0
    %v7532 = vadd.f32 %v7431, %v7531
    %7533 = vdwg.mxu0
    %s7534 = scalar_lea.vmem %s19, 64
    %7535 = vst [vmem:[%s7534] sm:$0xff] %v7512
    %7536 = vst [vmem:[%s7534 + $0x8] sm:$0xff] %v7514
    %7537 = vst [vmem:[%s7534 + $0x10] sm:$0xff] %v7518
    %7538 = vst [vmem:[%s7534 + $0x18] sm:$0xff] %v7520
    %7539 = vst [vmem:[%s7534 + $0x20] sm:$0xff] %v7524
    %7540 = vst [vmem:[%s7534 + $0x28] sm:$0xff] %v7526
    %7541 = vst [vmem:[%s7534 + $0x30] sm:$0xff] %v7530
    %7542 = vst [vmem:[%s7534 + $0x38] sm:$0xff] %v7532
    // Predicated region
    $region82: #{fga_forward_pallas.1} parent=1 // pred_check
      _
    $region83: #{fga_forward_pallas.1} parent=1 // pred_check_branch
      %7544 = sbr.rel (0) target = $region85
    $region84: #{fga_forward_pallas.1} parent=1 // pred_region
      _
    $region85: #{fga_forward_pallas.1} parent=1 // pred_fallthru
      _
    // Predicated region
    $region86: #{fga_forward_pallas.1} parent=1 // pred_check
      _
    $region87: #{fga_forward_pallas.1} parent=1 // pred_check_branch
      %7546 = sbr.rel (0) target = $region89
    $region88: #{fga_forward_pallas.1} parent=1 // pred_region
      _
    $region89: #{fga_forward_pallas.1} parent=1 // pred_fallthru
      _
    %7547 = vsyncpa [#allocation3], 1

</llo_original>
